<compile_context>
chip_gen: v6e
topology: v6e:2x2x1
jax: 0.10.0
libtpu: 0.0.40
codegen_flags: <defaults>
</compile_context>

<pallas_src>
import functools

import numpy as np

import jax
import jax.numpy as jnp
from jax.experimental import pallas as pl
from jax.experimental.pallas import tpu as pltpu


# ============================================================================
# Pallas kernels
# ============================================================================
def _unet_conv3_block_kernel(x_ref, w1_ref, b1_ref, w2_ref, b2_ref, o_ref,
                             xp1_ref, xp2_ref, *, D, H):
    """Fused UnetConv3 block: (3x3x3 conv + folded-BN + ReLU) x 2.

    Layout: rows = D*H (one row per (d, h) line), lanes = W*C.  The kw taps of
    the 3x3x3 kernel are baked into block-banded (W*Cin, W*Cout) weights, so
    each conv is 9 row-shifted matmuls accumulated in f32.  The intermediate
    feature map of the block stays in VMEM.
    """
    M = D * H
    P = H + 1                      # zero-pad rows on each side of the tile

    wc_in = x_ref.shape[-1]
    wc_mid = w1_ref.shape[-1]
    wc_out = w2_ref.shape[-1]

    # h coordinate of every output row (row r = d*H + h).  Only the two
    # H-boundary taps need masking; D-boundary taps read the zero padding.
    r_idx = jax.lax.broadcasted_iota(jnp.int32, (M, 1), 0)
    if (H & (H - 1)) == 0:         # power-of-two H (always true in this demo)
        h_pos = jnp.bitwise_and(r_idx, H - 1)
    else:
        h_pos = jax.lax.rem(r_idx, H)
    keep_top = h_pos > 0           # tap kh=0 needs h-1 >= 0
    keep_bot = h_pos < (H - 1)     # tap kh=2 needs h+1 <  H

    def conv3x3x3(xp_ref, w_ref, b_ref, n_out):
        acc = jnp.zeros((M, n_out), jnp.float32)
        for kd in range(3):
            for kh in range(3):
                tap = kd * 3 + kh
                off = (kd - 1) * H + (kh - 1)
                lhs = xp_ref[pl.ds(P + off, M), :]
                contrib = jnp.dot(lhs, w_ref[tap],
                                  preferred_element_type=jnp.float32)
                if kh == 0:
                    contrib = jnp.where(keep_top, contrib, 0.0)
                elif kh == 2:
                    contrib = jnp.where(keep_bot, contrib, 0.0)
                acc = acc + contrib
        # folded BatchNorm shift (includes conv bias), then ReLU
        return jnp.maximum(acc + b_ref[...], 0.0)

    # ---- conv #1: zero-pad into VMEM scratch, 9-tap accumulation -----------
    xp1_ref[pl.ds(0, P), :] = jnp.zeros((P, wc_in), xp1_ref.dtype)
    xp1_ref[pl.ds(P + M, P), :] = jnp.zeros((P, wc_in), xp1_ref.dtype)
    xp1_ref[pl.ds(P, M), :] = x_ref[...]
    y = conv3x3x3(xp1_ref, w1_ref, b1_ref, wc_mid)

    # ---- conv #2 (fused; intermediate never leaves VMEM) -------------------
    xp2_ref[pl.ds(0, P), :] = jnp.zeros((P, wc_mid), xp2_ref.dtype)
    xp2_ref[pl.ds(P + M, P), :] = jnp.zeros((P, wc_mid), xp2_ref.dtype)
    xp2_ref[pl.ds(P, M), :] = y.astype(xp2_ref.dtype)
    o_ref[...] = conv3x3x3(xp2_ref, w2_ref, b2_ref, wc_out).astype(o_ref.dtype)


def _final_conv_softmax_kernel(x_ref, w_ref, b_ref, o_ref):
    # x_ref: (C0, tm) bf16, w_ref: (ncls, C0) bf16, b_ref: (ncls, 1) f32.
    # Class-major layout keeps the voxel axis in lanes -> lane-dense store.
    logits = jnp.dot(w_ref[...], x_ref[...], preferred_element_type=jnp.float32)
    logits = logits + b_ref[...]
    m = jnp.max(logits, axis=0, keepdims=True)
    e = jnp.exp(logits - m)
    o_ref[...] = e / jnp.sum(e, axis=0, keepdims=True)


# ============================================================================
# pallas_call wrappers
# ============================================================================
def unet_conv3_block(x, blk, *, D, H):
    """x: (N, D*H, W*Cin) bf16 -> (N, D*H, W*Cout) bf16, one fused pallas_call."""
    N, M, wc_in = x.shape
    assert M == D * H
    w1, b1, w2, b2 = blk["w1"], blk["b1"], blk["w2"], blk["b2"]
    wc_mid = w1.shape[-1]
    wc_out = w2.shape[-1]
    P = H + 1
    kernel = functools.partial(_unet_conv3_block_kernel, D=D, H=H)
    return pl.pallas_call(
        kernel,
        out_shape=jax.ShapeDtypeStruct((N, M, wc_out), jnp.bfloat16),
        grid=(N,),
        in_specs=[
            pl.BlockSpec((None, M, wc_in), lambda n: (n, 0, 0)),
            pl.BlockSpec((9, wc_in, wc_mid), lambda n: (0, 0, 0)),
            pl.BlockSpec((1, wc_mid), lambda n: (0, 0)),
            pl.BlockSpec((9, wc_mid, wc_out), lambda n: (0, 0, 0)),
            pl.BlockSpec((1, wc_out), lambda n: (0, 0)),
        ],
        out_specs=pl.BlockSpec((None, M, wc_out), lambda n: (n, 0, 0)),
        scratch_shapes=[
            pltpu.VMEM((M + 2 * P, wc_in), jnp.bfloat16),
            pltpu.VMEM((M + 2 * P, wc_mid), jnp.bfloat16),
        ],
        compiler_params=pltpu.CompilerParams(
            dimension_semantics=("parallel",),   # batch shards across TCs (v7x)
        ),
    )(x, w1, b1, w2, b2)


def final_conv_softmax(xT, w, b, *, tile=512):
    """xT: (C0, Mtot) bf16 -> (ncls, Mtot) f32 softmax over the class axis."""
    c0, mtot = xT.shape
    ncls = w.shape[0]
    tm = min(tile, mtot)
    pad = (-mtot) % tm
    if pad:
        xT = jnp.pad(xT, ((0, 0), (0, pad)))
    mp = mtot + pad
    out = pl.pallas_call(
        _final_conv_softmax_kernel,
        out_shape=jax.ShapeDtypeStruct((ncls, mp), jnp.float32),
        grid=(mp // tm,),
        in_specs=[
            pl.BlockSpec((c0, tm), lambda i: (0, i)),
            pl.BlockSpec((ncls, c0), lambda i: (0, 0)),
            pl.BlockSpec((ncls, 1), lambda i: (0, 0)),
        ],
        out_specs=pl.BlockSpec((ncls, tm), lambda i: (0, i)),
        compiler_params=pltpu.CompilerParams(
            dimension_semantics=("parallel",),
        ),
    )(xT, w, b)
    return out[:, :mtot]


# ============================================================================
# Glue (data movement only)
# ============================================================================
def maxpool3d_2x(x5):
    n, d, h, w, c = x5.shape
    return x5.reshape(n, d // 2, 2, h // 2, 2, w // 2, 2, c).max(axis=(2, 4, 6))


def upsample_trilinear_2x(x5):
    n, d, h, w, c = x5.shape
    # matches nn.Upsample(scale_factor=2, mode='trilinear', align_corners=False)
    y = jax.image.resize(x5.astype(jnp.float32), (n, 2 * d, 2 * h, 2 * w, c),
                         method="trilinear")
    return y.astype(x5.dtype)


def _run_block(x5, blk):
    n, d, h, w, c = x5.shape
    y = unet_conv3_block(x5.reshape(n, d * h, w * c), blk, D=d, H=h)
    return y.reshape(n, d, h, w, blk["cout"])


def unet3d_forward(x_ncdhw, params):
    """x: (N, Cin, D, H, W) f32 -> (N, n_classes, D, H, W) f32 softmax probs."""
    x5 = jnp.transpose(x_ncdhw, (0, 2, 3, 4, 1)).astype(jnp.bfloat16)

    c1 = _run_block(x5, params["conv1"])
    c2 = _run_block(maxpool3d_2x(c1), params["conv2"])
    c3 = _run_block(maxpool3d_2x(c2), params["conv3"])
    c4 = _run_block(maxpool3d_2x(c3), params["conv4"])
    center = _run_block(maxpool3d_2x(c4), params["center"])

    def up(skip5, below5, blk):
        cat5 = jnp.concatenate([skip5, upsample_trilinear_2x(below5)], axis=-1)
        return _run_block(cat5, blk)

    u4 = up(c4, center, params["up4"])
    u3 = up(c3, u4, params["up3"])
    u2 = up(c2, u3, params["up2"])
    u1 = up(c1, u2, params["up1"])

    # final 1x1x1 conv + softmax over classes, class-major (voxels in lanes)
    n, d, h, w, c0 = u1.shape
    xT = jnp.transpose(u1, (4, 0, 1, 2, 3)).reshape(c0, n * d * h * w)
    y = final_conv_softmax(xT, params["final_w"], params["final_b"])
    y = y.reshape(y.shape[0], n, d, h, w)
    return jnp.transpose(y, (1, 0, 2, 3, 4))


# ============================================================================
# Parameter construction (synthetic, kaiming-ish; BN in inference mode)
# ============================================================================
def _expand_kw_banded(w_full, width):
    """(3,3,3,Cin,Cout) -> (9, W*Cin, W*Cout): fold the kw taps of the conv into
    a block-banded matrix so the W axis can live in the TPU lane dimension."""
    _, _, _, cin, cout = w_full.shape
    e = np.zeros((9, width * cin, width * cout), np.float32)
    for kd in range(3):
        for kh in range(3):
            tap = kd * 3 + kh
            for kw in range(3):
                for wo in range(width):
                    wi = wo + kw - 1
                    if 0 <= wi < width:
                        e[tap, wi * cin:(wi + 1) * cin,
                          wo * cout:(wo + 1) * cout] = w_full[kd, kh, kw]
    return e


def _init_conv_bn(key, cin, cout, width):
    k_w, k_g = jax.random.split(key)
    fan_in = 27 * cin
    w = jax.random.normal(k_w, (3, 3, 3, cin, cout), jnp.float32)
    w = w * np.sqrt(2.0 / fan_in)
    conv_bias = jnp.zeros((cout,), jnp.float32)
    gamma = 1.0 + 0.02 * jax.random.normal(k_g, (cout,), jnp.float32)
    beta = jnp.zeros((cout,), jnp.float32)
    running_mean = jnp.zeros((cout,), jnp.float32)
    running_var = jnp.ones((cout,), jnp.float32)
    eps = 1e-5
    scale = gamma / jnp.sqrt(running_var + eps)
    shift = (conv_bias - running_mean) * scale + beta
    # fold BN scale into the weight columns; only the shift remains as a bias
    w_folded = np.asarray(w * scale[None, None, None, None, :], np.float32)
    w_banded = jnp.asarray(_expand_kw_banded(w_folded, width), jnp.bfloat16)
    b_tiled = jnp.tile(shift, width).reshape(1, width * cout).astype(jnp.float32)
    return w_banded, b_tiled, jnp.asarray(w_folded), shift


def _init_block(key, cin, cout, width):
    k1, k2 = jax.random.split(key)
    w1, b1, w1_full, s1 = _init_conv_bn(k1, cin, cout, width)
    w2, b2, w2_full, s2 = _init_conv_bn(k2, cout, cout, width)
    return dict(w1=w1, b1=b1, w2=w2, b2=b2, cout=cout,
                ref=dict(w1=w1_full, b1=s1, w2=w2_full, b2=s2))


def init_params(key, in_channels, filters, n_classes, width):
    keys = jax.random.split(key, 11)
    f = filters
    p = {
        "conv1":  _init_block(keys[0], in_channels, f[0], width),
        "conv2":  _init_block(keys[1], f[0], f[1], width // 2),
        "conv3":  _init_block(keys[2], f[1], f[2], width // 4),
        "conv4":  _init_block(keys[3], f[2], f[3], width // 8),
        "center": _init_block(keys[4], f[3], f[4], width // 16),
        "up4":    _init_block(keys[5], f[4] + f[3], f[3], width // 8),
        "up3":    _init_block(keys[6], f[3] + f[2], f[2], width // 4),
        "up2":    _init_block(keys[7], f[2] + f[1], f[1], width // 2),
        "up1":    _init_block(keys[8], f[1] + f[0], f[0], width),
    }
    fw = jax.random.normal(keys[9], (n_classes, f[0]), jnp.float32)
    fw = fw * np.sqrt(2.0 / f[0])
    fb = 0.01 * jax.random.normal(keys[10], (n_classes, 1), jnp.float32)
    p["final_w"] = fw.astype(jnp.bfloat16)
    p["final_b"] = fb
    return p


# ============================================================================
# Pure-JAX reference for one block (correctness probe)
# ============================================================================
def _ref_unet_conv3_block(x5_f32, ref):
    def conv(x, w, b):
        w = w.astype(jnp.bfloat16).astype(jnp.float32)   # match bf16 weights
        y = jax.lax.conv_general_dilated(
            x, w, window_strides=(1, 1, 1),
            padding=((1, 1), (1, 1), (1, 1)),
            dimension_numbers=("NDHWC", "DHWIO", "NDHWC"))
        return jnp.maximum(y + b, 0.0)
    y = conv(x5_f32, ref["w1"], ref["b1"])
    return conv(y, ref["w2"], ref["b2"])


# ============================================================================
# Main
# ============================================================================
if __name__ == "__main__":
    key = jax.random.PRNGKey(0)
    k_params, k_x = jax.random.split(key)

    in_channels = 4
    filters = (8, 16, 32, 32, 64)      # small synthetic widths (5 levels)
    n_classes = 4
    N, D, H, W = 2, 16, 16, 16          # spatial divisible by 2**4

    params = init_params(k_params, in_channels, filters, n_classes, W)
    X = jax.random.normal(k_x, (N, in_channels, D, H, W), jnp.float32)

    # --- correctness probe: fused Pallas block vs lax.conv reference --------
    x5 = jnp.transpose(X, (0, 2, 3, 4, 1)).astype(jnp.bfloat16)
    c1_pallas = _run_block(x5, params["conv1"]).astype(jnp.float32)
    c1_ref = _ref_unet_conv3_block(x5.astype(jnp.float32), params["conv1"]["ref"])
    assert jnp.allclose(c1_pallas, c1_ref, rtol=5e-2, atol=1e-1), (
        float(jnp.max(jnp.abs(c1_pallas - c1_ref))))

    # --- full forward --------------------------------------------------------
    fwd = jax.jit(functools.partial(unet3d_forward, params=params))
    Y = jax.block_until_ready(fwd(X))

    assert Y.shape == (N, n_classes, D, H, W), Y.shape
    sums = jnp.sum(Y, axis=1)                 # softmax over classes sums to 1
    assert jnp.allclose(sums, jnp.ones_like(sums), atol=1e-4), (
        float(jnp.max(jnp.abs(sums - 1.0))))
    print("KERNEL_OK")
</pallas_src>

<mosaic_0001>
module attributes {stable_mosaic.version = 11 : i64} {
  func.func @_unet_conv3_block_kernel(%arg0: i32, %arg1: memref<1x256x64xbf16, #tpu.memory_space<vmem>>, %arg2: memref<9x64x128xbf16, #tpu.memory_space<vmem>>, %arg3: memref<1x128xf32, #tpu.memory_space<vmem>>, %arg4: memref<9x128x128xbf16, #tpu.memory_space<vmem>>, %arg5: memref<1x128xf32, #tpu.memory_space<vmem>>, %arg6: memref<1x256x128xbf16, #tpu.memory_space<vmem>>, %arg7: memref<290x64xbf16, #tpu.memory_space<vmem>>, %arg8: memref<290x128xbf16, #tpu.memory_space<vmem>>) attributes {dimension_semantics = [#tpu.dimension_semantics<parallel>], iteration_bounds = array<i64: 2>, scalar_prefetch = 0 : i64, scratch_operands = 2 : i64, tpu.core_type = #tpu.core_type<tc>, window_params = [{transform_indices = @transform_0, window_bounds = array<i64: 1, 256, 64>}, {pipeline_mode = #tpu.pipeline_mode<synchronous>, transform_indices = @transform_1, window_bounds = array<i64: 9, 64, 128>}, {pipeline_mode = #tpu.pipeline_mode<synchronous>, transform_indices = @transform_2, window_bounds = array<i64: 1, 128>}, {pipeline_mode = #tpu.pipeline_mode<synchronous>, transform_indices = @transform_3, window_bounds = array<i64: 9, 128, 128>}, {pipeline_mode = #tpu.pipeline_mode<synchronous>, transform_indices = @transform_4, window_bounds = array<i64: 1, 128>}, {transform_indices = @transform_5, window_bounds = array<i64: 1, 256, 128>}]} {
    %0 = tpu.iota {dimensions = array<i32: 0>} : vector<256x1xi32>
    %c15_i32 = arith.constant 15 : i32
    %1 = vector.broadcast %c15_i32 : i32 to vector<256x1xi32>
    %2 = arith.andi %0, %1 : vector<256x1xi32>
    %c0_i32 = arith.constant 0 : i32
    %3 = vector.broadcast %c0_i32 : i32 to vector<256x1xi32>
    %4 = arith.cmpi sgt, %2, %3 : vector<256x1xi32>
    %c15_i32_0 = arith.constant 15 : i32
    %5 = vector.broadcast %c15_i32_0 : i32 to vector<256x1xi32>
    %6 = arith.cmpi slt, %2, %5 : vector<256x1xi32>
    %cst = arith.constant 0.000000e+00 : bf16
    %7 = vector.broadcast %cst : bf16 to vector<17x64xbf16>
    %c0 = arith.constant 0 : index
    %c0_1 = arith.constant 0 : index
    %8 = vector.load %arg7[%c0, %c0_1] : memref<290x64xbf16, #tpu.memory_space<vmem>>, vector<17x64xbf16>
    tpu.vector_store %arg7[%c0, %c0_1], %7 {strides = array<i32>} : memref<290x64xbf16, #tpu.memory_space<vmem>>, vector<17x64xbf16>,
    %cst_2 = arith.constant 0.000000e+00 : bf16
    %9 = vector.broadcast %cst_2 : bf16 to vector<17x64xbf16>
    %c273 = arith.constant 273 : index
    %c0_3 = arith.constant 0 : index
    %10 = vector.load %arg7[%c273, %c0_3] : memref<290x64xbf16, #tpu.memory_space<vmem>>, vector<17x64xbf16>
    tpu.vector_store %arg7[%c273, %c0_3], %9 {strides = array<i32>} : memref<290x64xbf16, #tpu.memory_space<vmem>>, vector<17x64xbf16>,
    %c0_4 = arith.constant 0 : index
    %c0_5 = arith.constant 0 : index
    %c0_6 = arith.constant 0 : index
    %11 = vector.load %arg1[%c0_4, %c0_5, %c0_6] : memref<1x256x64xbf16, #tpu.memory_space<vmem>>, vector<1x256x64xbf16>
    %12 = vector.shape_cast %11 : vector<1x256x64xbf16> to vector<256x64xbf16>
    %c17 = arith.constant 17 : index
    %c0_7 = arith.constant 0 : index
    %13 = vector.load %arg7[%c17, %c0_7] : memref<290x64xbf16, #tpu.memory_space<vmem>>, vector<256x64xbf16>
    tpu.vector_store %arg7[%c17, %c0_7], %12 {strides = array<i32>} : memref<290x64xbf16, #tpu.memory_space<vmem>>, vector<256x64xbf16>,
    %cst_8 = arith.constant 0.000000e+00 : f32
    %14 = vector.broadcast %cst_8 : f32 to vector<256x128xf32>
    %c0_9 = arith.constant 0 : index
    %c0_10 = arith.constant 0 : index
    %15 = vector.load %arg7[%c0_9, %c0_10] : memref<290x64xbf16, #tpu.memory_space<vmem>>, vector<256x64xbf16>
    %c0_11 = arith.constant 0 : index
    %c0_12 = arith.constant 0 : index
    %c0_13 = arith.constant 0 : index
    %16 = vector.load %arg2[%c0_11, %c0_12, %c0_13] : memref<9x64x128xbf16, #tpu.memory_space<vmem>>, vector<1x64x128xbf16>
    %17 = vector.shape_cast %16 : vector<1x64x128xbf16> to vector<64x128xbf16>
    %cst_14 = arith.constant dense<0.000000e+00> : vector<256x128xf32>
    %18 = tpu.matmul %15, %17, %cst_14 {dimension_numbers = #tpu.dot_dimension_numbers<[1], [0], [0], [1], [0, 0, 1, 1], [], []>} : vector<256x64xbf16>, vector<64x128xbf16>, vector<256x128xf32> -> vector<256x128xf32>
    %cst_15 = arith.constant 0.000000e+00 : f32
    %19 = vector.shape_cast %4 : vector<256x1xi1> to vector<256x1xi1>
    %20 = vector.broadcast %19 : vector<256x1xi1> to vector<256x128xi1>
    %21 = vector.broadcast %cst_15 : f32 to vector<256x128xf32>
    %22 = arith.select %20, %18, %21 : vector<256x128xi1>, vector<256x128xf32>
    %23 = arith.addf %14, %22 : vector<256x128xf32>
    %c1 = arith.constant 1 : index
    %c0_16 = arith.constant 0 : index
    %24 = vector.load %arg7[%c1, %c0_16] : memref<290x64xbf16, #tpu.memory_space<vmem>>, vector<256x64xbf16>
    %c1_17 = arith.constant 1 : index
    %c0_18 = arith.constant 0 : index
    %c0_19 = arith.constant 0 : index
    %25 = vector.load %arg2[%c1_17, %c0_18, %c0_19] : memref<9x64x128xbf16, #tpu.memory_space<vmem>>, vector<1x64x128xbf16>
    %26 = vector.shape_cast %25 : vector<1x64x128xbf16> to vector<64x128xbf16>
    %cst_20 = arith.constant dense<0.000000e+00> : vector<256x128xf32>
    %27 = tpu.matmul %24, %26, %cst_20 {dimension_numbers = #tpu.dot_dimension_numbers<[1], [0], [0], [1], [0, 0, 1, 1], [], []>} : vector<256x64xbf16>, vector<64x128xbf16>, vector<256x128xf32> -> vector<256x128xf32>
    %28 = arith.addf %23, %27 : vector<256x128xf32>
    %c2 = arith.constant 2 : index
    %c0_21 = arith.constant 0 : index
    %29 = vector.load %arg7[%c2, %c0_21] : memref<290x64xbf16, #tpu.memory_space<vmem>>, vector<256x64xbf16>
    %c2_22 = arith.constant 2 : index
    %c0_23 = arith.constant 0 : index
    %c0_24 = arith.constant 0 : index
    %30 = vector.load %arg2[%c2_22, %c0_23, %c0_24] : memref<9x64x128xbf16, #tpu.memory_space<vmem>>, vector<1x64x128xbf16>
    %31 = vector.shape_cast %30 : vector<1x64x128xbf16> to vector<64x128xbf16>
    %cst_25 = arith.constant dense<0.000000e+00> : vector<256x128xf32>
    %32 = tpu.matmul %29, %31, %cst_25 {dimension_numbers = #tpu.dot_dimension_numbers<[1], [0], [0], [1], [0, 0, 1, 1], [], []>} : vector<256x64xbf16>, vector<64x128xbf16>, vector<256x128xf32> -> vector<256x128xf32>
    %cst_26 = arith.constant 0.000000e+00 : f32
    %33 = vector.shape_cast %6 : vector<256x1xi1> to vector<256x1xi1>
    %34 = vector.broadcast %33 : vector<256x1xi1> to vector<256x128xi1>
    %35 = vector.broadcast %cst_26 : f32 to vector<256x128xf32>
    %36 = arith.select %34, %32, %35 : vector<256x128xi1>, vector<256x128xf32>
    %37 = arith.addf %28, %36 : vector<256x128xf32>
    %c16 = arith.constant 16 : index
    %c0_27 = arith.constant 0 : index
    %38 = vector.load %arg7[%c16, %c0_27] : memref<290x64xbf16, #tpu.memory_space<vmem>>, vector<256x64xbf16>
    %c3 = arith.constant 3 : index
    %c0_28 = arith.constant 0 : index
    %c0_29 = arith.constant 0 : index
    %39 = vector.load %arg2[%c3, %c0_28, %c0_29] : memref<9x64x128xbf16, #tpu.memory_space<vmem>>, vector<1x64x128xbf16>
    %40 = vector.shape_cast %39 : vector<1x64x128xbf16> to vector<64x128xbf16>
    %cst_30 = arith.constant dense<0.000000e+00> : vector<256x128xf32>
    %41 = tpu.matmul %38, %40, %cst_30 {dimension_numbers = #tpu.dot_dimension_numbers<[1], [0], [0], [1], [0, 0, 1, 1], [], []>} : vector<256x64xbf16>, vector<64x128xbf16>, vector<256x128xf32> -> vector<256x128xf32>
    %cst_31 = arith.constant 0.000000e+00 : f32
    %42 = vector.shape_cast %4 : vector<256x1xi1> to vector<256x1xi1>
    %43 = vector.broadcast %42 : vector<256x1xi1> to vector<256x128xi1>
    %44 = vector.broadcast %cst_31 : f32 to vector<256x128xf32>
    %45 = arith.select %43, %41, %44 : vector<256x128xi1>, vector<256x128xf32>
    %46 = arith.addf %37, %45 : vector<256x128xf32>
    %c17_32 = arith.constant 17 : index
    %c0_33 = arith.constant 0 : index
    %47 = vector.load %arg7[%c17_32, %c0_33] : memref<290x64xbf16, #tpu.memory_space<vmem>>, vector<256x64xbf16>
    %c4 = arith.constant 4 : index
    %c0_34 = arith.constant 0 : index
    %c0_35 = arith.constant 0 : index
    %48 = vector.load %arg2[%c4, %c0_34, %c0_35] : memref<9x64x128xbf16, #tpu.memory_space<vmem>>, vector<1x64x128xbf16>
    %49 = vector.shape_cast %48 : vector<1x64x128xbf16> to vector<64x128xbf16>
    %cst_36 = arith.constant dense<0.000000e+00> : vector<256x128xf32>
    %50 = tpu.matmul %47, %49, %cst_36 {dimension_numbers = #tpu.dot_dimension_numbers<[1], [0], [0], [1], [0, 0, 1, 1], [], []>} : vector<256x64xbf16>, vector<64x128xbf16>, vector<256x128xf32> -> vector<256x128xf32>
    %51 = arith.addf %46, %50 : vector<256x128xf32>
    %c18 = arith.constant 18 : index
    %c0_37 = arith.constant 0 : index
    %52 = vector.load %arg7[%c18, %c0_37] : memref<290x64xbf16, #tpu.memory_space<vmem>>, vector<256x64xbf16>
    %c5 = arith.constant 5 : index
    %c0_38 = arith.constant 0 : index
    %c0_39 = arith.constant 0 : index
    %53 = vector.load %arg2[%c5, %c0_38, %c0_39] : memref<9x64x128xbf16, #tpu.memory_space<vmem>>, vector<1x64x128xbf16>
    %54 = vector.shape_cast %53 : vector<1x64x128xbf16> to vector<64x128xbf16>
    %cst_40 = arith.constant dense<0.000000e+00> : vector<256x128xf32>
    %55 = tpu.matmul %52, %54, %cst_40 {dimension_numbers = #tpu.dot_dimension_numbers<[1], [0], [0], [1], [0, 0, 1, 1], [], []>} : vector<256x64xbf16>, vector<64x128xbf16>, vector<256x128xf32> -> vector<256x128xf32>
    %cst_41 = arith.constant 0.000000e+00 : f32
    %56 = vector.shape_cast %6 : vector<256x1xi1> to vector<256x1xi1>
    %57 = vector.broadcast %56 : vector<256x1xi1> to vector<256x128xi1>
    %58 = vector.broadcast %cst_41 : f32 to vector<256x128xf32>
    %59 = arith.select %57, %55, %58 : vector<256x128xi1>, vector<256x128xf32>
    %60 = arith.addf %51, %59 : vector<256x128xf32>
    %c32 = arith.constant 32 : index
    %c0_42 = arith.constant 0 : index
    %61 = vector.load %arg7[%c32, %c0_42] : memref<290x64xbf16, #tpu.memory_space<vmem>>, vector<256x64xbf16>
    %c6 = arith.constant 6 : index
    %c0_43 = arith.constant 0 : index
    %c0_44 = arith.constant 0 : index
    %62 = vector.load %arg2[%c6, %c0_43, %c0_44] : memref<9x64x128xbf16, #tpu.memory_space<vmem>>, vector<1x64x128xbf16>
    %63 = vector.shape_cast %62 : vector<1x64x128xbf16> to vector<64x128xbf16>
    %cst_45 = arith.constant dense<0.000000e+00> : vector<256x128xf32>
    %64 = tpu.matmul %61, %63, %cst_45 {dimension_numbers = #tpu.dot_dimension_numbers<[1], [0], [0], [1], [0, 0, 1, 1], [], []>} : vector<256x64xbf16>, vector<64x128xbf16>, vector<256x128xf32> -> vector<256x128xf32>
    %cst_46 = arith.constant 0.000000e+00 : f32
    %65 = vector.shape_cast %4 : vector<256x1xi1> to vector<256x1xi1>
    %66 = vector.broadcast %65 : vector<256x1xi1> to vector<256x128xi1>
    %67 = vector.broadcast %cst_46 : f32 to vector<256x128xf32>
    %68 = arith.select %66, %64, %67 : vector<256x128xi1>, vector<256x128xf32>
    %69 = arith.addf %60, %68 : vector<256x128xf32>
    %c33 = arith.constant 33 : index
    %c0_47 = arith.constant 0 : index
    %70 = vector.load %arg7[%c33, %c0_47] : memref<290x64xbf16, #tpu.memory_space<vmem>>, vector<256x64xbf16>
    %c7 = arith.constant 7 : index
    %c0_48 = arith.constant 0 : index
    %c0_49 = arith.constant 0 : index
    %71 = vector.load %arg2[%c7, %c0_48, %c0_49] : memref<9x64x128xbf16, #tpu.memory_space<vmem>>, vector<1x64x128xbf16>
    %72 = vector.shape_cast %71 : vector<1x64x128xbf16> to vector<64x128xbf16>
    %cst_50 = arith.constant dense<0.000000e+00> : vector<256x128xf32>
    %73 = tpu.matmul %70, %72, %cst_50 {dimension_numbers = #tpu.dot_dimension_numbers<[1], [0], [0], [1], [0, 0, 1, 1], [], []>} : vector<256x64xbf16>, vector<64x128xbf16>, vector<256x128xf32> -> vector<256x128xf32>
    %74 = arith.addf %69, %73 : vector<256x128xf32>
    %c34 = arith.constant 34 : index
    %c0_51 = arith.constant 0 : index
    %75 = vector.load %arg7[%c34, %c0_51] : memref<290x64xbf16, #tpu.memory_space<vmem>>, vector<256x64xbf16>
    %c8 = arith.constant 8 : index
    %c0_52 = arith.constant 0 : index
    %c0_53 = arith.constant 0 : index
    %76 = vector.load %arg2[%c8, %c0_52, %c0_53] : memref<9x64x128xbf16, #tpu.memory_space<vmem>>, vector<1x64x128xbf16>
    %77 = vector.shape_cast %76 : vector<1x64x128xbf16> to vector<64x128xbf16>
    %cst_54 = arith.constant dense<0.000000e+00> : vector<256x128xf32>
    %78 = tpu.matmul %75, %77, %cst_54 {dimension_numbers = #tpu.dot_dimension_numbers<[1], [0], [0], [1], [0, 0, 1, 1], [], []>} : vector<256x64xbf16>, vector<64x128xbf16>, vector<256x128xf32> -> vector<256x128xf32>
    %cst_55 = arith.constant 0.000000e+00 : f32
    %79 = vector.shape_cast %6 : vector<256x1xi1> to vector<256x1xi1>
    %80 = vector.broadcast %79 : vector<256x1xi1> to vector<256x128xi1>
    %81 = vector.broadcast %cst_55 : f32 to vector<256x128xf32>
    %82 = arith.select %80, %78, %81 : vector<256x128xi1>, vector<256x128xf32>
    %83 = arith.addf %74, %82 : vector<256x128xf32>
    %c0_56 = arith.constant 0 : index
    %c0_57 = arith.constant 0 : index
    %84 = vector.load %arg3[%c0_56, %c0_57] : memref<1x128xf32, #tpu.memory_space<vmem>>, vector<1x128xf32>
    %85 = vector.broadcast %84 : vector<1x128xf32> to vector<256x128xf32>
    %86 = arith.addf %83, %85 : vector<256x128xf32>
    %cst_58 = arith.constant 0.000000e+00 : f32
    %87 = vector.broadcast %cst_58 : f32 to vector<256x128xf32>
    %88 = arith.maximumf %86, %87 : vector<256x128xf32>
    %cst_59 = arith.constant 0.000000e+00 : bf16
    %89 = vector.broadcast %cst_59 : bf16 to vector<17x128xbf16>
    %c0_60 = arith.constant 0 : index
    %c0_61 = arith.constant 0 : index
    %90 = vector.load %arg8[%c0_60, %c0_61] : memref<290x128xbf16, #tpu.memory_space<vmem>>, vector<17x128xbf16>
    tpu.vector_store %arg8[%c0_60, %c0_61], %89 {strides = array<i32>} : memref<290x128xbf16, #tpu.memory_space<vmem>>, vector<17x128xbf16>,
    %cst_62 = arith.constant 0.000000e+00 : bf16
    %91 = vector.broadcast %cst_62 : bf16 to vector<17x128xbf16>
    %c273_63 = arith.constant 273 : index
    %c0_64 = arith.constant 0 : index
    %92 = vector.load %arg8[%c273_63, %c0_64] : memref<290x128xbf16, #tpu.memory_space<vmem>>, vector<17x128xbf16>
    tpu.vector_store %arg8[%c273_63, %c0_64], %91 {strides = array<i32>} : memref<290x128xbf16, #tpu.memory_space<vmem>>, vector<17x128xbf16>,
    %93 = arith.truncf %88 : vector<256x128xf32> to vector<256x128xbf16>
    %c17_65 = arith.constant 17 : index
    %c0_66 = arith.constant 0 : index
    %94 = vector.load %arg8[%c17_65, %c0_66] : memref<290x128xbf16, #tpu.memory_space<vmem>>, vector<256x128xbf16>
    tpu.vector_store %arg8[%c17_65, %c0_66], %93 {strides = array<i32>} : memref<290x128xbf16, #tpu.memory_space<vmem>>, vector<256x128xbf16>,
    %cst_67 = arith.constant 0.000000e+00 : f32
    %95 = vector.broadcast %cst_67 : f32 to vector<256x128xf32>
    %c0_68 = arith.constant 0 : index
    %c0_69 = arith.constant 0 : index
    %96 = vector.load %arg8[%c0_68, %c0_69] : memref<290x128xbf16, #tpu.memory_space<vmem>>, vector<256x128xbf16>
    %c0_70 = arith.constant 0 : index
    %c0_71 = arith.constant 0 : index
    %c0_72 = arith.constant 0 : index
    %97 = vector.load %arg4[%c0_70, %c0_71, %c0_72] : memref<9x128x128xbf16, #tpu.memory_space<vmem>>, vector<1x128x128xbf16>
    %98 = vector.shape_cast %97 : vector<1x128x128xbf16> to vector<128x128xbf16>
    %cst_73 = arith.constant dense<0.000000e+00> : vector<256x128xf32>
    %99 = tpu.matmul %96, %98, %cst_73 {dimension_numbers = #tpu.dot_dimension_numbers<[1], [0], [0], [1], [0, 0, 1, 1], [], []>} : vector<256x128xbf16>, vector<128x128xbf16>, vector<256x128xf32> -> vector<256x128xf32>
    %cst_74 = arith.constant 0.000000e+00 : f32
    %100 = vector.shape_cast %4 : vector<256x1xi1> to vector<256x1xi1>
    %101 = vector.broadcast %100 : vector<256x1xi1> to vector<256x128xi1>
    %102 = vector.broadcast %cst_74 : f32 to vector<256x128xf32>
    %103 = arith.select %101, %99, %102 : vector<256x128xi1>, vector<256x128xf32>
    %104 = arith.addf %95, %103 : vector<256x128xf32>
    %c1_75 = arith.constant 1 : index
    %c0_76 = arith.constant 0 : index
    %105 = vector.load %arg8[%c1_75, %c0_76] : memref<290x128xbf16, #tpu.memory_space<vmem>>, vector<256x128xbf16>
    %c1_77 = arith.constant 1 : index
    %c0_78 = arith.constant 0 : index
    %c0_79 = arith.constant 0 : index
    %106 = vector.load %arg4[%c1_77, %c0_78, %c0_79] : memref<9x128x128xbf16, #tpu.memory_space<vmem>>, vector<1x128x128xbf16>
    %107 = vector.shape_cast %106 : vector<1x128x128xbf16> to vector<128x128xbf16>
    %cst_80 = arith.constant dense<0.000000e+00> : vector<256x128xf32>
    %108 = tpu.matmul %105, %107, %cst_80 {dimension_numbers = #tpu.dot_dimension_numbers<[1], [0], [0], [1], [0, 0, 1, 1], [], []>} : vector<256x128xbf16>, vector<128x128xbf16>, vector<256x128xf32> -> vector<256x128xf32>
    %109 = arith.addf %104, %108 : vector<256x128xf32>
    %c2_81 = arith.constant 2 : index
    %c0_82 = arith.constant 0 : index
    %110 = vector.load %arg8[%c2_81, %c0_82] : memref<290x128xbf16, #tpu.memory_space<vmem>>, vector<256x128xbf16>
    %c2_83 = arith.constant 2 : index
    %c0_84 = arith.constant 0 : index
    %c0_85 = arith.constant 0 : index
    %111 = vector.load %arg4[%c2_83, %c0_84, %c0_85] : memref<9x128x128xbf16, #tpu.memory_space<vmem>>, vector<1x128x128xbf16>
    %112 = vector.shape_cast %111 : vector<1x128x128xbf16> to vector<128x128xbf16>
    %cst_86 = arith.constant dense<0.000000e+00> : vector<256x128xf32>
    %113 = tpu.matmul %110, %112, %cst_86 {dimension_numbers = #tpu.dot_dimension_numbers<[1], [0], [0], [1], [0, 0, 1, 1], [], []>} : vector<256x128xbf16>, vector<128x128xbf16>, vector<256x128xf32> -> vector<256x128xf32>
    %cst_87 = arith.constant 0.000000e+00 : f32
    %114 = vector.shape_cast %6 : vector<256x1xi1> to vector<256x1xi1>
    %115 = vector.broadcast %114 : vector<256x1xi1> to vector<256x128xi1>
    %116 = vector.broadcast %cst_87 : f32 to vector<256x128xf32>
    %117 = arith.select %115, %113, %116 : vector<256x128xi1>, vector<256x128xf32>
    %118 = arith.addf %109, %117 : vector<256x128xf32>
    %c16_88 = arith.constant 16 : index
    %c0_89 = arith.constant 0 : index
    %119 = vector.load %arg8[%c16_88, %c0_89] : memref<290x128xbf16, #tpu.memory_space<vmem>>, vector<256x128xbf16>
    %c3_90 = arith.constant 3 : index
    %c0_91 = arith.constant 0 : index
    %c0_92 = arith.constant 0 : index
    %120 = vector.load %arg4[%c3_90, %c0_91, %c0_92] : memref<9x128x128xbf16, #tpu.memory_space<vmem>>, vector<1x128x128xbf16>
    %121 = vector.shape_cast %120 : vector<1x128x128xbf16> to vector<128x128xbf16>
    %cst_93 = arith.constant dense<0.000000e+00> : vector<256x128xf32>
    %122 = tpu.matmul %119, %121, %cst_93 {dimension_numbers = #tpu.dot_dimension_numbers<[1], [0], [0], [1], [0, 0, 1, 1], [], []>} : vector<256x128xbf16>, vector<128x128xbf16>, vector<256x128xf32> -> vector<256x128xf32>
    %cst_94 = arith.constant 0.000000e+00 : f32
    %123 = vector.shape_cast %4 : vector<256x1xi1> to vector<256x1xi1>
    %124 = vector.broadcast %123 : vector<256x1xi1> to vector<256x128xi1>
    %125 = vector.broadcast %cst_94 : f32 to vector<256x128xf32>
    %126 = arith.select %124, %122, %125 : vector<256x128xi1>, vector<256x128xf32>
    %127 = arith.addf %118, %126 : vector<256x128xf32>
    %c17_95 = arith.constant 17 : index
    %c0_96 = arith.constant 0 : index
    %128 = vector.load %arg8[%c17_95, %c0_96] : memref<290x128xbf16, #tpu.memory_space<vmem>>, vector<256x128xbf16>
    %c4_97 = arith.constant 4 : index
    %c0_98 = arith.constant 0 : index
    %c0_99 = arith.constant 0 : index
    %129 = vector.load %arg4[%c4_97, %c0_98, %c0_99] : memref<9x128x128xbf16, #tpu.memory_space<vmem>>, vector<1x128x128xbf16>
    %130 = vector.shape_cast %129 : vector<1x128x128xbf16> to vector<128x128xbf16>
    %cst_100 = arith.constant dense<0.000000e+00> : vector<256x128xf32>
    %131 = tpu.matmul %128, %130, %cst_100 {dimension_numbers = #tpu.dot_dimension_numbers<[1], [0], [0], [1], [0, 0, 1, 1], [], []>} : vector<256x128xbf16>, vector<128x128xbf16>, vector<256x128xf32> -> vector<256x128xf32>
    %132 = arith.addf %127, %131 : vector<256x128xf32>
    %c18_101 = arith.constant 18 : index
    %c0_102 = arith.constant 0 : index
    %133 = vector.load %arg8[%c18_101, %c0_102] : memref<290x128xbf16, #tpu.memory_space<vmem>>, vector<256x128xbf16>
    %c5_103 = arith.constant 5 : index
    %c0_104 = arith.constant 0 : index
    %c0_105 = arith.constant 0 : index
    %134 = vector.load %arg4[%c5_103, %c0_104, %c0_105] : memref<9x128x128xbf16, #tpu.memory_space<vmem>>, vector<1x128x128xbf16>
    %135 = vector.shape_cast %134 : vector<1x128x128xbf16> to vector<128x128xbf16>
    %cst_106 = arith.constant dense<0.000000e+00> : vector<256x128xf32>
    %136 = tpu.matmul %133, %135, %cst_106 {dimension_numbers = #tpu.dot_dimension_numbers<[1], [0], [0], [1], [0, 0, 1, 1], [], []>} : vector<256x128xbf16>, vector<128x128xbf16>, vector<256x128xf32> -> vector<256x128xf32>
    %cst_107 = arith.constant 0.000000e+00 : f32
    %137 = vector.shape_cast %6 : vector<256x1xi1> to vector<256x1xi1>
    %138 = vector.broadcast %137 : vector<256x1xi1> to vector<256x128xi1>
    %139 = vector.broadcast %cst_107 : f32 to vector<256x128xf32>
    %140 = arith.select %138, %136, %139 : vector<256x128xi1>, vector<256x128xf32>
    %141 = arith.addf %132, %140 : vector<256x128xf32>
    %c32_108 = arith.constant 32 : index
    %c0_109 = arith.constant 0 : index
    %142 = vector.load %arg8[%c32_108, %c0_109] : memref<290x128xbf16, #tpu.memory_space<vmem>>, vector<256x128xbf16>
    %c6_110 = arith.constant 6 : index
    %c0_111 = arith.constant 0 : index
    %c0_112 = arith.constant 0 : index
    %143 = vector.load %arg4[%c6_110, %c0_111, %c0_112] : memref<9x128x128xbf16, #tpu.memory_space<vmem>>, vector<1x128x128xbf16>
    %144 = vector.shape_cast %143 : vector<1x128x128xbf16> to vector<128x128xbf16>
    %cst_113 = arith.constant dense<0.000000e+00> : vector<256x128xf32>
    %145 = tpu.matmul %142, %144, %cst_113 {dimension_numbers = #tpu.dot_dimension_numbers<[1], [0], [0], [1], [0, 0, 1, 1], [], []>} : vector<256x128xbf16>, vector<128x128xbf16>, vector<256x128xf32> -> vector<256x128xf32>
    %cst_114 = arith.constant 0.000000e+00 : f32
    %146 = vector.shape_cast %4 : vector<256x1xi1> to vector<256x1xi1>
    %147 = vector.broadcast %146 : vector<256x1xi1> to vector<256x128xi1>
    %148 = vector.broadcast %cst_114 : f32 to vector<256x128xf32>
    %149 = arith.select %147, %145, %148 : vector<256x128xi1>, vector<256x128xf32>
    %150 = arith.addf %141, %149 : vector<256x128xf32>
    %c33_115 = arith.constant 33 : index
    %c0_116 = arith.constant 0 : index
    %151 = vector.load %arg8[%c33_115, %c0_116] : memref<290x128xbf16, #tpu.memory_space<vmem>>, vector<256x128xbf16>
    %c7_117 = arith.constant 7 : index
    %c0_118 = arith.constant 0 : index
    %c0_119 = arith.constant 0 : index
    %152 = vector.load %arg4[%c7_117, %c0_118, %c0_119] : memref<9x128x128xbf16, #tpu.memory_space<vmem>>, vector<1x128x128xbf16>
    %153 = vector.shape_cast %152 : vector<1x128x128xbf16> to vector<128x128xbf16>
    %cst_120 = arith.constant dense<0.000000e+00> : vector<256x128xf32>
    %154 = tpu.matmul %151, %153, %cst_120 {dimension_numbers = #tpu.dot_dimension_numbers<[1], [0], [0], [1], [0, 0, 1, 1], [], []>} : vector<256x128xbf16>, vector<128x128xbf16>, vector<256x128xf32> -> vector<256x128xf32>
    %155 = arith.addf %150, %154 : vector<256x128xf32>
    %c34_121 = arith.constant 34 : index
    %c0_122 = arith.constant 0 : index
    %156 = vector.load %arg8[%c34_121, %c0_122] : memref<290x128xbf16, #tpu.memory_space<vmem>>, vector<256x128xbf16>
    %c8_123 = arith.constant 8 : index
    %c0_124 = arith.constant 0 : index
    %c0_125 = arith.constant 0 : index
    %157 = vector.load %arg4[%c8_123, %c0_124, %c0_125] : memref<9x128x128xbf16, #tpu.memory_space<vmem>>, vector<1x128x128xbf16>
    %158 = vector.shape_cast %157 : vector<1x128x128xbf16> to vector<128x128xbf16>
    %cst_126 = arith.constant dense<0.000000e+00> : vector<256x128xf32>
    %159 = tpu.matmul %156, %158, %cst_126 {dimension_numbers = #tpu.dot_dimension_numbers<[1], [0], [0], [1], [0, 0, 1, 1], [], []>} : vector<256x128xbf16>, vector<128x128xbf16>, vector<256x128xf32> -> vector<256x128xf32>
    %cst_127 = arith.constant 0.000000e+00 : f32
    %160 = vector.shape_cast %6 : vector<256x1xi1> to vector<256x1xi1>
    %161 = vector.broadcast %160 : vector<256x1xi1> to vector<256x128xi1>
    %162 = vector.broadcast %cst_127 : f32 to vector<256x128xf32>
    %163 = arith.select %161, %159, %162 : vector<256x128xi1>, vector<256x128xf32>
    %164 = arith.addf %155, %163 : vector<256x128xf32>
    %c0_128 = arith.constant 0 : index
    %c0_129 = arith.constant 0 : index
    %165 = vector.load %arg5[%c0_128, %c0_129] : memref<1x128xf32, #tpu.memory_space<vmem>>, vector<1x128xf32>
    %166 = vector.broadcast %165 : vector<1x128xf32> to vector<256x128xf32>
    %167 = arith.addf %164, %166 : vector<256x128xf32>
    %cst_130 = arith.constant 0.000000e+00 : f32
    %168 = vector.broadcast %cst_130 : f32 to vector<256x128xf32>
    %169 = arith.maximumf %167, %168 : vector<256x128xf32>
    %170 = arith.truncf %169 : vector<256x128xf32> to vector<256x128xbf16>
    %c0_131 = arith.constant 0 : index
    %c0_132 = arith.constant 0 : index
    %c0_133 = arith.constant 0 : index
    %171 = vector.load %arg6[%c0_131, %c0_132, %c0_133] : memref<1x256x128xbf16, #tpu.memory_space<vmem>>, vector<1x256x128xbf16>
    %172 = vector.shape_cast %171 : vector<1x256x128xbf16> to vector<256x128xbf16>
    %173 = vector.shape_cast %170 : vector<256x128xbf16> to vector<1x256x128xbf16>
    tpu.vector_store %arg6[%c0_131, %c0_132, %c0_133], %173 {strides = array<i32>} : memref<1x256x128xbf16, #tpu.memory_space<vmem>>, vector<1x256x128xbf16>,
    return
  }
  func.func @transform_0(%arg0: i32) -> (i32, i32, i32) {
    %c0_i32 = arith.constant 0 : i32
    %c0_i32_0 = arith.constant 0 : i32
    %c0_i32_1 = arith.constant 0 : i32
    return %arg0, %c0_i32, %c0_i32_0 : i32, i32, i32
  }
  func.func @transform_1(%arg0: i32) -> (i32, i32, i32) {
    %c0_i32 = arith.constant 0 : i32
    %c0_i32_0 = arith.constant 0 : i32
    %c0_i32_1 = arith.constant 0 : i32
    %c0_i32_2 = arith.constant 0 : i32
    return %c0_i32, %c0_i32_0, %c0_i32_1 : i32, i32, i32
  }
  func.func @transform_2(%arg0: i32) -> (i32, i32) {
    %c0_i32 = arith.constant 0 : i32
    %c0_i32_0 = arith.constant 0 : i32
    %c0_i32_1 = arith.constant 0 : i32
    return %c0_i32, %c0_i32_0 : i32, i32
  }
  func.func @transform_3(%arg0: i32) -> (i32, i32, i32) {
    %c0_i32 = arith.constant 0 : i32
    %c0_i32_0 = arith.constant 0 : i32
    %c0_i32_1 = arith.constant 0 : i32
    %c0_i32_2 = arith.constant 0 : i32
    return %c0_i32, %c0_i32_0, %c0_i32_1 : i32, i32, i32
  }
  func.func @transform_4(%arg0: i32) -> (i32, i32) {
    %c0_i32 = arith.constant 0 : i32
    %c0_i32_0 = arith.constant 0 : i32
    %c0_i32_1 = arith.constant 0 : i32
    return %c0_i32, %c0_i32_0 : i32, i32
  }
  func.func @transform_5(%arg0: i32) -> (i32, i32, i32) {
    %c0_i32 = arith.constant 0 : i32
    %c0_i32_0 = arith.constant 0 : i32
    %c0_i32_1 = arith.constant 0 : i32
    return %arg0, %c0_i32, %c0_i32_0 : i32, i32, i32
  }
}

</mosaic_0001>

<llo_original>
// kernel: tpu_custom_call.1
$region0: #{tpu_custom_call.1}
  #allocation0 [shape = 'u32[]', space=smem, size = 0x4, offset = 0x4, fixed_abs, tag = 'smem constant byte address 0x4 - core index']
  #allocation1 [shape = 'u32[144,128]{1,0:T(1,128)}', space=vmem, size = 0x12000, scoped, tag = 'internal scratch']
  #allocation2 [shape = 'bf16[290,64]{1,0:T(8,128)(2,1)}', space=vmem, size = 0x12800, scoped, tag = 'scratch operand']
  #allocation3 [shape = 'bf16[290,128]{1,0:T(8,128)(2,1)}', space=vmem, size = 0x12800, scoped, tag = 'scratch operand']
  %s0 = inlined_call_operand.vmem [shape: bf16[2,256,64], index: 0, kind: input, shape index: {}]
  %s1 = inlined_call_operand.vmem [shape: bf16[9,64,128], index: 1, kind: input, shape index: {}]
  %s2 = inlined_call_operand.vmem [shape: f32[1,128], index: 2, kind: input, shape index: {}]
  %s3 = inlined_call_operand.hbm [shape: bf16[9,128,128], index: 3, kind: input, shape index: {}]
  %s4 = inlined_call_operand.vmem [shape: f32[1,128], index: 4, kind: input, shape index: {}]
  %s5 = inlined_call_operand.hbm [shape: bf16[2,256,128], index: 5, kind: output, shape index: {}]
  %s6 = sld [smem:[#allocation0]]
  $region57: #{tpu_custom_call.1} parent=0
    _
  %s8 = ssub.s32 1, %s6
  %s9 = scalar_select 0, %s8, %s6
  $region1: #{tpu_custom_call.1} parent=0
    #allocation4 [shape = 'u8[294912]{0}', space=vmem, size = 0x48000, scoped, tag = 'input window, operand 3, single buffered']
    #allocation5 [shape = 's32[2]{0}', space=sflag, size = 0x8, scoped, tag = 'scoped memory for tpu_custom_call.1']
    #allocation6 [shape = 's32[2]{0}', space=sflag, size = 0x8, scoped, tag = 'scoped memory for tpu_custom_call.1']
    #allocation7 [shape = 'u8[131072]{0}', space=vmem, size = 0x20000, scoped, tag = 'output window, operand 0']
    %10 = vsyncpa [#allocation5], 0
    %11 = vsyncpa [#allocation6], 0
    %s12 = scalar_lea.sflag [#allocation6], 1
    %13 = vsyncpa %s12, 0
    loop: start=0, step=1, limit=4
    $region2: #{tpu_custom_call.1} parent=1 // loop_pre_header
      _
    $region3: #{tpu_custom_call.1} parent=1 // loop_header
      %s15 = sphi 0, %s19
      %p16 = scmp.ge.s32.totalorder %s15, 4
      %s25 = sphi 0, %s27
      %s28 = sphi 0, %s25
      %s29 = sphi 0, %s28
      %s45 = sphi 0, %s29
      %s49 = sphi 0, %s49
      %s51 = sphi 0, %s49
      %s52 = sphi 0, %s51
      %s66 = sphi 0, %s52
      %s70 = sphi 0, %s70
      %s72 = sphi 0, %s70
      %s73 = sphi 0, %s72
      %s87 = sphi 0, %s73
      %s91 = sphi 0, %s91
      %s93 = sphi 0, %s91
      %s94 = sphi 0, %s93
      %s108 = sphi 0, %s94
      %s112 = sphi 0, %s112
      %s114 = sphi 0, %s112
      %s115 = sphi 0, %s114
      %s129 = sphi 0, %s115
      %s135 = sphi 0, %s137
      %s138 = sphi 0, %s135
      %s139 = sphi 0, %s138
      %s155 = sphi 0, %s139
    $region4: #{tpu_custom_call.1} parent=1 // loop_header_branch
      %18 = sbr.rel (%p16) target = $region8
    $region5: #{tpu_custom_call.1} parent=1 // loop_body
      %s20 = ssub.s32 %s15, 1
      %s21 = ssub.s32 %s15, 2
      %s22 = sadd.s32 %s15, 1
      %s23 = ssub.s32 %s15, %s22
      %p24 = scmp.eq.s32.totalorder %s23, 0
      %s26 = sadd.s32 %s25, 1
      %s27 = scalar_select %p24, %s25, %s26
      %p30 = pneg %p24
      %p31 = scmp.eq.s32.totalorder %s15, 1
      %p32 = por %p30, %p31
      %p33 = scmp.ne.s32.totalorder %s25, %s28
      %p34 = scmp.eq.s32.totalorder %s15, 0
      %p35 = por %p33, %p34
      %p36 = scmp.ne.s32.totalorder %s25, %s28
      %p37 = scmp.eq.s32.totalorder %s20, 1
      %p38 = por %p36, %p37
      %p39 = scmp.ne.s32.totalorder %s28, %s29
      %p40 = scmp.eq.s32.totalorder %s20, 0
      %p41 = por %p39, %p40
      %p42 = scmp.ne.s32.totalorder %s28, %s29
      %p43 = scmp.eq.s32.totalorder %s21, 1
      %p44 = por %p42, %p43
      %p46 = scmp.ne.s32.totalorder %s29, %s45
      %p47 = scmp.eq.s32.totalorder %s21, 0
      %p48 = por %p46, %p47
      %s50 = sadd.s32 %s49, 1
      %p53 = scmp.eq.s32.totalorder %s15, 1
      %p54 = scmp.ne.s32.totalorder %s49, %s51
      %p55 = scmp.eq.s32.totalorder %s15, 0
      %p56 = por %p54, %p55
      %p57 = scmp.ne.s32.totalorder %s49, %s51
      %p58 = scmp.eq.s32.totalorder %s20, 1
      %p59 = por %p57, %p58
      %p60 = scmp.ne.s32.totalorder %s51, %s52
      %p61 = scmp.eq.s32.totalorder %s20, 0
      %p62 = por %p60, %p61
      %p63 = scmp.ne.s32.totalorder %s51, %s52
      %p64 = scmp.eq.s32.totalorder %s21, 1
      %p65 = por %p63, %p64
      %p67 = scmp.ne.s32.totalorder %s52, %s66
      %p68 = scmp.eq.s32.totalorder %s21, 0
      %p69 = por %p67, %p68
      %s71 = sadd.s32 %s70, 1
      %p74 = scmp.eq.s32.totalorder %s15, 1
      %p75 = scmp.ne.s32.totalorder %s70, %s72
      %p76 = scmp.eq.s32.totalorder %s15, 0
      %p77 = por %p75, %p76
      %p78 = scmp.ne.s32.totalorder %s70, %s72
      %p79 = scmp.eq.s32.totalorder %s20, 1
      %p80 = por %p78, %p79
      %p81 = scmp.ne.s32.totalorder %s72, %s73
      %p82 = scmp.eq.s32.totalorder %s20, 0
      %p83 = por %p81, %p82
      %p84 = scmp.ne.s32.totalorder %s72, %s73
      %p85 = scmp.eq.s32.totalorder %s21, 1
      %p86 = por %p84, %p85
      %p88 = scmp.ne.s32.totalorder %s73, %s87
      %p89 = scmp.eq.s32.totalorder %s21, 0
      %p90 = por %p88, %p89
      %s92 = sadd.s32 %s91, 1
      %p95 = scmp.eq.s32.totalorder %s15, 1
      %p96 = scmp.ne.s32.totalorder %s91, %s93
      %p97 = scmp.eq.s32.totalorder %s15, 0
      %p98 = por %p96, %p97
      %p99 = scmp.ne.s32.totalorder %s91, %s93
      %p100 = scmp.eq.s32.totalorder %s20, 1
      %p101 = por %p99, %p100
      %p102 = scmp.ne.s32.totalorder %s93, %s94
      %p103 = scmp.eq.s32.totalorder %s20, 0
      %p104 = por %p102, %p103
      %p105 = scmp.ne.s32.totalorder %s93, %s94
      %p106 = scmp.eq.s32.totalorder %s21, 1
      %p107 = por %p105, %p106
      %p109 = scmp.ne.s32.totalorder %s94, %s108
      %p110 = scmp.eq.s32.totalorder %s21, 0
      %p111 = por %p109, %p110
      %s113 = sadd.s32 %s112, 1
      %p116 = scmp.eq.s32.totalorder %s15, 1
      %p117 = scmp.ne.s32.totalorder %s112, %s114
      %p118 = scmp.eq.s32.totalorder %s15, 0
      %p119 = por %p117, %p118
      %p120 = scmp.ne.s32.totalorder %s112, %s114
      %p121 = scmp.eq.s32.totalorder %s20, 1
      %p122 = por %p120, %p121
      %p123 = scmp.ne.s32.totalorder %s114, %s115
      %p124 = scmp.eq.s32.totalorder %s20, 0
      %p125 = por %p123, %p124
      %p126 = scmp.ne.s32.totalorder %s114, %s115
      %p127 = scmp.eq.s32.totalorder %s21, 1
      %p128 = por %p126, %p127
      %p130 = scmp.ne.s32.totalorder %s115, %s129
      %p131 = scmp.eq.s32.totalorder %s21, 0
      %p132 = por %p130, %p131
      %s133 = ssub.s32 %s15, %s22
      %p134 = scmp.eq.s32.totalorder %s133, 0
      %s136 = sadd.s32 %s135, 1
      %s137 = scalar_select %p134, %s135, %s136
      %p140 = pneg %p134
      %p141 = scmp.eq.s32.totalorder %s15, 1
      %p142 = por %p140, %p141
      %p143 = scmp.ne.s32.totalorder %s135, %s138
      %p144 = scmp.eq.s32.totalorder %s15, 0
      %p145 = por %p143, %p144
      %p146 = scmp.ne.s32.totalorder %s135, %s138
      %p147 = scmp.eq.s32.totalorder %s20, 1
      %p148 = por %p146, %p147
      %p149 = scmp.ne.s32.totalorder %s138, %s139
      %p150 = scmp.eq.s32.totalorder %s20, 0
      %p151 = por %p149, %p150
      %p152 = scmp.ne.s32.totalorder %s138, %s139
      %p153 = scmp.eq.s32.totalorder %s21, 1
      %p154 = por %p152, %p153
      %p156 = scmp.ne.s32.totalorder %s139, %s155
      %p157 = scmp.eq.s32.totalorder %s21, 0
      %p158 = por %p156, %p157
      %p159 = scmp.le.s32.totalorder 1, %s15
      %p160 = scmp.lt.s32.totalorder %s15, 3
      %p161 = pnand %p159, %p160
      %p162 = pneg %p161
      // Predicated region
      $region9: #{tpu_custom_call.1} parent=5 // pred_check
        _
      $region10: #{tpu_custom_call.1} parent=5 // pred_check_branch
        %164 = sbr.rel (%p161) target = $region12
      $region11: #{tpu_custom_call.1} parent=5 // pred_region
        %s165 = ssub.s32 %s15, 1
        // Predicated region
        $region13: #{tpu_custom_call.1} parent=11 // pred_check
          %p166 = pneg %p62
        $region14: #{tpu_custom_call.1} parent=11 // pred_check_branch
          %168 = sbr.rel (%p166) target = $region16
        $region15: #{tpu_custom_call.1} parent=11 // pred_region
          _
        $region16: #{tpu_custom_call.1} parent=11 // pred_fallthru
          _
        // Predicated region
        $region17: #{tpu_custom_call.1} parent=11 // pred_check
          %p169 = pneg %p83
        $region18: #{tpu_custom_call.1} parent=11 // pred_check_branch
          %171 = sbr.rel (%p169) target = $region20
        $region19: #{tpu_custom_call.1} parent=11 // pred_region
          _
        $region20: #{tpu_custom_call.1} parent=11 // pred_fallthru
          _
        // Predicated region
        $region21: #{tpu_custom_call.1} parent=11 // pred_check
          %p172 = pneg %p104
        $region22: #{tpu_custom_call.1} parent=11 // pred_check_branch
          %174 = sbr.rel (%p172) target = $region24
        $region23: #{tpu_custom_call.1} parent=11 // pred_region
          %s176 = ssub.s32 9216, 9216
          %177 = vsyncadd [#allocation5], %s176
          %s178 = sshll.u32 [#allocation4], 4
          %s179 = int_to_ptr.vmem [resolvable:$true] %s178
          %184 = dma.hbm_to_vmem [thread:$0]  %s3, 9216, %s179, [#allocation5], 64, 64, 4
        $region24: #{tpu_custom_call.1} parent=11 // pred_fallthru
          _
        // Predicated region
        $region25: #{tpu_custom_call.1} parent=11 // pred_check
          %p185 = pneg %p125
        $region26: #{tpu_custom_call.1} parent=11 // pred_check_branch
          %187 = sbr.rel (%p185) target = $region28
        $region27: #{tpu_custom_call.1} parent=11 // pred_region
          _
        $region28: #{tpu_custom_call.1} parent=11 // pred_fallthru
          _
      $region12: #{tpu_custom_call.1} parent=5 // pred_fallthru
        _
      %p188 = scmp.lt.s32.totalorder %s15, 2
      // Predicated region
      $region29: #{tpu_custom_call.1} parent=5 // pred_check
        %p189 = pneg %p188
      $region30: #{tpu_custom_call.1} parent=5 // pred_check_branch
        %191 = sbr.rel (%p189) target = $region32
      $region31: #{tpu_custom_call.1} parent=5 // pred_region
        // Predicated region
        $region33: #{tpu_custom_call.1} parent=31 // pred_check
          %p192 = pneg %p35
        $region34: #{tpu_custom_call.1} parent=31 // pred_check_branch
          %194 = sbr.rel (%p192) target = $region36
        $region35: #{tpu_custom_call.1} parent=31 // pred_region
          %p195 = scmp.lt.s32.totalorder %s15, 1
          %s196 = scalar_select %p195, %s15, 1
          %s197 = smul.addr %s196, 32
          %s198 = smul.addr %s197, 4
          %s199 = scalar_lea.vmem %s0, %s198
        $region36: #{tpu_custom_call.1} parent=31 // pred_fallthru
          _
      $region32: #{tpu_custom_call.1} parent=5 // pred_fallthru
        _
      %p200 = scmp.le.s32.totalorder 1, %s15
      %p201 = scmp.lt.s32.totalorder %s15, 3
      %p202 = pnand %p200, %p201
      %p203 = pneg %p202
      // Predicated region
      $region37: #{tpu_custom_call.1} parent=5 // pred_check
        _
      $region38: #{tpu_custom_call.1} parent=5 // pred_check_branch
        %205 = sbr.rel (%p202) target = $region40
      $region39: #{tpu_custom_call.1} parent=5 // pred_region
        %s206 = ssub.s32 %s15, 1
        // Predicated region
        $region41: #{tpu_custom_call.1} parent=39 // pred_check
          %p207 = pneg %p104
        $region42: #{tpu_custom_call.1} parent=39 // pred_check_branch
          %209 = sbr.rel (%p207) target = $region44
        $region43: #{tpu_custom_call.1} parent=39 // pred_region
          %210 = dma.done [#allocation5], 9216
        $region44: #{tpu_custom_call.1} parent=39 // pred_fallthru
          _
        %p211 = scmp.lt.s32.totalorder %s20, 1
        %s212 = scalar_select %p211, %s20, 1
        %s213 = smul.addr %s212, 32
        %s214 = smul.addr %s213, 4
        %s215 = scalar_lea.vmem %s0, %s214
        %p216 = pneg %p41
        %p217 = pneg %p38
        %p218 = pneg %p62
        %p219 = pneg %p59
        %p220 = pneg %p83
        %p221 = pneg %p80
        %p222 = pneg %p104
        %p223 = pneg %p101
        %p224 = pneg %p125
        %p225 = pneg %p122
        %p226 = pneg %p151
        %p227 = pneg %p148
        %s228 = sand.u32 %s138, 1
        %s229 = scalar_lea.sflag [#allocation6], %s228
        %s230 = sand.u32 %s138, 1
        %s231 = smul.addr %s230, 128
        %s232 = scalar_lea.vmem [#allocation7], %s231
        %p233 = scmp.lt.s32.totalorder %s20, 1
        %s234 = scalar_select %p233, %s20, 1
        %s235 = smul.addr %s234, 32
        %s236 = smul.addr %s235, 4
        %s237 = scalar_lea.vmem %s0, %s236
        %v239 = vlaneseq
        %v240 = vshrl.u32 %v239, 7
        %v241 = vadd.s32 %v240, 8
        %v242 = vadd.s32 %v240, 16
        %v243 = vadd.s32 %v240, 24
        %v244 = vadd.s32 %v240, 32
        %v245 = vadd.s32 %v240, 40
        %v246 = vadd.s32 %v240, 48
        %v247 = vadd.s32 %v240, 56
        %v248 = vadd.s32 %v240, 64
        %v249 = vadd.s32 %v240, 72
        %v250 = vadd.s32 %v240, 80
        %v251 = vadd.s32 %v240, 88
        %v252 = vadd.s32 %v240, 96
        %v253 = vadd.s32 %v240, 104
        %v254 = vadd.s32 %v240, 112
        %v255 = vadd.s32 %v240, 120
        %v256 = vadd.s32 %v240, 128
        %v257 = vadd.s32 %v240, 136
        %v258 = vadd.s32 %v240, 144
        %v259 = vadd.s32 %v240, 152
        %v260 = vadd.s32 %v240, 160
        %v261 = vadd.s32 %v240, 168
        %v262 = vadd.s32 %v240, 176
        %v263 = vadd.s32 %v240, 184
        %v264 = vadd.s32 %v240, 192
        %v265 = vadd.s32 %v240, 200
        %v266 = vadd.s32 %v240, 208
        %v267 = vadd.s32 %v240, 216
        %v268 = vadd.s32 %v240, 224
        %v269 = vadd.s32 %v240, 232
        %v270 = vadd.s32 %v240, 240
        %v271 = vadd.s32 %v240, 248
        %v272 = vand.u32 %v240, 15
        %v273 = vand.u32 %v241, 15
        %v274 = vand.u32 %v242, 15
        %v275 = vand.u32 %v243, 15
        %v276 = vand.u32 %v244, 15
        %v277 = vand.u32 %v245, 15
        %v278 = vand.u32 %v246, 15
        %v279 = vand.u32 %v247, 15
        %v280 = vand.u32 %v248, 15
        %v281 = vand.u32 %v249, 15
        %v282 = vand.u32 %v250, 15
        %v283 = vand.u32 %v251, 15
        %v284 = vand.u32 %v252, 15
        %v285 = vand.u32 %v253, 15
        %v286 = vand.u32 %v254, 15
        %v287 = vand.u32 %v255, 15
        %v288 = vand.u32 %v256, 15
        %v289 = vand.u32 %v257, 15
        %v290 = vand.u32 %v258, 15
        %v291 = vand.u32 %v259, 15
        %v292 = vand.u32 %v260, 15
        %v293 = vand.u32 %v261, 15
        %v294 = vand.u32 %v262, 15
        %v295 = vand.u32 %v263, 15
        %v296 = vand.u32 %v264, 15
        %v297 = vand.u32 %v265, 15
        %v298 = vand.u32 %v266, 15
        %v299 = vand.u32 %v267, 15
        %v300 = vand.u32 %v268, 15
        %v301 = vand.u32 %v269, 15
        %v302 = vand.u32 %v270, 15
        %v303 = vand.u32 %v271, 15
        %vm304 = vcmp.gt.s32.totalorder %v272, 0
        %vm305 = vcmp.gt.s32.totalorder %v273, 0
        %vm306 = vcmp.gt.s32.totalorder %v274, 0
        %vm307 = vcmp.gt.s32.totalorder %v275, 0
        %vm308 = vcmp.gt.s32.totalorder %v276, 0
        %vm309 = vcmp.gt.s32.totalorder %v277, 0
        %vm310 = vcmp.gt.s32.totalorder %v278, 0
        %vm311 = vcmp.gt.s32.totalorder %v279, 0
        %vm312 = vcmp.gt.s32.totalorder %v280, 0
        %vm313 = vcmp.gt.s32.totalorder %v281, 0
        %vm314 = vcmp.gt.s32.totalorder %v282, 0
        %vm315 = vcmp.gt.s32.totalorder %v283, 0
        %vm316 = vcmp.gt.s32.totalorder %v284, 0
        %vm317 = vcmp.gt.s32.totalorder %v285, 0
        %vm318 = vcmp.gt.s32.totalorder %v286, 0
        %vm319 = vcmp.gt.s32.totalorder %v287, 0
        %vm320 = vcmp.gt.s32.totalorder %v288, 0
        %vm321 = vcmp.gt.s32.totalorder %v289, 0
        %vm322 = vcmp.gt.s32.totalorder %v290, 0
        %vm323 = vcmp.gt.s32.totalorder %v291, 0
        %vm324 = vcmp.gt.s32.totalorder %v292, 0
        %vm325 = vcmp.gt.s32.totalorder %v293, 0
        %vm326 = vcmp.gt.s32.totalorder %v294, 0
        %vm327 = vcmp.gt.s32.totalorder %v295, 0
        %vm328 = vcmp.gt.s32.totalorder %v296, 0
        %vm329 = vcmp.gt.s32.totalorder %v297, 0
        %vm330 = vcmp.gt.s32.totalorder %v298, 0
        %vm331 = vcmp.gt.s32.totalorder %v299, 0
        %vm332 = vcmp.gt.s32.totalorder %v300, 0
        %vm333 = vcmp.gt.s32.totalorder %v301, 0
        %vm334 = vcmp.gt.s32.totalorder %v302, 0
        %vm335 = vcmp.gt.s32.totalorder %v303, 0
        %vm336 = vcmp.lt.s32.totalorder %v272, 15
        %vm337 = vcmp.lt.s32.totalorder %v273, 15
        %vm338 = vcmp.lt.s32.totalorder %v274, 15
        %vm339 = vcmp.lt.s32.totalorder %v275, 15
        %vm340 = vcmp.lt.s32.totalorder %v276, 15
        %vm341 = vcmp.lt.s32.totalorder %v277, 15
        %vm342 = vcmp.lt.s32.totalorder %v278, 15
        %vm343 = vcmp.lt.s32.totalorder %v279, 15
        %vm344 = vcmp.lt.s32.totalorder %v280, 15
        %vm345 = vcmp.lt.s32.totalorder %v281, 15
        %vm346 = vcmp.lt.s32.totalorder %v282, 15
        %vm347 = vcmp.lt.s32.totalorder %v283, 15
        %vm348 = vcmp.lt.s32.totalorder %v284, 15
        %vm349 = vcmp.lt.s32.totalorder %v285, 15
        %vm350 = vcmp.lt.s32.totalorder %v286, 15
        %vm351 = vcmp.lt.s32.totalorder %v287, 15
        %vm352 = vcmp.lt.s32.totalorder %v288, 15
        %vm353 = vcmp.lt.s32.totalorder %v289, 15
        %vm354 = vcmp.lt.s32.totalorder %v290, 15
        %vm355 = vcmp.lt.s32.totalorder %v291, 15
        %vm356 = vcmp.lt.s32.totalorder %v292, 15
        %vm357 = vcmp.lt.s32.totalorder %v293, 15
        %vm358 = vcmp.lt.s32.totalorder %v294, 15
        %vm359 = vcmp.lt.s32.totalorder %v295, 15
        %vm360 = vcmp.lt.s32.totalorder %v296, 15
        %vm361 = vcmp.lt.s32.totalorder %v297, 15
        %vm362 = vcmp.lt.s32.totalorder %v298, 15
        %vm363 = vcmp.lt.s32.totalorder %v299, 15
        %vm364 = vcmp.lt.s32.totalorder %v300, 15
        %vm365 = vcmp.lt.s32.totalorder %v301, 15
        %vm366 = vcmp.lt.s32.totalorder %v302, 15
        %vm367 = vcmp.lt.s32.totalorder %v303, 15
        %vm368 = vcmask 519168
        %369 = vst.msk [vmem:[#allocation2] sm:$0xf] %vm368, 0
        %370 = vst.msk [vmem:[#allocation2 + $0x4] sm:$0xf] %vm368, 0
        %vm371 = vcmask 516096
        %vm372 = vsmask.f32 256
        %vm373 = vmand %vm371, %vm372
        %v374 = vld [vmem:[#allocation2 + $0x8] sm:$0x1]
        %v375 = vsel %vm373, 0, %v374
        %376 = vst [vmem:[#allocation2 + $0x8] sm:$0x1] %v375
        %vm377 = vcmask 519168
        %vm378 = vsmask.f32 7938
        %vm379 = vmand %vm377, %vm378
        %v380 = vld [vmem:[#allocation2 + $0x88] sm:$0xf]
        %v381 = vsel %vm379, 0, %v380
        %382 = vst [vmem:[#allocation2 + $0x88] sm:$0xf] %v381
        %383 = vst.msk [vmem:[#allocation2 + $0x8c] sm:$0xf] %vm368, 0
        %vm384 = vcmask 516096
        %385 = vst.msk [vmem:[#allocation2 + $0x90] sm:$0x1] %vm384, 0
        %v386 = vld [vmem:[%s237] sm:$0xf]
        %v387 = vld [vmem:[%s237 + $0x4] sm:$0xf]
        %v388 = vld [vmem:[%s237 + $0x8] sm:$0xf]
        %v389 = vld [vmem:[%s237 + $0xc] sm:$0xf]
        %v390 = vld [vmem:[%s237 + $0x10] sm:$0xf]
        %v391 = vld [vmem:[%s237 + $0x14] sm:$0xf]
        %v392 = vld [vmem:[%s237 + $0x18] sm:$0xf]
        %v393 = vld [vmem:[%s237 + $0x1c] sm:$0xf]
        %v394 = vld [vmem:[%s237 + $0x20] sm:$0xf]
        %v395 = vld [vmem:[%s237 + $0x24] sm:$0xf]
        %v396 = vld [vmem:[%s237 + $0x28] sm:$0xf]
        %v397 = vld [vmem:[%s237 + $0x2c] sm:$0xf]
        %v398 = vld [vmem:[%s237 + $0x30] sm:$0xf]
        %v399 = vld [vmem:[%s237 + $0x34] sm:$0xf]
        %v400 = vld [vmem:[%s237 + $0x38] sm:$0xf]
        %v401 = vld [vmem:[%s237 + $0x3c] sm:$0xf]
        %v402 = vld [vmem:[%s237 + $0x40] sm:$0xf]
        %v403 = vld [vmem:[%s237 + $0x44] sm:$0xf]
        %v404 = vld [vmem:[%s237 + $0x48] sm:$0xf]
        %v405 = vld [vmem:[%s237 + $0x4c] sm:$0xf]
        %v406 = vld [vmem:[%s237 + $0x50] sm:$0xf]
        %v407 = vld [vmem:[%s237 + $0x54] sm:$0xf]
        %v408 = vld [vmem:[%s237 + $0x58] sm:$0xf]
        %v409 = vld [vmem:[%s237 + $0x5c] sm:$0xf]
        %v410 = vld [vmem:[%s237 + $0x60] sm:$0xf]
        %v411 = vld [vmem:[%s237 + $0x64] sm:$0xf]
        %v412 = vld [vmem:[%s237 + $0x68] sm:$0xf]
        %v413 = vld [vmem:[%s237 + $0x6c] sm:$0xf]
        %v414 = vld [vmem:[%s237 + $0x70] sm:$0xf]
        %v415 = vld [vmem:[%s237 + $0x74] sm:$0xf]
        %v416 = vld [vmem:[%s237 + $0x78] sm:$0xf]
        %v417 = vld [vmem:[%s237 + $0x7c] sm:$0xf]
        %vm418 = vsmask.f32 4368
        %vm419 = vmor %vm372, %vm418
        %v421 = vshrl.u32 %v386, 16
        %v423 = vrot.slane %v421, 7
        %v424 = vshll.u32 %v386, 16
        %v426 = vor.u32 %v423, %v424
        %v427 = vrot.slane %v423, 4
        %v429 = vshrl.u32 %v387, 16
        %v431 = vrot.slane %v429, 7
        %v432 = vshll.u32 %v387, 16
        %v434 = vor.u32 %v431, %v432
        %v435 = vsel %vm419, %v427, %v434
        %v436 = vrot.slane %v431, 4
        %v438 = vshrl.u32 %v388, 16
        %v440 = vrot.slane %v438, 7
        %v441 = vshll.u32 %v388, 16
        %v443 = vor.u32 %v440, %v441
        %v444 = vsel %vm419, %v436, %v443
        %v445 = vrot.slane %v440, 4
        %v447 = vshrl.u32 %v389, 16
        %v449 = vrot.slane %v447, 7
        %v450 = vshll.u32 %v389, 16
        %v452 = vor.u32 %v449, %v450
        %v453 = vsel %vm419, %v445, %v452
        %v454 = vrot.slane %v449, 4
        %v456 = vshrl.u32 %v390, 16
        %v458 = vrot.slane %v456, 7
        %v459 = vshll.u32 %v390, 16
        %v461 = vor.u32 %v458, %v459
        %v462 = vsel %vm419, %v454, %v461
        %v463 = vrot.slane %v458, 4
        %v465 = vshrl.u32 %v391, 16
        %v467 = vrot.slane %v465, 7
        %v468 = vshll.u32 %v391, 16
        %v470 = vor.u32 %v467, %v468
        %v471 = vsel %vm419, %v463, %v470
        %v472 = vrot.slane %v467, 4
        %v474 = vshrl.u32 %v392, 16
        %v476 = vrot.slane %v474, 7
        %v477 = vshll.u32 %v392, 16
        %v479 = vor.u32 %v476, %v477
        %v480 = vsel %vm419, %v472, %v479
        %v481 = vrot.slane %v476, 4
        %v483 = vshrl.u32 %v393, 16
        %v485 = vrot.slane %v483, 7
        %v486 = vshll.u32 %v393, 16
        %v488 = vor.u32 %v485, %v486
        %v489 = vsel %vm419, %v481, %v488
        %v490 = vrot.slane %v485, 4
        %v492 = vshrl.u32 %v394, 16
        %v494 = vrot.slane %v492, 7
        %v495 = vshll.u32 %v394, 16
        %v497 = vor.u32 %v494, %v495
        %v498 = vsel %vm419, %v490, %v497
        %v499 = vrot.slane %v494, 4
        %v501 = vshrl.u32 %v395, 16
        %v503 = vrot.slane %v501, 7
        %v504 = vshll.u32 %v395, 16
        %v506 = vor.u32 %v503, %v504
        %v507 = vsel %vm419, %v499, %v506
        %v508 = vrot.slane %v503, 4
        %v510 = vshrl.u32 %v396, 16
        %v512 = vrot.slane %v510, 7
        %v513 = vshll.u32 %v396, 16
        %v515 = vor.u32 %v512, %v513
        %v516 = vsel %vm419, %v508, %v515
        %v517 = vrot.slane %v512, 4
        %v519 = vshrl.u32 %v397, 16
        %v521 = vrot.slane %v519, 7
        %v522 = vshll.u32 %v397, 16
        %v524 = vor.u32 %v521, %v522
        %v525 = vsel %vm419, %v517, %v524
        %v526 = vrot.slane %v521, 4
        %v528 = vshrl.u32 %v398, 16
        %v530 = vrot.slane %v528, 7
        %v531 = vshll.u32 %v398, 16
        %v533 = vor.u32 %v530, %v531
        %v534 = vsel %vm419, %v526, %v533
        %v535 = vrot.slane %v530, 4
        %v537 = vshrl.u32 %v399, 16
        %v539 = vrot.slane %v537, 7
        %v540 = vshll.u32 %v399, 16
        %v542 = vor.u32 %v539, %v540
        %v543 = vsel %vm419, %v535, %v542
        %v544 = vrot.slane %v539, 4
        %v546 = vshrl.u32 %v400, 16
        %v548 = vrot.slane %v546, 7
        %v549 = vshll.u32 %v400, 16
        %v551 = vor.u32 %v548, %v549
        %v552 = vsel %vm419, %v544, %v551
        %v553 = vrot.slane %v548, 4
        %v555 = vshrl.u32 %v401, 16
        %v557 = vrot.slane %v555, 7
        %v558 = vshll.u32 %v401, 16
        %v560 = vor.u32 %v557, %v558
        %v561 = vsel %vm419, %v553, %v560
        %v562 = vrot.slane %v557, 4
        %v564 = vshrl.u32 %v402, 16
        %v566 = vrot.slane %v564, 7
        %v567 = vshll.u32 %v402, 16
        %v569 = vor.u32 %v566, %v567
        %v570 = vsel %vm419, %v562, %v569
        %v571 = vrot.slane %v566, 4
        %v573 = vshrl.u32 %v403, 16
        %v575 = vrot.slane %v573, 7
        %v576 = vshll.u32 %v403, 16
        %v578 = vor.u32 %v575, %v576
        %v579 = vsel %vm419, %v571, %v578
        %v580 = vrot.slane %v575, 4
        %v582 = vshrl.u32 %v404, 16
        %v584 = vrot.slane %v582, 7
        %v585 = vshll.u32 %v404, 16
        %v587 = vor.u32 %v584, %v585
        %v588 = vsel %vm419, %v580, %v587
        %v589 = vrot.slane %v584, 4
        %v591 = vshrl.u32 %v405, 16
        %v593 = vrot.slane %v591, 7
        %v594 = vshll.u32 %v405, 16
        %v596 = vor.u32 %v593, %v594
        %v597 = vsel %vm419, %v589, %v596
        %v598 = vrot.slane %v593, 4
        %v600 = vshrl.u32 %v406, 16
        %v602 = vrot.slane %v600, 7
        %v603 = vshll.u32 %v406, 16
        %v605 = vor.u32 %v602, %v603
        %v606 = vsel %vm419, %v598, %v605
        %v607 = vrot.slane %v602, 4
        %v609 = vshrl.u32 %v407, 16
        %v611 = vrot.slane %v609, 7
        %v612 = vshll.u32 %v407, 16
        %v614 = vor.u32 %v611, %v612
        %v615 = vsel %vm419, %v607, %v614
        %v616 = vrot.slane %v611, 4
        %v618 = vshrl.u32 %v408, 16
        %v620 = vrot.slane %v618, 7
        %v621 = vshll.u32 %v408, 16
        %v623 = vor.u32 %v620, %v621
        %v624 = vsel %vm419, %v616, %v623
        %v625 = vrot.slane %v620, 4
        %v627 = vshrl.u32 %v409, 16
        %v629 = vrot.slane %v627, 7
        %v630 = vshll.u32 %v409, 16
        %v632 = vor.u32 %v629, %v630
        %v633 = vsel %vm419, %v625, %v632
        %v634 = vrot.slane %v629, 4
        %v636 = vshrl.u32 %v410, 16
        %v638 = vrot.slane %v636, 7
        %v639 = vshll.u32 %v410, 16
        %v641 = vor.u32 %v638, %v639
        %v642 = vsel %vm419, %v634, %v641
        %v643 = vrot.slane %v638, 4
        %v645 = vshrl.u32 %v411, 16
        %v647 = vrot.slane %v645, 7
        %v648 = vshll.u32 %v411, 16
        %v650 = vor.u32 %v647, %v648
        %v651 = vsel %vm419, %v643, %v650
        %v652 = vrot.slane %v647, 4
        %v654 = vshrl.u32 %v412, 16
        %v656 = vrot.slane %v654, 7
        %v657 = vshll.u32 %v412, 16
        %v659 = vor.u32 %v656, %v657
        %v660 = vsel %vm419, %v652, %v659
        %v661 = vrot.slane %v656, 4
        %v663 = vshrl.u32 %v413, 16
        %v665 = vrot.slane %v663, 7
        %v666 = vshll.u32 %v413, 16
        %v668 = vor.u32 %v665, %v666
        %v669 = vsel %vm419, %v661, %v668
        %v670 = vrot.slane %v665, 4
        %v672 = vshrl.u32 %v414, 16
        %v674 = vrot.slane %v672, 7
        %v675 = vshll.u32 %v414, 16
        %v677 = vor.u32 %v674, %v675
        %v678 = vsel %vm419, %v670, %v677
        %v679 = vrot.slane %v674, 4
        %v681 = vshrl.u32 %v415, 16
        %v683 = vrot.slane %v681, 7
        %v684 = vshll.u32 %v415, 16
        %v686 = vor.u32 %v683, %v684
        %v687 = vsel %vm419, %v679, %v686
        %v688 = vrot.slane %v683, 4
        %v690 = vshrl.u32 %v416, 16
        %v692 = vrot.slane %v690, 7
        %v693 = vshll.u32 %v416, 16
        %v695 = vor.u32 %v692, %v693
        %v696 = vsel %vm419, %v688, %v695
        %v697 = vrot.slane %v692, 4
        %v699 = vshrl.u32 %v417, 16
        %v701 = vrot.slane %v699, 7
        %v702 = vshll.u32 %v417, 16
        %v704 = vor.u32 %v701, %v702
        %v705 = vsel %vm419, %v697, %v704
        %v706 = vrot.slane %v701, 4
        %v740 = vld [vmem:[#allocation2 + $0x8] sm:$0xf]
        %v741 = vsel %vm379, %v426, %v740
        %742 = vst [vmem:[#allocation2 + $0x8] sm:$0xf] %v741
        %743 = vst.msk [vmem:[#allocation2 + $0xc] sm:$0xf] %vm368, %v435
        %744 = vst.msk [vmem:[#allocation2 + $0x10] sm:$0xf] %vm368, %v444
        %745 = vst.msk [vmem:[#allocation2 + $0x14] sm:$0xf] %vm368, %v453
        %746 = vst.msk [vmem:[#allocation2 + $0x18] sm:$0xf] %vm368, %v462
        %747 = vst.msk [vmem:[#allocation2 + $0x1c] sm:$0xf] %vm368, %v471
        %748 = vst.msk [vmem:[#allocation2 + $0x20] sm:$0xf] %vm368, %v480
        %749 = vst.msk [vmem:[#allocation2 + $0x24] sm:$0xf] %vm368, %v489
        %750 = vst.msk [vmem:[#allocation2 + $0x28] sm:$0xf] %vm368, %v498
        %751 = vst.msk [vmem:[#allocation2 + $0x2c] sm:$0xf] %vm368, %v507
        %752 = vst.msk [vmem:[#allocation2 + $0x30] sm:$0xf] %vm368, %v516
        %753 = vst.msk [vmem:[#allocation2 + $0x34] sm:$0xf] %vm368, %v525
        %754 = vst.msk [vmem:[#allocation2 + $0x38] sm:$0xf] %vm368, %v534
        %755 = vst.msk [vmem:[#allocation2 + $0x3c] sm:$0xf] %vm368, %v543
        %756 = vst.msk [vmem:[#allocation2 + $0x40] sm:$0xf] %vm368, %v552
        %757 = vst.msk [vmem:[#allocation2 + $0x44] sm:$0xf] %vm368, %v561
        %758 = vst.msk [vmem:[#allocation2 + $0x48] sm:$0xf] %vm368, %v570
        %759 = vst.msk [vmem:[#allocation2 + $0x4c] sm:$0xf] %vm368, %v579
        %760 = vst.msk [vmem:[#allocation2 + $0x50] sm:$0xf] %vm368, %v588
        %761 = vst.msk [vmem:[#allocation2 + $0x54] sm:$0xf] %vm368, %v597
        %762 = vst.msk [vmem:[#allocation2 + $0x58] sm:$0xf] %vm368, %v606
        %763 = vst.msk [vmem:[#allocation2 + $0x5c] sm:$0xf] %vm368, %v615
        %764 = vst.msk [vmem:[#allocation2 + $0x60] sm:$0xf] %vm368, %v624
        %765 = vst.msk [vmem:[#allocation2 + $0x64] sm:$0xf] %vm368, %v633
        %766 = vst.msk [vmem:[#allocation2 + $0x68] sm:$0xf] %vm368, %v642
        %767 = vst.msk [vmem:[#allocation2 + $0x6c] sm:$0xf] %vm368, %v651
        %768 = vst.msk [vmem:[#allocation2 + $0x70] sm:$0xf] %vm368, %v660
        %769 = vst.msk [vmem:[#allocation2 + $0x74] sm:$0xf] %vm368, %v669
        %770 = vst.msk [vmem:[#allocation2 + $0x78] sm:$0xf] %vm368, %v678
        %771 = vst.msk [vmem:[#allocation2 + $0x7c] sm:$0xf] %vm368, %v687
        %772 = vst.msk [vmem:[#allocation2 + $0x80] sm:$0xf] %vm368, %v696
        %773 = vst.msk [vmem:[#allocation2 + $0x84] sm:$0xf] %vm368, %v705
        %v774 = vld [vmem:[#allocation2 + $0x88] sm:$0x1]
        %v775 = vsel %vm373, %v706, %v774
        %776 = vst [vmem:[#allocation2 + $0x88] sm:$0x1] %v775
        %v777 = vld [vmem:[#allocation2] sm:$0xf]
        %v778 = vld [vmem:[#allocation2 + $0x4] sm:$0xf]
        %v779 = vld [vmem:[#allocation2 + $0x8] sm:$0xf]
        %v780 = vld [vmem:[#allocation2 + $0xc] sm:$0xf]
        %v781 = vld [vmem:[#allocation2 + $0x10] sm:$0xf]
        %v782 = vld [vmem:[#allocation2 + $0x14] sm:$0xf]
        %v783 = vld [vmem:[#allocation2 + $0x18] sm:$0xf]
        %v784 = vld [vmem:[#allocation2 + $0x1c] sm:$0xf]
        %v785 = vld [vmem:[#allocation2 + $0x20] sm:$0xf]
        %v786 = vld [vmem:[#allocation2 + $0x24] sm:$0xf]
        %v787 = vld [vmem:[#allocation2 + $0x28] sm:$0xf]
        %v788 = vld [vmem:[#allocation2 + $0x2c] sm:$0xf]
        %v789 = vld [vmem:[#allocation2 + $0x30] sm:$0xf]
        %v790 = vld [vmem:[#allocation2 + $0x34] sm:$0xf]
        %v791 = vld [vmem:[#allocation2 + $0x38] sm:$0xf]
        %v792 = vld [vmem:[#allocation2 + $0x3c] sm:$0xf]
        %v793 = vld [vmem:[#allocation2 + $0x40] sm:$0xf]
        %v794 = vld [vmem:[#allocation2 + $0x44] sm:$0xf]
        %v795 = vld [vmem:[#allocation2 + $0x48] sm:$0xf]
        %v796 = vld [vmem:[#allocation2 + $0x4c] sm:$0xf]
        %v797 = vld [vmem:[#allocation2 + $0x50] sm:$0xf]
        %v798 = vld [vmem:[#allocation2 + $0x54] sm:$0xf]
        %v799 = vld [vmem:[#allocation2 + $0x58] sm:$0xf]
        %v800 = vld [vmem:[#allocation2 + $0x5c] sm:$0xf]
        %v801 = vld [vmem:[#allocation2 + $0x60] sm:$0xf]
        %v802 = vld [vmem:[#allocation2 + $0x64] sm:$0xf]
        %v803 = vld [vmem:[#allocation2 + $0x68] sm:$0xf]
        %v804 = vld [vmem:[#allocation2 + $0x6c] sm:$0xf]
        %v805 = vld [vmem:[#allocation2 + $0x70] sm:$0xf]
        %v806 = vld [vmem:[#allocation2 + $0x74] sm:$0xf]
        %v807 = vld [vmem:[#allocation2 + $0x78] sm:$0xf]
        %v808 = vld [vmem:[#allocation2 + $0x7c] sm:$0xf]
        %v809 = vld [vmem:[%s1] sm:$0xf]
        %v810 = vld [vmem:[%s1 + $0x4] sm:$0xf]
        %v811 = vld [vmem:[%s1 + $0x8] sm:$0xf]
        %v812 = vld [vmem:[%s1 + $0xc] sm:$0xf]
        %v813 = vld [vmem:[%s1 + $0x10] sm:$0xf]
        %v814 = vld [vmem:[%s1 + $0x14] sm:$0xf]
        %v815 = vld [vmem:[%s1 + $0x18] sm:$0xf]
        %v816 = vld [vmem:[%s1 + $0x1c] sm:$0xf]
        %v849 = vunpack.c.l.b16 %v777
        %v850 = vunpack.c.l.b16 %v778
        %v851 = vunpack.c.l.b16 %v779
        %v852 = vunpack.c.l.b16 %v780
        %v853 = vunpack.c.l.b16 %v781
        %v854 = vunpack.c.l.b16 %v782
        %v855 = vunpack.c.l.b16 %v783
        %v856 = vunpack.c.l.b16 %v784
        %v857 = vunpack.c.l.b16 %v785
        %v858 = vunpack.c.l.b16 %v786
        %v859 = vunpack.c.l.b16 %v787
        %v860 = vunpack.c.l.b16 %v788
        %v861 = vunpack.c.l.b16 %v789
        %v862 = vunpack.c.l.b16 %v790
        %v863 = vunpack.c.l.b16 %v791
        %v864 = vunpack.c.l.b16 %v792
        %v865 = vunpack.c.l.b16 %v793
        %v866 = vunpack.c.l.b16 %v794
        %v867 = vunpack.c.l.b16 %v795
        %v868 = vunpack.c.l.b16 %v796
        %v869 = vunpack.c.l.b16 %v797
        %v870 = vunpack.c.l.b16 %v798
        %v871 = vunpack.c.l.b16 %v799
        %v872 = vunpack.c.l.b16 %v800
        %v873 = vunpack.c.l.b16 %v801
        %v874 = vunpack.c.l.b16 %v802
        %v875 = vunpack.c.l.b16 %v803
        %v876 = vunpack.c.l.b16 %v804
        %v877 = vunpack.c.l.b16 %v805
        %v878 = vunpack.c.l.b16 %v806
        %v879 = vunpack.c.l.b16 %v807
        %v880 = vunpack.c.l.b16 %v808
        %v881 = vpack.c.b16 %v850, %v849
        %v882 = vpack.c.b16 %v852, %v851
        %v883 = vpack.c.b16 %v854, %v853
        %v884 = vpack.c.b16 %v856, %v855
        %v885 = vpack.c.b16 %v858, %v857
        %v886 = vpack.c.b16 %v860, %v859
        %v887 = vpack.c.b16 %v862, %v861
        %v888 = vpack.c.b16 %v864, %v863
        %v889 = vpack.c.b16 %v866, %v865
        %v890 = vpack.c.b16 %v868, %v867
        %v891 = vpack.c.b16 %v870, %v869
        %v892 = vpack.c.b16 %v872, %v871
        %v893 = vpack.c.b16 %v874, %v873
        %v894 = vpack.c.b16 %v876, %v875
        %v895 = vpack.c.b16 %v878, %v877
        %v896 = vpack.c.b16 %v880, %v879
        %v905 = vunpack.c.l.b16 %v809
        %v906 = vunpack.c.l.b16 %v810
        %v907 = vunpack.c.l.b16 %v811
        %v908 = vunpack.c.l.b16 %v812
        %v909 = vunpack.c.l.b16 %v813
        %v910 = vunpack.c.l.b16 %v814
        %v911 = vunpack.c.l.b16 %v815
        %v912 = vunpack.c.l.b16 %v816
        %v913 = vpack.c.b16 %v906, %v905
        %v914 = vpack.c.b16 %v908, %v907
        %v915 = vpack.c.b16 %v910, %v909
        %v916 = vpack.c.b16 %v912, %v911
        %vm921 = vcmask 523264
        %v923 = vsel %vm921, %v881, 0
        %v926 = vsel %vm921, %v882, 0
        %v929 = vsel %vm921, %v883, 0
        %v932 = vsel %vm921, %v884, 0
        %v935 = vsel %vm921, %v885, 0
        %v938 = vsel %vm921, %v886, 0
        %v941 = vsel %vm921, %v887, 0
        %v944 = vsel %vm921, %v888, 0
        %v947 = vsel %vm921, %v889, 0
        %v950 = vsel %vm921, %v890, 0
        %v953 = vsel %vm921, %v891, 0
        %v956 = vsel %vm921, %v892, 0
        %v959 = vsel %vm921, %v893, 0
        %v962 = vsel %vm921, %v894, 0
        %v965 = vsel %vm921, %v895, 0
        %v968 = vsel %vm921, %v896, 0
        %970 = vmatprep.subr.bf16.mxu0 0
        %971 = vmatpush1.bf16.msra.mxu0 0
        %972 = vmatprep.subr.bf16.mxu0 0
        %973 = vmatpush1.bf16.msra.mxu0 0
        %974 = vmatprep.subr.bf16.mxu0 0
        %975 = vmatpush1.bf16.msra.mxu0 0
        %976 = vmatprep.subr.bf16.mxu0 0
        %977 = vmatpush1.bf16.msra.mxu0 0
        %978 = vmatprep.subr.bf16.mxu0 0
        %979 = vmatpush1.bf16.msra.mxu0 %v916
        %980 = vmatprep.subr.bf16.mxu0 0
        %981 = vmatpush1.bf16.msra.mxu0 %v915
        %982 = vmatprep.subr.bf16.mxu0 0
        %983 = vmatpush1.bf16.msra.mxu0 %v914
        %984 = vmatprep.subr.bf16.mxu0 0
        %985 = vmatpush1.bf16.msra.mxu0 %v913
        %986 = vmatprep.subr.bf16.mxu0 0
        %987 = vmatpush2.bf16.msra.mxu0 0
        %988 = vmatprep.subr.bf16.mxu0 0
        %989 = vmatpush2.bf16.msra.mxu0 0
        %990 = vmatprep.subr.bf16.mxu0 0
        %991 = vmatpush2.bf16.msra.mxu0 0
        %992 = vmatprep.subr.bf16.mxu0 0
        %993 = vmatpush2.bf16.msra.mxu0 0
        %994 = vmatprep.subr.bf16.mxu0 0
        %995 = vmatpush2.bf16.msra.mxu0 0
        %996 = vmatprep.subr.bf16.mxu0 0
        %997 = vmatpush2.bf16.msra.mxu0 0
        %998 = vmatprep.subr.bf16.mxu0 0
        %999 = vmatpush2.bf16.msra.mxu0 0
        %1000 = vmatprep.subr.bf16.mxu0 0
        %1001 = vmatpush2.bf16.msra.mxu0 0
        %1002 = vmatprep.mubr.bf16.mxu0 0
        %1003 = vmatmul.mubr.bf16.gmra.mxu0 %v923
        %v1004 = vpop.f32.mrf.mxu0
        %v1005 = vadd.f32 0.0, %v1004
        %v1006 = vpop.f32.mrf.mxu0
        %v1007 = vpop.f32.mrf.mxu0
        %v1008 = vadd.f32 0.0, %v1007
        %v1009 = vpop.f32.mrf.mxu0
        %1010 = vmatprep.mubr.bf16.mxu0 0
        %1011 = vmatmul.mubr.bf16.gmra.mxu0 %v926
        %v1012 = vpop.f32.mrf.mxu0
        %v1013 = vadd.f32 0.0, %v1012
        %v1014 = vpop.f32.mrf.mxu0
        %v1015 = vpop.f32.mrf.mxu0
        %v1016 = vadd.f32 0.0, %v1015
        %v1017 = vpop.f32.mrf.mxu0
        %1018 = vmatprep.mubr.bf16.mxu0 0
        %1019 = vmatmul.mubr.bf16.gmra.mxu0 %v929
        %v1020 = vpop.f32.mrf.mxu0
        %v1021 = vadd.f32 0.0, %v1020
        %v1022 = vpop.f32.mrf.mxu0
        %v1023 = vpop.f32.mrf.mxu0
        %v1024 = vadd.f32 0.0, %v1023
        %v1025 = vpop.f32.mrf.mxu0
        %1026 = vmatprep.mubr.bf16.mxu0 0
        %1027 = vmatmul.mubr.bf16.gmra.mxu0 %v932
        %v1028 = vpop.f32.mrf.mxu0
        %v1029 = vadd.f32 0.0, %v1028
        %v1030 = vpop.f32.mrf.mxu0
        %v1031 = vpop.f32.mrf.mxu0
        %v1032 = vadd.f32 0.0, %v1031
        %v1033 = vpop.f32.mrf.mxu0
        %1034 = vmatprep.mubr.bf16.mxu0 0
        %1035 = vmatmul.mubr.bf16.gmra.mxu0 %v935
        %v1036 = vpop.f32.mrf.mxu0
        %v1037 = vadd.f32 0.0, %v1036
        %v1038 = vpop.f32.mrf.mxu0
        %v1039 = vpop.f32.mrf.mxu0
        %v1040 = vadd.f32 0.0, %v1039
        %v1041 = vpop.f32.mrf.mxu0
        %1042 = vmatprep.mubr.bf16.mxu0 0
        %1043 = vmatmul.mubr.bf16.gmra.mxu0 %v938
        %v1044 = vpop.f32.mrf.mxu0
        %v1045 = vadd.f32 0.0, %v1044
        %v1046 = vpop.f32.mrf.mxu0
        %v1047 = vpop.f32.mrf.mxu0
        %v1048 = vadd.f32 0.0, %v1047
        %v1049 = vpop.f32.mrf.mxu0
        %1050 = vmatprep.mubr.bf16.mxu0 0
        %1051 = vmatmul.mubr.bf16.gmra.mxu0 %v941
        %v1052 = vpop.f32.mrf.mxu0
        %v1053 = vadd.f32 0.0, %v1052
        %v1054 = vpop.f32.mrf.mxu0
        %v1055 = vpop.f32.mrf.mxu0
        %v1056 = vadd.f32 0.0, %v1055
        %v1057 = vpop.f32.mrf.mxu0
        %1058 = vmatprep.mubr.bf16.mxu0 0
        %1059 = vmatmul.mubr.bf16.gmra.mxu0 %v944
        %v1060 = vpop.f32.mrf.mxu0
        %v1061 = vadd.f32 0.0, %v1060
        %v1062 = vpop.f32.mrf.mxu0
        %v1063 = vpop.f32.mrf.mxu0
        %v1064 = vadd.f32 0.0, %v1063
        %v1065 = vpop.f32.mrf.mxu0
        %1066 = vmatprep.mubr.bf16.mxu0 0
        %1067 = vmatmul.mubr.bf16.gmra.mxu0 %v947
        %v1068 = vpop.f32.mrf.mxu0
        %v1069 = vadd.f32 0.0, %v1068
        %v1070 = vpop.f32.mrf.mxu0
        %v1071 = vpop.f32.mrf.mxu0
        %v1072 = vadd.f32 0.0, %v1071
        %v1073 = vpop.f32.mrf.mxu0
        %1074 = vmatprep.mubr.bf16.mxu0 0
        %1075 = vmatmul.mubr.bf16.gmra.mxu0 %v950
        %v1076 = vpop.f32.mrf.mxu0
        %v1077 = vadd.f32 0.0, %v1076
        %v1078 = vpop.f32.mrf.mxu0
        %v1079 = vpop.f32.mrf.mxu0
        %v1080 = vadd.f32 0.0, %v1079
        %v1081 = vpop.f32.mrf.mxu0
        %1082 = vmatprep.mubr.bf16.mxu0 0
        %1083 = vmatmul.mubr.bf16.gmra.mxu0 %v953
        %v1084 = vpop.f32.mrf.mxu0
        %v1085 = vadd.f32 0.0, %v1084
        %v1086 = vpop.f32.mrf.mxu0
        %v1087 = vpop.f32.mrf.mxu0
        %v1088 = vadd.f32 0.0, %v1087
        %v1089 = vpop.f32.mrf.mxu0
        %1090 = vmatprep.mubr.bf16.mxu0 0
        %1091 = vmatmul.mubr.bf16.gmra.mxu0 %v956
        %v1092 = vpop.f32.mrf.mxu0
        %v1093 = vadd.f32 0.0, %v1092
        %v1094 = vpop.f32.mrf.mxu0
        %v1095 = vpop.f32.mrf.mxu0
        %v1096 = vadd.f32 0.0, %v1095
        %v1097 = vpop.f32.mrf.mxu0
        %1098 = vmatprep.mubr.bf16.mxu0 0
        %1099 = vmatmul.mubr.bf16.gmra.mxu0 %v959
        %v1100 = vpop.f32.mrf.mxu0
        %v1101 = vadd.f32 0.0, %v1100
        %v1102 = vpop.f32.mrf.mxu0
        %v1103 = vpop.f32.mrf.mxu0
        %v1104 = vadd.f32 0.0, %v1103
        %v1105 = vpop.f32.mrf.mxu0
        %1106 = vmatprep.mubr.bf16.mxu0 0
        %1107 = vmatmul.mubr.bf16.gmra.mxu0 %v962
        %v1108 = vpop.f32.mrf.mxu0
        %v1109 = vadd.f32 0.0, %v1108
        %v1110 = vpop.f32.mrf.mxu0
        %v1111 = vpop.f32.mrf.mxu0
        %v1112 = vadd.f32 0.0, %v1111
        %v1113 = vpop.f32.mrf.mxu0
        %1114 = vmatprep.mubr.bf16.mxu0 0
        %1115 = vmatmul.mubr.bf16.gmra.mxu0 %v965
        %v1116 = vpop.f32.mrf.mxu0
        %v1117 = vadd.f32 0.0, %v1116
        %v1118 = vpop.f32.mrf.mxu0
        %v1119 = vpop.f32.mrf.mxu0
        %v1120 = vadd.f32 0.0, %v1119
        %v1121 = vpop.f32.mrf.mxu0
        %1122 = vmatprep.mubr.bf16.mxu0 0
        %1123 = vmatmul.mubr.bf16.gmra.mxu0 %v968
        %v1124 = vpop.f32.mrf.mxu0
        %v1125 = vadd.f32 0.0, %v1124
        %v1126 = vpop.f32.mrf.mxu0
        %v1127 = vpop.f32.mrf.mxu0
        %v1128 = vadd.f32 0.0, %v1127
        %v1129 = vpop.f32.mrf.mxu0
        %1130 = vdwg.mxu0
        %v1131 = vsel %vm304, 1, 0
        %v1132 = vsel %vm305, 1, 0
        %v1133 = vsel %vm306, 1, 0
        %v1134 = vsel %vm307, 1, 0
        %v1135 = vsel %vm308, 1, 0
        %v1136 = vsel %vm309, 1, 0
        %v1137 = vsel %vm310, 1, 0
        %v1138 = vsel %vm311, 1, 0
        %v1139 = vsel %vm312, 1, 0
        %v1140 = vsel %vm313, 1, 0
        %v1141 = vsel %vm314, 1, 0
        %v1142 = vsel %vm315, 1, 0
        %v1143 = vsel %vm316, 1, 0
        %v1144 = vsel %vm317, 1, 0
        %v1145 = vsel %vm318, 1, 0
        %v1146 = vsel %vm319, 1, 0
        %v1147 = vsel %vm320, 1, 0
        %v1148 = vsel %vm321, 1, 0
        %v1149 = vsel %vm322, 1, 0
        %v1150 = vsel %vm323, 1, 0
        %v1151 = vsel %vm324, 1, 0
        %v1152 = vsel %vm325, 1, 0
        %v1153 = vsel %vm326, 1, 0
        %v1154 = vsel %vm327, 1, 0
        %v1155 = vsel %vm328, 1, 0
        %v1156 = vsel %vm329, 1, 0
        %v1157 = vsel %vm330, 1, 0
        %v1158 = vsel %vm331, 1, 0
        %v1159 = vsel %vm332, 1, 0
        %v1160 = vsel %vm333, 1, 0
        %v1161 = vsel %vm334, 1, 0
        %v1162 = vsel %vm335, 1, 0
        %vm1163 = vcmp.eq.s32.totalorder %v1131, 1
        %vm1164 = vcmp.eq.s32.totalorder %v1132, 1
        %vm1165 = vcmp.eq.s32.totalorder %v1133, 1
        %vm1166 = vcmp.eq.s32.totalorder %v1134, 1
        %vm1167 = vcmp.eq.s32.totalorder %v1135, 1
        %vm1168 = vcmp.eq.s32.totalorder %v1136, 1
        %vm1169 = vcmp.eq.s32.totalorder %v1137, 1
        %vm1170 = vcmp.eq.s32.totalorder %v1138, 1
        %vm1171 = vcmp.eq.s32.totalorder %v1139, 1
        %vm1172 = vcmp.eq.s32.totalorder %v1140, 1
        %vm1173 = vcmp.eq.s32.totalorder %v1141, 1
        %vm1174 = vcmp.eq.s32.totalorder %v1142, 1
        %vm1175 = vcmp.eq.s32.totalorder %v1143, 1
        %vm1176 = vcmp.eq.s32.totalorder %v1144, 1
        %vm1177 = vcmp.eq.s32.totalorder %v1145, 1
        %vm1178 = vcmp.eq.s32.totalorder %v1146, 1
        %vm1179 = vcmp.eq.s32.totalorder %v1147, 1
        %vm1180 = vcmp.eq.s32.totalorder %v1148, 1
        %vm1181 = vcmp.eq.s32.totalorder %v1149, 1
        %vm1182 = vcmp.eq.s32.totalorder %v1150, 1
        %vm1183 = vcmp.eq.s32.totalorder %v1151, 1
        %vm1184 = vcmp.eq.s32.totalorder %v1152, 1
        %vm1185 = vcmp.eq.s32.totalorder %v1153, 1
        %vm1186 = vcmp.eq.s32.totalorder %v1154, 1
        %vm1187 = vcmp.eq.s32.totalorder %v1155, 1
        %vm1188 = vcmp.eq.s32.totalorder %v1156, 1
        %vm1189 = vcmp.eq.s32.totalorder %v1157, 1
        %vm1190 = vcmp.eq.s32.totalorder %v1158, 1
        %vm1191 = vcmp.eq.s32.totalorder %v1159, 1
        %vm1192 = vcmp.eq.s32.totalorder %v1160, 1
        %vm1193 = vcmp.eq.s32.totalorder %v1161, 1
        %vm1194 = vcmp.eq.s32.totalorder %v1162, 1
        %v1195 = vsel %vm1163, %v1005, 0.0
        %v1196 = vsel %vm1164, %v1008, 0.0
        %v1197 = vsel %vm1165, %v1013, 0.0
        %v1198 = vsel %vm1166, %v1016, 0.0
        %v1199 = vsel %vm1167, %v1021, 0.0
        %v1200 = vsel %vm1168, %v1024, 0.0
        %v1201 = vsel %vm1169, %v1029, 0.0
        %v1202 = vsel %vm1170, %v1032, 0.0
        %v1203 = vsel %vm1171, %v1037, 0.0
        %v1204 = vsel %vm1172, %v1040, 0.0
        %v1205 = vsel %vm1173, %v1045, 0.0
        %v1206 = vsel %vm1174, %v1048, 0.0
        %v1207 = vsel %vm1175, %v1053, 0.0
        %v1208 = vsel %vm1176, %v1056, 0.0
        %v1209 = vsel %vm1177, %v1061, 0.0
        %v1210 = vsel %vm1178, %v1064, 0.0
        %v1211 = vsel %vm1179, %v1069, 0.0
        %v1212 = vsel %vm1180, %v1072, 0.0
        %v1213 = vsel %vm1181, %v1077, 0.0
        %v1214 = vsel %vm1182, %v1080, 0.0
        %v1215 = vsel %vm1183, %v1085, 0.0
        %v1216 = vsel %vm1184, %v1088, 0.0
        %v1217 = vsel %vm1185, %v1093, 0.0
        %v1218 = vsel %vm1186, %v1096, 0.0
        %v1219 = vsel %vm1187, %v1101, 0.0
        %v1220 = vsel %vm1188, %v1104, 0.0
        %v1221 = vsel %vm1189, %v1109, 0.0
        %v1222 = vsel %vm1190, %v1112, 0.0
        %v1223 = vsel %vm1191, %v1117, 0.0
        %v1224 = vsel %vm1192, %v1120, 0.0
        %v1225 = vsel %vm1193, %v1125, 0.0
        %v1226 = vsel %vm1194, %v1128, 0.0
        %v1227 = vadd.f32 %v1195, 0.0
        %v1228 = vadd.f32 %v1196, 0.0
        %v1229 = vadd.f32 %v1197, 0.0
        %v1230 = vadd.f32 %v1198, 0.0
        %v1231 = vadd.f32 %v1199, 0.0
        %v1232 = vadd.f32 %v1200, 0.0
        %v1233 = vadd.f32 %v1201, 0.0
        %v1234 = vadd.f32 %v1202, 0.0
        %v1235 = vadd.f32 %v1203, 0.0
        %v1236 = vadd.f32 %v1204, 0.0
        %v1237 = vadd.f32 %v1205, 0.0
        %v1238 = vadd.f32 %v1206, 0.0
        %v1239 = vadd.f32 %v1207, 0.0
        %v1240 = vadd.f32 %v1208, 0.0
        %v1241 = vadd.f32 %v1209, 0.0
        %v1242 = vadd.f32 %v1210, 0.0
        %v1243 = vadd.f32 %v1211, 0.0
        %v1244 = vadd.f32 %v1212, 0.0
        %v1245 = vadd.f32 %v1213, 0.0
        %v1246 = vadd.f32 %v1214, 0.0
        %v1247 = vadd.f32 %v1215, 0.0
        %v1248 = vadd.f32 %v1216, 0.0
        %v1249 = vadd.f32 %v1217, 0.0
        %v1250 = vadd.f32 %v1218, 0.0
        %v1251 = vadd.f32 %v1219, 0.0
        %v1252 = vadd.f32 %v1220, 0.0
        %v1253 = vadd.f32 %v1221, 0.0
        %v1254 = vadd.f32 %v1222, 0.0
        %v1255 = vadd.f32 %v1223, 0.0
        %v1256 = vadd.f32 %v1224, 0.0
        %v1257 = vadd.f32 %v1225, 0.0
        %v1258 = vadd.f32 %v1226, 0.0
        %v1259 = vld [vmem:[#allocation2] sm:$0xf]
        %v1260 = vld [vmem:[#allocation2 + $0x4] sm:$0xf]
        %v1261 = vld [vmem:[#allocation2 + $0x8] sm:$0xf]
        %v1262 = vld [vmem:[#allocation2 + $0xc] sm:$0xf]
        %v1263 = vld [vmem:[#allocation2 + $0x10] sm:$0xf]
        %v1264 = vld [vmem:[#allocation2 + $0x14] sm:$0xf]
        %v1265 = vld [vmem:[#allocation2 + $0x18] sm:$0xf]
        %v1266 = vld [vmem:[#allocation2 + $0x1c] sm:$0xf]
        %v1267 = vld [vmem:[#allocation2 + $0x20] sm:$0xf]
        %v1268 = vld [vmem:[#allocation2 + $0x24] sm:$0xf]
        %v1269 = vld [vmem:[#allocation2 + $0x28] sm:$0xf]
        %v1270 = vld [vmem:[#allocation2 + $0x2c] sm:$0xf]
        %v1271 = vld [vmem:[#allocation2 + $0x30] sm:$0xf]
        %v1272 = vld [vmem:[#allocation2 + $0x34] sm:$0xf]
        %v1273 = vld [vmem:[#allocation2 + $0x38] sm:$0xf]
        %v1274 = vld [vmem:[#allocation2 + $0x3c] sm:$0xf]
        %v1275 = vld [vmem:[#allocation2 + $0x40] sm:$0xf]
        %v1276 = vld [vmem:[#allocation2 + $0x44] sm:$0xf]
        %v1277 = vld [vmem:[#allocation2 + $0x48] sm:$0xf]
        %v1278 = vld [vmem:[#allocation2 + $0x4c] sm:$0xf]
        %v1279 = vld [vmem:[#allocation2 + $0x50] sm:$0xf]
        %v1280 = vld [vmem:[#allocation2 + $0x54] sm:$0xf]
        %v1281 = vld [vmem:[#allocation2 + $0x58] sm:$0xf]
        %v1282 = vld [vmem:[#allocation2 + $0x5c] sm:$0xf]
        %v1283 = vld [vmem:[#allocation2 + $0x60] sm:$0xf]
        %v1284 = vld [vmem:[#allocation2 + $0x64] sm:$0xf]
        %v1285 = vld [vmem:[#allocation2 + $0x68] sm:$0xf]
        %v1286 = vld [vmem:[#allocation2 + $0x6c] sm:$0xf]
        %v1287 = vld [vmem:[#allocation2 + $0x70] sm:$0xf]
        %v1288 = vld [vmem:[#allocation2 + $0x74] sm:$0xf]
        %v1289 = vld [vmem:[#allocation2 + $0x78] sm:$0xf]
        %v1290 = vld [vmem:[#allocation2 + $0x7c] sm:$0xf]
        %v1291 = vld [vmem:[#allocation2 + $0x80] sm:$0x1]
        %s1292 = scalar_lea.vmem %s1, 32
        %v1293 = vld [vmem:[%s1292] sm:$0xf]
        %v1294 = vld [vmem:[%s1292 + $0x4] sm:$0xf]
        %v1295 = vld [vmem:[%s1292 + $0x8] sm:$0xf]
        %v1296 = vld [vmem:[%s1292 + $0xc] sm:$0xf]
        %v1297 = vld [vmem:[%s1292 + $0x10] sm:$0xf]
        %v1298 = vld [vmem:[%s1292 + $0x14] sm:$0xf]
        %v1299 = vld [vmem:[%s1292 + $0x18] sm:$0xf]
        %v1300 = vld [vmem:[%s1292 + $0x1c] sm:$0xf]
        %v1334 = vunpack.c.l.b16 %v1259
        %v1335 = vunpack.c.l.b16 %v1260
        %v1336 = vunpack.c.l.b16 %v1261
        %v1337 = vunpack.c.l.b16 %v1262
        %v1338 = vunpack.c.l.b16 %v1263
        %v1339 = vunpack.c.l.b16 %v1264
        %v1340 = vunpack.c.l.b16 %v1265
        %v1341 = vunpack.c.l.b16 %v1266
        %v1342 = vunpack.c.l.b16 %v1267
        %v1343 = vunpack.c.l.b16 %v1268
        %v1344 = vunpack.c.l.b16 %v1269
        %v1345 = vunpack.c.l.b16 %v1270
        %v1346 = vunpack.c.l.b16 %v1271
        %v1347 = vunpack.c.l.b16 %v1272
        %v1348 = vunpack.c.l.b16 %v1273
        %v1349 = vunpack.c.l.b16 %v1274
        %v1350 = vunpack.c.l.b16 %v1275
        %v1351 = vunpack.c.l.b16 %v1276
        %v1352 = vunpack.c.l.b16 %v1277
        %v1353 = vunpack.c.l.b16 %v1278
        %v1354 = vunpack.c.l.b16 %v1279
        %v1355 = vunpack.c.l.b16 %v1280
        %v1356 = vunpack.c.l.b16 %v1281
        %v1357 = vunpack.c.l.b16 %v1282
        %v1358 = vunpack.c.l.b16 %v1283
        %v1359 = vunpack.c.l.b16 %v1284
        %v1360 = vunpack.c.l.b16 %v1285
        %v1361 = vunpack.c.l.b16 %v1286
        %v1362 = vunpack.c.l.b16 %v1287
        %v1363 = vunpack.c.l.b16 %v1288
        %v1364 = vunpack.c.l.b16 %v1289
        %v1365 = vunpack.c.l.b16 %v1290
        %v1366 = vunpack.c.l.b16 %v1291
        %v1367 = vpack.c.b16 %v1335, %v1334
        %v1368 = vpack.c.b16 %v1337, %v1336
        %v1369 = vpack.c.b16 %v1339, %v1338
        %v1370 = vpack.c.b16 %v1341, %v1340
        %v1371 = vpack.c.b16 %v1343, %v1342
        %v1372 = vpack.c.b16 %v1345, %v1344
        %v1373 = vpack.c.b16 %v1347, %v1346
        %v1374 = vpack.c.b16 %v1349, %v1348
        %v1375 = vpack.c.b16 %v1351, %v1350
        %v1376 = vpack.c.b16 %v1353, %v1352
        %v1377 = vpack.c.b16 %v1355, %v1354
        %v1378 = vpack.c.b16 %v1357, %v1356
        %v1379 = vpack.c.b16 %v1359, %v1358
        %v1380 = vpack.c.b16 %v1361, %v1360
        %v1381 = vpack.c.b16 %v1363, %v1362
        %v1382 = vpack.c.b16 %v1365, %v1364
        %v1383 = vpack.c.b16 %v1366, %v1366
        %vm1384 = vsmask.f32 7424
        %v1386 = vshrl.u32 %v1367, 16
        %v1388 = vshll.u32 %v1367, 16
        %v1390 = vrot.slane %v1388, 1
        %v1391 = vor.u32 %v1386, %v1390
        %v1393 = vshll.u32 %v1368, 16
        %v1395 = vrot.slane %v1393, 1
        %v1396 = vsel %vm1384, %v1391, %v1395
        %v1397 = vshrl.u32 %v1368, 16
        %v1399 = vor.u32 %v1397, %v1395
        %v1401 = vshll.u32 %v1369, 16
        %v1403 = vrot.slane %v1401, 1
        %v1404 = vsel %vm1384, %v1399, %v1403
        %v1405 = vshrl.u32 %v1369, 16
        %v1407 = vor.u32 %v1405, %v1403
        %v1409 = vshll.u32 %v1370, 16
        %v1411 = vrot.slane %v1409, 1
        %v1412 = vsel %vm1384, %v1407, %v1411
        %v1413 = vshrl.u32 %v1370, 16
        %v1415 = vor.u32 %v1413, %v1411
        %v1417 = vshll.u32 %v1371, 16
        %v1419 = vrot.slane %v1417, 1
        %v1420 = vsel %vm1384, %v1415, %v1419
        %v1421 = vshrl.u32 %v1371, 16
        %v1423 = vor.u32 %v1421, %v1419
        %v1425 = vshll.u32 %v1372, 16
        %v1427 = vrot.slane %v1425, 1
        %v1428 = vsel %vm1384, %v1423, %v1427
        %v1429 = vshrl.u32 %v1372, 16
        %v1431 = vor.u32 %v1429, %v1427
        %v1433 = vshll.u32 %v1373, 16
        %v1435 = vrot.slane %v1433, 1
        %v1436 = vsel %vm1384, %v1431, %v1435
        %v1437 = vshrl.u32 %v1373, 16
        %v1439 = vor.u32 %v1437, %v1435
        %v1441 = vshll.u32 %v1374, 16
        %v1443 = vrot.slane %v1441, 1
        %v1444 = vsel %vm1384, %v1439, %v1443
        %v1445 = vshrl.u32 %v1374, 16
        %v1447 = vor.u32 %v1445, %v1443
        %v1449 = vshll.u32 %v1375, 16
        %v1451 = vrot.slane %v1449, 1
        %v1452 = vsel %vm1384, %v1447, %v1451
        %v1453 = vshrl.u32 %v1375, 16
        %v1455 = vor.u32 %v1453, %v1451
        %v1457 = vshll.u32 %v1376, 16
        %v1459 = vrot.slane %v1457, 1
        %v1460 = vsel %vm1384, %v1455, %v1459
        %v1461 = vshrl.u32 %v1376, 16
        %v1463 = vor.u32 %v1461, %v1459
        %v1465 = vshll.u32 %v1377, 16
        %v1467 = vrot.slane %v1465, 1
        %v1468 = vsel %vm1384, %v1463, %v1467
        %v1469 = vshrl.u32 %v1377, 16
        %v1471 = vor.u32 %v1469, %v1467
        %v1473 = vshll.u32 %v1378, 16
        %v1475 = vrot.slane %v1473, 1
        %v1476 = vsel %vm1384, %v1471, %v1475
        %v1477 = vshrl.u32 %v1378, 16
        %v1479 = vor.u32 %v1477, %v1475
        %v1481 = vshll.u32 %v1379, 16
        %v1483 = vrot.slane %v1481, 1
        %v1484 = vsel %vm1384, %v1479, %v1483
        %v1485 = vshrl.u32 %v1379, 16
        %v1487 = vor.u32 %v1485, %v1483
        %v1489 = vshll.u32 %v1380, 16
        %v1491 = vrot.slane %v1489, 1
        %v1492 = vsel %vm1384, %v1487, %v1491
        %v1493 = vshrl.u32 %v1380, 16
        %v1495 = vor.u32 %v1493, %v1491
        %v1497 = vshll.u32 %v1381, 16
        %v1499 = vrot.slane %v1497, 1
        %v1500 = vsel %vm1384, %v1495, %v1499
        %v1501 = vshrl.u32 %v1381, 16
        %v1503 = vor.u32 %v1501, %v1499
        %v1505 = vshll.u32 %v1382, 16
        %v1507 = vrot.slane %v1505, 1
        %v1508 = vsel %vm1384, %v1503, %v1507
        %v1509 = vshrl.u32 %v1382, 16
        %v1511 = vor.u32 %v1509, %v1507
        %v1513 = vshll.u32 %v1383, 16
        %v1515 = vrot.slane %v1513, 1
        %v1516 = vsel %vm1384, %v1511, %v1515
        %v1525 = vunpack.c.l.b16 %v1293
        %v1526 = vunpack.c.l.b16 %v1294
        %v1527 = vunpack.c.l.b16 %v1295
        %v1528 = vunpack.c.l.b16 %v1296
        %v1529 = vunpack.c.l.b16 %v1297
        %v1530 = vunpack.c.l.b16 %v1298
        %v1531 = vunpack.c.l.b16 %v1299
        %v1532 = vunpack.c.l.b16 %v1300
        %v1533 = vpack.c.b16 %v1526, %v1525
        %v1534 = vpack.c.b16 %v1528, %v1527
        %v1535 = vpack.c.b16 %v1530, %v1529
        %v1536 = vpack.c.b16 %v1532, %v1531
        %v1542 = vsel %vm921, %v1396, 0
        %v1545 = vsel %vm921, %v1404, 0
        %v1548 = vsel %vm921, %v1412, 0
        %v1551 = vsel %vm921, %v1420, 0
        %v1554 = vsel %vm921, %v1428, 0
        %v1557 = vsel %vm921, %v1436, 0
        %v1560 = vsel %vm921, %v1444, 0
        %v1563 = vsel %vm921, %v1452, 0
        %v1566 = vsel %vm921, %v1460, 0
        %v1569 = vsel %vm921, %v1468, 0
        %v1572 = vsel %vm921, %v1476, 0
        %v1575 = vsel %vm921, %v1484, 0
        %v1578 = vsel %vm921, %v1492, 0
        %v1581 = vsel %vm921, %v1500, 0
        %v1584 = vsel %vm921, %v1508, 0
        %v1587 = vsel %vm921, %v1516, 0
        %1589 = vmatprep.subr.bf16.mxu0 0
        %1590 = vmatpush1.bf16.msra.mxu0 0
        %1591 = vmatprep.subr.bf16.mxu0 0
        %1592 = vmatpush1.bf16.msra.mxu0 0
        %1593 = vmatprep.subr.bf16.mxu0 0
        %1594 = vmatpush1.bf16.msra.mxu0 0
        %1595 = vmatprep.subr.bf16.mxu0 0
        %1596 = vmatpush1.bf16.msra.mxu0 0
        %1597 = vmatprep.subr.bf16.mxu0 0
        %1598 = vmatpush1.bf16.msra.mxu0 %v1536
        %1599 = vmatprep.subr.bf16.mxu0 0
        %1600 = vmatpush1.bf16.msra.mxu0 %v1535
        %1601 = vmatprep.subr.bf16.mxu0 0
        %1602 = vmatpush1.bf16.msra.mxu0 %v1534
        %1603 = vmatprep.subr.bf16.mxu0 0
        %1604 = vmatpush1.bf16.msra.mxu0 %v1533
        %1605 = vmatprep.subr.bf16.mxu0 0
        %1606 = vmatpush2.bf16.msra.mxu0 0
        %1607 = vmatprep.subr.bf16.mxu0 0
        %1608 = vmatpush2.bf16.msra.mxu0 0
        %1609 = vmatprep.subr.bf16.mxu0 0
        %1610 = vmatpush2.bf16.msra.mxu0 0
        %1611 = vmatprep.subr.bf16.mxu0 0
        %1612 = vmatpush2.bf16.msra.mxu0 0
        %1613 = vmatprep.subr.bf16.mxu0 0
        %1614 = vmatpush2.bf16.msra.mxu0 0
        %1615 = vmatprep.subr.bf16.mxu0 0
        %1616 = vmatpush2.bf16.msra.mxu0 0
        %1617 = vmatprep.subr.bf16.mxu0 0
        %1618 = vmatpush2.bf16.msra.mxu0 0
        %1619 = vmatprep.subr.bf16.mxu0 0
        %1620 = vmatpush2.bf16.msra.mxu0 0
        %1621 = vmatprep.mubr.bf16.mxu0 0
        %1622 = vmatmul.mubr.bf16.gmra.mxu0 %v1542
        %v1623 = vpop.f32.mrf.mxu0
        %v1624 = vadd.f32 0.0, %v1623
        %v1625 = vpop.f32.mrf.mxu0
        %v1626 = vpop.f32.mrf.mxu0
        %v1627 = vadd.f32 0.0, %v1626
        %v1628 = vpop.f32.mrf.mxu0
        %1629 = vmatprep.mubr.bf16.mxu0 0
        %1630 = vmatmul.mubr.bf16.gmra.mxu0 %v1545
        %v1631 = vpop.f32.mrf.mxu0
        %v1632 = vadd.f32 0.0, %v1631
        %v1633 = vpop.f32.mrf.mxu0
        %v1634 = vpop.f32.mrf.mxu0
        %v1635 = vadd.f32 0.0, %v1634
        %v1636 = vpop.f32.mrf.mxu0
        %1637 = vmatprep.mubr.bf16.mxu0 0
        %1638 = vmatmul.mubr.bf16.gmra.mxu0 %v1548
        %v1639 = vpop.f32.mrf.mxu0
        %v1640 = vadd.f32 0.0, %v1639
        %v1641 = vpop.f32.mrf.mxu0
        %v1642 = vpop.f32.mrf.mxu0
        %v1643 = vadd.f32 0.0, %v1642
        %v1644 = vpop.f32.mrf.mxu0
        %1645 = vmatprep.mubr.bf16.mxu0 0
        %1646 = vmatmul.mubr.bf16.gmra.mxu0 %v1551
        %v1647 = vpop.f32.mrf.mxu0
        %v1648 = vadd.f32 0.0, %v1647
        %v1649 = vpop.f32.mrf.mxu0
        %v1650 = vpop.f32.mrf.mxu0
        %v1651 = vadd.f32 0.0, %v1650
        %v1652 = vpop.f32.mrf.mxu0
        %1653 = vmatprep.mubr.bf16.mxu0 0
        %1654 = vmatmul.mubr.bf16.gmra.mxu0 %v1554
        %v1655 = vpop.f32.mrf.mxu0
        %v1656 = vadd.f32 0.0, %v1655
        %v1657 = vpop.f32.mrf.mxu0
        %v1658 = vpop.f32.mrf.mxu0
        %v1659 = vadd.f32 0.0, %v1658
        %v1660 = vpop.f32.mrf.mxu0
        %1661 = vmatprep.mubr.bf16.mxu0 0
        %1662 = vmatmul.mubr.bf16.gmra.mxu0 %v1557
        %v1663 = vpop.f32.mrf.mxu0
        %v1664 = vadd.f32 0.0, %v1663
        %v1665 = vpop.f32.mrf.mxu0
        %v1666 = vpop.f32.mrf.mxu0
        %v1667 = vadd.f32 0.0, %v1666
        %v1668 = vpop.f32.mrf.mxu0
        %1669 = vmatprep.mubr.bf16.mxu0 0
        %1670 = vmatmul.mubr.bf16.gmra.mxu0 %v1560
        %v1671 = vpop.f32.mrf.mxu0
        %v1672 = vadd.f32 0.0, %v1671
        %v1673 = vpop.f32.mrf.mxu0
        %v1674 = vpop.f32.mrf.mxu0
        %v1675 = vadd.f32 0.0, %v1674
        %v1676 = vpop.f32.mrf.mxu0
        %1677 = vmatprep.mubr.bf16.mxu0 0
        %1678 = vmatmul.mubr.bf16.gmra.mxu0 %v1563
        %v1679 = vpop.f32.mrf.mxu0
        %v1680 = vadd.f32 0.0, %v1679
        %v1681 = vpop.f32.mrf.mxu0
        %v1682 = vpop.f32.mrf.mxu0
        %v1683 = vadd.f32 0.0, %v1682
        %v1684 = vpop.f32.mrf.mxu0
        %1685 = vmatprep.mubr.bf16.mxu0 0
        %1686 = vmatmul.mubr.bf16.gmra.mxu0 %v1566
        %v1687 = vpop.f32.mrf.mxu0
        %v1688 = vadd.f32 0.0, %v1687
        %v1689 = vpop.f32.mrf.mxu0
        %v1690 = vpop.f32.mrf.mxu0
        %v1691 = vadd.f32 0.0, %v1690
        %v1692 = vpop.f32.mrf.mxu0
        %1693 = vmatprep.mubr.bf16.mxu0 0
        %1694 = vmatmul.mubr.bf16.gmra.mxu0 %v1569
        %v1695 = vpop.f32.mrf.mxu0
        %v1696 = vadd.f32 0.0, %v1695
        %v1697 = vpop.f32.mrf.mxu0
        %v1698 = vpop.f32.mrf.mxu0
        %v1699 = vadd.f32 0.0, %v1698
        %v1700 = vpop.f32.mrf.mxu0
        %1701 = vmatprep.mubr.bf16.mxu0 0
        %1702 = vmatmul.mubr.bf16.gmra.mxu0 %v1572
        %v1703 = vpop.f32.mrf.mxu0
        %v1704 = vadd.f32 0.0, %v1703
        %v1705 = vpop.f32.mrf.mxu0
        %v1706 = vpop.f32.mrf.mxu0
        %v1707 = vadd.f32 0.0, %v1706
        %v1708 = vpop.f32.mrf.mxu0
        %1709 = vmatprep.mubr.bf16.mxu0 0
        %1710 = vmatmul.mubr.bf16.gmra.mxu0 %v1575
        %v1711 = vpop.f32.mrf.mxu0
        %v1712 = vadd.f32 0.0, %v1711
        %v1713 = vpop.f32.mrf.mxu0
        %v1714 = vpop.f32.mrf.mxu0
        %v1715 = vadd.f32 0.0, %v1714
        %v1716 = vpop.f32.mrf.mxu0
        %1717 = vmatprep.mubr.bf16.mxu0 0
        %1718 = vmatmul.mubr.bf16.gmra.mxu0 %v1578
        %v1719 = vpop.f32.mrf.mxu0
        %v1720 = vadd.f32 0.0, %v1719
        %v1721 = vpop.f32.mrf.mxu0
        %v1722 = vpop.f32.mrf.mxu0
        %v1723 = vadd.f32 0.0, %v1722
        %v1724 = vpop.f32.mrf.mxu0
        %1725 = vmatprep.mubr.bf16.mxu0 0
        %1726 = vmatmul.mubr.bf16.gmra.mxu0 %v1581
        %v1727 = vpop.f32.mrf.mxu0
        %v1728 = vadd.f32 0.0, %v1727
        %v1729 = vpop.f32.mrf.mxu0
        %v1730 = vpop.f32.mrf.mxu0
        %v1731 = vadd.f32 0.0, %v1730
        %v1732 = vpop.f32.mrf.mxu0
        %1733 = vmatprep.mubr.bf16.mxu0 0
        %1734 = vmatmul.mubr.bf16.gmra.mxu0 %v1584
        %v1735 = vpop.f32.mrf.mxu0
        %v1736 = vadd.f32 0.0, %v1735
        %v1737 = vpop.f32.mrf.mxu0
        %v1738 = vpop.f32.mrf.mxu0
        %v1739 = vadd.f32 0.0, %v1738
        %v1740 = vpop.f32.mrf.mxu0
        %1741 = vmatprep.mubr.bf16.mxu0 0
        %1742 = vmatmul.mubr.bf16.gmra.mxu0 %v1587
        %v1743 = vpop.f32.mrf.mxu0
        %v1744 = vadd.f32 0.0, %v1743
        %v1745 = vpop.f32.mrf.mxu0
        %v1746 = vpop.f32.mrf.mxu0
        %v1747 = vadd.f32 0.0, %v1746
        %v1748 = vpop.f32.mrf.mxu0
        %1749 = vdwg.mxu0
        %v1750 = vadd.f32 %v1227, %v1624
        %v1751 = vadd.f32 %v1228, %v1627
        %v1752 = vadd.f32 %v1229, %v1632
        %v1753 = vadd.f32 %v1230, %v1635
        %v1754 = vadd.f32 %v1231, %v1640
        %v1755 = vadd.f32 %v1232, %v1643
        %v1756 = vadd.f32 %v1233, %v1648
        %v1757 = vadd.f32 %v1234, %v1651
        %v1758 = vadd.f32 %v1235, %v1656
        %v1759 = vadd.f32 %v1236, %v1659
        %v1760 = vadd.f32 %v1237, %v1664
        %v1761 = vadd.f32 %v1238, %v1667
        %v1762 = vadd.f32 %v1239, %v1672
        %v1763 = vadd.f32 %v1240, %v1675
        %v1764 = vadd.f32 %v1241, %v1680
        %v1765 = vadd.f32 %v1242, %v1683
        %v1766 = vadd.f32 %v1243, %v1688
        %v1767 = vadd.f32 %v1244, %v1691
        %v1768 = vadd.f32 %v1245, %v1696
        %v1769 = vadd.f32 %v1246, %v1699
        %v1770 = vadd.f32 %v1247, %v1704
        %v1771 = vadd.f32 %v1248, %v1707
        %v1772 = vadd.f32 %v1249, %v1712
        %v1773 = vadd.f32 %v1250, %v1715
        %v1774 = vadd.f32 %v1251, %v1720
        %v1775 = vadd.f32 %v1252, %v1723
        %v1776 = vadd.f32 %v1253, %v1728
        %v1777 = vadd.f32 %v1254, %v1731
        %v1778 = vadd.f32 %v1255, %v1736
        %v1779 = vadd.f32 %v1256, %v1739
        %v1780 = vadd.f32 %v1257, %v1744
        %v1781 = vadd.f32 %v1258, %v1747
        %v1782 = vld [vmem:[#allocation2] sm:$0xe]
        %s1783 = scalar_lea.vmem %s1, 64
        %v1784 = vld [vmem:[%s1783] sm:$0xf]
        %v1785 = vld [vmem:[%s1783 + $0x4] sm:$0xf]
        %v1786 = vld [vmem:[%s1783 + $0x8] sm:$0xf]
        %v1787 = vld [vmem:[%s1783 + $0xc] sm:$0xf]
        %v1788 = vld [vmem:[%s1783 + $0x10] sm:$0xf]
        %v1789 = vld [vmem:[%s1783 + $0x14] sm:$0xf]
        %v1790 = vld [vmem:[%s1783 + $0x18] sm:$0xf]
        %v1791 = vld [vmem:[%s1783 + $0x1c] sm:$0xf]
        %v1793 = vunpack.c.l.b16 %v1782
        %v1794 = vpack.c.b16 %v1335, %v1793
        %vm1795 = vcmask 1046528
        %v1796 = vrot.slane %v1794, 1
        %v1797 = vrot.slane %v1368, 1
        %v1798 = vsel %vm1795, %v1796, %v1797
        %v1799 = vrot.slane %v1369, 1
        %v1800 = vsel %vm1795, %v1797, %v1799
        %v1801 = vrot.slane %v1370, 1
        %v1802 = vsel %vm1795, %v1799, %v1801
        %v1803 = vrot.slane %v1371, 1
        %v1804 = vsel %vm1795, %v1801, %v1803
        %v1805 = vrot.slane %v1372, 1
        %v1806 = vsel %vm1795, %v1803, %v1805
        %v1807 = vrot.slane %v1373, 1
        %v1808 = vsel %vm1795, %v1805, %v1807
        %v1809 = vrot.slane %v1374, 1
        %v1810 = vsel %vm1795, %v1807, %v1809
        %v1811 = vrot.slane %v1375, 1
        %v1812 = vsel %vm1795, %v1809, %v1811
        %v1813 = vrot.slane %v1376, 1
        %v1814 = vsel %vm1795, %v1811, %v1813
        %v1815 = vrot.slane %v1377, 1
        %v1816 = vsel %vm1795, %v1813, %v1815
        %v1817 = vrot.slane %v1378, 1
        %v1818 = vsel %vm1795, %v1815, %v1817
        %v1819 = vrot.slane %v1379, 1
        %v1820 = vsel %vm1795, %v1817, %v1819
        %v1821 = vrot.slane %v1380, 1
        %v1822 = vsel %vm1795, %v1819, %v1821
        %v1823 = vrot.slane %v1381, 1
        %v1824 = vsel %vm1795, %v1821, %v1823
        %v1825 = vrot.slane %v1382, 1
        %v1826 = vsel %vm1795, %v1823, %v1825
        %v1827 = vrot.slane %v1383, 1
        %v1828 = vsel %vm1795, %v1825, %v1827
        %v1837 = vunpack.c.l.b16 %v1784
        %v1838 = vunpack.c.l.b16 %v1785
        %v1839 = vunpack.c.l.b16 %v1786
        %v1840 = vunpack.c.l.b16 %v1787
        %v1841 = vunpack.c.l.b16 %v1788
        %v1842 = vunpack.c.l.b16 %v1789
        %v1843 = vunpack.c.l.b16 %v1790
        %v1844 = vunpack.c.l.b16 %v1791
        %v1845 = vpack.c.b16 %v1838, %v1837
        %v1846 = vpack.c.b16 %v1840, %v1839
        %v1847 = vpack.c.b16 %v1842, %v1841
        %v1848 = vpack.c.b16 %v1844, %v1843
        %v1854 = vsel %vm921, %v1798, 0
        %v1857 = vsel %vm921, %v1800, 0
        %v1860 = vsel %vm921, %v1802, 0
        %v1863 = vsel %vm921, %v1804, 0
        %v1866 = vsel %vm921, %v1806, 0
        %v1869 = vsel %vm921, %v1808, 0
        %v1872 = vsel %vm921, %v1810, 0
        %v1875 = vsel %vm921, %v1812, 0
        %v1878 = vsel %vm921, %v1814, 0
        %v1881 = vsel %vm921, %v1816, 0
        %v1884 = vsel %vm921, %v1818, 0
        %v1887 = vsel %vm921, %v1820, 0
        %v1890 = vsel %vm921, %v1822, 0
        %v1893 = vsel %vm921, %v1824, 0
        %v1896 = vsel %vm921, %v1826, 0
        %v1899 = vsel %vm921, %v1828, 0
        %1901 = vmatprep.subr.bf16.mxu0 0
        %1902 = vmatpush1.bf16.msra.mxu0 0
        %1903 = vmatprep.subr.bf16.mxu0 0
        %1904 = vmatpush1.bf16.msra.mxu0 0
        %1905 = vmatprep.subr.bf16.mxu0 0
        %1906 = vmatpush1.bf16.msra.mxu0 0
        %1907 = vmatprep.subr.bf16.mxu0 0
        %1908 = vmatpush1.bf16.msra.mxu0 0
        %1909 = vmatprep.subr.bf16.mxu0 0
        %1910 = vmatpush1.bf16.msra.mxu0 %v1848
        %1911 = vmatprep.subr.bf16.mxu0 0
        %1912 = vmatpush1.bf16.msra.mxu0 %v1847
        %1913 = vmatprep.subr.bf16.mxu0 0
        %1914 = vmatpush1.bf16.msra.mxu0 %v1846
        %1915 = vmatprep.subr.bf16.mxu0 0
        %1916 = vmatpush1.bf16.msra.mxu0 %v1845
        %1917 = vmatprep.subr.bf16.mxu0 0
        %1918 = vmatpush2.bf16.msra.mxu0 0
        %1919 = vmatprep.subr.bf16.mxu0 0
        %1920 = vmatpush2.bf16.msra.mxu0 0
        %1921 = vmatprep.subr.bf16.mxu0 0
        %1922 = vmatpush2.bf16.msra.mxu0 0
        %1923 = vmatprep.subr.bf16.mxu0 0
        %1924 = vmatpush2.bf16.msra.mxu0 0
        %1925 = vmatprep.subr.bf16.mxu0 0
        %1926 = vmatpush2.bf16.msra.mxu0 0
        %1927 = vmatprep.subr.bf16.mxu0 0
        %1928 = vmatpush2.bf16.msra.mxu0 0
        %1929 = vmatprep.subr.bf16.mxu0 0
        %1930 = vmatpush2.bf16.msra.mxu0 0
        %1931 = vmatprep.subr.bf16.mxu0 0
        %1932 = vmatpush2.bf16.msra.mxu0 0
        %1933 = vmatprep.mubr.bf16.mxu0 0
        %1934 = vmatmul.mubr.bf16.gmra.mxu0 %v1854
        %v1935 = vpop.f32.mrf.mxu0
        %v1936 = vadd.f32 0.0, %v1935
        %v1937 = vpop.f32.mrf.mxu0
        %v1938 = vpop.f32.mrf.mxu0
        %v1939 = vadd.f32 0.0, %v1938
        %v1940 = vpop.f32.mrf.mxu0
        %1941 = vmatprep.mubr.bf16.mxu0 0
        %1942 = vmatmul.mubr.bf16.gmra.mxu0 %v1857
        %v1943 = vpop.f32.mrf.mxu0
        %v1944 = vadd.f32 0.0, %v1943
        %v1945 = vpop.f32.mrf.mxu0
        %v1946 = vpop.f32.mrf.mxu0
        %v1947 = vadd.f32 0.0, %v1946
        %v1948 = vpop.f32.mrf.mxu0
        %1949 = vmatprep.mubr.bf16.mxu0 0
        %1950 = vmatmul.mubr.bf16.gmra.mxu0 %v1860
        %v1951 = vpop.f32.mrf.mxu0
        %v1952 = vadd.f32 0.0, %v1951
        %v1953 = vpop.f32.mrf.mxu0
        %v1954 = vpop.f32.mrf.mxu0
        %v1955 = vadd.f32 0.0, %v1954
        %v1956 = vpop.f32.mrf.mxu0
        %1957 = vmatprep.mubr.bf16.mxu0 0
        %1958 = vmatmul.mubr.bf16.gmra.mxu0 %v1863
        %v1959 = vpop.f32.mrf.mxu0
        %v1960 = vadd.f32 0.0, %v1959
        %v1961 = vpop.f32.mrf.mxu0
        %v1962 = vpop.f32.mrf.mxu0
        %v1963 = vadd.f32 0.0, %v1962
        %v1964 = vpop.f32.mrf.mxu0
        %1965 = vmatprep.mubr.bf16.mxu0 0
        %1966 = vmatmul.mubr.bf16.gmra.mxu0 %v1866
        %v1967 = vpop.f32.mrf.mxu0
        %v1968 = vadd.f32 0.0, %v1967
        %v1969 = vpop.f32.mrf.mxu0
        %v1970 = vpop.f32.mrf.mxu0
        %v1971 = vadd.f32 0.0, %v1970
        %v1972 = vpop.f32.mrf.mxu0
        %1973 = vmatprep.mubr.bf16.mxu0 0
        %1974 = vmatmul.mubr.bf16.gmra.mxu0 %v1869
        %v1975 = vpop.f32.mrf.mxu0
        %v1976 = vadd.f32 0.0, %v1975
        %v1977 = vpop.f32.mrf.mxu0
        %v1978 = vpop.f32.mrf.mxu0
        %v1979 = vadd.f32 0.0, %v1978
        %v1980 = vpop.f32.mrf.mxu0
        %1981 = vmatprep.mubr.bf16.mxu0 0
        %1982 = vmatmul.mubr.bf16.gmra.mxu0 %v1872
        %v1983 = vpop.f32.mrf.mxu0
        %v1984 = vadd.f32 0.0, %v1983
        %v1985 = vpop.f32.mrf.mxu0
        %v1986 = vpop.f32.mrf.mxu0
        %v1987 = vadd.f32 0.0, %v1986
        %v1988 = vpop.f32.mrf.mxu0
        %1989 = vmatprep.mubr.bf16.mxu0 0
        %1990 = vmatmul.mubr.bf16.gmra.mxu0 %v1875
        %v1991 = vpop.f32.mrf.mxu0
        %v1992 = vadd.f32 0.0, %v1991
        %v1993 = vpop.f32.mrf.mxu0
        %v1994 = vpop.f32.mrf.mxu0
        %v1995 = vadd.f32 0.0, %v1994
        %v1996 = vpop.f32.mrf.mxu0
        %1997 = vmatprep.mubr.bf16.mxu0 0
        %1998 = vmatmul.mubr.bf16.gmra.mxu0 %v1878
        %v1999 = vpop.f32.mrf.mxu0
        %v2000 = vadd.f32 0.0, %v1999
        %v2001 = vpop.f32.mrf.mxu0
        %v2002 = vpop.f32.mrf.mxu0
        %v2003 = vadd.f32 0.0, %v2002
        %v2004 = vpop.f32.mrf.mxu0
        %2005 = vmatprep.mubr.bf16.mxu0 0
        %2006 = vmatmul.mubr.bf16.gmra.mxu0 %v1881
        %v2007 = vpop.f32.mrf.mxu0
        %v2008 = vadd.f32 0.0, %v2007
        %v2009 = vpop.f32.mrf.mxu0
        %v2010 = vpop.f32.mrf.mxu0
        %v2011 = vadd.f32 0.0, %v2010
        %v2012 = vpop.f32.mrf.mxu0
        %2013 = vmatprep.mubr.bf16.mxu0 0
        %2014 = vmatmul.mubr.bf16.gmra.mxu0 %v1884
        %v2015 = vpop.f32.mrf.mxu0
        %v2016 = vadd.f32 0.0, %v2015
        %v2017 = vpop.f32.mrf.mxu0
        %v2018 = vpop.f32.mrf.mxu0
        %v2019 = vadd.f32 0.0, %v2018
        %v2020 = vpop.f32.mrf.mxu0
        %2021 = vmatprep.mubr.bf16.mxu0 0
        %2022 = vmatmul.mubr.bf16.gmra.mxu0 %v1887
        %v2023 = vpop.f32.mrf.mxu0
        %v2024 = vadd.f32 0.0, %v2023
        %v2025 = vpop.f32.mrf.mxu0
        %v2026 = vpop.f32.mrf.mxu0
        %v2027 = vadd.f32 0.0, %v2026
        %v2028 = vpop.f32.mrf.mxu0
        %2029 = vmatprep.mubr.bf16.mxu0 0
        %2030 = vmatmul.mubr.bf16.gmra.mxu0 %v1890
        %v2031 = vpop.f32.mrf.mxu0
        %v2032 = vadd.f32 0.0, %v2031
        %v2033 = vpop.f32.mrf.mxu0
        %v2034 = vpop.f32.mrf.mxu0
        %v2035 = vadd.f32 0.0, %v2034
        %v2036 = vpop.f32.mrf.mxu0
        %2037 = vmatprep.mubr.bf16.mxu0 0
        %2038 = vmatmul.mubr.bf16.gmra.mxu0 %v1893
        %v2039 = vpop.f32.mrf.mxu0
        %v2040 = vadd.f32 0.0, %v2039
        %v2041 = vpop.f32.mrf.mxu0
        %v2042 = vpop.f32.mrf.mxu0
        %v2043 = vadd.f32 0.0, %v2042
        %v2044 = vpop.f32.mrf.mxu0
        %2045 = vmatprep.mubr.bf16.mxu0 0
        %2046 = vmatmul.mubr.bf16.gmra.mxu0 %v1896
        %v2047 = vpop.f32.mrf.mxu0
        %v2048 = vadd.f32 0.0, %v2047
        %v2049 = vpop.f32.mrf.mxu0
        %v2050 = vpop.f32.mrf.mxu0
        %v2051 = vadd.f32 0.0, %v2050
        %v2052 = vpop.f32.mrf.mxu0
        %2053 = vmatprep.mubr.bf16.mxu0 0
        %2054 = vmatmul.mubr.bf16.gmra.mxu0 %v1899
        %v2055 = vpop.f32.mrf.mxu0
        %v2056 = vadd.f32 0.0, %v2055
        %v2057 = vpop.f32.mrf.mxu0
        %v2058 = vpop.f32.mrf.mxu0
        %v2059 = vadd.f32 0.0, %v2058
        %v2060 = vpop.f32.mrf.mxu0
        %2061 = vdwg.mxu0
        %v2062 = vsel %vm336, 1, 0
        %v2063 = vsel %vm337, 1, 0
        %v2064 = vsel %vm338, 1, 0
        %v2065 = vsel %vm339, 1, 0
        %v2066 = vsel %vm340, 1, 0
        %v2067 = vsel %vm341, 1, 0
        %v2068 = vsel %vm342, 1, 0
        %v2069 = vsel %vm343, 1, 0
        %v2070 = vsel %vm344, 1, 0
        %v2071 = vsel %vm345, 1, 0
        %v2072 = vsel %vm346, 1, 0
        %v2073 = vsel %vm347, 1, 0
        %v2074 = vsel %vm348, 1, 0
        %v2075 = vsel %vm349, 1, 0
        %v2076 = vsel %vm350, 1, 0
        %v2077 = vsel %vm351, 1, 0
        %v2078 = vsel %vm352, 1, 0
        %v2079 = vsel %vm353, 1, 0
        %v2080 = vsel %vm354, 1, 0
        %v2081 = vsel %vm355, 1, 0
        %v2082 = vsel %vm356, 1, 0
        %v2083 = vsel %vm357, 1, 0
        %v2084 = vsel %vm358, 1, 0
        %v2085 = vsel %vm359, 1, 0
        %v2086 = vsel %vm360, 1, 0
        %v2087 = vsel %vm361, 1, 0
        %v2088 = vsel %vm362, 1, 0
        %v2089 = vsel %vm363, 1, 0
        %v2090 = vsel %vm364, 1, 0
        %v2091 = vsel %vm365, 1, 0
        %v2092 = vsel %vm366, 1, 0
        %v2093 = vsel %vm367, 1, 0
        %vm2094 = vcmp.eq.s32.totalorder %v2062, 1
        %vm2095 = vcmp.eq.s32.totalorder %v2063, 1
        %vm2096 = vcmp.eq.s32.totalorder %v2064, 1
        %vm2097 = vcmp.eq.s32.totalorder %v2065, 1
        %vm2098 = vcmp.eq.s32.totalorder %v2066, 1
        %vm2099 = vcmp.eq.s32.totalorder %v2067, 1
        %vm2100 = vcmp.eq.s32.totalorder %v2068, 1
        %vm2101 = vcmp.eq.s32.totalorder %v2069, 1
        %vm2102 = vcmp.eq.s32.totalorder %v2070, 1
        %vm2103 = vcmp.eq.s32.totalorder %v2071, 1
        %vm2104 = vcmp.eq.s32.totalorder %v2072, 1
        %vm2105 = vcmp.eq.s32.totalorder %v2073, 1
        %vm2106 = vcmp.eq.s32.totalorder %v2074, 1
        %vm2107 = vcmp.eq.s32.totalorder %v2075, 1
        %vm2108 = vcmp.eq.s32.totalorder %v2076, 1
        %vm2109 = vcmp.eq.s32.totalorder %v2077, 1
        %vm2110 = vcmp.eq.s32.totalorder %v2078, 1
        %vm2111 = vcmp.eq.s32.totalorder %v2079, 1
        %vm2112 = vcmp.eq.s32.totalorder %v2080, 1
        %vm2113 = vcmp.eq.s32.totalorder %v2081, 1
        %vm2114 = vcmp.eq.s32.totalorder %v2082, 1
        %vm2115 = vcmp.eq.s32.totalorder %v2083, 1
        %vm2116 = vcmp.eq.s32.totalorder %v2084, 1
        %vm2117 = vcmp.eq.s32.totalorder %v2085, 1
        %vm2118 = vcmp.eq.s32.totalorder %v2086, 1
        %vm2119 = vcmp.eq.s32.totalorder %v2087, 1
        %vm2120 = vcmp.eq.s32.totalorder %v2088, 1
        %vm2121 = vcmp.eq.s32.totalorder %v2089, 1
        %vm2122 = vcmp.eq.s32.totalorder %v2090, 1
        %vm2123 = vcmp.eq.s32.totalorder %v2091, 1
        %vm2124 = vcmp.eq.s32.totalorder %v2092, 1
        %vm2125 = vcmp.eq.s32.totalorder %v2093, 1
        %v2126 = vsel %vm2094, %v1936, 0.0
        %v2127 = vsel %vm2095, %v1939, 0.0
        %v2128 = vsel %vm2096, %v1944, 0.0
        %v2129 = vsel %vm2097, %v1947, 0.0
        %v2130 = vsel %vm2098, %v1952, 0.0
        %v2131 = vsel %vm2099, %v1955, 0.0
        %v2132 = vsel %vm2100, %v1960, 0.0
        %v2133 = vsel %vm2101, %v1963, 0.0
        %v2134 = vsel %vm2102, %v1968, 0.0
        %v2135 = vsel %vm2103, %v1971, 0.0
        %v2136 = vsel %vm2104, %v1976, 0.0
        %v2137 = vsel %vm2105, %v1979, 0.0
        %v2138 = vsel %vm2106, %v1984, 0.0
        %v2139 = vsel %vm2107, %v1987, 0.0
        %v2140 = vsel %vm2108, %v1992, 0.0
        %v2141 = vsel %vm2109, %v1995, 0.0
        %v2142 = vsel %vm2110, %v2000, 0.0
        %v2143 = vsel %vm2111, %v2003, 0.0
        %v2144 = vsel %vm2112, %v2008, 0.0
        %v2145 = vsel %vm2113, %v2011, 0.0
        %v2146 = vsel %vm2114, %v2016, 0.0
        %v2147 = vsel %vm2115, %v2019, 0.0
        %v2148 = vsel %vm2116, %v2024, 0.0
        %v2149 = vsel %vm2117, %v2027, 0.0
        %v2150 = vsel %vm2118, %v2032, 0.0
        %v2151 = vsel %vm2119, %v2035, 0.0
        %v2152 = vsel %vm2120, %v2040, 0.0
        %v2153 = vsel %vm2121, %v2043, 0.0
        %v2154 = vsel %vm2122, %v2048, 0.0
        %v2155 = vsel %vm2123, %v2051, 0.0
        %v2156 = vsel %vm2124, %v2056, 0.0
        %v2157 = vsel %vm2125, %v2059, 0.0
        %v2158 = vadd.f32 %v1750, %v2126
        %v2159 = vadd.f32 %v1751, %v2127
        %v2160 = vadd.f32 %v1752, %v2128
        %v2161 = vadd.f32 %v1753, %v2129
        %v2162 = vadd.f32 %v1754, %v2130
        %v2163 = vadd.f32 %v1755, %v2131
        %v2164 = vadd.f32 %v1756, %v2132
        %v2165 = vadd.f32 %v1757, %v2133
        %v2166 = vadd.f32 %v1758, %v2134
        %v2167 = vadd.f32 %v1759, %v2135
        %v2168 = vadd.f32 %v1760, %v2136
        %v2169 = vadd.f32 %v1761, %v2137
        %v2170 = vadd.f32 %v1762, %v2138
        %v2171 = vadd.f32 %v1763, %v2139
        %v2172 = vadd.f32 %v1764, %v2140
        %v2173 = vadd.f32 %v1765, %v2141
        %v2174 = vadd.f32 %v1766, %v2142
        %v2175 = vadd.f32 %v1767, %v2143
        %v2176 = vadd.f32 %v1768, %v2144
        %v2177 = vadd.f32 %v1769, %v2145
        %v2178 = vadd.f32 %v1770, %v2146
        %v2179 = vadd.f32 %v1771, %v2147
        %v2180 = vadd.f32 %v1772, %v2148
        %v2181 = vadd.f32 %v1773, %v2149
        %v2182 = vadd.f32 %v1774, %v2150
        %v2183 = vadd.f32 %v1775, %v2151
        %v2184 = vadd.f32 %v1776, %v2152
        %v2185 = vadd.f32 %v1777, %v2153
        %v2186 = vadd.f32 %v1778, %v2154
        %v2187 = vadd.f32 %v1779, %v2155
        %v2188 = vadd.f32 %v1780, %v2156
        %v2189 = vadd.f32 %v1781, %v2157
        %v2190 = vld [vmem:[#allocation2 + $0x8] sm:$0xf]
        %v2191 = vld [vmem:[#allocation2 + $0xc] sm:$0xf]
        %v2192 = vld [vmem:[#allocation2 + $0x10] sm:$0xf]
        %v2193 = vld [vmem:[#allocation2 + $0x14] sm:$0xf]
        %v2194 = vld [vmem:[#allocation2 + $0x18] sm:$0xf]
        %v2195 = vld [vmem:[#allocation2 + $0x1c] sm:$0xf]
        %v2196 = vld [vmem:[#allocation2 + $0x20] sm:$0xf]
        %v2197 = vld [vmem:[#allocation2 + $0x24] sm:$0xf]
        %v2198 = vld [vmem:[#allocation2 + $0x28] sm:$0xf]
        %v2199 = vld [vmem:[#allocation2 + $0x2c] sm:$0xf]
        %v2200 = vld [vmem:[#allocation2 + $0x30] sm:$0xf]
        %v2201 = vld [vmem:[#allocation2 + $0x34] sm:$0xf]
        %v2202 = vld [vmem:[#allocation2 + $0x38] sm:$0xf]
        %v2203 = vld [vmem:[#allocation2 + $0x3c] sm:$0xf]
        %v2204 = vld [vmem:[#allocation2 + $0x40] sm:$0xf]
        %v2205 = vld [vmem:[#allocation2 + $0x44] sm:$0xf]
        %v2206 = vld [vmem:[#allocation2 + $0x48] sm:$0xf]
        %v2207 = vld [vmem:[#allocation2 + $0x4c] sm:$0xf]
        %v2208 = vld [vmem:[#allocation2 + $0x50] sm:$0xf]
        %v2209 = vld [vmem:[#allocation2 + $0x54] sm:$0xf]
        %v2210 = vld [vmem:[#allocation2 + $0x58] sm:$0xf]
        %v2211 = vld [vmem:[#allocation2 + $0x5c] sm:$0xf]
        %v2212 = vld [vmem:[#allocation2 + $0x60] sm:$0xf]
        %v2213 = vld [vmem:[#allocation2 + $0x64] sm:$0xf]
        %v2214 = vld [vmem:[#allocation2 + $0x68] sm:$0xf]
        %v2215 = vld [vmem:[#allocation2 + $0x6c] sm:$0xf]
        %v2216 = vld [vmem:[#allocation2 + $0x70] sm:$0xf]
        %v2217 = vld [vmem:[#allocation2 + $0x74] sm:$0xf]
        %v2218 = vld [vmem:[#allocation2 + $0x78] sm:$0xf]
        %v2219 = vld [vmem:[#allocation2 + $0x7c] sm:$0xf]
        %v2220 = vld [vmem:[#allocation2 + $0x80] sm:$0xf]
        %v2221 = vld [vmem:[#allocation2 + $0x84] sm:$0xf]
        %s2222 = scalar_lea.vmem %s1, 96
        %v2223 = vld [vmem:[%s2222] sm:$0xf]
        %v2224 = vld [vmem:[%s2222 + $0x4] sm:$0xf]
        %v2225 = vld [vmem:[%s2222 + $0x8] sm:$0xf]
        %v2226 = vld [vmem:[%s2222 + $0xc] sm:$0xf]
        %v2227 = vld [vmem:[%s2222 + $0x10] sm:$0xf]
        %v2228 = vld [vmem:[%s2222 + $0x14] sm:$0xf]
        %v2229 = vld [vmem:[%s2222 + $0x18] sm:$0xf]
        %v2230 = vld [vmem:[%s2222 + $0x1c] sm:$0xf]
        %v2263 = vunpack.c.l.b16 %v2190
        %v2264 = vunpack.c.l.b16 %v2191
        %v2265 = vunpack.c.l.b16 %v2192
        %v2266 = vunpack.c.l.b16 %v2193
        %v2267 = vunpack.c.l.b16 %v2194
        %v2268 = vunpack.c.l.b16 %v2195
        %v2269 = vunpack.c.l.b16 %v2196
        %v2270 = vunpack.c.l.b16 %v2197
        %v2271 = vunpack.c.l.b16 %v2198
        %v2272 = vunpack.c.l.b16 %v2199
        %v2273 = vunpack.c.l.b16 %v2200
        %v2274 = vunpack.c.l.b16 %v2201
        %v2275 = vunpack.c.l.b16 %v2202
        %v2276 = vunpack.c.l.b16 %v2203
        %v2277 = vunpack.c.l.b16 %v2204
        %v2278 = vunpack.c.l.b16 %v2205
        %v2279 = vunpack.c.l.b16 %v2206
        %v2280 = vunpack.c.l.b16 %v2207
        %v2281 = vunpack.c.l.b16 %v2208
        %v2282 = vunpack.c.l.b16 %v2209
        %v2283 = vunpack.c.l.b16 %v2210
        %v2284 = vunpack.c.l.b16 %v2211
        %v2285 = vunpack.c.l.b16 %v2212
        %v2286 = vunpack.c.l.b16 %v2213
        %v2287 = vunpack.c.l.b16 %v2214
        %v2288 = vunpack.c.l.b16 %v2215
        %v2289 = vunpack.c.l.b16 %v2216
        %v2290 = vunpack.c.l.b16 %v2217
        %v2291 = vunpack.c.l.b16 %v2218
        %v2292 = vunpack.c.l.b16 %v2219
        %v2293 = vunpack.c.l.b16 %v2220
        %v2294 = vunpack.c.l.b16 %v2221
        %v2295 = vpack.c.b16 %v2264, %v2263
        %v2296 = vpack.c.b16 %v2266, %v2265
        %v2297 = vpack.c.b16 %v2268, %v2267
        %v2298 = vpack.c.b16 %v2270, %v2269
        %v2299 = vpack.c.b16 %v2272, %v2271
        %v2300 = vpack.c.b16 %v2274, %v2273
        %v2301 = vpack.c.b16 %v2276, %v2275
        %v2302 = vpack.c.b16 %v2278, %v2277
        %v2303 = vpack.c.b16 %v2280, %v2279
        %v2304 = vpack.c.b16 %v2282, %v2281
        %v2305 = vpack.c.b16 %v2284, %v2283
        %v2306 = vpack.c.b16 %v2286, %v2285
        %v2307 = vpack.c.b16 %v2288, %v2287
        %v2308 = vpack.c.b16 %v2290, %v2289
        %v2309 = vpack.c.b16 %v2292, %v2291
        %v2310 = vpack.c.b16 %v2294, %v2293
        %v2319 = vunpack.c.l.b16 %v2223
        %v2320 = vunpack.c.l.b16 %v2224
        %v2321 = vunpack.c.l.b16 %v2225
        %v2322 = vunpack.c.l.b16 %v2226
        %v2323 = vunpack.c.l.b16 %v2227
        %v2324 = vunpack.c.l.b16 %v2228
        %v2325 = vunpack.c.l.b16 %v2229
        %v2326 = vunpack.c.l.b16 %v2230
        %v2327 = vpack.c.b16 %v2320, %v2319
        %v2328 = vpack.c.b16 %v2322, %v2321
        %v2329 = vpack.c.b16 %v2324, %v2323
        %v2330 = vpack.c.b16 %v2326, %v2325
        %v2336 = vsel %vm921, %v2295, 0
        %v2339 = vsel %vm921, %v2296, 0
        %v2342 = vsel %vm921, %v2297, 0
        %v2345 = vsel %vm921, %v2298, 0
        %v2348 = vsel %vm921, %v2299, 0
        %v2351 = vsel %vm921, %v2300, 0
        %v2354 = vsel %vm921, %v2301, 0
        %v2357 = vsel %vm921, %v2302, 0
        %v2360 = vsel %vm921, %v2303, 0
        %v2363 = vsel %vm921, %v2304, 0
        %v2366 = vsel %vm921, %v2305, 0
        %v2369 = vsel %vm921, %v2306, 0
        %v2372 = vsel %vm921, %v2307, 0
        %v2375 = vsel %vm921, %v2308, 0
        %v2378 = vsel %vm921, %v2309, 0
        %v2381 = vsel %vm921, %v2310, 0
        %2383 = vmatprep.subr.bf16.mxu0 0
        %2384 = vmatpush1.bf16.msra.mxu0 0
        %2385 = vmatprep.subr.bf16.mxu0 0
        %2386 = vmatpush1.bf16.msra.mxu0 0
        %2387 = vmatprep.subr.bf16.mxu0 0
        %2388 = vmatpush1.bf16.msra.mxu0 0
        %2389 = vmatprep.subr.bf16.mxu0 0
        %2390 = vmatpush1.bf16.msra.mxu0 0
        %2391 = vmatprep.subr.bf16.mxu0 0
        %2392 = vmatpush1.bf16.msra.mxu0 %v2330
        %2393 = vmatprep.subr.bf16.mxu0 0
        %2394 = vmatpush1.bf16.msra.mxu0 %v2329
        %2395 = vmatprep.subr.bf16.mxu0 0
        %2396 = vmatpush1.bf16.msra.mxu0 %v2328
        %2397 = vmatprep.subr.bf16.mxu0 0
        %2398 = vmatpush1.bf16.msra.mxu0 %v2327
        %2399 = vmatprep.subr.bf16.mxu0 0
        %2400 = vmatpush2.bf16.msra.mxu0 0
        %2401 = vmatprep.subr.bf16.mxu0 0
        %2402 = vmatpush2.bf16.msra.mxu0 0
        %2403 = vmatprep.subr.bf16.mxu0 0
        %2404 = vmatpush2.bf16.msra.mxu0 0
        %2405 = vmatprep.subr.bf16.mxu0 0
        %2406 = vmatpush2.bf16.msra.mxu0 0
        %2407 = vmatprep.subr.bf16.mxu0 0
        %2408 = vmatpush2.bf16.msra.mxu0 0
        %2409 = vmatprep.subr.bf16.mxu0 0
        %2410 = vmatpush2.bf16.msra.mxu0 0
        %2411 = vmatprep.subr.bf16.mxu0 0
        %2412 = vmatpush2.bf16.msra.mxu0 0
        %2413 = vmatprep.subr.bf16.mxu0 0
        %2414 = vmatpush2.bf16.msra.mxu0 0
        %2415 = vmatprep.mubr.bf16.mxu0 0
        %2416 = vmatmul.mubr.bf16.gmra.mxu0 %v2336
        %v2417 = vpop.f32.mrf.mxu0
        %v2418 = vadd.f32 0.0, %v2417
        %v2419 = vpop.f32.mrf.mxu0
        %v2420 = vpop.f32.mrf.mxu0
        %v2421 = vadd.f32 0.0, %v2420
        %v2422 = vpop.f32.mrf.mxu0
        %2423 = vmatprep.mubr.bf16.mxu0 0
        %2424 = vmatmul.mubr.bf16.gmra.mxu0 %v2339
        %v2425 = vpop.f32.mrf.mxu0
        %v2426 = vadd.f32 0.0, %v2425
        %v2427 = vpop.f32.mrf.mxu0
        %v2428 = vpop.f32.mrf.mxu0
        %v2429 = vadd.f32 0.0, %v2428
        %v2430 = vpop.f32.mrf.mxu0
        %2431 = vmatprep.mubr.bf16.mxu0 0
        %2432 = vmatmul.mubr.bf16.gmra.mxu0 %v2342
        %v2433 = vpop.f32.mrf.mxu0
        %v2434 = vadd.f32 0.0, %v2433
        %v2435 = vpop.f32.mrf.mxu0
        %v2436 = vpop.f32.mrf.mxu0
        %v2437 = vadd.f32 0.0, %v2436
        %v2438 = vpop.f32.mrf.mxu0
        %2439 = vmatprep.mubr.bf16.mxu0 0
        %2440 = vmatmul.mubr.bf16.gmra.mxu0 %v2345
        %v2441 = vpop.f32.mrf.mxu0
        %v2442 = vadd.f32 0.0, %v2441
        %v2443 = vpop.f32.mrf.mxu0
        %v2444 = vpop.f32.mrf.mxu0
        %v2445 = vadd.f32 0.0, %v2444
        %v2446 = vpop.f32.mrf.mxu0
        %2447 = vmatprep.mubr.bf16.mxu0 0
        %2448 = vmatmul.mubr.bf16.gmra.mxu0 %v2348
        %v2449 = vpop.f32.mrf.mxu0
        %v2450 = vadd.f32 0.0, %v2449
        %v2451 = vpop.f32.mrf.mxu0
        %v2452 = vpop.f32.mrf.mxu0
        %v2453 = vadd.f32 0.0, %v2452
        %v2454 = vpop.f32.mrf.mxu0
        %2455 = vmatprep.mubr.bf16.mxu0 0
        %2456 = vmatmul.mubr.bf16.gmra.mxu0 %v2351
        %v2457 = vpop.f32.mrf.mxu0
        %v2458 = vadd.f32 0.0, %v2457
        %v2459 = vpop.f32.mrf.mxu0
        %v2460 = vpop.f32.mrf.mxu0
        %v2461 = vadd.f32 0.0, %v2460
        %v2462 = vpop.f32.mrf.mxu0
        %2463 = vmatprep.mubr.bf16.mxu0 0
        %2464 = vmatmul.mubr.bf16.gmra.mxu0 %v2354
        %v2465 = vpop.f32.mrf.mxu0
        %v2466 = vadd.f32 0.0, %v2465
        %v2467 = vpop.f32.mrf.mxu0
        %v2468 = vpop.f32.mrf.mxu0
        %v2469 = vadd.f32 0.0, %v2468
        %v2470 = vpop.f32.mrf.mxu0
        %2471 = vmatprep.mubr.bf16.mxu0 0
        %2472 = vmatmul.mubr.bf16.gmra.mxu0 %v2357
        %v2473 = vpop.f32.mrf.mxu0
        %v2474 = vadd.f32 0.0, %v2473
        %v2475 = vpop.f32.mrf.mxu0
        %v2476 = vpop.f32.mrf.mxu0
        %v2477 = vadd.f32 0.0, %v2476
        %v2478 = vpop.f32.mrf.mxu0
        %2479 = vmatprep.mubr.bf16.mxu0 0
        %2480 = vmatmul.mubr.bf16.gmra.mxu0 %v2360
        %v2481 = vpop.f32.mrf.mxu0
        %v2482 = vadd.f32 0.0, %v2481
        %v2483 = vpop.f32.mrf.mxu0
        %v2484 = vpop.f32.mrf.mxu0
        %v2485 = vadd.f32 0.0, %v2484
        %v2486 = vpop.f32.mrf.mxu0
        %2487 = vmatprep.mubr.bf16.mxu0 0
        %2488 = vmatmul.mubr.bf16.gmra.mxu0 %v2363
        %v2489 = vpop.f32.mrf.mxu0
        %v2490 = vadd.f32 0.0, %v2489
        %v2491 = vpop.f32.mrf.mxu0
        %v2492 = vpop.f32.mrf.mxu0
        %v2493 = vadd.f32 0.0, %v2492
        %v2494 = vpop.f32.mrf.mxu0
        %2495 = vmatprep.mubr.bf16.mxu0 0
        %2496 = vmatmul.mubr.bf16.gmra.mxu0 %v2366
        %v2497 = vpop.f32.mrf.mxu0
        %v2498 = vadd.f32 0.0, %v2497
        %v2499 = vpop.f32.mrf.mxu0
        %v2500 = vpop.f32.mrf.mxu0
        %v2501 = vadd.f32 0.0, %v2500
        %v2502 = vpop.f32.mrf.mxu0
        %2503 = vmatprep.mubr.bf16.mxu0 0
        %2504 = vmatmul.mubr.bf16.gmra.mxu0 %v2369
        %v2505 = vpop.f32.mrf.mxu0
        %v2506 = vadd.f32 0.0, %v2505
        %v2507 = vpop.f32.mrf.mxu0
        %v2508 = vpop.f32.mrf.mxu0
        %v2509 = vadd.f32 0.0, %v2508
        %v2510 = vpop.f32.mrf.mxu0
        %2511 = vmatprep.mubr.bf16.mxu0 0
        %2512 = vmatmul.mubr.bf16.gmra.mxu0 %v2372
        %v2513 = vpop.f32.mrf.mxu0
        %v2514 = vadd.f32 0.0, %v2513
        %v2515 = vpop.f32.mrf.mxu0
        %v2516 = vpop.f32.mrf.mxu0
        %v2517 = vadd.f32 0.0, %v2516
        %v2518 = vpop.f32.mrf.mxu0
        %2519 = vmatprep.mubr.bf16.mxu0 0
        %2520 = vmatmul.mubr.bf16.gmra.mxu0 %v2375
        %v2521 = vpop.f32.mrf.mxu0
        %v2522 = vadd.f32 0.0, %v2521
        %v2523 = vpop.f32.mrf.mxu0
        %v2524 = vpop.f32.mrf.mxu0
        %v2525 = vadd.f32 0.0, %v2524
        %v2526 = vpop.f32.mrf.mxu0
        %2527 = vmatprep.mubr.bf16.mxu0 0
        %2528 = vmatmul.mubr.bf16.gmra.mxu0 %v2378
        %v2529 = vpop.f32.mrf.mxu0
        %v2530 = vadd.f32 0.0, %v2529
        %v2531 = vpop.f32.mrf.mxu0
        %v2532 = vpop.f32.mrf.mxu0
        %v2533 = vadd.f32 0.0, %v2532
        %v2534 = vpop.f32.mrf.mxu0
        %2535 = vmatprep.mubr.bf16.mxu0 0
        %2536 = vmatmul.mubr.bf16.gmra.mxu0 %v2381
        %v2537 = vpop.f32.mrf.mxu0
        %v2538 = vadd.f32 0.0, %v2537
        %v2539 = vpop.f32.mrf.mxu0
        %v2540 = vpop.f32.mrf.mxu0
        %v2541 = vadd.f32 0.0, %v2540
        %v2542 = vpop.f32.mrf.mxu0
        %2543 = vdwg.mxu0
        %v2544 = vsel %vm1163, %v2418, 0.0
        %v2545 = vsel %vm1164, %v2421, 0.0
        %v2546 = vsel %vm1165, %v2426, 0.0
        %v2547 = vsel %vm1166, %v2429, 0.0
        %v2548 = vsel %vm1167, %v2434, 0.0
        %v2549 = vsel %vm1168, %v2437, 0.0
        %v2550 = vsel %vm1169, %v2442, 0.0
        %v2551 = vsel %vm1170, %v2445, 0.0
        %v2552 = vsel %vm1171, %v2450, 0.0
        %v2553 = vsel %vm1172, %v2453, 0.0
        %v2554 = vsel %vm1173, %v2458, 0.0
        %v2555 = vsel %vm1174, %v2461, 0.0
        %v2556 = vsel %vm1175, %v2466, 0.0
        %v2557 = vsel %vm1176, %v2469, 0.0
        %v2558 = vsel %vm1177, %v2474, 0.0
        %v2559 = vsel %vm1178, %v2477, 0.0
        %v2560 = vsel %vm1179, %v2482, 0.0
        %v2561 = vsel %vm1180, %v2485, 0.0
        %v2562 = vsel %vm1181, %v2490, 0.0
        %v2563 = vsel %vm1182, %v2493, 0.0
        %v2564 = vsel %vm1183, %v2498, 0.0
        %v2565 = vsel %vm1184, %v2501, 0.0
        %v2566 = vsel %vm1185, %v2506, 0.0
        %v2567 = vsel %vm1186, %v2509, 0.0
        %v2568 = vsel %vm1187, %v2514, 0.0
        %v2569 = vsel %vm1188, %v2517, 0.0
        %v2570 = vsel %vm1189, %v2522, 0.0
        %v2571 = vsel %vm1190, %v2525, 0.0
        %v2572 = vsel %vm1191, %v2530, 0.0
        %v2573 = vsel %vm1192, %v2533, 0.0
        %v2574 = vsel %vm1193, %v2538, 0.0
        %v2575 = vsel %vm1194, %v2541, 0.0
        %v2576 = vadd.f32 %v2158, %v2544
        %v2577 = vadd.f32 %v2159, %v2545
        %v2578 = vadd.f32 %v2160, %v2546
        %v2579 = vadd.f32 %v2161, %v2547
        %v2580 = vadd.f32 %v2162, %v2548
        %v2581 = vadd.f32 %v2163, %v2549
        %v2582 = vadd.f32 %v2164, %v2550
        %v2583 = vadd.f32 %v2165, %v2551
        %v2584 = vadd.f32 %v2166, %v2552
        %v2585 = vadd.f32 %v2167, %v2553
        %v2586 = vadd.f32 %v2168, %v2554
        %v2587 = vadd.f32 %v2169, %v2555
        %v2588 = vadd.f32 %v2170, %v2556
        %v2589 = vadd.f32 %v2171, %v2557
        %v2590 = vadd.f32 %v2172, %v2558
        %v2591 = vadd.f32 %v2173, %v2559
        %v2592 = vadd.f32 %v2174, %v2560
        %v2593 = vadd.f32 %v2175, %v2561
        %v2594 = vadd.f32 %v2176, %v2562
        %v2595 = vadd.f32 %v2177, %v2563
        %v2596 = vadd.f32 %v2178, %v2564
        %v2597 = vadd.f32 %v2179, %v2565
        %v2598 = vadd.f32 %v2180, %v2566
        %v2599 = vadd.f32 %v2181, %v2567
        %v2600 = vadd.f32 %v2182, %v2568
        %v2601 = vadd.f32 %v2183, %v2569
        %v2602 = vadd.f32 %v2184, %v2570
        %v2603 = vadd.f32 %v2185, %v2571
        %v2604 = vadd.f32 %v2186, %v2572
        %v2605 = vadd.f32 %v2187, %v2573
        %v2606 = vadd.f32 %v2188, %v2574
        %v2607 = vadd.f32 %v2189, %v2575
        %v2608 = vld [vmem:[#allocation2 + $0x8] sm:$0xf]
        %v2609 = vld [vmem:[#allocation2 + $0xc] sm:$0xf]
        %v2610 = vld [vmem:[#allocation2 + $0x10] sm:$0xf]
        %v2611 = vld [vmem:[#allocation2 + $0x14] sm:$0xf]
        %v2612 = vld [vmem:[#allocation2 + $0x18] sm:$0xf]
        %v2613 = vld [vmem:[#allocation2 + $0x1c] sm:$0xf]
        %v2614 = vld [vmem:[#allocation2 + $0x20] sm:$0xf]
        %v2615 = vld [vmem:[#allocation2 + $0x24] sm:$0xf]
        %v2616 = vld [vmem:[#allocation2 + $0x28] sm:$0xf]
        %v2617 = vld [vmem:[#allocation2 + $0x2c] sm:$0xf]
        %v2618 = vld [vmem:[#allocation2 + $0x30] sm:$0xf]
        %v2619 = vld [vmem:[#allocation2 + $0x34] sm:$0xf]
        %v2620 = vld [vmem:[#allocation2 + $0x38] sm:$0xf]
        %v2621 = vld [vmem:[#allocation2 + $0x3c] sm:$0xf]
        %v2622 = vld [vmem:[#allocation2 + $0x40] sm:$0xf]
        %v2623 = vld [vmem:[#allocation2 + $0x44] sm:$0xf]
        %v2624 = vld [vmem:[#allocation2 + $0x48] sm:$0xf]
        %v2625 = vld [vmem:[#allocation2 + $0x4c] sm:$0xf]
        %v2626 = vld [vmem:[#allocation2 + $0x50] sm:$0xf]
        %v2627 = vld [vmem:[#allocation2 + $0x54] sm:$0xf]
        %v2628 = vld [vmem:[#allocation2 + $0x58] sm:$0xf]
        %v2629 = vld [vmem:[#allocation2 + $0x5c] sm:$0xf]
        %v2630 = vld [vmem:[#allocation2 + $0x60] sm:$0xf]
        %v2631 = vld [vmem:[#allocation2 + $0x64] sm:$0xf]
        %v2632 = vld [vmem:[#allocation2 + $0x68] sm:$0xf]
        %v2633 = vld [vmem:[#allocation2 + $0x6c] sm:$0xf]
        %v2634 = vld [vmem:[#allocation2 + $0x70] sm:$0xf]
        %v2635 = vld [vmem:[#allocation2 + $0x74] sm:$0xf]
        %v2636 = vld [vmem:[#allocation2 + $0x78] sm:$0xf]
        %v2637 = vld [vmem:[#allocation2 + $0x7c] sm:$0xf]
        %v2638 = vld [vmem:[#allocation2 + $0x80] sm:$0xf]
        %v2639 = vld [vmem:[#allocation2 + $0x84] sm:$0xf]
        %v2640 = vld [vmem:[#allocation2 + $0x88] sm:$0x1]
        %s2641 = scalar_lea.vmem %s1, 128
        %v2642 = vld [vmem:[%s2641] sm:$0xf]
        %v2643 = vld [vmem:[%s2641 + $0x4] sm:$0xf]
        %v2644 = vld [vmem:[%s2641 + $0x8] sm:$0xf]
        %v2645 = vld [vmem:[%s2641 + $0xc] sm:$0xf]
        %v2646 = vld [vmem:[%s2641 + $0x10] sm:$0xf]
        %v2647 = vld [vmem:[%s2641 + $0x14] sm:$0xf]
        %v2648 = vld [vmem:[%s2641 + $0x18] sm:$0xf]
        %v2649 = vld [vmem:[%s2641 + $0x1c] sm:$0xf]
        %v2683 = vunpack.c.l.b16 %v2608
        %v2684 = vunpack.c.l.b16 %v2609
        %v2685 = vunpack.c.l.b16 %v2610
        %v2686 = vunpack.c.l.b16 %v2611
        %v2687 = vunpack.c.l.b16 %v2612
        %v2688 = vunpack.c.l.b16 %v2613
        %v2689 = vunpack.c.l.b16 %v2614
        %v2690 = vunpack.c.l.b16 %v2615
        %v2691 = vunpack.c.l.b16 %v2616
        %v2692 = vunpack.c.l.b16 %v2617
        %v2693 = vunpack.c.l.b16 %v2618
        %v2694 = vunpack.c.l.b16 %v2619
        %v2695 = vunpack.c.l.b16 %v2620
        %v2696 = vunpack.c.l.b16 %v2621
        %v2697 = vunpack.c.l.b16 %v2622
        %v2698 = vunpack.c.l.b16 %v2623
        %v2699 = vunpack.c.l.b16 %v2624
        %v2700 = vunpack.c.l.b16 %v2625
        %v2701 = vunpack.c.l.b16 %v2626
        %v2702 = vunpack.c.l.b16 %v2627
        %v2703 = vunpack.c.l.b16 %v2628
        %v2704 = vunpack.c.l.b16 %v2629
        %v2705 = vunpack.c.l.b16 %v2630
        %v2706 = vunpack.c.l.b16 %v2631
        %v2707 = vunpack.c.l.b16 %v2632
        %v2708 = vunpack.c.l.b16 %v2633
        %v2709 = vunpack.c.l.b16 %v2634
        %v2710 = vunpack.c.l.b16 %v2635
        %v2711 = vunpack.c.l.b16 %v2636
        %v2712 = vunpack.c.l.b16 %v2637
        %v2713 = vunpack.c.l.b16 %v2638
        %v2714 = vunpack.c.l.b16 %v2639
        %v2715 = vunpack.c.l.b16 %v2640
        %v2716 = vpack.c.b16 %v2684, %v2683
        %v2717 = vpack.c.b16 %v2686, %v2685
        %v2718 = vpack.c.b16 %v2688, %v2687
        %v2719 = vpack.c.b16 %v2690, %v2689
        %v2720 = vpack.c.b16 %v2692, %v2691
        %v2721 = vpack.c.b16 %v2694, %v2693
        %v2722 = vpack.c.b16 %v2696, %v2695
        %v2723 = vpack.c.b16 %v2698, %v2697
        %v2724 = vpack.c.b16 %v2700, %v2699
        %v2725 = vpack.c.b16 %v2702, %v2701
        %v2726 = vpack.c.b16 %v2704, %v2703
        %v2727 = vpack.c.b16 %v2706, %v2705
        %v2728 = vpack.c.b16 %v2708, %v2707
        %v2729 = vpack.c.b16 %v2710, %v2709
        %v2730 = vpack.c.b16 %v2712, %v2711
        %v2731 = vpack.c.b16 %v2714, %v2713
        %v2732 = vpack.c.b16 %v2715, %v2715
        %v2734 = vshrl.u32 %v2716, 16
        %v2736 = vshll.u32 %v2716, 16
        %v2738 = vrot.slane %v2736, 1
        %v2739 = vor.u32 %v2734, %v2738
        %v2741 = vshll.u32 %v2717, 16
        %v2743 = vrot.slane %v2741, 1
        %v2744 = vsel %vm1384, %v2739, %v2743
        %v2745 = vshrl.u32 %v2717, 16
        %v2747 = vor.u32 %v2745, %v2743
        %v2749 = vshll.u32 %v2718, 16
        %v2751 = vrot.slane %v2749, 1
        %v2752 = vsel %vm1384, %v2747, %v2751
        %v2753 = vshrl.u32 %v2718, 16
        %v2755 = vor.u32 %v2753, %v2751
        %v2757 = vshll.u32 %v2719, 16
        %v2759 = vrot.slane %v2757, 1
        %v2760 = vsel %vm1384, %v2755, %v2759
        %v2761 = vshrl.u32 %v2719, 16
        %v2763 = vor.u32 %v2761, %v2759
        %v2765 = vshll.u32 %v2720, 16
        %v2767 = vrot.slane %v2765, 1
        %v2768 = vsel %vm1384, %v2763, %v2767
        %v2769 = vshrl.u32 %v2720, 16
        %v2771 = vor.u32 %v2769, %v2767
        %v2773 = vshll.u32 %v2721, 16
        %v2775 = vrot.slane %v2773, 1
        %v2776 = vsel %vm1384, %v2771, %v2775
        %v2777 = vshrl.u32 %v2721, 16
        %v2779 = vor.u32 %v2777, %v2775
        %v2781 = vshll.u32 %v2722, 16
        %v2783 = vrot.slane %v2781, 1
        %v2784 = vsel %vm1384, %v2779, %v2783
        %v2785 = vshrl.u32 %v2722, 16
        %v2787 = vor.u32 %v2785, %v2783
        %v2789 = vshll.u32 %v2723, 16
        %v2791 = vrot.slane %v2789, 1
        %v2792 = vsel %vm1384, %v2787, %v2791
        %v2793 = vshrl.u32 %v2723, 16
        %v2795 = vor.u32 %v2793, %v2791
        %v2797 = vshll.u32 %v2724, 16
        %v2799 = vrot.slane %v2797, 1
        %v2800 = vsel %vm1384, %v2795, %v2799
        %v2801 = vshrl.u32 %v2724, 16
        %v2803 = vor.u32 %v2801, %v2799
        %v2805 = vshll.u32 %v2725, 16
        %v2807 = vrot.slane %v2805, 1
        %v2808 = vsel %vm1384, %v2803, %v2807
        %v2809 = vshrl.u32 %v2725, 16
        %v2811 = vor.u32 %v2809, %v2807
        %v2813 = vshll.u32 %v2726, 16
        %v2815 = vrot.slane %v2813, 1
        %v2816 = vsel %vm1384, %v2811, %v2815
        %v2817 = vshrl.u32 %v2726, 16
        %v2819 = vor.u32 %v2817, %v2815
        %v2821 = vshll.u32 %v2727, 16
        %v2823 = vrot.slane %v2821, 1
        %v2824 = vsel %vm1384, %v2819, %v2823
        %v2825 = vshrl.u32 %v2727, 16
        %v2827 = vor.u32 %v2825, %v2823
        %v2829 = vshll.u32 %v2728, 16
        %v2831 = vrot.slane %v2829, 1
        %v2832 = vsel %vm1384, %v2827, %v2831
        %v2833 = vshrl.u32 %v2728, 16
        %v2835 = vor.u32 %v2833, %v2831
        %v2837 = vshll.u32 %v2729, 16
        %v2839 = vrot.slane %v2837, 1
        %v2840 = vsel %vm1384, %v2835, %v2839
        %v2841 = vshrl.u32 %v2729, 16
        %v2843 = vor.u32 %v2841, %v2839
        %v2845 = vshll.u32 %v2730, 16
        %v2847 = vrot.slane %v2845, 1
        %v2848 = vsel %vm1384, %v2843, %v2847
        %v2849 = vshrl.u32 %v2730, 16
        %v2851 = vor.u32 %v2849, %v2847
        %v2853 = vshll.u32 %v2731, 16
        %v2855 = vrot.slane %v2853, 1
        %v2856 = vsel %vm1384, %v2851, %v2855
        %v2857 = vshrl.u32 %v2731, 16
        %v2859 = vor.u32 %v2857, %v2855
        %v2861 = vshll.u32 %v2732, 16
        %v2863 = vrot.slane %v2861, 1
        %v2864 = vsel %vm1384, %v2859, %v2863
        %v2873 = vunpack.c.l.b16 %v2642
        %v2874 = vunpack.c.l.b16 %v2643
        %v2875 = vunpack.c.l.b16 %v2644
        %v2876 = vunpack.c.l.b16 %v2645
        %v2877 = vunpack.c.l.b16 %v2646
        %v2878 = vunpack.c.l.b16 %v2647
        %v2879 = vunpack.c.l.b16 %v2648
        %v2880 = vunpack.c.l.b16 %v2649
        %v2881 = vpack.c.b16 %v2874, %v2873
        %v2882 = vpack.c.b16 %v2876, %v2875
        %v2883 = vpack.c.b16 %v2878, %v2877
        %v2884 = vpack.c.b16 %v2880, %v2879
        %v2890 = vsel %vm921, %v2744, 0
        %v2893 = vsel %vm921, %v2752, 0
        %v2896 = vsel %vm921, %v2760, 0
        %v2899 = vsel %vm921, %v2768, 0
        %v2902 = vsel %vm921, %v2776, 0
        %v2905 = vsel %vm921, %v2784, 0
        %v2908 = vsel %vm921, %v2792, 0
        %v2911 = vsel %vm921, %v2800, 0
        %v2914 = vsel %vm921, %v2808, 0
        %v2917 = vsel %vm921, %v2816, 0
        %v2920 = vsel %vm921, %v2824, 0
        %v2923 = vsel %vm921, %v2832, 0
        %v2926 = vsel %vm921, %v2840, 0
        %v2929 = vsel %vm921, %v2848, 0
        %v2932 = vsel %vm921, %v2856, 0
        %v2935 = vsel %vm921, %v2864, 0
        %2937 = vmatprep.subr.bf16.mxu0 0
        %2938 = vmatpush1.bf16.msra.mxu0 0
        %2939 = vmatprep.subr.bf16.mxu0 0
        %2940 = vmatpush1.bf16.msra.mxu0 0
        %2941 = vmatprep.subr.bf16.mxu0 0
        %2942 = vmatpush1.bf16.msra.mxu0 0
        %2943 = vmatprep.subr.bf16.mxu0 0
        %2944 = vmatpush1.bf16.msra.mxu0 0
        %2945 = vmatprep.subr.bf16.mxu0 0
        %2946 = vmatpush1.bf16.msra.mxu0 %v2884
        %2947 = vmatprep.subr.bf16.mxu0 0
        %2948 = vmatpush1.bf16.msra.mxu0 %v2883
        %2949 = vmatprep.subr.bf16.mxu0 0
        %2950 = vmatpush1.bf16.msra.mxu0 %v2882
        %2951 = vmatprep.subr.bf16.mxu0 0
        %2952 = vmatpush1.bf16.msra.mxu0 %v2881
        %2953 = vmatprep.subr.bf16.mxu0 0
        %2954 = vmatpush2.bf16.msra.mxu0 0
        %2955 = vmatprep.subr.bf16.mxu0 0
        %2956 = vmatpush2.bf16.msra.mxu0 0
        %2957 = vmatprep.subr.bf16.mxu0 0
        %2958 = vmatpush2.bf16.msra.mxu0 0
        %2959 = vmatprep.subr.bf16.mxu0 0
        %2960 = vmatpush2.bf16.msra.mxu0 0
        %2961 = vmatprep.subr.bf16.mxu0 0
        %2962 = vmatpush2.bf16.msra.mxu0 0
        %2963 = vmatprep.subr.bf16.mxu0 0
        %2964 = vmatpush2.bf16.msra.mxu0 0
        %2965 = vmatprep.subr.bf16.mxu0 0
        %2966 = vmatpush2.bf16.msra.mxu0 0
        %2967 = vmatprep.subr.bf16.mxu0 0
        %2968 = vmatpush2.bf16.msra.mxu0 0
        %2969 = vmatprep.mubr.bf16.mxu0 0
        %2970 = vmatmul.mubr.bf16.gmra.mxu0 %v2890
        %v2971 = vpop.f32.mrf.mxu0
        %v2972 = vadd.f32 0.0, %v2971
        %v2973 = vpop.f32.mrf.mxu0
        %v2974 = vpop.f32.mrf.mxu0
        %v2975 = vadd.f32 0.0, %v2974
        %v2976 = vpop.f32.mrf.mxu0
        %2977 = vmatprep.mubr.bf16.mxu0 0
        %2978 = vmatmul.mubr.bf16.gmra.mxu0 %v2893
        %v2979 = vpop.f32.mrf.mxu0
        %v2980 = vadd.f32 0.0, %v2979
        %v2981 = vpop.f32.mrf.mxu0
        %v2982 = vpop.f32.mrf.mxu0
        %v2983 = vadd.f32 0.0, %v2982
        %v2984 = vpop.f32.mrf.mxu0
        %2985 = vmatprep.mubr.bf16.mxu0 0
        %2986 = vmatmul.mubr.bf16.gmra.mxu0 %v2896
        %v2987 = vpop.f32.mrf.mxu0
        %v2988 = vadd.f32 0.0, %v2987
        %v2989 = vpop.f32.mrf.mxu0
        %v2990 = vpop.f32.mrf.mxu0
        %v2991 = vadd.f32 0.0, %v2990
        %v2992 = vpop.f32.mrf.mxu0
        %2993 = vmatprep.mubr.bf16.mxu0 0
        %2994 = vmatmul.mubr.bf16.gmra.mxu0 %v2899
        %v2995 = vpop.f32.mrf.mxu0
        %v2996 = vadd.f32 0.0, %v2995
        %v2997 = vpop.f32.mrf.mxu0
        %v2998 = vpop.f32.mrf.mxu0
        %v2999 = vadd.f32 0.0, %v2998
        %v3000 = vpop.f32.mrf.mxu0
        %3001 = vmatprep.mubr.bf16.mxu0 0
        %3002 = vmatmul.mubr.bf16.gmra.mxu0 %v2902
        %v3003 = vpop.f32.mrf.mxu0
        %v3004 = vadd.f32 0.0, %v3003
        %v3005 = vpop.f32.mrf.mxu0
        %v3006 = vpop.f32.mrf.mxu0
        %v3007 = vadd.f32 0.0, %v3006
        %v3008 = vpop.f32.mrf.mxu0
        %3009 = vmatprep.mubr.bf16.mxu0 0
        %3010 = vmatmul.mubr.bf16.gmra.mxu0 %v2905
        %v3011 = vpop.f32.mrf.mxu0
        %v3012 = vadd.f32 0.0, %v3011
        %v3013 = vpop.f32.mrf.mxu0
        %v3014 = vpop.f32.mrf.mxu0
        %v3015 = vadd.f32 0.0, %v3014
        %v3016 = vpop.f32.mrf.mxu0
        %3017 = vmatprep.mubr.bf16.mxu0 0
        %3018 = vmatmul.mubr.bf16.gmra.mxu0 %v2908
        %v3019 = vpop.f32.mrf.mxu0
        %v3020 = vadd.f32 0.0, %v3019
        %v3021 = vpop.f32.mrf.mxu0
        %v3022 = vpop.f32.mrf.mxu0
        %v3023 = vadd.f32 0.0, %v3022
        %v3024 = vpop.f32.mrf.mxu0
        %3025 = vmatprep.mubr.bf16.mxu0 0
        %3026 = vmatmul.mubr.bf16.gmra.mxu0 %v2911
        %v3027 = vpop.f32.mrf.mxu0
        %v3028 = vadd.f32 0.0, %v3027
        %v3029 = vpop.f32.mrf.mxu0
        %v3030 = vpop.f32.mrf.mxu0
        %v3031 = vadd.f32 0.0, %v3030
        %v3032 = vpop.f32.mrf.mxu0
        %3033 = vmatprep.mubr.bf16.mxu0 0
        %3034 = vmatmul.mubr.bf16.gmra.mxu0 %v2914
        %v3035 = vpop.f32.mrf.mxu0
        %v3036 = vadd.f32 0.0, %v3035
        %v3037 = vpop.f32.mrf.mxu0
        %v3038 = vpop.f32.mrf.mxu0
        %v3039 = vadd.f32 0.0, %v3038
        %v3040 = vpop.f32.mrf.mxu0
        %3041 = vmatprep.mubr.bf16.mxu0 0
        %3042 = vmatmul.mubr.bf16.gmra.mxu0 %v2917
        %v3043 = vpop.f32.mrf.mxu0
        %v3044 = vadd.f32 0.0, %v3043
        %v3045 = vpop.f32.mrf.mxu0
        %v3046 = vpop.f32.mrf.mxu0
        %v3047 = vadd.f32 0.0, %v3046
        %v3048 = vpop.f32.mrf.mxu0
        %3049 = vmatprep.mubr.bf16.mxu0 0
        %3050 = vmatmul.mubr.bf16.gmra.mxu0 %v2920
        %v3051 = vpop.f32.mrf.mxu0
        %v3052 = vadd.f32 0.0, %v3051
        %v3053 = vpop.f32.mrf.mxu0
        %v3054 = vpop.f32.mrf.mxu0
        %v3055 = vadd.f32 0.0, %v3054
        %v3056 = vpop.f32.mrf.mxu0
        %3057 = vmatprep.mubr.bf16.mxu0 0
        %3058 = vmatmul.mubr.bf16.gmra.mxu0 %v2923
        %v3059 = vpop.f32.mrf.mxu0
        %v3060 = vadd.f32 0.0, %v3059
        %v3061 = vpop.f32.mrf.mxu0
        %v3062 = vpop.f32.mrf.mxu0
        %v3063 = vadd.f32 0.0, %v3062
        %v3064 = vpop.f32.mrf.mxu0
        %3065 = vmatprep.mubr.bf16.mxu0 0
        %3066 = vmatmul.mubr.bf16.gmra.mxu0 %v2926
        %v3067 = vpop.f32.mrf.mxu0
        %v3068 = vadd.f32 0.0, %v3067
        %v3069 = vpop.f32.mrf.mxu0
        %v3070 = vpop.f32.mrf.mxu0
        %v3071 = vadd.f32 0.0, %v3070
        %v3072 = vpop.f32.mrf.mxu0
        %3073 = vmatprep.mubr.bf16.mxu0 0
        %3074 = vmatmul.mubr.bf16.gmra.mxu0 %v2929
        %v3075 = vpop.f32.mrf.mxu0
        %v3076 = vadd.f32 0.0, %v3075
        %v3077 = vpop.f32.mrf.mxu0
        %v3078 = vpop.f32.mrf.mxu0
        %v3079 = vadd.f32 0.0, %v3078
        %v3080 = vpop.f32.mrf.mxu0
        %3081 = vmatprep.mubr.bf16.mxu0 0
        %3082 = vmatmul.mubr.bf16.gmra.mxu0 %v2932
        %v3083 = vpop.f32.mrf.mxu0
        %v3084 = vadd.f32 0.0, %v3083
        %v3085 = vpop.f32.mrf.mxu0
        %v3086 = vpop.f32.mrf.mxu0
        %v3087 = vadd.f32 0.0, %v3086
        %v3088 = vpop.f32.mrf.mxu0
        %3089 = vmatprep.mubr.bf16.mxu0 0
        %3090 = vmatmul.mubr.bf16.gmra.mxu0 %v2935
        %v3091 = vpop.f32.mrf.mxu0
        %v3092 = vadd.f32 0.0, %v3091
        %v3093 = vpop.f32.mrf.mxu0
        %v3094 = vpop.f32.mrf.mxu0
        %v3095 = vadd.f32 0.0, %v3094
        %v3096 = vpop.f32.mrf.mxu0
        %3097 = vdwg.mxu0
        %v3098 = vadd.f32 %v2576, %v2972
        %v3099 = vadd.f32 %v2577, %v2975
        %v3100 = vadd.f32 %v2578, %v2980
        %v3101 = vadd.f32 %v2579, %v2983
        %v3102 = vadd.f32 %v2580, %v2988
        %v3103 = vadd.f32 %v2581, %v2991
        %v3104 = vadd.f32 %v2582, %v2996
        %v3105 = vadd.f32 %v2583, %v2999
        %v3106 = vadd.f32 %v2584, %v3004
        %v3107 = vadd.f32 %v2585, %v3007
        %v3108 = vadd.f32 %v2586, %v3012
        %v3109 = vadd.f32 %v2587, %v3015
        %v3110 = vadd.f32 %v2588, %v3020
        %v3111 = vadd.f32 %v2589, %v3023
        %v3112 = vadd.f32 %v2590, %v3028
        %v3113 = vadd.f32 %v2591, %v3031
        %v3114 = vadd.f32 %v2592, %v3036
        %v3115 = vadd.f32 %v2593, %v3039
        %v3116 = vadd.f32 %v2594, %v3044
        %v3117 = vadd.f32 %v2595, %v3047
        %v3118 = vadd.f32 %v2596, %v3052
        %v3119 = vadd.f32 %v2597, %v3055
        %v3120 = vadd.f32 %v2598, %v3060
        %v3121 = vadd.f32 %v2599, %v3063
        %v3122 = vadd.f32 %v2600, %v3068
        %v3123 = vadd.f32 %v2601, %v3071
        %v3124 = vadd.f32 %v2602, %v3076
        %v3125 = vadd.f32 %v2603, %v3079
        %v3126 = vadd.f32 %v2604, %v3084
        %v3127 = vadd.f32 %v2605, %v3087
        %v3128 = vadd.f32 %v2606, %v3092
        %v3129 = vadd.f32 %v2607, %v3095
        %v3130 = vld [vmem:[#allocation2 + $0x8] sm:$0xe]
        %s3131 = scalar_lea.vmem %s1, 160
        %v3132 = vld [vmem:[%s3131] sm:$0xf]
        %v3133 = vld [vmem:[%s3131 + $0x4] sm:$0xf]
        %v3134 = vld [vmem:[%s3131 + $0x8] sm:$0xf]
        %v3135 = vld [vmem:[%s3131 + $0xc] sm:$0xf]
        %v3136 = vld [vmem:[%s3131 + $0x10] sm:$0xf]
        %v3137 = vld [vmem:[%s3131 + $0x14] sm:$0xf]
        %v3138 = vld [vmem:[%s3131 + $0x18] sm:$0xf]
        %v3139 = vld [vmem:[%s3131 + $0x1c] sm:$0xf]
        %v3141 = vunpack.c.l.b16 %v3130
        %v3142 = vpack.c.b16 %v2684, %v3141
        %v3143 = vrot.slane %v3142, 1
        %v3144 = vrot.slane %v2717, 1
        %v3145 = vsel %vm1795, %v3143, %v3144
        %v3146 = vrot.slane %v2718, 1
        %v3147 = vsel %vm1795, %v3144, %v3146
        %v3148 = vrot.slane %v2719, 1
        %v3149 = vsel %vm1795, %v3146, %v3148
        %v3150 = vrot.slane %v2720, 1
        %v3151 = vsel %vm1795, %v3148, %v3150
        %v3152 = vrot.slane %v2721, 1
        %v3153 = vsel %vm1795, %v3150, %v3152
        %v3154 = vrot.slane %v2722, 1
        %v3155 = vsel %vm1795, %v3152, %v3154
        %v3156 = vrot.slane %v2723, 1
        %v3157 = vsel %vm1795, %v3154, %v3156
        %v3158 = vrot.slane %v2724, 1
        %v3159 = vsel %vm1795, %v3156, %v3158
        %v3160 = vrot.slane %v2725, 1
        %v3161 = vsel %vm1795, %v3158, %v3160
        %v3162 = vrot.slane %v2726, 1
        %v3163 = vsel %vm1795, %v3160, %v3162
        %v3164 = vrot.slane %v2727, 1
        %v3165 = vsel %vm1795, %v3162, %v3164
        %v3166 = vrot.slane %v2728, 1
        %v3167 = vsel %vm1795, %v3164, %v3166
        %v3168 = vrot.slane %v2729, 1
        %v3169 = vsel %vm1795, %v3166, %v3168
        %v3170 = vrot.slane %v2730, 1
        %v3171 = vsel %vm1795, %v3168, %v3170
        %v3172 = vrot.slane %v2731, 1
        %v3173 = vsel %vm1795, %v3170, %v3172
        %v3174 = vrot.slane %v2732, 1
        %v3175 = vsel %vm1795, %v3172, %v3174
        %v3184 = vunpack.c.l.b16 %v3132
        %v3185 = vunpack.c.l.b16 %v3133
        %v3186 = vunpack.c.l.b16 %v3134
        %v3187 = vunpack.c.l.b16 %v3135
        %v3188 = vunpack.c.l.b16 %v3136
        %v3189 = vunpack.c.l.b16 %v3137
        %v3190 = vunpack.c.l.b16 %v3138
        %v3191 = vunpack.c.l.b16 %v3139
        %v3192 = vpack.c.b16 %v3185, %v3184
        %v3193 = vpack.c.b16 %v3187, %v3186
        %v3194 = vpack.c.b16 %v3189, %v3188
        %v3195 = vpack.c.b16 %v3191, %v3190
        %v3201 = vsel %vm921, %v3145, 0
        %v3204 = vsel %vm921, %v3147, 0
        %v3207 = vsel %vm921, %v3149, 0
        %v3210 = vsel %vm921, %v3151, 0
        %v3213 = vsel %vm921, %v3153, 0
        %v3216 = vsel %vm921, %v3155, 0
        %v3219 = vsel %vm921, %v3157, 0
        %v3222 = vsel %vm921, %v3159, 0
        %v3225 = vsel %vm921, %v3161, 0
        %v3228 = vsel %vm921, %v3163, 0
        %v3231 = vsel %vm921, %v3165, 0
        %v3234 = vsel %vm921, %v3167, 0
        %v3237 = vsel %vm921, %v3169, 0
        %v3240 = vsel %vm921, %v3171, 0
        %v3243 = vsel %vm921, %v3173, 0
        %v3246 = vsel %vm921, %v3175, 0
        %3248 = vmatprep.subr.bf16.mxu0 0
        %3249 = vmatpush1.bf16.msra.mxu0 0
        %3250 = vmatprep.subr.bf16.mxu0 0
        %3251 = vmatpush1.bf16.msra.mxu0 0
        %3252 = vmatprep.subr.bf16.mxu0 0
        %3253 = vmatpush1.bf16.msra.mxu0 0
        %3254 = vmatprep.subr.bf16.mxu0 0
        %3255 = vmatpush1.bf16.msra.mxu0 0
        %3256 = vmatprep.subr.bf16.mxu0 0
        %3257 = vmatpush1.bf16.msra.mxu0 %v3195
        %3258 = vmatprep.subr.bf16.mxu0 0
        %3259 = vmatpush1.bf16.msra.mxu0 %v3194
        %3260 = vmatprep.subr.bf16.mxu0 0
        %3261 = vmatpush1.bf16.msra.mxu0 %v3193
        %3262 = vmatprep.subr.bf16.mxu0 0
        %3263 = vmatpush1.bf16.msra.mxu0 %v3192
        %3264 = vmatprep.subr.bf16.mxu0 0
        %3265 = vmatpush2.bf16.msra.mxu0 0
        %3266 = vmatprep.subr.bf16.mxu0 0
        %3267 = vmatpush2.bf16.msra.mxu0 0
        %3268 = vmatprep.subr.bf16.mxu0 0
        %3269 = vmatpush2.bf16.msra.mxu0 0
        %3270 = vmatprep.subr.bf16.mxu0 0
        %3271 = vmatpush2.bf16.msra.mxu0 0
        %3272 = vmatprep.subr.bf16.mxu0 0
        %3273 = vmatpush2.bf16.msra.mxu0 0
        %3274 = vmatprep.subr.bf16.mxu0 0
        %3275 = vmatpush2.bf16.msra.mxu0 0
        %3276 = vmatprep.subr.bf16.mxu0 0
        %3277 = vmatpush2.bf16.msra.mxu0 0
        %3278 = vmatprep.subr.bf16.mxu0 0
        %3279 = vmatpush2.bf16.msra.mxu0 0
        %3280 = vmatprep.mubr.bf16.mxu0 0
        %3281 = vmatmul.mubr.bf16.gmra.mxu0 %v3201
        %v3282 = vpop.f32.mrf.mxu0
        %v3283 = vadd.f32 0.0, %v3282
        %v3284 = vpop.f32.mrf.mxu0
        %v3285 = vpop.f32.mrf.mxu0
        %v3286 = vadd.f32 0.0, %v3285
        %v3287 = vpop.f32.mrf.mxu0
        %3288 = vmatprep.mubr.bf16.mxu0 0
        %3289 = vmatmul.mubr.bf16.gmra.mxu0 %v3204
        %v3290 = vpop.f32.mrf.mxu0
        %v3291 = vadd.f32 0.0, %v3290
        %v3292 = vpop.f32.mrf.mxu0
        %v3293 = vpop.f32.mrf.mxu0
        %v3294 = vadd.f32 0.0, %v3293
        %v3295 = vpop.f32.mrf.mxu0
        %3296 = vmatprep.mubr.bf16.mxu0 0
        %3297 = vmatmul.mubr.bf16.gmra.mxu0 %v3207
        %v3298 = vpop.f32.mrf.mxu0
        %v3299 = vadd.f32 0.0, %v3298
        %v3300 = vpop.f32.mrf.mxu0
        %v3301 = vpop.f32.mrf.mxu0
        %v3302 = vadd.f32 0.0, %v3301
        %v3303 = vpop.f32.mrf.mxu0
        %3304 = vmatprep.mubr.bf16.mxu0 0
        %3305 = vmatmul.mubr.bf16.gmra.mxu0 %v3210
        %v3306 = vpop.f32.mrf.mxu0
        %v3307 = vadd.f32 0.0, %v3306
        %v3308 = vpop.f32.mrf.mxu0
        %v3309 = vpop.f32.mrf.mxu0
        %v3310 = vadd.f32 0.0, %v3309
        %v3311 = vpop.f32.mrf.mxu0
        %3312 = vmatprep.mubr.bf16.mxu0 0
        %3313 = vmatmul.mubr.bf16.gmra.mxu0 %v3213
        %v3314 = vpop.f32.mrf.mxu0
        %v3315 = vadd.f32 0.0, %v3314
        %v3316 = vpop.f32.mrf.mxu0
        %v3317 = vpop.f32.mrf.mxu0
        %v3318 = vadd.f32 0.0, %v3317
        %v3319 = vpop.f32.mrf.mxu0
        %3320 = vmatprep.mubr.bf16.mxu0 0
        %3321 = vmatmul.mubr.bf16.gmra.mxu0 %v3216
        %v3322 = vpop.f32.mrf.mxu0
        %v3323 = vadd.f32 0.0, %v3322
        %v3324 = vpop.f32.mrf.mxu0
        %v3325 = vpop.f32.mrf.mxu0
        %v3326 = vadd.f32 0.0, %v3325
        %v3327 = vpop.f32.mrf.mxu0
        %3328 = vmatprep.mubr.bf16.mxu0 0
        %3329 = vmatmul.mubr.bf16.gmra.mxu0 %v3219
        %v3330 = vpop.f32.mrf.mxu0
        %v3331 = vadd.f32 0.0, %v3330
        %v3332 = vpop.f32.mrf.mxu0
        %v3333 = vpop.f32.mrf.mxu0
        %v3334 = vadd.f32 0.0, %v3333
        %v3335 = vpop.f32.mrf.mxu0
        %3336 = vmatprep.mubr.bf16.mxu0 0
        %3337 = vmatmul.mubr.bf16.gmra.mxu0 %v3222
        %v3338 = vpop.f32.mrf.mxu0
        %v3339 = vadd.f32 0.0, %v3338
        %v3340 = vpop.f32.mrf.mxu0
        %v3341 = vpop.f32.mrf.mxu0
        %v3342 = vadd.f32 0.0, %v3341
        %v3343 = vpop.f32.mrf.mxu0
        %3344 = vmatprep.mubr.bf16.mxu0 0
        %3345 = vmatmul.mubr.bf16.gmra.mxu0 %v3225
        %v3346 = vpop.f32.mrf.mxu0
        %v3347 = vadd.f32 0.0, %v3346
        %v3348 = vpop.f32.mrf.mxu0
        %v3349 = vpop.f32.mrf.mxu0
        %v3350 = vadd.f32 0.0, %v3349
        %v3351 = vpop.f32.mrf.mxu0
        %3352 = vmatprep.mubr.bf16.mxu0 0
        %3353 = vmatmul.mubr.bf16.gmra.mxu0 %v3228
        %v3354 = vpop.f32.mrf.mxu0
        %v3355 = vadd.f32 0.0, %v3354
        %v3356 = vpop.f32.mrf.mxu0
        %v3357 = vpop.f32.mrf.mxu0
        %v3358 = vadd.f32 0.0, %v3357
        %v3359 = vpop.f32.mrf.mxu0
        %3360 = vmatprep.mubr.bf16.mxu0 0
        %3361 = vmatmul.mubr.bf16.gmra.mxu0 %v3231
        %v3362 = vpop.f32.mrf.mxu0
        %v3363 = vadd.f32 0.0, %v3362
        %v3364 = vpop.f32.mrf.mxu0
        %v3365 = vpop.f32.mrf.mxu0
        %v3366 = vadd.f32 0.0, %v3365
        %v3367 = vpop.f32.mrf.mxu0
        %3368 = vmatprep.mubr.bf16.mxu0 0
        %3369 = vmatmul.mubr.bf16.gmra.mxu0 %v3234
        %v3370 = vpop.f32.mrf.mxu0
        %v3371 = vadd.f32 0.0, %v3370
        %v3372 = vpop.f32.mrf.mxu0
        %v3373 = vpop.f32.mrf.mxu0
        %v3374 = vadd.f32 0.0, %v3373
        %v3375 = vpop.f32.mrf.mxu0
        %3376 = vmatprep.mubr.bf16.mxu0 0
        %3377 = vmatmul.mubr.bf16.gmra.mxu0 %v3237
        %v3378 = vpop.f32.mrf.mxu0
        %v3379 = vadd.f32 0.0, %v3378
        %v3380 = vpop.f32.mrf.mxu0
        %v3381 = vpop.f32.mrf.mxu0
        %v3382 = vadd.f32 0.0, %v3381
        %v3383 = vpop.f32.mrf.mxu0
        %3384 = vmatprep.mubr.bf16.mxu0 0
        %3385 = vmatmul.mubr.bf16.gmra.mxu0 %v3240
        %v3386 = vpop.f32.mrf.mxu0
        %v3387 = vadd.f32 0.0, %v3386
        %v3388 = vpop.f32.mrf.mxu0
        %v3389 = vpop.f32.mrf.mxu0
        %v3390 = vadd.f32 0.0, %v3389
        %v3391 = vpop.f32.mrf.mxu0
        %3392 = vmatprep.mubr.bf16.mxu0 0
        %3393 = vmatmul.mubr.bf16.gmra.mxu0 %v3243
        %v3394 = vpop.f32.mrf.mxu0
        %v3395 = vadd.f32 0.0, %v3394
        %v3396 = vpop.f32.mrf.mxu0
        %v3397 = vpop.f32.mrf.mxu0
        %v3398 = vadd.f32 0.0, %v3397
        %v3399 = vpop.f32.mrf.mxu0
        %3400 = vmatprep.mubr.bf16.mxu0 0
        %3401 = vmatmul.mubr.bf16.gmra.mxu0 %v3246
        %v3402 = vpop.f32.mrf.mxu0
        %v3403 = vadd.f32 0.0, %v3402
        %v3404 = vpop.f32.mrf.mxu0
        %v3405 = vpop.f32.mrf.mxu0
        %v3406 = vadd.f32 0.0, %v3405
        %v3407 = vpop.f32.mrf.mxu0
        %3408 = vdwg.mxu0
        %v3409 = vsel %vm2094, %v3283, 0.0
        %v3410 = vsel %vm2095, %v3286, 0.0
        %v3411 = vsel %vm2096, %v3291, 0.0
        %v3412 = vsel %vm2097, %v3294, 0.0
        %v3413 = vsel %vm2098, %v3299, 0.0
        %v3414 = vsel %vm2099, %v3302, 0.0
        %v3415 = vsel %vm2100, %v3307, 0.0
        %v3416 = vsel %vm2101, %v3310, 0.0
        %v3417 = vsel %vm2102, %v3315, 0.0
        %v3418 = vsel %vm2103, %v3318, 0.0
        %v3419 = vsel %vm2104, %v3323, 0.0
        %v3420 = vsel %vm2105, %v3326, 0.0
        %v3421 = vsel %vm2106, %v3331, 0.0
        %v3422 = vsel %vm2107, %v3334, 0.0
        %v3423 = vsel %vm2108, %v3339, 0.0
        %v3424 = vsel %vm2109, %v3342, 0.0
        %v3425 = vsel %vm2110, %v3347, 0.0
        %v3426 = vsel %vm2111, %v3350, 0.0
        %v3427 = vsel %vm2112, %v3355, 0.0
        %v3428 = vsel %vm2113, %v3358, 0.0
        %v3429 = vsel %vm2114, %v3363, 0.0
        %v3430 = vsel %vm2115, %v3366, 0.0
        %v3431 = vsel %vm2116, %v3371, 0.0
        %v3432 = vsel %vm2117, %v3374, 0.0
        %v3433 = vsel %vm2118, %v3379, 0.0
        %v3434 = vsel %vm2119, %v3382, 0.0
        %v3435 = vsel %vm2120, %v3387, 0.0
        %v3436 = vsel %vm2121, %v3390, 0.0
        %v3437 = vsel %vm2122, %v3395, 0.0
        %v3438 = vsel %vm2123, %v3398, 0.0
        %v3439 = vsel %vm2124, %v3403, 0.0
        %v3440 = vsel %vm2125, %v3406, 0.0
        %v3441 = vadd.f32 %v3098, %v3409
        %v3442 = vadd.f32 %v3099, %v3410
        %v3443 = vadd.f32 %v3100, %v3411
        %v3444 = vadd.f32 %v3101, %v3412
        %v3445 = vadd.f32 %v3102, %v3413
        %v3446 = vadd.f32 %v3103, %v3414
        %v3447 = vadd.f32 %v3104, %v3415
        %v3448 = vadd.f32 %v3105, %v3416
        %v3449 = vadd.f32 %v3106, %v3417
        %v3450 = vadd.f32 %v3107, %v3418
        %v3451 = vadd.f32 %v3108, %v3419
        %v3452 = vadd.f32 %v3109, %v3420
        %v3453 = vadd.f32 %v3110, %v3421
        %v3454 = vadd.f32 %v3111, %v3422
        %v3455 = vadd.f32 %v3112, %v3423
        %v3456 = vadd.f32 %v3113, %v3424
        %v3457 = vadd.f32 %v3114, %v3425
        %v3458 = vadd.f32 %v3115, %v3426
        %v3459 = vadd.f32 %v3116, %v3427
        %v3460 = vadd.f32 %v3117, %v3428
        %v3461 = vadd.f32 %v3118, %v3429
        %v3462 = vadd.f32 %v3119, %v3430
        %v3463 = vadd.f32 %v3120, %v3431
        %v3464 = vadd.f32 %v3121, %v3432
        %v3465 = vadd.f32 %v3122, %v3433
        %v3466 = vadd.f32 %v3123, %v3434
        %v3467 = vadd.f32 %v3124, %v3435
        %v3468 = vadd.f32 %v3125, %v3436
        %v3469 = vadd.f32 %v3126, %v3437
        %v3470 = vadd.f32 %v3127, %v3438
        %v3471 = vadd.f32 %v3128, %v3439
        %v3472 = vadd.f32 %v3129, %v3440
        %v3473 = vld [vmem:[#allocation2 + $0x10] sm:$0xf]
        %v3474 = vld [vmem:[#allocation2 + $0x14] sm:$0xf]
        %v3475 = vld [vmem:[#allocation2 + $0x18] sm:$0xf]
        %v3476 = vld [vmem:[#allocation2 + $0x1c] sm:$0xf]
        %v3477 = vld [vmem:[#allocation2 + $0x20] sm:$0xf]
        %v3478 = vld [vmem:[#allocation2 + $0x24] sm:$0xf]
        %v3479 = vld [vmem:[#allocation2 + $0x28] sm:$0xf]
        %v3480 = vld [vmem:[#allocation2 + $0x2c] sm:$0xf]
        %v3481 = vld [vmem:[#allocation2 + $0x30] sm:$0xf]
        %v3482 = vld [vmem:[#allocation2 + $0x34] sm:$0xf]
        %v3483 = vld [vmem:[#allocation2 + $0x38] sm:$0xf]
        %v3484 = vld [vmem:[#allocation2 + $0x3c] sm:$0xf]
        %v3485 = vld [vmem:[#allocation2 + $0x40] sm:$0xf]
        %v3486 = vld [vmem:[#allocation2 + $0x44] sm:$0xf]
        %v3487 = vld [vmem:[#allocation2 + $0x48] sm:$0xf]
        %v3488 = vld [vmem:[#allocation2 + $0x4c] sm:$0xf]
        %v3489 = vld [vmem:[#allocation2 + $0x50] sm:$0xf]
        %v3490 = vld [vmem:[#allocation2 + $0x54] sm:$0xf]
        %v3491 = vld [vmem:[#allocation2 + $0x58] sm:$0xf]
        %v3492 = vld [vmem:[#allocation2 + $0x5c] sm:$0xf]
        %v3493 = vld [vmem:[#allocation2 + $0x60] sm:$0xf]
        %v3494 = vld [vmem:[#allocation2 + $0x64] sm:$0xf]
        %v3495 = vld [vmem:[#allocation2 + $0x68] sm:$0xf]
        %v3496 = vld [vmem:[#allocation2 + $0x6c] sm:$0xf]
        %v3497 = vld [vmem:[#allocation2 + $0x70] sm:$0xf]
        %v3498 = vld [vmem:[#allocation2 + $0x74] sm:$0xf]
        %v3499 = vld [vmem:[#allocation2 + $0x78] sm:$0xf]
        %v3500 = vld [vmem:[#allocation2 + $0x7c] sm:$0xf]
        %v3501 = vld [vmem:[#allocation2 + $0x80] sm:$0xf]
        %v3502 = vld [vmem:[#allocation2 + $0x84] sm:$0xf]
        %v3503 = vld [vmem:[#allocation2 + $0x88] sm:$0xf]
        %v3504 = vld [vmem:[#allocation2 + $0x8c] sm:$0xf]
        %s3505 = scalar_lea.vmem %s1, 192
        %v3506 = vld [vmem:[%s3505] sm:$0xf]
        %v3507 = vld [vmem:[%s3505 + $0x4] sm:$0xf]
        %v3508 = vld [vmem:[%s3505 + $0x8] sm:$0xf]
        %v3509 = vld [vmem:[%s3505 + $0xc] sm:$0xf]
        %v3510 = vld [vmem:[%s3505 + $0x10] sm:$0xf]
        %v3511 = vld [vmem:[%s3505 + $0x14] sm:$0xf]
        %v3512 = vld [vmem:[%s3505 + $0x18] sm:$0xf]
        %v3513 = vld [vmem:[%s3505 + $0x1c] sm:$0xf]
        %v3546 = vunpack.c.l.b16 %v3473
        %v3547 = vunpack.c.l.b16 %v3474
        %v3548 = vunpack.c.l.b16 %v3475
        %v3549 = vunpack.c.l.b16 %v3476
        %v3550 = vunpack.c.l.b16 %v3477
        %v3551 = vunpack.c.l.b16 %v3478
        %v3552 = vunpack.c.l.b16 %v3479
        %v3553 = vunpack.c.l.b16 %v3480
        %v3554 = vunpack.c.l.b16 %v3481
        %v3555 = vunpack.c.l.b16 %v3482
        %v3556 = vunpack.c.l.b16 %v3483
        %v3557 = vunpack.c.l.b16 %v3484
        %v3558 = vunpack.c.l.b16 %v3485
        %v3559 = vunpack.c.l.b16 %v3486
        %v3560 = vunpack.c.l.b16 %v3487
        %v3561 = vunpack.c.l.b16 %v3488
        %v3562 = vunpack.c.l.b16 %v3489
        %v3563 = vunpack.c.l.b16 %v3490
        %v3564 = vunpack.c.l.b16 %v3491
        %v3565 = vunpack.c.l.b16 %v3492
        %v3566 = vunpack.c.l.b16 %v3493
        %v3567 = vunpack.c.l.b16 %v3494
        %v3568 = vunpack.c.l.b16 %v3495
        %v3569 = vunpack.c.l.b16 %v3496
        %v3570 = vunpack.c.l.b16 %v3497
        %v3571 = vunpack.c.l.b16 %v3498
        %v3572 = vunpack.c.l.b16 %v3499
        %v3573 = vunpack.c.l.b16 %v3500
        %v3574 = vunpack.c.l.b16 %v3501
        %v3575 = vunpack.c.l.b16 %v3502
        %v3576 = vunpack.c.l.b16 %v3503
        %v3577 = vunpack.c.l.b16 %v3504
        %v3578 = vpack.c.b16 %v3547, %v3546
        %v3579 = vpack.c.b16 %v3549, %v3548
        %v3580 = vpack.c.b16 %v3551, %v3550
        %v3581 = vpack.c.b16 %v3553, %v3552
        %v3582 = vpack.c.b16 %v3555, %v3554
        %v3583 = vpack.c.b16 %v3557, %v3556
        %v3584 = vpack.c.b16 %v3559, %v3558
        %v3585 = vpack.c.b16 %v3561, %v3560
        %v3586 = vpack.c.b16 %v3563, %v3562
        %v3587 = vpack.c.b16 %v3565, %v3564
        %v3588 = vpack.c.b16 %v3567, %v3566
        %v3589 = vpack.c.b16 %v3569, %v3568
        %v3590 = vpack.c.b16 %v3571, %v3570
        %v3591 = vpack.c.b16 %v3573, %v3572
        %v3592 = vpack.c.b16 %v3575, %v3574
        %v3593 = vpack.c.b16 %v3577, %v3576
        %v3602 = vunpack.c.l.b16 %v3506
        %v3603 = vunpack.c.l.b16 %v3507
        %v3604 = vunpack.c.l.b16 %v3508
        %v3605 = vunpack.c.l.b16 %v3509
        %v3606 = vunpack.c.l.b16 %v3510
        %v3607 = vunpack.c.l.b16 %v3511
        %v3608 = vunpack.c.l.b16 %v3512
        %v3609 = vunpack.c.l.b16 %v3513
        %v3610 = vpack.c.b16 %v3603, %v3602
        %v3611 = vpack.c.b16 %v3605, %v3604
        %v3612 = vpack.c.b16 %v3607, %v3606
        %v3613 = vpack.c.b16 %v3609, %v3608
        %v3619 = vsel %vm921, %v3578, 0
        %v3622 = vsel %vm921, %v3579, 0
        %v3625 = vsel %vm921, %v3580, 0
        %v3628 = vsel %vm921, %v3581, 0
        %v3631 = vsel %vm921, %v3582, 0
        %v3634 = vsel %vm921, %v3583, 0
        %v3637 = vsel %vm921, %v3584, 0
        %v3640 = vsel %vm921, %v3585, 0
        %v3643 = vsel %vm921, %v3586, 0
        %v3646 = vsel %vm921, %v3587, 0
        %v3649 = vsel %vm921, %v3588, 0
        %v3652 = vsel %vm921, %v3589, 0
        %v3655 = vsel %vm921, %v3590, 0
        %v3658 = vsel %vm921, %v3591, 0
        %v3661 = vsel %vm921, %v3592, 0
        %v3664 = vsel %vm921, %v3593, 0
        %3666 = vmatprep.subr.bf16.mxu0 0
        %3667 = vmatpush1.bf16.msra.mxu0 0
        %3668 = vmatprep.subr.bf16.mxu0 0
        %3669 = vmatpush1.bf16.msra.mxu0 0
        %3670 = vmatprep.subr.bf16.mxu0 0
        %3671 = vmatpush1.bf16.msra.mxu0 0
        %3672 = vmatprep.subr.bf16.mxu0 0
        %3673 = vmatpush1.bf16.msra.mxu0 0
        %3674 = vmatprep.subr.bf16.mxu0 0
        %3675 = vmatpush1.bf16.msra.mxu0 %v3613
        %3676 = vmatprep.subr.bf16.mxu0 0
        %3677 = vmatpush1.bf16.msra.mxu0 %v3612
        %3678 = vmatprep.subr.bf16.mxu0 0
        %3679 = vmatpush1.bf16.msra.mxu0 %v3611
        %3680 = vmatprep.subr.bf16.mxu0 0
        %3681 = vmatpush1.bf16.msra.mxu0 %v3610
        %3682 = vmatprep.subr.bf16.mxu0 0
        %3683 = vmatpush2.bf16.msra.mxu0 0
        %3684 = vmatprep.subr.bf16.mxu0 0
        %3685 = vmatpush2.bf16.msra.mxu0 0
        %3686 = vmatprep.subr.bf16.mxu0 0
        %3687 = vmatpush2.bf16.msra.mxu0 0
        %3688 = vmatprep.subr.bf16.mxu0 0
        %3689 = vmatpush2.bf16.msra.mxu0 0
        %3690 = vmatprep.subr.bf16.mxu0 0
        %3691 = vmatpush2.bf16.msra.mxu0 0
        %3692 = vmatprep.subr.bf16.mxu0 0
        %3693 = vmatpush2.bf16.msra.mxu0 0
        %3694 = vmatprep.subr.bf16.mxu0 0
        %3695 = vmatpush2.bf16.msra.mxu0 0
        %3696 = vmatprep.subr.bf16.mxu0 0
        %3697 = vmatpush2.bf16.msra.mxu0 0
        %3698 = vmatprep.mubr.bf16.mxu0 0
        %3699 = vmatmul.mubr.bf16.gmra.mxu0 %v3619
        %v3700 = vpop.f32.mrf.mxu0
        %v3701 = vadd.f32 0.0, %v3700
        %v3702 = vpop.f32.mrf.mxu0
        %v3703 = vpop.f32.mrf.mxu0
        %v3704 = vadd.f32 0.0, %v3703
        %v3705 = vpop.f32.mrf.mxu0
        %3706 = vmatprep.mubr.bf16.mxu0 0
        %3707 = vmatmul.mubr.bf16.gmra.mxu0 %v3622
        %v3708 = vpop.f32.mrf.mxu0
        %v3709 = vadd.f32 0.0, %v3708
        %v3710 = vpop.f32.mrf.mxu0
        %v3711 = vpop.f32.mrf.mxu0
        %v3712 = vadd.f32 0.0, %v3711
        %v3713 = vpop.f32.mrf.mxu0
        %3714 = vmatprep.mubr.bf16.mxu0 0
        %3715 = vmatmul.mubr.bf16.gmra.mxu0 %v3625
        %v3716 = vpop.f32.mrf.mxu0
        %v3717 = vadd.f32 0.0, %v3716
        %v3718 = vpop.f32.mrf.mxu0
        %v3719 = vpop.f32.mrf.mxu0
        %v3720 = vadd.f32 0.0, %v3719
        %v3721 = vpop.f32.mrf.mxu0
        %3722 = vmatprep.mubr.bf16.mxu0 0
        %3723 = vmatmul.mubr.bf16.gmra.mxu0 %v3628
        %v3724 = vpop.f32.mrf.mxu0
        %v3725 = vadd.f32 0.0, %v3724
        %v3726 = vpop.f32.mrf.mxu0
        %v3727 = vpop.f32.mrf.mxu0
        %v3728 = vadd.f32 0.0, %v3727
        %v3729 = vpop.f32.mrf.mxu0
        %3730 = vmatprep.mubr.bf16.mxu0 0
        %3731 = vmatmul.mubr.bf16.gmra.mxu0 %v3631
        %v3732 = vpop.f32.mrf.mxu0
        %v3733 = vadd.f32 0.0, %v3732
        %v3734 = vpop.f32.mrf.mxu0
        %v3735 = vpop.f32.mrf.mxu0
        %v3736 = vadd.f32 0.0, %v3735
        %v3737 = vpop.f32.mrf.mxu0
        %3738 = vmatprep.mubr.bf16.mxu0 0
        %3739 = vmatmul.mubr.bf16.gmra.mxu0 %v3634
        %v3740 = vpop.f32.mrf.mxu0
        %v3741 = vadd.f32 0.0, %v3740
        %v3742 = vpop.f32.mrf.mxu0
        %v3743 = vpop.f32.mrf.mxu0
        %v3744 = vadd.f32 0.0, %v3743
        %v3745 = vpop.f32.mrf.mxu0
        %3746 = vmatprep.mubr.bf16.mxu0 0
        %3747 = vmatmul.mubr.bf16.gmra.mxu0 %v3637
        %v3748 = vpop.f32.mrf.mxu0
        %v3749 = vadd.f32 0.0, %v3748
        %v3750 = vpop.f32.mrf.mxu0
        %v3751 = vpop.f32.mrf.mxu0
        %v3752 = vadd.f32 0.0, %v3751
        %v3753 = vpop.f32.mrf.mxu0
        %3754 = vmatprep.mubr.bf16.mxu0 0
        %3755 = vmatmul.mubr.bf16.gmra.mxu0 %v3640
        %v3756 = vpop.f32.mrf.mxu0
        %v3757 = vadd.f32 0.0, %v3756
        %v3758 = vpop.f32.mrf.mxu0
        %v3759 = vpop.f32.mrf.mxu0
        %v3760 = vadd.f32 0.0, %v3759
        %v3761 = vpop.f32.mrf.mxu0
        %3762 = vmatprep.mubr.bf16.mxu0 0
        %3763 = vmatmul.mubr.bf16.gmra.mxu0 %v3643
        %v3764 = vpop.f32.mrf.mxu0
        %v3765 = vadd.f32 0.0, %v3764
        %v3766 = vpop.f32.mrf.mxu0
        %v3767 = vpop.f32.mrf.mxu0
        %v3768 = vadd.f32 0.0, %v3767
        %v3769 = vpop.f32.mrf.mxu0
        %3770 = vmatprep.mubr.bf16.mxu0 0
        %3771 = vmatmul.mubr.bf16.gmra.mxu0 %v3646
        %v3772 = vpop.f32.mrf.mxu0
        %v3773 = vadd.f32 0.0, %v3772
        %v3774 = vpop.f32.mrf.mxu0
        %v3775 = vpop.f32.mrf.mxu0
        %v3776 = vadd.f32 0.0, %v3775
        %v3777 = vpop.f32.mrf.mxu0
        %3778 = vmatprep.mubr.bf16.mxu0 0
        %3779 = vmatmul.mubr.bf16.gmra.mxu0 %v3649
        %v3780 = vpop.f32.mrf.mxu0
        %v3781 = vadd.f32 0.0, %v3780
        %v3782 = vpop.f32.mrf.mxu0
        %v3783 = vpop.f32.mrf.mxu0
        %v3784 = vadd.f32 0.0, %v3783
        %v3785 = vpop.f32.mrf.mxu0
        %3786 = vmatprep.mubr.bf16.mxu0 0
        %3787 = vmatmul.mubr.bf16.gmra.mxu0 %v3652
        %v3788 = vpop.f32.mrf.mxu0
        %v3789 = vadd.f32 0.0, %v3788
        %v3790 = vpop.f32.mrf.mxu0
        %v3791 = vpop.f32.mrf.mxu0
        %v3792 = vadd.f32 0.0, %v3791
        %v3793 = vpop.f32.mrf.mxu0
        %3794 = vmatprep.mubr.bf16.mxu0 0
        %3795 = vmatmul.mubr.bf16.gmra.mxu0 %v3655
        %v3796 = vpop.f32.mrf.mxu0
        %v3797 = vadd.f32 0.0, %v3796
        %v3798 = vpop.f32.mrf.mxu0
        %v3799 = vpop.f32.mrf.mxu0
        %v3800 = vadd.f32 0.0, %v3799
        %v3801 = vpop.f32.mrf.mxu0
        %3802 = vmatprep.mubr.bf16.mxu0 0
        %3803 = vmatmul.mubr.bf16.gmra.mxu0 %v3658
        %v3804 = vpop.f32.mrf.mxu0
        %v3805 = vadd.f32 0.0, %v3804
        %v3806 = vpop.f32.mrf.mxu0
        %v3807 = vpop.f32.mrf.mxu0
        %v3808 = vadd.f32 0.0, %v3807
        %v3809 = vpop.f32.mrf.mxu0
        %3810 = vmatprep.mubr.bf16.mxu0 0
        %3811 = vmatmul.mubr.bf16.gmra.mxu0 %v3661
        %v3812 = vpop.f32.mrf.mxu0
        %v3813 = vadd.f32 0.0, %v3812
        %v3814 = vpop.f32.mrf.mxu0
        %v3815 = vpop.f32.mrf.mxu0
        %v3816 = vadd.f32 0.0, %v3815
        %v3817 = vpop.f32.mrf.mxu0
        %3818 = vmatprep.mubr.bf16.mxu0 0
        %3819 = vmatmul.mubr.bf16.gmra.mxu0 %v3664
        %v3820 = vpop.f32.mrf.mxu0
        %v3821 = vadd.f32 0.0, %v3820
        %v3822 = vpop.f32.mrf.mxu0
        %v3823 = vpop.f32.mrf.mxu0
        %v3824 = vadd.f32 0.0, %v3823
        %v3825 = vpop.f32.mrf.mxu0
        %3826 = vdwg.mxu0
        %v3827 = vsel %vm1163, %v3701, 0.0
        %v3828 = vsel %vm1164, %v3704, 0.0
        %v3829 = vsel %vm1165, %v3709, 0.0
        %v3830 = vsel %vm1166, %v3712, 0.0
        %v3831 = vsel %vm1167, %v3717, 0.0
        %v3832 = vsel %vm1168, %v3720, 0.0
        %v3833 = vsel %vm1169, %v3725, 0.0
        %v3834 = vsel %vm1170, %v3728, 0.0
        %v3835 = vsel %vm1171, %v3733, 0.0
        %v3836 = vsel %vm1172, %v3736, 0.0
        %v3837 = vsel %vm1173, %v3741, 0.0
        %v3838 = vsel %vm1174, %v3744, 0.0
        %v3839 = vsel %vm1175, %v3749, 0.0
        %v3840 = vsel %vm1176, %v3752, 0.0
        %v3841 = vsel %vm1177, %v3757, 0.0
        %v3842 = vsel %vm1178, %v3760, 0.0
        %v3843 = vsel %vm1179, %v3765, 0.0
        %v3844 = vsel %vm1180, %v3768, 0.0
        %v3845 = vsel %vm1181, %v3773, 0.0
        %v3846 = vsel %vm1182, %v3776, 0.0
        %v3847 = vsel %vm1183, %v3781, 0.0
        %v3848 = vsel %vm1184, %v3784, 0.0
        %v3849 = vsel %vm1185, %v3789, 0.0
        %v3850 = vsel %vm1186, %v3792, 0.0
        %v3851 = vsel %vm1187, %v3797, 0.0
        %v3852 = vsel %vm1188, %v3800, 0.0
        %v3853 = vsel %vm1189, %v3805, 0.0
        %v3854 = vsel %vm1190, %v3808, 0.0
        %v3855 = vsel %vm1191, %v3813, 0.0
        %v3856 = vsel %vm1192, %v3816, 0.0
        %v3857 = vsel %vm1193, %v3821, 0.0
        %v3858 = vsel %vm1194, %v3824, 0.0
        %v3859 = vadd.f32 %v3441, %v3827
        %v3860 = vadd.f32 %v3442, %v3828
        %v3861 = vadd.f32 %v3443, %v3829
        %v3862 = vadd.f32 %v3444, %v3830
        %v3863 = vadd.f32 %v3445, %v3831
        %v3864 = vadd.f32 %v3446, %v3832
        %v3865 = vadd.f32 %v3447, %v3833
        %v3866 = vadd.f32 %v3448, %v3834
        %v3867 = vadd.f32 %v3449, %v3835
        %v3868 = vadd.f32 %v3450, %v3836
        %v3869 = vadd.f32 %v3451, %v3837
        %v3870 = vadd.f32 %v3452, %v3838
        %v3871 = vadd.f32 %v3453, %v3839
        %v3872 = vadd.f32 %v3454, %v3840
        %v3873 = vadd.f32 %v3455, %v3841
        %v3874 = vadd.f32 %v3456, %v3842
        %v3875 = vadd.f32 %v3457, %v3843
        %v3876 = vadd.f32 %v3458, %v3844
        %v3877 = vadd.f32 %v3459, %v3845
        %v3878 = vadd.f32 %v3460, %v3846
        %v3879 = vadd.f32 %v3461, %v3847
        %v3880 = vadd.f32 %v3462, %v3848
        %v3881 = vadd.f32 %v3463, %v3849
        %v3882 = vadd.f32 %v3464, %v3850
        %v3883 = vadd.f32 %v3465, %v3851
        %v3884 = vadd.f32 %v3466, %v3852
        %v3885 = vadd.f32 %v3467, %v3853
        %v3886 = vadd.f32 %v3468, %v3854
        %v3887 = vadd.f32 %v3469, %v3855
        %v3888 = vadd.f32 %v3470, %v3856
        %v3889 = vadd.f32 %v3471, %v3857
        %v3890 = vadd.f32 %v3472, %v3858
        %v3891 = vld [vmem:[#allocation2 + $0x10] sm:$0xf]
        %v3892 = vld [vmem:[#allocation2 + $0x14] sm:$0xf]
        %v3893 = vld [vmem:[#allocation2 + $0x18] sm:$0xf]
        %v3894 = vld [vmem:[#allocation2 + $0x1c] sm:$0xf]
        %v3895 = vld [vmem:[#allocation2 + $0x20] sm:$0xf]
        %v3896 = vld [vmem:[#allocation2 + $0x24] sm:$0xf]
        %v3897 = vld [vmem:[#allocation2 + $0x28] sm:$0xf]
        %v3898 = vld [vmem:[#allocation2 + $0x2c] sm:$0xf]
        %v3899 = vld [vmem:[#allocation2 + $0x30] sm:$0xf]
        %v3900 = vld [vmem:[#allocation2 + $0x34] sm:$0xf]
        %v3901 = vld [vmem:[#allocation2 + $0x38] sm:$0xf]
        %v3902 = vld [vmem:[#allocation2 + $0x3c] sm:$0xf]
        %v3903 = vld [vmem:[#allocation2 + $0x40] sm:$0xf]
        %v3904 = vld [vmem:[#allocation2 + $0x44] sm:$0xf]
        %v3905 = vld [vmem:[#allocation2 + $0x48] sm:$0xf]
        %v3906 = vld [vmem:[#allocation2 + $0x4c] sm:$0xf]
        %v3907 = vld [vmem:[#allocation2 + $0x50] sm:$0xf]
        %v3908 = vld [vmem:[#allocation2 + $0x54] sm:$0xf]
        %v3909 = vld [vmem:[#allocation2 + $0x58] sm:$0xf]
        %v3910 = vld [vmem:[#allocation2 + $0x5c] sm:$0xf]
        %v3911 = vld [vmem:[#allocation2 + $0x60] sm:$0xf]
        %v3912 = vld [vmem:[#allocation2 + $0x64] sm:$0xf]
        %v3913 = vld [vmem:[#allocation2 + $0x68] sm:$0xf]
        %v3914 = vld [vmem:[#allocation2 + $0x6c] sm:$0xf]
        %v3915 = vld [vmem:[#allocation2 + $0x70] sm:$0xf]
        %v3916 = vld [vmem:[#allocation2 + $0x74] sm:$0xf]
        %v3917 = vld [vmem:[#allocation2 + $0x78] sm:$0xf]
        %v3918 = vld [vmem:[#allocation2 + $0x7c] sm:$0xf]
        %v3919 = vld [vmem:[#allocation2 + $0x80] sm:$0xf]
        %v3920 = vld [vmem:[#allocation2 + $0x84] sm:$0xf]
        %v3921 = vld [vmem:[#allocation2 + $0x88] sm:$0xf]
        %v3922 = vld [vmem:[#allocation2 + $0x8c] sm:$0xf]
        %v3923 = vld [vmem:[#allocation2 + $0x90] sm:$0x1]
        %s3924 = scalar_lea.vmem %s1, 224
        %v3925 = vld [vmem:[%s3924] sm:$0xf]
        %v3926 = vld [vmem:[%s3924 + $0x4] sm:$0xf]
        %v3927 = vld [vmem:[%s3924 + $0x8] sm:$0xf]
        %v3928 = vld [vmem:[%s3924 + $0xc] sm:$0xf]
        %v3929 = vld [vmem:[%s3924 + $0x10] sm:$0xf]
        %v3930 = vld [vmem:[%s3924 + $0x14] sm:$0xf]
        %v3931 = vld [vmem:[%s3924 + $0x18] sm:$0xf]
        %v3932 = vld [vmem:[%s3924 + $0x1c] sm:$0xf]
        %v3966 = vunpack.c.l.b16 %v3891
        %v3967 = vunpack.c.l.b16 %v3892
        %v3968 = vunpack.c.l.b16 %v3893
        %v3969 = vunpack.c.l.b16 %v3894
        %v3970 = vunpack.c.l.b16 %v3895
        %v3971 = vunpack.c.l.b16 %v3896
        %v3972 = vunpack.c.l.b16 %v3897
        %v3973 = vunpack.c.l.b16 %v3898
        %v3974 = vunpack.c.l.b16 %v3899
        %v3975 = vunpack.c.l.b16 %v3900
        %v3976 = vunpack.c.l.b16 %v3901
        %v3977 = vunpack.c.l.b16 %v3902
        %v3978 = vunpack.c.l.b16 %v3903
        %v3979 = vunpack.c.l.b16 %v3904
        %v3980 = vunpack.c.l.b16 %v3905
        %v3981 = vunpack.c.l.b16 %v3906
        %v3982 = vunpack.c.l.b16 %v3907
        %v3983 = vunpack.c.l.b16 %v3908
        %v3984 = vunpack.c.l.b16 %v3909
        %v3985 = vunpack.c.l.b16 %v3910
        %v3986 = vunpack.c.l.b16 %v3911
        %v3987 = vunpack.c.l.b16 %v3912
        %v3988 = vunpack.c.l.b16 %v3913
        %v3989 = vunpack.c.l.b16 %v3914
        %v3990 = vunpack.c.l.b16 %v3915
        %v3991 = vunpack.c.l.b16 %v3916
        %v3992 = vunpack.c.l.b16 %v3917
        %v3993 = vunpack.c.l.b16 %v3918
        %v3994 = vunpack.c.l.b16 %v3919
        %v3995 = vunpack.c.l.b16 %v3920
        %v3996 = vunpack.c.l.b16 %v3921
        %v3997 = vunpack.c.l.b16 %v3922
        %v3998 = vunpack.c.l.b16 %v3923
        %v3999 = vpack.c.b16 %v3967, %v3966
        %v4000 = vpack.c.b16 %v3969, %v3968
        %v4001 = vpack.c.b16 %v3971, %v3970
        %v4002 = vpack.c.b16 %v3973, %v3972
        %v4003 = vpack.c.b16 %v3975, %v3974
        %v4004 = vpack.c.b16 %v3977, %v3976
        %v4005 = vpack.c.b16 %v3979, %v3978
        %v4006 = vpack.c.b16 %v3981, %v3980
        %v4007 = vpack.c.b16 %v3983, %v3982
        %v4008 = vpack.c.b16 %v3985, %v3984
        %v4009 = vpack.c.b16 %v3987, %v3986
        %v4010 = vpack.c.b16 %v3989, %v3988
        %v4011 = vpack.c.b16 %v3991, %v3990
        %v4012 = vpack.c.b16 %v3993, %v3992
        %v4013 = vpack.c.b16 %v3995, %v3994
        %v4014 = vpack.c.b16 %v3997, %v3996
        %v4015 = vpack.c.b16 %v3998, %v3998
        %v4017 = vshrl.u32 %v3999, 16
        %v4019 = vshll.u32 %v3999, 16
        %v4021 = vrot.slane %v4019, 1
        %v4022 = vor.u32 %v4017, %v4021
        %v4024 = vshll.u32 %v4000, 16
        %v4026 = vrot.slane %v4024, 1
        %v4027 = vsel %vm1384, %v4022, %v4026
        %v4028 = vshrl.u32 %v4000, 16
        %v4030 = vor.u32 %v4028, %v4026
        %v4032 = vshll.u32 %v4001, 16
        %v4034 = vrot.slane %v4032, 1
        %v4035 = vsel %vm1384, %v4030, %v4034
        %v4036 = vshrl.u32 %v4001, 16
        %v4038 = vor.u32 %v4036, %v4034
        %v4040 = vshll.u32 %v4002, 16
        %v4042 = vrot.slane %v4040, 1
        %v4043 = vsel %vm1384, %v4038, %v4042
        %v4044 = vshrl.u32 %v4002, 16
        %v4046 = vor.u32 %v4044, %v4042
        %v4048 = vshll.u32 %v4003, 16
        %v4050 = vrot.slane %v4048, 1
        %v4051 = vsel %vm1384, %v4046, %v4050
        %v4052 = vshrl.u32 %v4003, 16
        %v4054 = vor.u32 %v4052, %v4050
        %v4056 = vshll.u32 %v4004, 16
        %v4058 = vrot.slane %v4056, 1
        %v4059 = vsel %vm1384, %v4054, %v4058
        %v4060 = vshrl.u32 %v4004, 16
        %v4062 = vor.u32 %v4060, %v4058
        %v4064 = vshll.u32 %v4005, 16
        %v4066 = vrot.slane %v4064, 1
        %v4067 = vsel %vm1384, %v4062, %v4066
        %v4068 = vshrl.u32 %v4005, 16
        %v4070 = vor.u32 %v4068, %v4066
        %v4072 = vshll.u32 %v4006, 16
        %v4074 = vrot.slane %v4072, 1
        %v4075 = vsel %vm1384, %v4070, %v4074
        %v4076 = vshrl.u32 %v4006, 16
        %v4078 = vor.u32 %v4076, %v4074
        %v4080 = vshll.u32 %v4007, 16
        %v4082 = vrot.slane %v4080, 1
        %v4083 = vsel %vm1384, %v4078, %v4082
        %v4084 = vshrl.u32 %v4007, 16
        %v4086 = vor.u32 %v4084, %v4082
        %v4088 = vshll.u32 %v4008, 16
        %v4090 = vrot.slane %v4088, 1
        %v4091 = vsel %vm1384, %v4086, %v4090
        %v4092 = vshrl.u32 %v4008, 16
        %v4094 = vor.u32 %v4092, %v4090
        %v4096 = vshll.u32 %v4009, 16
        %v4098 = vrot.slane %v4096, 1
        %v4099 = vsel %vm1384, %v4094, %v4098
        %v4100 = vshrl.u32 %v4009, 16
        %v4102 = vor.u32 %v4100, %v4098
        %v4104 = vshll.u32 %v4010, 16
        %v4106 = vrot.slane %v4104, 1
        %v4107 = vsel %vm1384, %v4102, %v4106
        %v4108 = vshrl.u32 %v4010, 16
        %v4110 = vor.u32 %v4108, %v4106
        %v4112 = vshll.u32 %v4011, 16
        %v4114 = vrot.slane %v4112, 1
        %v4115 = vsel %vm1384, %v4110, %v4114
        %v4116 = vshrl.u32 %v4011, 16
        %v4118 = vor.u32 %v4116, %v4114
        %v4120 = vshll.u32 %v4012, 16
        %v4122 = vrot.slane %v4120, 1
        %v4123 = vsel %vm1384, %v4118, %v4122
        %v4124 = vshrl.u32 %v4012, 16
        %v4126 = vor.u32 %v4124, %v4122
        %v4128 = vshll.u32 %v4013, 16
        %v4130 = vrot.slane %v4128, 1
        %v4131 = vsel %vm1384, %v4126, %v4130
        %v4132 = vshrl.u32 %v4013, 16
        %v4134 = vor.u32 %v4132, %v4130
        %v4136 = vshll.u32 %v4014, 16
        %v4138 = vrot.slane %v4136, 1
        %v4139 = vsel %vm1384, %v4134, %v4138
        %v4140 = vshrl.u32 %v4014, 16
        %v4142 = vor.u32 %v4140, %v4138
        %v4144 = vshll.u32 %v4015, 16
        %v4146 = vrot.slane %v4144, 1
        %v4147 = vsel %vm1384, %v4142, %v4146
        %v4156 = vunpack.c.l.b16 %v3925
        %v4157 = vunpack.c.l.b16 %v3926
        %v4158 = vunpack.c.l.b16 %v3927
        %v4159 = vunpack.c.l.b16 %v3928
        %v4160 = vunpack.c.l.b16 %v3929
        %v4161 = vunpack.c.l.b16 %v3930
        %v4162 = vunpack.c.l.b16 %v3931
        %v4163 = vunpack.c.l.b16 %v3932
        %v4164 = vpack.c.b16 %v4157, %v4156
        %v4165 = vpack.c.b16 %v4159, %v4158
        %v4166 = vpack.c.b16 %v4161, %v4160
        %v4167 = vpack.c.b16 %v4163, %v4162
        %v4173 = vsel %vm921, %v4027, 0
        %v4176 = vsel %vm921, %v4035, 0
        %v4179 = vsel %vm921, %v4043, 0
        %v4182 = vsel %vm921, %v4051, 0
        %v4185 = vsel %vm921, %v4059, 0
        %v4188 = vsel %vm921, %v4067, 0
        %v4191 = vsel %vm921, %v4075, 0
        %v4194 = vsel %vm921, %v4083, 0
        %v4197 = vsel %vm921, %v4091, 0
        %v4200 = vsel %vm921, %v4099, 0
        %v4203 = vsel %vm921, %v4107, 0
        %v4206 = vsel %vm921, %v4115, 0
        %v4209 = vsel %vm921, %v4123, 0
        %v4212 = vsel %vm921, %v4131, 0
        %v4215 = vsel %vm921, %v4139, 0
        %v4218 = vsel %vm921, %v4147, 0
        %4220 = vmatprep.subr.bf16.mxu0 0
        %4221 = vmatpush1.bf16.msra.mxu0 0
        %4222 = vmatprep.subr.bf16.mxu0 0
        %4223 = vmatpush1.bf16.msra.mxu0 0
        %4224 = vmatprep.subr.bf16.mxu0 0
        %4225 = vmatpush1.bf16.msra.mxu0 0
        %4226 = vmatprep.subr.bf16.mxu0 0
        %4227 = vmatpush1.bf16.msra.mxu0 0
        %4228 = vmatprep.subr.bf16.mxu0 0
        %4229 = vmatpush1.bf16.msra.mxu0 %v4167
        %4230 = vmatprep.subr.bf16.mxu0 0
        %4231 = vmatpush1.bf16.msra.mxu0 %v4166
        %4232 = vmatprep.subr.bf16.mxu0 0
        %4233 = vmatpush1.bf16.msra.mxu0 %v4165
        %4234 = vmatprep.subr.bf16.mxu0 0
        %4235 = vmatpush1.bf16.msra.mxu0 %v4164
        %4236 = vmatprep.subr.bf16.mxu0 0
        %4237 = vmatpush2.bf16.msra.mxu0 0
        %4238 = vmatprep.subr.bf16.mxu0 0
        %4239 = vmatpush2.bf16.msra.mxu0 0
        %4240 = vmatprep.subr.bf16.mxu0 0
        %4241 = vmatpush2.bf16.msra.mxu0 0
        %4242 = vmatprep.subr.bf16.mxu0 0
        %4243 = vmatpush2.bf16.msra.mxu0 0
        %4244 = vmatprep.subr.bf16.mxu0 0
        %4245 = vmatpush2.bf16.msra.mxu0 0
        %4246 = vmatprep.subr.bf16.mxu0 0
        %4247 = vmatpush2.bf16.msra.mxu0 0
        %4248 = vmatprep.subr.bf16.mxu0 0
        %4249 = vmatpush2.bf16.msra.mxu0 0
        %4250 = vmatprep.subr.bf16.mxu0 0
        %4251 = vmatpush2.bf16.msra.mxu0 0
        %4252 = vmatprep.mubr.bf16.mxu0 0
        %4253 = vmatmul.mubr.bf16.gmra.mxu0 %v4173
        %v4254 = vpop.f32.mrf.mxu0
        %v4255 = vadd.f32 0.0, %v4254
        %v4256 = vpop.f32.mrf.mxu0
        %v4257 = vpop.f32.mrf.mxu0
        %v4258 = vadd.f32 0.0, %v4257
        %v4259 = vpop.f32.mrf.mxu0
        %4260 = vmatprep.mubr.bf16.mxu0 0
        %4261 = vmatmul.mubr.bf16.gmra.mxu0 %v4176
        %v4262 = vpop.f32.mrf.mxu0
        %v4263 = vadd.f32 0.0, %v4262
        %v4264 = vpop.f32.mrf.mxu0
        %v4265 = vpop.f32.mrf.mxu0
        %v4266 = vadd.f32 0.0, %v4265
        %v4267 = vpop.f32.mrf.mxu0
        %4268 = vmatprep.mubr.bf16.mxu0 0
        %4269 = vmatmul.mubr.bf16.gmra.mxu0 %v4179
        %v4270 = vpop.f32.mrf.mxu0
        %v4271 = vadd.f32 0.0, %v4270
        %v4272 = vpop.f32.mrf.mxu0
        %v4273 = vpop.f32.mrf.mxu0
        %v4274 = vadd.f32 0.0, %v4273
        %v4275 = vpop.f32.mrf.mxu0
        %4276 = vmatprep.mubr.bf16.mxu0 0
        %4277 = vmatmul.mubr.bf16.gmra.mxu0 %v4182
        %v4278 = vpop.f32.mrf.mxu0
        %v4279 = vadd.f32 0.0, %v4278
        %v4280 = vpop.f32.mrf.mxu0
        %v4281 = vpop.f32.mrf.mxu0
        %v4282 = vadd.f32 0.0, %v4281
        %v4283 = vpop.f32.mrf.mxu0
        %4284 = vmatprep.mubr.bf16.mxu0 0
        %4285 = vmatmul.mubr.bf16.gmra.mxu0 %v4185
        %v4286 = vpop.f32.mrf.mxu0
        %v4287 = vadd.f32 0.0, %v4286
        %v4288 = vpop.f32.mrf.mxu0
        %v4289 = vpop.f32.mrf.mxu0
        %v4290 = vadd.f32 0.0, %v4289
        %v4291 = vpop.f32.mrf.mxu0
        %4292 = vmatprep.mubr.bf16.mxu0 0
        %4293 = vmatmul.mubr.bf16.gmra.mxu0 %v4188
        %v4294 = vpop.f32.mrf.mxu0
        %v4295 = vadd.f32 0.0, %v4294
        %v4296 = vpop.f32.mrf.mxu0
        %v4297 = vpop.f32.mrf.mxu0
        %v4298 = vadd.f32 0.0, %v4297
        %v4299 = vpop.f32.mrf.mxu0
        %4300 = vmatprep.mubr.bf16.mxu0 0
        %4301 = vmatmul.mubr.bf16.gmra.mxu0 %v4191
        %v4302 = vpop.f32.mrf.mxu0
        %v4303 = vadd.f32 0.0, %v4302
        %v4304 = vpop.f32.mrf.mxu0
        %v4305 = vpop.f32.mrf.mxu0
        %v4306 = vadd.f32 0.0, %v4305
        %v4307 = vpop.f32.mrf.mxu0
        %4308 = vmatprep.mubr.bf16.mxu0 0
        %4309 = vmatmul.mubr.bf16.gmra.mxu0 %v4194
        %v4310 = vpop.f32.mrf.mxu0
        %v4311 = vadd.f32 0.0, %v4310
        %v4312 = vpop.f32.mrf.mxu0
        %v4313 = vpop.f32.mrf.mxu0
        %v4314 = vadd.f32 0.0, %v4313
        %v4315 = vpop.f32.mrf.mxu0
        %4316 = vmatprep.mubr.bf16.mxu0 0
        %4317 = vmatmul.mubr.bf16.gmra.mxu0 %v4197
        %v4318 = vpop.f32.mrf.mxu0
        %v4319 = vadd.f32 0.0, %v4318
        %v4320 = vpop.f32.mrf.mxu0
        %v4321 = vpop.f32.mrf.mxu0
        %v4322 = vadd.f32 0.0, %v4321
        %v4323 = vpop.f32.mrf.mxu0
        %4324 = vmatprep.mubr.bf16.mxu0 0
        %4325 = vmatmul.mubr.bf16.gmra.mxu0 %v4200
        %v4326 = vpop.f32.mrf.mxu0
        %v4327 = vadd.f32 0.0, %v4326
        %v4328 = vpop.f32.mrf.mxu0
        %v4329 = vpop.f32.mrf.mxu0
        %v4330 = vadd.f32 0.0, %v4329
        %v4331 = vpop.f32.mrf.mxu0
        %4332 = vmatprep.mubr.bf16.mxu0 0
        %4333 = vmatmul.mubr.bf16.gmra.mxu0 %v4203
        %v4334 = vpop.f32.mrf.mxu0
        %v4335 = vadd.f32 0.0, %v4334
        %v4336 = vpop.f32.mrf.mxu0
        %v4337 = vpop.f32.mrf.mxu0
        %v4338 = vadd.f32 0.0, %v4337
        %v4339 = vpop.f32.mrf.mxu0
        %4340 = vmatprep.mubr.bf16.mxu0 0
        %4341 = vmatmul.mubr.bf16.gmra.mxu0 %v4206
        %v4342 = vpop.f32.mrf.mxu0
        %v4343 = vadd.f32 0.0, %v4342
        %v4344 = vpop.f32.mrf.mxu0
        %v4345 = vpop.f32.mrf.mxu0
        %v4346 = vadd.f32 0.0, %v4345
        %v4347 = vpop.f32.mrf.mxu0
        %4348 = vmatprep.mubr.bf16.mxu0 0
        %4349 = vmatmul.mubr.bf16.gmra.mxu0 %v4209
        %v4350 = vpop.f32.mrf.mxu0
        %v4351 = vadd.f32 0.0, %v4350
        %v4352 = vpop.f32.mrf.mxu0
        %v4353 = vpop.f32.mrf.mxu0
        %v4354 = vadd.f32 0.0, %v4353
        %v4355 = vpop.f32.mrf.mxu0
        %4356 = vmatprep.mubr.bf16.mxu0 0
        %4357 = vmatmul.mubr.bf16.gmra.mxu0 %v4212
        %v4358 = vpop.f32.mrf.mxu0
        %v4359 = vadd.f32 0.0, %v4358
        %v4360 = vpop.f32.mrf.mxu0
        %v4361 = vpop.f32.mrf.mxu0
        %v4362 = vadd.f32 0.0, %v4361
        %v4363 = vpop.f32.mrf.mxu0
        %4364 = vmatprep.mubr.bf16.mxu0 0
        %4365 = vmatmul.mubr.bf16.gmra.mxu0 %v4215
        %v4366 = vpop.f32.mrf.mxu0
        %v4367 = vadd.f32 0.0, %v4366
        %v4368 = vpop.f32.mrf.mxu0
        %v4369 = vpop.f32.mrf.mxu0
        %v4370 = vadd.f32 0.0, %v4369
        %v4371 = vpop.f32.mrf.mxu0
        %4372 = vmatprep.mubr.bf16.mxu0 0
        %4373 = vmatmul.mubr.bf16.gmra.mxu0 %v4218
        %v4374 = vpop.f32.mrf.mxu0
        %v4375 = vadd.f32 0.0, %v4374
        %v4376 = vpop.f32.mrf.mxu0
        %v4377 = vpop.f32.mrf.mxu0
        %v4378 = vadd.f32 0.0, %v4377
        %v4379 = vpop.f32.mrf.mxu0
        %4380 = vdwg.mxu0
        %v4381 = vadd.f32 %v3859, %v4255
        %v4382 = vadd.f32 %v3860, %v4258
        %v4383 = vadd.f32 %v3861, %v4263
        %v4384 = vadd.f32 %v3862, %v4266
        %v4385 = vadd.f32 %v3863, %v4271
        %v4386 = vadd.f32 %v3864, %v4274
        %v4387 = vadd.f32 %v3865, %v4279
        %v4388 = vadd.f32 %v3866, %v4282
        %v4389 = vadd.f32 %v3867, %v4287
        %v4390 = vadd.f32 %v3868, %v4290
        %v4391 = vadd.f32 %v3869, %v4295
        %v4392 = vadd.f32 %v3870, %v4298
        %v4393 = vadd.f32 %v3871, %v4303
        %v4394 = vadd.f32 %v3872, %v4306
        %v4395 = vadd.f32 %v3873, %v4311
        %v4396 = vadd.f32 %v3874, %v4314
        %v4397 = vadd.f32 %v3875, %v4319
        %v4398 = vadd.f32 %v3876, %v4322
        %v4399 = vadd.f32 %v3877, %v4327
        %v4400 = vadd.f32 %v3878, %v4330
        %v4401 = vadd.f32 %v3879, %v4335
        %v4402 = vadd.f32 %v3880, %v4338
        %v4403 = vadd.f32 %v3881, %v4343
        %v4404 = vadd.f32 %v3882, %v4346
        %v4405 = vadd.f32 %v3883, %v4351
        %v4406 = vadd.f32 %v3884, %v4354
        %v4407 = vadd.f32 %v3885, %v4359
        %v4408 = vadd.f32 %v3886, %v4362
        %v4409 = vadd.f32 %v3887, %v4367
        %v4410 = vadd.f32 %v3888, %v4370
        %v4411 = vadd.f32 %v3889, %v4375
        %v4412 = vadd.f32 %v3890, %v4378
        %v4413 = vld [vmem:[#allocation2 + $0x10] sm:$0xe]
        %s4414 = scalar_lea.vmem %s1, 256
        %v4415 = vld [vmem:[%s4414] sm:$0xf]
        %v4416 = vld [vmem:[%s4414 + $0x4] sm:$0xf]
        %v4417 = vld [vmem:[%s4414 + $0x8] sm:$0xf]
        %v4418 = vld [vmem:[%s4414 + $0xc] sm:$0xf]
        %v4419 = vld [vmem:[%s4414 + $0x10] sm:$0xf]
        %v4420 = vld [vmem:[%s4414 + $0x14] sm:$0xf]
        %v4421 = vld [vmem:[%s4414 + $0x18] sm:$0xf]
        %v4422 = vld [vmem:[%s4414 + $0x1c] sm:$0xf]
        %v4424 = vunpack.c.l.b16 %v4413
        %v4425 = vpack.c.b16 %v3967, %v4424
        %v4426 = vrot.slane %v4425, 1
        %v4427 = vrot.slane %v4000, 1
        %v4428 = vsel %vm1795, %v4426, %v4427
        %v4429 = vrot.slane %v4001, 1
        %v4430 = vsel %vm1795, %v4427, %v4429
        %v4431 = vrot.slane %v4002, 1
        %v4432 = vsel %vm1795, %v4429, %v4431
        %v4433 = vrot.slane %v4003, 1
        %v4434 = vsel %vm1795, %v4431, %v4433
        %v4435 = vrot.slane %v4004, 1
        %v4436 = vsel %vm1795, %v4433, %v4435
        %v4437 = vrot.slane %v4005, 1
        %v4438 = vsel %vm1795, %v4435, %v4437
        %v4439 = vrot.slane %v4006, 1
        %v4440 = vsel %vm1795, %v4437, %v4439
        %v4441 = vrot.slane %v4007, 1
        %v4442 = vsel %vm1795, %v4439, %v4441
        %v4443 = vrot.slane %v4008, 1
        %v4444 = vsel %vm1795, %v4441, %v4443
        %v4445 = vrot.slane %v4009, 1
        %v4446 = vsel %vm1795, %v4443, %v4445
        %v4447 = vrot.slane %v4010, 1
        %v4448 = vsel %vm1795, %v4445, %v4447
        %v4449 = vrot.slane %v4011, 1
        %v4450 = vsel %vm1795, %v4447, %v4449
        %v4451 = vrot.slane %v4012, 1
        %v4452 = vsel %vm1795, %v4449, %v4451
        %v4453 = vrot.slane %v4013, 1
        %v4454 = vsel %vm1795, %v4451, %v4453
        %v4455 = vrot.slane %v4014, 1
        %v4456 = vsel %vm1795, %v4453, %v4455
        %v4457 = vrot.slane %v4015, 1
        %v4458 = vsel %vm1795, %v4455, %v4457
        %v4467 = vunpack.c.l.b16 %v4415
        %v4468 = vunpack.c.l.b16 %v4416
        %v4469 = vunpack.c.l.b16 %v4417
        %v4470 = vunpack.c.l.b16 %v4418
        %v4471 = vunpack.c.l.b16 %v4419
        %v4472 = vunpack.c.l.b16 %v4420
        %v4473 = vunpack.c.l.b16 %v4421
        %v4474 = vunpack.c.l.b16 %v4422
        %v4475 = vpack.c.b16 %v4468, %v4467
        %v4476 = vpack.c.b16 %v4470, %v4469
        %v4477 = vpack.c.b16 %v4472, %v4471
        %v4478 = vpack.c.b16 %v4474, %v4473
        %v4484 = vsel %vm921, %v4428, 0
        %v4487 = vsel %vm921, %v4430, 0
        %v4490 = vsel %vm921, %v4432, 0
        %v4493 = vsel %vm921, %v4434, 0
        %v4496 = vsel %vm921, %v4436, 0
        %v4499 = vsel %vm921, %v4438, 0
        %v4502 = vsel %vm921, %v4440, 0
        %v4505 = vsel %vm921, %v4442, 0
        %v4508 = vsel %vm921, %v4444, 0
        %v4511 = vsel %vm921, %v4446, 0
        %v4514 = vsel %vm921, %v4448, 0
        %v4517 = vsel %vm921, %v4450, 0
        %v4520 = vsel %vm921, %v4452, 0
        %v4523 = vsel %vm921, %v4454, 0
        %v4526 = vsel %vm921, %v4456, 0
        %v4529 = vsel %vm921, %v4458, 0
        %4531 = vmatprep.subr.bf16.mxu0 0
        %4532 = vmatpush1.bf16.msra.mxu0 0
        %4533 = vmatprep.subr.bf16.mxu0 0
        %4534 = vmatpush1.bf16.msra.mxu0 0
        %4535 = vmatprep.subr.bf16.mxu0 0
        %4536 = vmatpush1.bf16.msra.mxu0 0
        %4537 = vmatprep.subr.bf16.mxu0 0
        %4538 = vmatpush1.bf16.msra.mxu0 0
        %4539 = vmatprep.subr.bf16.mxu0 0
        %4540 = vmatpush1.bf16.msra.mxu0 %v4478
        %4541 = vmatprep.subr.bf16.mxu0 0
        %4542 = vmatpush1.bf16.msra.mxu0 %v4477
        %4543 = vmatprep.subr.bf16.mxu0 0
        %4544 = vmatpush1.bf16.msra.mxu0 %v4476
        %4545 = vmatprep.subr.bf16.mxu0 0
        %4546 = vmatpush1.bf16.msra.mxu0 %v4475
        %4547 = vmatprep.subr.bf16.mxu0 0
        %4548 = vmatpush2.bf16.msra.mxu0 0
        %4549 = vmatprep.subr.bf16.mxu0 0
        %4550 = vmatpush2.bf16.msra.mxu0 0
        %4551 = vmatprep.subr.bf16.mxu0 0
        %4552 = vmatpush2.bf16.msra.mxu0 0
        %4553 = vmatprep.subr.bf16.mxu0 0
        %4554 = vmatpush2.bf16.msra.mxu0 0
        %4555 = vmatprep.subr.bf16.mxu0 0
        %4556 = vmatpush2.bf16.msra.mxu0 0
        %4557 = vmatprep.subr.bf16.mxu0 0
        %4558 = vmatpush2.bf16.msra.mxu0 0
        %4559 = vmatprep.subr.bf16.mxu0 0
        %4560 = vmatpush2.bf16.msra.mxu0 0
        %4561 = vmatprep.subr.bf16.mxu0 0
        %4562 = vmatpush2.bf16.msra.mxu0 0
        %4563 = vmatprep.mubr.bf16.mxu0 0
        %4564 = vmatmul.mubr.bf16.gmra.mxu0 %v4484
        %v4565 = vpop.f32.mrf.mxu0
        %v4566 = vadd.f32 0.0, %v4565
        %v4567 = vpop.f32.mrf.mxu0
        %v4568 = vpop.f32.mrf.mxu0
        %v4569 = vadd.f32 0.0, %v4568
        %v4570 = vpop.f32.mrf.mxu0
        %4571 = vmatprep.mubr.bf16.mxu0 0
        %4572 = vmatmul.mubr.bf16.gmra.mxu0 %v4487
        %v4573 = vpop.f32.mrf.mxu0
        %v4574 = vadd.f32 0.0, %v4573
        %v4575 = vpop.f32.mrf.mxu0
        %v4576 = vpop.f32.mrf.mxu0
        %v4577 = vadd.f32 0.0, %v4576
        %v4578 = vpop.f32.mrf.mxu0
        %4579 = vmatprep.mubr.bf16.mxu0 0
        %4580 = vmatmul.mubr.bf16.gmra.mxu0 %v4490
        %v4581 = vpop.f32.mrf.mxu0
        %v4582 = vadd.f32 0.0, %v4581
        %v4583 = vpop.f32.mrf.mxu0
        %v4584 = vpop.f32.mrf.mxu0
        %v4585 = vadd.f32 0.0, %v4584
        %v4586 = vpop.f32.mrf.mxu0
        %4587 = vmatprep.mubr.bf16.mxu0 0
        %4588 = vmatmul.mubr.bf16.gmra.mxu0 %v4493
        %v4589 = vpop.f32.mrf.mxu0
        %v4590 = vadd.f32 0.0, %v4589
        %v4591 = vpop.f32.mrf.mxu0
        %v4592 = vpop.f32.mrf.mxu0
        %v4593 = vadd.f32 0.0, %v4592
        %v4594 = vpop.f32.mrf.mxu0
        %4595 = vmatprep.mubr.bf16.mxu0 0
        %4596 = vmatmul.mubr.bf16.gmra.mxu0 %v4496
        %v4597 = vpop.f32.mrf.mxu0
        %v4598 = vadd.f32 0.0, %v4597
        %v4599 = vpop.f32.mrf.mxu0
        %v4600 = vpop.f32.mrf.mxu0
        %v4601 = vadd.f32 0.0, %v4600
        %v4602 = vpop.f32.mrf.mxu0
        %4603 = vmatprep.mubr.bf16.mxu0 0
        %4604 = vmatmul.mubr.bf16.gmra.mxu0 %v4499
        %v4605 = vpop.f32.mrf.mxu0
        %v4606 = vadd.f32 0.0, %v4605
        %v4607 = vpop.f32.mrf.mxu0
        %v4608 = vpop.f32.mrf.mxu0
        %v4609 = vadd.f32 0.0, %v4608
        %v4610 = vpop.f32.mrf.mxu0
        %4611 = vmatprep.mubr.bf16.mxu0 0
        %4612 = vmatmul.mubr.bf16.gmra.mxu0 %v4502
        %v4613 = vpop.f32.mrf.mxu0
        %v4614 = vadd.f32 0.0, %v4613
        %v4615 = vpop.f32.mrf.mxu0
        %v4616 = vpop.f32.mrf.mxu0
        %v4617 = vadd.f32 0.0, %v4616
        %v4618 = vpop.f32.mrf.mxu0
        %4619 = vmatprep.mubr.bf16.mxu0 0
        %4620 = vmatmul.mubr.bf16.gmra.mxu0 %v4505
        %v4621 = vpop.f32.mrf.mxu0
        %v4622 = vadd.f32 0.0, %v4621
        %v4623 = vpop.f32.mrf.mxu0
        %v4624 = vpop.f32.mrf.mxu0
        %v4625 = vadd.f32 0.0, %v4624
        %v4626 = vpop.f32.mrf.mxu0
        %4627 = vmatprep.mubr.bf16.mxu0 0
        %4628 = vmatmul.mubr.bf16.gmra.mxu0 %v4508
        %v4629 = vpop.f32.mrf.mxu0
        %v4630 = vadd.f32 0.0, %v4629
        %v4631 = vpop.f32.mrf.mxu0
        %v4632 = vpop.f32.mrf.mxu0
        %v4633 = vadd.f32 0.0, %v4632
        %v4634 = vpop.f32.mrf.mxu0
        %4635 = vmatprep.mubr.bf16.mxu0 0
        %4636 = vmatmul.mubr.bf16.gmra.mxu0 %v4511
        %v4637 = vpop.f32.mrf.mxu0
        %v4638 = vadd.f32 0.0, %v4637
        %v4639 = vpop.f32.mrf.mxu0
        %v4640 = vpop.f32.mrf.mxu0
        %v4641 = vadd.f32 0.0, %v4640
        %v4642 = vpop.f32.mrf.mxu0
        %4643 = vmatprep.mubr.bf16.mxu0 0
        %4644 = vmatmul.mubr.bf16.gmra.mxu0 %v4514
        %v4645 = vpop.f32.mrf.mxu0
        %v4646 = vadd.f32 0.0, %v4645
        %v4647 = vpop.f32.mrf.mxu0
        %v4648 = vpop.f32.mrf.mxu0
        %v4649 = vadd.f32 0.0, %v4648
        %v4650 = vpop.f32.mrf.mxu0
        %4651 = vmatprep.mubr.bf16.mxu0 0
        %4652 = vmatmul.mubr.bf16.gmra.mxu0 %v4517
        %v4653 = vpop.f32.mrf.mxu0
        %v4654 = vadd.f32 0.0, %v4653
        %v4655 = vpop.f32.mrf.mxu0
        %v4656 = vpop.f32.mrf.mxu0
        %v4657 = vadd.f32 0.0, %v4656
        %v4658 = vpop.f32.mrf.mxu0
        %4659 = vmatprep.mubr.bf16.mxu0 0
        %4660 = vmatmul.mubr.bf16.gmra.mxu0 %v4520
        %v4661 = vpop.f32.mrf.mxu0
        %v4662 = vadd.f32 0.0, %v4661
        %v4663 = vpop.f32.mrf.mxu0
        %v4664 = vpop.f32.mrf.mxu0
        %v4665 = vadd.f32 0.0, %v4664
        %v4666 = vpop.f32.mrf.mxu0
        %4667 = vmatprep.mubr.bf16.mxu0 0
        %4668 = vmatmul.mubr.bf16.gmra.mxu0 %v4523
        %v4669 = vpop.f32.mrf.mxu0
        %v4670 = vadd.f32 0.0, %v4669
        %v4671 = vpop.f32.mrf.mxu0
        %v4672 = vpop.f32.mrf.mxu0
        %v4673 = vadd.f32 0.0, %v4672
        %v4674 = vpop.f32.mrf.mxu0
        %4675 = vmatprep.mubr.bf16.mxu0 0
        %4676 = vmatmul.mubr.bf16.gmra.mxu0 %v4526
        %v4677 = vpop.f32.mrf.mxu0
        %v4678 = vadd.f32 0.0, %v4677
        %v4679 = vpop.f32.mrf.mxu0
        %v4680 = vpop.f32.mrf.mxu0
        %v4681 = vadd.f32 0.0, %v4680
        %v4682 = vpop.f32.mrf.mxu0
        %4683 = vmatprep.mubr.bf16.mxu0 0
        %4684 = vmatmul.mubr.bf16.gmra.mxu0 %v4529
        %v4685 = vpop.f32.mrf.mxu0
        %v4686 = vadd.f32 0.0, %v4685
        %v4687 = vpop.f32.mrf.mxu0
        %v4688 = vpop.f32.mrf.mxu0
        %v4689 = vadd.f32 0.0, %v4688
        %v4690 = vpop.f32.mrf.mxu0
        %4691 = vdwg.mxu0
        %v4692 = vsel %vm2094, %v4566, 0.0
        %v4693 = vsel %vm2095, %v4569, 0.0
        %v4694 = vsel %vm2096, %v4574, 0.0
        %v4695 = vsel %vm2097, %v4577, 0.0
        %v4696 = vsel %vm2098, %v4582, 0.0
        %v4697 = vsel %vm2099, %v4585, 0.0
        %v4698 = vsel %vm2100, %v4590, 0.0
        %v4699 = vsel %vm2101, %v4593, 0.0
        %v4700 = vsel %vm2102, %v4598, 0.0
        %v4701 = vsel %vm2103, %v4601, 0.0
        %v4702 = vsel %vm2104, %v4606, 0.0
        %v4703 = vsel %vm2105, %v4609, 0.0
        %v4704 = vsel %vm2106, %v4614, 0.0
        %v4705 = vsel %vm2107, %v4617, 0.0
        %v4706 = vsel %vm2108, %v4622, 0.0
        %v4707 = vsel %vm2109, %v4625, 0.0
        %v4708 = vsel %vm2110, %v4630, 0.0
        %v4709 = vsel %vm2111, %v4633, 0.0
        %v4710 = vsel %vm2112, %v4638, 0.0
        %v4711 = vsel %vm2113, %v4641, 0.0
        %v4712 = vsel %vm2114, %v4646, 0.0
        %v4713 = vsel %vm2115, %v4649, 0.0
        %v4714 = vsel %vm2116, %v4654, 0.0
        %v4715 = vsel %vm2117, %v4657, 0.0
        %v4716 = vsel %vm2118, %v4662, 0.0
        %v4717 = vsel %vm2119, %v4665, 0.0
        %v4718 = vsel %vm2120, %v4670, 0.0
        %v4719 = vsel %vm2121, %v4673, 0.0
        %v4720 = vsel %vm2122, %v4678, 0.0
        %v4721 = vsel %vm2123, %v4681, 0.0
        %v4722 = vsel %vm2124, %v4686, 0.0
        %v4723 = vsel %vm2125, %v4689, 0.0
        %v4724 = vadd.f32 %v4381, %v4692
        %v4725 = vadd.f32 %v4382, %v4693
        %v4726 = vadd.f32 %v4383, %v4694
        %v4727 = vadd.f32 %v4384, %v4695
        %v4728 = vadd.f32 %v4385, %v4696
        %v4729 = vadd.f32 %v4386, %v4697
        %v4730 = vadd.f32 %v4387, %v4698
        %v4731 = vadd.f32 %v4388, %v4699
        %v4732 = vadd.f32 %v4389, %v4700
        %v4733 = vadd.f32 %v4390, %v4701
        %v4734 = vadd.f32 %v4391, %v4702
        %v4735 = vadd.f32 %v4392, %v4703
        %v4736 = vadd.f32 %v4393, %v4704
        %v4737 = vadd.f32 %v4394, %v4705
        %v4738 = vadd.f32 %v4395, %v4706
        %v4739 = vadd.f32 %v4396, %v4707
        %v4740 = vadd.f32 %v4397, %v4708
        %v4741 = vadd.f32 %v4398, %v4709
        %v4742 = vadd.f32 %v4399, %v4710
        %v4743 = vadd.f32 %v4400, %v4711
        %v4744 = vadd.f32 %v4401, %v4712
        %v4745 = vadd.f32 %v4402, %v4713
        %v4746 = vadd.f32 %v4403, %v4714
        %v4747 = vadd.f32 %v4404, %v4715
        %v4748 = vadd.f32 %v4405, %v4716
        %v4749 = vadd.f32 %v4406, %v4717
        %v4750 = vadd.f32 %v4407, %v4718
        %v4751 = vadd.f32 %v4408, %v4719
        %v4752 = vadd.f32 %v4409, %v4720
        %v4753 = vadd.f32 %v4410, %v4721
        %v4754 = vadd.f32 %v4411, %v4722
        %v4755 = vadd.f32 %v4412, %v4723
        %v4756 = vld [vmem:[%s2] sm:$0x1]
        %v4758 = vlaneseq
        %v4759 = vshrl.u32 %v4758, 7
        %v4760 = vsub.s32 0, %v4759
        %v4761 = vrot.slane %v4756, %v4760
        %v4763 = vadd.f32 %v4724, %v4761
        %v4764 = vadd.f32 %v4725, %v4761
        %v4765 = vadd.f32 %v4726, %v4761
        %v4766 = vadd.f32 %v4727, %v4761
        %v4767 = vadd.f32 %v4728, %v4761
        %v4768 = vadd.f32 %v4729, %v4761
        %v4769 = vadd.f32 %v4730, %v4761
        %v4770 = vadd.f32 %v4731, %v4761
        %v4771 = vadd.f32 %v4732, %v4761
        %v4772 = vadd.f32 %v4733, %v4761
        %v4773 = vadd.f32 %v4734, %v4761
        %v4774 = vadd.f32 %v4735, %v4761
        %v4775 = vadd.f32 %v4736, %v4761
        %v4776 = vadd.f32 %v4737, %v4761
        %v4777 = vadd.f32 %v4738, %v4761
        %v4778 = vadd.f32 %v4739, %v4761
        %v4779 = vadd.f32 %v4740, %v4761
        %v4780 = vadd.f32 %v4741, %v4761
        %v4781 = vadd.f32 %v4742, %v4761
        %v4782 = vadd.f32 %v4743, %v4761
        %v4783 = vadd.f32 %v4744, %v4761
        %v4784 = vadd.f32 %v4745, %v4761
        %v4785 = vadd.f32 %v4746, %v4761
        %v4786 = vadd.f32 %v4747, %v4761
        %v4787 = vadd.f32 %v4748, %v4761
        %v4788 = vadd.f32 %v4749, %v4761
        %v4789 = vadd.f32 %v4750, %v4761
        %v4790 = vadd.f32 %v4751, %v4761
        %v4791 = vadd.f32 %v4752, %v4761
        %v4792 = vadd.f32 %v4753, %v4761
        %v4793 = vadd.f32 %v4754, %v4761
        %v4794 = vadd.f32 %v4755, %v4761
        %v4795 = vmax.f32 %v4763, 0.0
        %v4796 = vmax.f32 %v4764, 0.0
        %v4797 = vmax.f32 %v4765, 0.0
        %v4798 = vmax.f32 %v4766, 0.0
        %v4799 = vmax.f32 %v4767, 0.0
        %v4800 = vmax.f32 %v4768, 0.0
        %v4801 = vmax.f32 %v4769, 0.0
        %v4802 = vmax.f32 %v4770, 0.0
        %v4803 = vmax.f32 %v4771, 0.0
        %v4804 = vmax.f32 %v4772, 0.0
        %v4805 = vmax.f32 %v4773, 0.0
        %v4806 = vmax.f32 %v4774, 0.0
        %v4807 = vmax.f32 %v4775, 0.0
        %v4808 = vmax.f32 %v4776, 0.0
        %v4809 = vmax.f32 %v4777, 0.0
        %v4810 = vmax.f32 %v4778, 0.0
        %v4811 = vmax.f32 %v4779, 0.0
        %v4812 = vmax.f32 %v4780, 0.0
        %v4813 = vmax.f32 %v4781, 0.0
        %v4814 = vmax.f32 %v4782, 0.0
        %v4815 = vmax.f32 %v4783, 0.0
        %v4816 = vmax.f32 %v4784, 0.0
        %v4817 = vmax.f32 %v4785, 0.0
        %v4818 = vmax.f32 %v4786, 0.0
        %v4819 = vmax.f32 %v4787, 0.0
        %v4820 = vmax.f32 %v4788, 0.0
        %v4821 = vmax.f32 %v4789, 0.0
        %v4822 = vmax.f32 %v4790, 0.0
        %v4823 = vmax.f32 %v4791, 0.0
        %v4824 = vmax.f32 %v4792, 0.0
        %v4825 = vmax.f32 %v4793, 0.0
        %v4826 = vmax.f32 %v4794, 0.0
        %4827 = vst [vmem:[#allocation3] sm:$0xf] 0
        %4828 = vst [vmem:[#allocation3 + $0x4] sm:$0xf] 0
        %vm4829 = vcmask 1040384
        %vm4830 = vmand %vm4829, %vm372
        %v4831 = vld [vmem:[#allocation3 + $0x8] sm:$0x1]
        %v4832 = vsel %vm4830, 0, %v4831
        %4833 = vst [vmem:[#allocation3 + $0x8] sm:$0x1] %v4832
        %vm4834 = vcmask 1043456
        %vm4835 = vmand %vm4834, %vm378
        %v4836 = vld [vmem:[#allocation3 + $0x88] sm:$0xf]
        %v4837 = vsel %vm4835, 0, %v4836
        %4838 = vst [vmem:[#allocation3 + $0x88] sm:$0xf] %v4837
        %4839 = vst [vmem:[#allocation3 + $0x8c] sm:$0xf] 0
        %4840 = vst [vmem:[#allocation3 + $0x90] sm:$0x1] 0
        %v4841 = vpack.c.bf16 %v4796, %v4795
        %v4842 = vpack.c.bf16 %v4798, %v4797
        %v4843 = vpack.c.bf16 %v4800, %v4799
        %v4844 = vpack.c.bf16 %v4802, %v4801
        %v4845 = vpack.c.bf16 %v4804, %v4803
        %v4846 = vpack.c.bf16 %v4806, %v4805
        %v4847 = vpack.c.bf16 %v4808, %v4807
        %v4848 = vpack.c.bf16 %v4810, %v4809
        %v4849 = vpack.c.bf16 %v4812, %v4811
        %v4850 = vpack.c.bf16 %v4814, %v4813
        %v4851 = vpack.c.bf16 %v4816, %v4815
        %v4852 = vpack.c.bf16 %v4818, %v4817
        %v4853 = vpack.c.bf16 %v4820, %v4819
        %v4854 = vpack.c.bf16 %v4822, %v4821
        %v4855 = vpack.c.bf16 %v4824, %v4823
        %v4856 = vpack.c.bf16 %v4826, %v4825
        %v4873 = vunpack.c.l.b16 %v4841
        %v4874 = vunpack.c.h.b16 %v4841
        %v4875 = vunpack.c.l.b16 %v4842
        %v4876 = vunpack.c.h.b16 %v4842
        %v4877 = vunpack.c.l.b16 %v4843
        %v4878 = vunpack.c.h.b16 %v4843
        %v4879 = vunpack.c.l.b16 %v4844
        %v4880 = vunpack.c.h.b16 %v4844
        %v4881 = vunpack.c.l.b16 %v4845
        %v4882 = vunpack.c.h.b16 %v4845
        %v4883 = vunpack.c.l.b16 %v4846
        %v4884 = vunpack.c.h.b16 %v4846
        %v4885 = vunpack.c.l.b16 %v4847
        %v4886 = vunpack.c.h.b16 %v4847
        %v4887 = vunpack.c.l.b16 %v4848
        %v4888 = vunpack.c.h.b16 %v4848
        %v4889 = vunpack.c.l.b16 %v4849
        %v4890 = vunpack.c.h.b16 %v4849
        %v4891 = vunpack.c.l.b16 %v4850
        %v4892 = vunpack.c.h.b16 %v4850
        %v4893 = vunpack.c.l.b16 %v4851
        %v4894 = vunpack.c.h.b16 %v4851
        %v4895 = vunpack.c.l.b16 %v4852
        %v4896 = vunpack.c.h.b16 %v4852
        %v4897 = vunpack.c.l.b16 %v4853
        %v4898 = vunpack.c.h.b16 %v4853
        %v4899 = vunpack.c.l.b16 %v4854
        %v4900 = vunpack.c.h.b16 %v4854
        %v4901 = vunpack.c.l.b16 %v4855
        %v4902 = vunpack.c.h.b16 %v4855
        %v4903 = vunpack.c.l.b16 %v4856
        %v4904 = vunpack.c.h.b16 %v4856
        %v4905 = vpack.c.b16 %v4873, %v4873
        %v4906 = vpack.c.b16 %v4874, %v4874
        %v4907 = vpack.c.b16 %v4875, %v4875
        %v4908 = vpack.c.b16 %v4876, %v4876
        %v4909 = vpack.c.b16 %v4877, %v4877
        %v4910 = vpack.c.b16 %v4878, %v4878
        %v4911 = vpack.c.b16 %v4879, %v4879
        %v4912 = vpack.c.b16 %v4880, %v4880
        %v4913 = vpack.c.b16 %v4881, %v4881
        %v4914 = vpack.c.b16 %v4882, %v4882
        %v4915 = vpack.c.b16 %v4883, %v4883
        %v4916 = vpack.c.b16 %v4884, %v4884
        %v4917 = vpack.c.b16 %v4885, %v4885
        %v4918 = vpack.c.b16 %v4886, %v4886
        %v4919 = vpack.c.b16 %v4887, %v4887
        %v4920 = vpack.c.b16 %v4888, %v4888
        %v4921 = vpack.c.b16 %v4889, %v4889
        %v4922 = vpack.c.b16 %v4890, %v4890
        %v4923 = vpack.c.b16 %v4891, %v4891
        %v4924 = vpack.c.b16 %v4892, %v4892
        %v4925 = vpack.c.b16 %v4893, %v4893
        %v4926 = vpack.c.b16 %v4894, %v4894
        %v4927 = vpack.c.b16 %v4895, %v4895
        %v4928 = vpack.c.b16 %v4896, %v4896
        %v4929 = vpack.c.b16 %v4897, %v4897
        %v4930 = vpack.c.b16 %v4898, %v4898
        %v4931 = vpack.c.b16 %v4899, %v4899
        %v4932 = vpack.c.b16 %v4900, %v4900
        %v4933 = vpack.c.b16 %v4901, %v4901
        %v4934 = vpack.c.b16 %v4902, %v4902
        %v4935 = vpack.c.b16 %v4903, %v4903
        %v4936 = vpack.c.b16 %v4904, %v4904
        %v4938 = vshrl.u32 %v4905, 16
        %v4940 = vrot.slane %v4938, 7
        %v4941 = vshll.u32 %v4905, 16
        %v4943 = vor.u32 %v4940, %v4941
        %v4944 = vrot.slane %v4940, 4
        %v4946 = vshrl.u32 %v4906, 16
        %v4948 = vrot.slane %v4946, 7
        %v4949 = vshll.u32 %v4906, 16
        %v4951 = vor.u32 %v4948, %v4949
        %v4952 = vsel %vm419, %v4944, %v4951
        %v4953 = vrot.slane %v4948, 4
        %v4955 = vshrl.u32 %v4907, 16
        %v4957 = vrot.slane %v4955, 7
        %v4958 = vshll.u32 %v4907, 16
        %v4960 = vor.u32 %v4957, %v4958
        %v4961 = vsel %vm419, %v4953, %v4960
        %v4962 = vrot.slane %v4957, 4
        %v4964 = vshrl.u32 %v4908, 16
        %v4966 = vrot.slane %v4964, 7
        %v4967 = vshll.u32 %v4908, 16
        %v4969 = vor.u32 %v4966, %v4967
        %v4970 = vsel %vm419, %v4962, %v4969
        %v4971 = vrot.slane %v4966, 4
        %v4973 = vshrl.u32 %v4909, 16
        %v4975 = vrot.slane %v4973, 7
        %v4976 = vshll.u32 %v4909, 16
        %v4978 = vor.u32 %v4975, %v4976
        %v4979 = vsel %vm419, %v4971, %v4978
        %v4980 = vrot.slane %v4975, 4
        %v4982 = vshrl.u32 %v4910, 16
        %v4984 = vrot.slane %v4982, 7
        %v4985 = vshll.u32 %v4910, 16
        %v4987 = vor.u32 %v4984, %v4985
        %v4988 = vsel %vm419, %v4980, %v4987
        %v4989 = vrot.slane %v4984, 4
        %v4991 = vshrl.u32 %v4911, 16
        %v4993 = vrot.slane %v4991, 7
        %v4994 = vshll.u32 %v4911, 16
        %v4996 = vor.u32 %v4993, %v4994
        %v4997 = vsel %vm419, %v4989, %v4996
        %v4998 = vrot.slane %v4993, 4
        %v5000 = vshrl.u32 %v4912, 16
        %v5002 = vrot.slane %v5000, 7
        %v5003 = vshll.u32 %v4912, 16
        %v5005 = vor.u32 %v5002, %v5003
        %v5006 = vsel %vm419, %v4998, %v5005
        %v5007 = vrot.slane %v5002, 4
        %v5009 = vshrl.u32 %v4913, 16
        %v5011 = vrot.slane %v5009, 7
        %v5012 = vshll.u32 %v4913, 16
        %v5014 = vor.u32 %v5011, %v5012
        %v5015 = vsel %vm419, %v5007, %v5014
        %v5016 = vrot.slane %v5011, 4
        %v5018 = vshrl.u32 %v4914, 16
        %v5020 = vrot.slane %v5018, 7
        %v5021 = vshll.u32 %v4914, 16
        %v5023 = vor.u32 %v5020, %v5021
        %v5024 = vsel %vm419, %v5016, %v5023
        %v5025 = vrot.slane %v5020, 4
        %v5027 = vshrl.u32 %v4915, 16
        %v5029 = vrot.slane %v5027, 7
        %v5030 = vshll.u32 %v4915, 16
        %v5032 = vor.u32 %v5029, %v5030
        %v5033 = vsel %vm419, %v5025, %v5032
        %v5034 = vrot.slane %v5029, 4
        %v5036 = vshrl.u32 %v4916, 16
        %v5038 = vrot.slane %v5036, 7
        %v5039 = vshll.u32 %v4916, 16
        %v5041 = vor.u32 %v5038, %v5039
        %v5042 = vsel %vm419, %v5034, %v5041
        %v5043 = vrot.slane %v5038, 4
        %v5045 = vshrl.u32 %v4917, 16
        %v5047 = vrot.slane %v5045, 7
        %v5048 = vshll.u32 %v4917, 16
        %v5050 = vor.u32 %v5047, %v5048
        %v5051 = vsel %vm419, %v5043, %v5050
        %v5052 = vrot.slane %v5047, 4
        %v5054 = vshrl.u32 %v4918, 16
        %v5056 = vrot.slane %v5054, 7
        %v5057 = vshll.u32 %v4918, 16
        %v5059 = vor.u32 %v5056, %v5057
        %v5060 = vsel %vm419, %v5052, %v5059
        %v5061 = vrot.slane %v5056, 4
        %v5063 = vshrl.u32 %v4919, 16
        %v5065 = vrot.slane %v5063, 7
        %v5066 = vshll.u32 %v4919, 16
        %v5068 = vor.u32 %v5065, %v5066
        %v5069 = vsel %vm419, %v5061, %v5068
        %v5070 = vrot.slane %v5065, 4
        %v5072 = vshrl.u32 %v4920, 16
        %v5074 = vrot.slane %v5072, 7
        %v5075 = vshll.u32 %v4920, 16
        %v5077 = vor.u32 %v5074, %v5075
        %v5078 = vsel %vm419, %v5070, %v5077
        %v5079 = vrot.slane %v5074, 4
        %v5081 = vshrl.u32 %v4921, 16
        %v5083 = vrot.slane %v5081, 7
        %v5084 = vshll.u32 %v4921, 16
        %v5086 = vor.u32 %v5083, %v5084
        %v5087 = vsel %vm419, %v5079, %v5086
        %v5088 = vrot.slane %v5083, 4
        %v5090 = vshrl.u32 %v4922, 16
        %v5092 = vrot.slane %v5090, 7
        %v5093 = vshll.u32 %v4922, 16
        %v5095 = vor.u32 %v5092, %v5093
        %v5096 = vsel %vm419, %v5088, %v5095
        %v5097 = vrot.slane %v5092, 4
        %v5099 = vshrl.u32 %v4923, 16
        %v5101 = vrot.slane %v5099, 7
        %v5102 = vshll.u32 %v4923, 16
        %v5104 = vor.u32 %v5101, %v5102
        %v5105 = vsel %vm419, %v5097, %v5104
        %v5106 = vrot.slane %v5101, 4
        %v5108 = vshrl.u32 %v4924, 16
        %v5110 = vrot.slane %v5108, 7
        %v5111 = vshll.u32 %v4924, 16
        %v5113 = vor.u32 %v5110, %v5111
        %v5114 = vsel %vm419, %v5106, %v5113
        %v5115 = vrot.slane %v5110, 4
        %v5117 = vshrl.u32 %v4925, 16
        %v5119 = vrot.slane %v5117, 7
        %v5120 = vshll.u32 %v4925, 16
        %v5122 = vor.u32 %v5119, %v5120
        %v5123 = vsel %vm419, %v5115, %v5122
        %v5124 = vrot.slane %v5119, 4
        %v5126 = vshrl.u32 %v4926, 16
        %v5128 = vrot.slane %v5126, 7
        %v5129 = vshll.u32 %v4926, 16
        %v5131 = vor.u32 %v5128, %v5129
        %v5132 = vsel %vm419, %v5124, %v5131
        %v5133 = vrot.slane %v5128, 4
        %v5135 = vshrl.u32 %v4927, 16
        %v5137 = vrot.slane %v5135, 7
        %v5138 = vshll.u32 %v4927, 16
        %v5140 = vor.u32 %v5137, %v5138
        %v5141 = vsel %vm419, %v5133, %v5140
        %v5142 = vrot.slane %v5137, 4
        %v5144 = vshrl.u32 %v4928, 16
        %v5146 = vrot.slane %v5144, 7
        %v5147 = vshll.u32 %v4928, 16
        %v5149 = vor.u32 %v5146, %v5147
        %v5150 = vsel %vm419, %v5142, %v5149
        %v5151 = vrot.slane %v5146, 4
        %v5153 = vshrl.u32 %v4929, 16
        %v5155 = vrot.slane %v5153, 7
        %v5156 = vshll.u32 %v4929, 16
        %v5158 = vor.u32 %v5155, %v5156
        %v5159 = vsel %vm419, %v5151, %v5158
        %v5160 = vrot.slane %v5155, 4
        %v5162 = vshrl.u32 %v4930, 16
        %v5164 = vrot.slane %v5162, 7
        %v5165 = vshll.u32 %v4930, 16
        %v5167 = vor.u32 %v5164, %v5165
        %v5168 = vsel %vm419, %v5160, %v5167
        %v5169 = vrot.slane %v5164, 4
        %v5171 = vshrl.u32 %v4931, 16
        %v5173 = vrot.slane %v5171, 7
        %v5174 = vshll.u32 %v4931, 16
        %v5176 = vor.u32 %v5173, %v5174
        %v5177 = vsel %vm419, %v5169, %v5176
        %v5178 = vrot.slane %v5173, 4
        %v5180 = vshrl.u32 %v4932, 16
        %v5182 = vrot.slane %v5180, 7
        %v5183 = vshll.u32 %v4932, 16
        %v5185 = vor.u32 %v5182, %v5183
        %v5186 = vsel %vm419, %v5178, %v5185
        %v5187 = vrot.slane %v5182, 4
        %v5189 = vshrl.u32 %v4933, 16
        %v5191 = vrot.slane %v5189, 7
        %v5192 = vshll.u32 %v4933, 16
        %v5194 = vor.u32 %v5191, %v5192
        %v5195 = vsel %vm419, %v5187, %v5194
        %v5196 = vrot.slane %v5191, 4
        %v5198 = vshrl.u32 %v4934, 16
        %v5200 = vrot.slane %v5198, 7
        %v5201 = vshll.u32 %v4934, 16
        %v5203 = vor.u32 %v5200, %v5201
        %v5204 = vsel %vm419, %v5196, %v5203
        %v5205 = vrot.slane %v5200, 4
        %v5207 = vshrl.u32 %v4935, 16
        %v5209 = vrot.slane %v5207, 7
        %v5210 = vshll.u32 %v4935, 16
        %v5212 = vor.u32 %v5209, %v5210
        %v5213 = vsel %vm419, %v5205, %v5212
        %v5214 = vrot.slane %v5209, 4
        %v5216 = vshrl.u32 %v4936, 16
        %v5218 = vrot.slane %v5216, 7
        %v5219 = vshll.u32 %v4936, 16
        %v5221 = vor.u32 %v5218, %v5219
        %v5222 = vsel %vm419, %v5214, %v5221
        %v5223 = vrot.slane %v5218, 4
        %v5257 = vld [vmem:[#allocation3 + $0x8] sm:$0xf]
        %v5258 = vsel %vm4835, %v4943, %v5257
        %5259 = vst [vmem:[#allocation3 + $0x8] sm:$0xf] %v5258
        %5260 = vst [vmem:[#allocation3 + $0xc] sm:$0xf] %v4952
        %5261 = vst [vmem:[#allocation3 + $0x10] sm:$0xf] %v4961
        %5262 = vst [vmem:[#allocation3 + $0x14] sm:$0xf] %v4970
        %5263 = vst [vmem:[#allocation3 + $0x18] sm:$0xf] %v4979
        %5264 = vst [vmem:[#allocation3 + $0x1c] sm:$0xf] %v4988
        %5265 = vst [vmem:[#allocation3 + $0x20] sm:$0xf] %v4997
        %5266 = vst [vmem:[#allocation3 + $0x24] sm:$0xf] %v5006
        %5267 = vst [vmem:[#allocation3 + $0x28] sm:$0xf] %v5015
        %5268 = vst [vmem:[#allocation3 + $0x2c] sm:$0xf] %v5024
        %5269 = vst [vmem:[#allocation3 + $0x30] sm:$0xf] %v5033
        %5270 = vst [vmem:[#allocation3 + $0x34] sm:$0xf] %v5042
        %5271 = vst [vmem:[#allocation3 + $0x38] sm:$0xf] %v5051
        %5272 = vst [vmem:[#allocation3 + $0x3c] sm:$0xf] %v5060
        %5273 = vst [vmem:[#allocation3 + $0x40] sm:$0xf] %v5069
        %5274 = vst [vmem:[#allocation3 + $0x44] sm:$0xf] %v5078
        %5275 = vst [vmem:[#allocation3 + $0x48] sm:$0xf] %v5087
        %5276 = vst [vmem:[#allocation3 + $0x4c] sm:$0xf] %v5096
        %5277 = vst [vmem:[#allocation3 + $0x50] sm:$0xf] %v5105
        %5278 = vst [vmem:[#allocation3 + $0x54] sm:$0xf] %v5114
        %5279 = vst [vmem:[#allocation3 + $0x58] sm:$0xf] %v5123
        %5280 = vst [vmem:[#allocation3 + $0x5c] sm:$0xf] %v5132
        %5281 = vst [vmem:[#allocation3 + $0x60] sm:$0xf] %v5141
        %5282 = vst [vmem:[#allocation3 + $0x64] sm:$0xf] %v5150
        %5283 = vst [vmem:[#allocation3 + $0x68] sm:$0xf] %v5159
        %5284 = vst [vmem:[#allocation3 + $0x6c] sm:$0xf] %v5168
        %5285 = vst [vmem:[#allocation3 + $0x70] sm:$0xf] %v5177
        %5286 = vst [vmem:[#allocation3 + $0x74] sm:$0xf] %v5186
        %5287 = vst [vmem:[#allocation3 + $0x78] sm:$0xf] %v5195
        %5288 = vst [vmem:[#allocation3 + $0x7c] sm:$0xf] %v5204
        %5289 = vst [vmem:[#allocation3 + $0x80] sm:$0xf] %v5213
        %5290 = vst [vmem:[#allocation3 + $0x84] sm:$0xf] %v5222
        %v5291 = vld [vmem:[#allocation3 + $0x88] sm:$0x1]
        %v5292 = vsel %vm4830, %v5223, %v5291
        %5293 = vst [vmem:[#allocation3 + $0x88] sm:$0x1] %v5292
        %v5294 = vld [vmem:[#allocation3] sm:$0xf]
        %v5295 = vld [vmem:[#allocation3 + $0x4] sm:$0xf]
        %v5296 = vld [vmem:[#allocation3 + $0x8] sm:$0xf]
        %v5297 = vld [vmem:[#allocation3 + $0xc] sm:$0xf]
        %v5298 = vld [vmem:[#allocation3 + $0x10] sm:$0xf]
        %v5299 = vld [vmem:[#allocation3 + $0x14] sm:$0xf]
        %v5300 = vld [vmem:[#allocation3 + $0x18] sm:$0xf]
        %v5301 = vld [vmem:[#allocation3 + $0x1c] sm:$0xf]
        %v5302 = vld [vmem:[#allocation3 + $0x20] sm:$0xf]
        %v5303 = vld [vmem:[#allocation3 + $0x24] sm:$0xf]
        %v5304 = vld [vmem:[#allocation3 + $0x28] sm:$0xf]
        %v5305 = vld [vmem:[#allocation3 + $0x2c] sm:$0xf]
        %v5306 = vld [vmem:[#allocation3 + $0x30] sm:$0xf]
        %v5307 = vld [vmem:[#allocation3 + $0x34] sm:$0xf]
        %v5308 = vld [vmem:[#allocation3 + $0x38] sm:$0xf]
        %v5309 = vld [vmem:[#allocation3 + $0x3c] sm:$0xf]
        %v5310 = vld [vmem:[#allocation3 + $0x40] sm:$0xf]
        %v5311 = vld [vmem:[#allocation3 + $0x44] sm:$0xf]
        %v5312 = vld [vmem:[#allocation3 + $0x48] sm:$0xf]
        %v5313 = vld [vmem:[#allocation3 + $0x4c] sm:$0xf]
        %v5314 = vld [vmem:[#allocation3 + $0x50] sm:$0xf]
        %v5315 = vld [vmem:[#allocation3 + $0x54] sm:$0xf]
        %v5316 = vld [vmem:[#allocation3 + $0x58] sm:$0xf]
        %v5317 = vld [vmem:[#allocation3 + $0x5c] sm:$0xf]
        %v5318 = vld [vmem:[#allocation3 + $0x60] sm:$0xf]
        %v5319 = vld [vmem:[#allocation3 + $0x64] sm:$0xf]
        %v5320 = vld [vmem:[#allocation3 + $0x68] sm:$0xf]
        %v5321 = vld [vmem:[#allocation3 + $0x6c] sm:$0xf]
        %v5322 = vld [vmem:[#allocation3 + $0x70] sm:$0xf]
        %v5323 = vld [vmem:[#allocation3 + $0x74] sm:$0xf]
        %v5324 = vld [vmem:[#allocation3 + $0x78] sm:$0xf]
        %v5325 = vld [vmem:[#allocation3 + $0x7c] sm:$0xf]
        %v5326 = vld [vmem:[#allocation4] sm:$0xf]
        %v5327 = vld [vmem:[#allocation4 + $0x4] sm:$0xf]
        %v5328 = vld [vmem:[#allocation4 + $0x8] sm:$0xf]
        %v5329 = vld [vmem:[#allocation4 + $0xc] sm:$0xf]
        %v5330 = vld [vmem:[#allocation4 + $0x10] sm:$0xf]
        %v5331 = vld [vmem:[#allocation4 + $0x14] sm:$0xf]
        %v5332 = vld [vmem:[#allocation4 + $0x18] sm:$0xf]
        %v5333 = vld [vmem:[#allocation4 + $0x1c] sm:$0xf]
        %v5334 = vld [vmem:[#allocation4 + $0x20] sm:$0xf]
        %v5335 = vld [vmem:[#allocation4 + $0x24] sm:$0xf]
        %v5336 = vld [vmem:[#allocation4 + $0x28] sm:$0xf]
        %v5337 = vld [vmem:[#allocation4 + $0x2c] sm:$0xf]
        %v5338 = vld [vmem:[#allocation4 + $0x30] sm:$0xf]
        %v5339 = vld [vmem:[#allocation4 + $0x34] sm:$0xf]
        %v5340 = vld [vmem:[#allocation4 + $0x38] sm:$0xf]
        %v5341 = vld [vmem:[#allocation4 + $0x3c] sm:$0xf]
        %v5374 = vunpack.c.l.b16 %v5294
        %v5375 = vunpack.c.l.b16 %v5295
        %v5376 = vunpack.c.l.b16 %v5296
        %v5377 = vunpack.c.l.b16 %v5297
        %v5378 = vunpack.c.l.b16 %v5298
        %v5379 = vunpack.c.l.b16 %v5299
        %v5380 = vunpack.c.l.b16 %v5300
        %v5381 = vunpack.c.l.b16 %v5301
        %v5382 = vunpack.c.l.b16 %v5302
        %v5383 = vunpack.c.l.b16 %v5303
        %v5384 = vunpack.c.l.b16 %v5304
        %v5385 = vunpack.c.l.b16 %v5305
        %v5386 = vunpack.c.l.b16 %v5306
        %v5387 = vunpack.c.l.b16 %v5307
        %v5388 = vunpack.c.l.b16 %v5308
        %v5389 = vunpack.c.l.b16 %v5309
        %v5390 = vunpack.c.l.b16 %v5310
        %v5391 = vunpack.c.l.b16 %v5311
        %v5392 = vunpack.c.l.b16 %v5312
        %v5393 = vunpack.c.l.b16 %v5313
        %v5394 = vunpack.c.l.b16 %v5314
        %v5395 = vunpack.c.l.b16 %v5315
        %v5396 = vunpack.c.l.b16 %v5316
        %v5397 = vunpack.c.l.b16 %v5317
        %v5398 = vunpack.c.l.b16 %v5318
        %v5399 = vunpack.c.l.b16 %v5319
        %v5400 = vunpack.c.l.b16 %v5320
        %v5401 = vunpack.c.l.b16 %v5321
        %v5402 = vunpack.c.l.b16 %v5322
        %v5403 = vunpack.c.l.b16 %v5323
        %v5404 = vunpack.c.l.b16 %v5324
        %v5405 = vunpack.c.l.b16 %v5325
        %v5406 = vpack.c.b16 %v5375, %v5374
        %v5407 = vpack.c.b16 %v5377, %v5376
        %v5408 = vpack.c.b16 %v5379, %v5378
        %v5409 = vpack.c.b16 %v5381, %v5380
        %v5410 = vpack.c.b16 %v5383, %v5382
        %v5411 = vpack.c.b16 %v5385, %v5384
        %v5412 = vpack.c.b16 %v5387, %v5386
        %v5413 = vpack.c.b16 %v5389, %v5388
        %v5414 = vpack.c.b16 %v5391, %v5390
        %v5415 = vpack.c.b16 %v5393, %v5392
        %v5416 = vpack.c.b16 %v5395, %v5394
        %v5417 = vpack.c.b16 %v5397, %v5396
        %v5418 = vpack.c.b16 %v5399, %v5398
        %v5419 = vpack.c.b16 %v5401, %v5400
        %v5420 = vpack.c.b16 %v5403, %v5402
        %v5421 = vpack.c.b16 %v5405, %v5404
        %v5454 = vunpack.c.l.b16 %v5326
        %v5455 = vunpack.c.l.b16 %v5327
        %v5456 = vunpack.c.l.b16 %v5328
        %v5457 = vunpack.c.l.b16 %v5329
        %v5458 = vunpack.c.l.b16 %v5330
        %v5459 = vunpack.c.l.b16 %v5331
        %v5460 = vunpack.c.l.b16 %v5332
        %v5461 = vunpack.c.l.b16 %v5333
        %v5462 = vunpack.c.l.b16 %v5334
        %v5463 = vunpack.c.l.b16 %v5335
        %v5464 = vunpack.c.l.b16 %v5336
        %v5465 = vunpack.c.l.b16 %v5337
        %v5466 = vunpack.c.l.b16 %v5338
        %v5467 = vunpack.c.l.b16 %v5339
        %v5468 = vunpack.c.l.b16 %v5340
        %v5469 = vunpack.c.l.b16 %v5341
        %v5470 = vpack.c.b16 %v5455, %v5454
        %v5471 = vpack.c.b16 %v5457, %v5456
        %v5472 = vpack.c.b16 %v5459, %v5458
        %v5473 = vpack.c.b16 %v5461, %v5460
        %v5474 = vpack.c.b16 %v5463, %v5462
        %v5475 = vpack.c.b16 %v5465, %v5464
        %v5476 = vpack.c.b16 %v5467, %v5466
        %v5477 = vpack.c.b16 %v5469, %v5468
        %5486 = vmatprep.subr.bf16.mxu0 0
        %5487 = vmatpush1.bf16.msra.mxu0 %v5477
        %5488 = vmatprep.subr.bf16.mxu0 0
        %5489 = vmatpush1.bf16.msra.mxu0 %v5476
        %5490 = vmatprep.subr.bf16.mxu0 0
        %5491 = vmatpush1.bf16.msra.mxu0 %v5475
        %5492 = vmatprep.subr.bf16.mxu0 0
        %5493 = vmatpush1.bf16.msra.mxu0 %v5474
        %5494 = vmatprep.subr.bf16.mxu0 0
        %5495 = vmatpush1.bf16.msra.mxu0 %v5473
        %5496 = vmatprep.subr.bf16.mxu0 0
        %5497 = vmatpush1.bf16.msra.mxu0 %v5472
        %5498 = vmatprep.subr.bf16.mxu0 0
        %5499 = vmatpush1.bf16.msra.mxu0 %v5471
        %5500 = vmatprep.subr.bf16.mxu0 0
        %5501 = vmatpush1.bf16.msra.mxu0 %v5470
        %5502 = vmatprep.subr.bf16.mxu0 0
        %5503 = vmatpush2.bf16.msra.mxu0 0
        %5504 = vmatprep.subr.bf16.mxu0 0
        %5505 = vmatpush2.bf16.msra.mxu0 0
        %5506 = vmatprep.subr.bf16.mxu0 0
        %5507 = vmatpush2.bf16.msra.mxu0 0
        %5508 = vmatprep.subr.bf16.mxu0 0
        %5509 = vmatpush2.bf16.msra.mxu0 0
        %5510 = vmatprep.subr.bf16.mxu0 0
        %5511 = vmatpush2.bf16.msra.mxu0 0
        %5512 = vmatprep.subr.bf16.mxu0 0
        %5513 = vmatpush2.bf16.msra.mxu0 0
        %5514 = vmatprep.subr.bf16.mxu0 0
        %5515 = vmatpush2.bf16.msra.mxu0 0
        %5516 = vmatprep.subr.bf16.mxu0 0
        %5517 = vmatpush2.bf16.msra.mxu0 0
        %5518 = vmatprep.mubr.bf16.mxu0 0
        %5519 = vmatmul.mubr.bf16.gmra.mxu0 %v5406
        %v5520 = vpop.f32.mrf.mxu0
        %v5521 = vadd.f32 0.0, %v5520
        %v5522 = vpop.f32.mrf.mxu0
        %v5523 = vpop.f32.mrf.mxu0
        %v5524 = vadd.f32 0.0, %v5523
        %v5525 = vpop.f32.mrf.mxu0
        %5526 = vmatprep.mubr.bf16.mxu0 0
        %5527 = vmatmul.mubr.bf16.gmra.mxu0 %v5407
        %v5528 = vpop.f32.mrf.mxu0
        %v5529 = vadd.f32 0.0, %v5528
        %v5530 = vpop.f32.mrf.mxu0
        %v5531 = vpop.f32.mrf.mxu0
        %v5532 = vadd.f32 0.0, %v5531
        %v5533 = vpop.f32.mrf.mxu0
        %5534 = vmatprep.mubr.bf16.mxu0 0
        %5535 = vmatmul.mubr.bf16.gmra.mxu0 %v5408
        %v5536 = vpop.f32.mrf.mxu0
        %v5537 = vadd.f32 0.0, %v5536
        %v5538 = vpop.f32.mrf.mxu0
        %v5539 = vpop.f32.mrf.mxu0
        %v5540 = vadd.f32 0.0, %v5539
        %v5541 = vpop.f32.mrf.mxu0
        %5542 = vmatprep.mubr.bf16.mxu0 0
        %5543 = vmatmul.mubr.bf16.gmra.mxu0 %v5409
        %v5544 = vpop.f32.mrf.mxu0
        %v5545 = vadd.f32 0.0, %v5544
        %v5546 = vpop.f32.mrf.mxu0
        %v5547 = vpop.f32.mrf.mxu0
        %v5548 = vadd.f32 0.0, %v5547
        %v5549 = vpop.f32.mrf.mxu0
        %5550 = vmatprep.mubr.bf16.mxu0 0
        %5551 = vmatmul.mubr.bf16.gmra.mxu0 %v5410
        %v5552 = vpop.f32.mrf.mxu0
        %v5553 = vadd.f32 0.0, %v5552
        %v5554 = vpop.f32.mrf.mxu0
        %v5555 = vpop.f32.mrf.mxu0
        %v5556 = vadd.f32 0.0, %v5555
        %v5557 = vpop.f32.mrf.mxu0
        %5558 = vmatprep.mubr.bf16.mxu0 0
        %5559 = vmatmul.mubr.bf16.gmra.mxu0 %v5411
        %v5560 = vpop.f32.mrf.mxu0
        %v5561 = vadd.f32 0.0, %v5560
        %v5562 = vpop.f32.mrf.mxu0
        %v5563 = vpop.f32.mrf.mxu0
        %v5564 = vadd.f32 0.0, %v5563
        %v5565 = vpop.f32.mrf.mxu0
        %5566 = vmatprep.mubr.bf16.mxu0 0
        %5567 = vmatmul.mubr.bf16.gmra.mxu0 %v5412
        %v5568 = vpop.f32.mrf.mxu0
        %v5569 = vadd.f32 0.0, %v5568
        %v5570 = vpop.f32.mrf.mxu0
        %v5571 = vpop.f32.mrf.mxu0
        %v5572 = vadd.f32 0.0, %v5571
        %v5573 = vpop.f32.mrf.mxu0
        %5574 = vmatprep.mubr.bf16.mxu0 0
        %5575 = vmatmul.mubr.bf16.gmra.mxu0 %v5413
        %v5576 = vpop.f32.mrf.mxu0
        %v5577 = vadd.f32 0.0, %v5576
        %v5578 = vpop.f32.mrf.mxu0
        %v5579 = vpop.f32.mrf.mxu0
        %v5580 = vadd.f32 0.0, %v5579
        %v5581 = vpop.f32.mrf.mxu0
        %5582 = vmatprep.mubr.bf16.mxu0 0
        %5583 = vmatmul.mubr.bf16.gmra.mxu0 %v5414
        %v5584 = vpop.f32.mrf.mxu0
        %v5585 = vadd.f32 0.0, %v5584
        %v5586 = vpop.f32.mrf.mxu0
        %v5587 = vpop.f32.mrf.mxu0
        %v5588 = vadd.f32 0.0, %v5587
        %v5589 = vpop.f32.mrf.mxu0
        %5590 = vmatprep.mubr.bf16.mxu0 0
        %5591 = vmatmul.mubr.bf16.gmra.mxu0 %v5415
        %v5592 = vpop.f32.mrf.mxu0
        %v5593 = vadd.f32 0.0, %v5592
        %v5594 = vpop.f32.mrf.mxu0
        %v5595 = vpop.f32.mrf.mxu0
        %v5596 = vadd.f32 0.0, %v5595
        %v5597 = vpop.f32.mrf.mxu0
        %5598 = vmatprep.mubr.bf16.mxu0 0
        %5599 = vmatmul.mubr.bf16.gmra.mxu0 %v5416
        %v5600 = vpop.f32.mrf.mxu0
        %v5601 = vadd.f32 0.0, %v5600
        %v5602 = vpop.f32.mrf.mxu0
        %v5603 = vpop.f32.mrf.mxu0
        %v5604 = vadd.f32 0.0, %v5603
        %v5605 = vpop.f32.mrf.mxu0
        %5606 = vmatprep.mubr.bf16.mxu0 0
        %5607 = vmatmul.mubr.bf16.gmra.mxu0 %v5417
        %v5608 = vpop.f32.mrf.mxu0
        %v5609 = vadd.f32 0.0, %v5608
        %v5610 = vpop.f32.mrf.mxu0
        %v5611 = vpop.f32.mrf.mxu0
        %v5612 = vadd.f32 0.0, %v5611
        %v5613 = vpop.f32.mrf.mxu0
        %5614 = vmatprep.mubr.bf16.mxu0 0
        %5615 = vmatmul.mubr.bf16.gmra.mxu0 %v5418
        %v5616 = vpop.f32.mrf.mxu0
        %v5617 = vadd.f32 0.0, %v5616
        %v5618 = vpop.f32.mrf.mxu0
        %v5619 = vpop.f32.mrf.mxu0
        %v5620 = vadd.f32 0.0, %v5619
        %v5621 = vpop.f32.mrf.mxu0
        %5622 = vmatprep.mubr.bf16.mxu0 0
        %5623 = vmatmul.mubr.bf16.gmra.mxu0 %v5419
        %v5624 = vpop.f32.mrf.mxu0
        %v5625 = vadd.f32 0.0, %v5624
        %v5626 = vpop.f32.mrf.mxu0
        %v5627 = vpop.f32.mrf.mxu0
        %v5628 = vadd.f32 0.0, %v5627
        %v5629 = vpop.f32.mrf.mxu0
        %5630 = vmatprep.mubr.bf16.mxu0 0
        %5631 = vmatmul.mubr.bf16.gmra.mxu0 %v5420
        %v5632 = vpop.f32.mrf.mxu0
        %v5633 = vadd.f32 0.0, %v5632
        %v5634 = vpop.f32.mrf.mxu0
        %v5635 = vpop.f32.mrf.mxu0
        %v5636 = vadd.f32 0.0, %v5635
        %v5637 = vpop.f32.mrf.mxu0
        %5638 = vmatprep.mubr.bf16.mxu0 0
        %5639 = vmatmul.mubr.bf16.gmra.mxu0 %v5421
        %v5640 = vpop.f32.mrf.mxu0
        %v5641 = vadd.f32 0.0, %v5640
        %v5642 = vpop.f32.mrf.mxu0
        %v5643 = vpop.f32.mrf.mxu0
        %v5644 = vadd.f32 0.0, %v5643
        %v5645 = vpop.f32.mrf.mxu0
        %5646 = vdwg.mxu0
        %v5647 = vsel %vm1163, %v5521, 0.0
        %v5648 = vsel %vm1164, %v5524, 0.0
        %v5649 = vsel %vm1165, %v5529, 0.0
        %v5650 = vsel %vm1166, %v5532, 0.0
        %v5651 = vsel %vm1167, %v5537, 0.0
        %v5652 = vsel %vm1168, %v5540, 0.0
        %v5653 = vsel %vm1169, %v5545, 0.0
        %v5654 = vsel %vm1170, %v5548, 0.0
        %v5655 = vsel %vm1171, %v5553, 0.0
        %v5656 = vsel %vm1172, %v5556, 0.0
        %v5657 = vsel %vm1173, %v5561, 0.0
        %v5658 = vsel %vm1174, %v5564, 0.0
        %v5659 = vsel %vm1175, %v5569, 0.0
        %v5660 = vsel %vm1176, %v5572, 0.0
        %v5661 = vsel %vm1177, %v5577, 0.0
        %v5662 = vsel %vm1178, %v5580, 0.0
        %v5663 = vsel %vm1179, %v5585, 0.0
        %v5664 = vsel %vm1180, %v5588, 0.0
        %v5665 = vsel %vm1181, %v5593, 0.0
        %v5666 = vsel %vm1182, %v5596, 0.0
        %v5667 = vsel %vm1183, %v5601, 0.0
        %v5668 = vsel %vm1184, %v5604, 0.0
        %v5669 = vsel %vm1185, %v5609, 0.0
        %v5670 = vsel %vm1186, %v5612, 0.0
        %v5671 = vsel %vm1187, %v5617, 0.0
        %v5672 = vsel %vm1188, %v5620, 0.0
        %v5673 = vsel %vm1189, %v5625, 0.0
        %v5674 = vsel %vm1190, %v5628, 0.0
        %v5675 = vsel %vm1191, %v5633, 0.0
        %v5676 = vsel %vm1192, %v5636, 0.0
        %v5677 = vsel %vm1193, %v5641, 0.0
        %v5678 = vsel %vm1194, %v5644, 0.0
        %v5679 = vadd.f32 %v5647, 0.0
        %v5680 = vadd.f32 %v5648, 0.0
        %v5681 = vadd.f32 %v5649, 0.0
        %v5682 = vadd.f32 %v5650, 0.0
        %v5683 = vadd.f32 %v5651, 0.0
        %v5684 = vadd.f32 %v5652, 0.0
        %v5685 = vadd.f32 %v5653, 0.0
        %v5686 = vadd.f32 %v5654, 0.0
        %v5687 = vadd.f32 %v5655, 0.0
        %v5688 = vadd.f32 %v5656, 0.0
        %v5689 = vadd.f32 %v5657, 0.0
        %v5690 = vadd.f32 %v5658, 0.0
        %v5691 = vadd.f32 %v5659, 0.0
        %v5692 = vadd.f32 %v5660, 0.0
        %v5693 = vadd.f32 %v5661, 0.0
        %v5694 = vadd.f32 %v5662, 0.0
        %v5695 = vadd.f32 %v5663, 0.0
        %v5696 = vadd.f32 %v5664, 0.0
        %v5697 = vadd.f32 %v5665, 0.0
        %v5698 = vadd.f32 %v5666, 0.0
        %v5699 = vadd.f32 %v5667, 0.0
        %v5700 = vadd.f32 %v5668, 0.0
        %v5701 = vadd.f32 %v5669, 0.0
        %v5702 = vadd.f32 %v5670, 0.0
        %v5703 = vadd.f32 %v5671, 0.0
        %v5704 = vadd.f32 %v5672, 0.0
        %v5705 = vadd.f32 %v5673, 0.0
        %v5706 = vadd.f32 %v5674, 0.0
        %v5707 = vadd.f32 %v5675, 0.0
        %v5708 = vadd.f32 %v5676, 0.0
        %v5709 = vadd.f32 %v5677, 0.0
        %v5710 = vadd.f32 %v5678, 0.0
        %v5711 = vld [vmem:[#allocation3] sm:$0xf]
        %v5712 = vld [vmem:[#allocation3 + $0x4] sm:$0xf]
        %v5713 = vld [vmem:[#allocation3 + $0x8] sm:$0xf]
        %v5714 = vld [vmem:[#allocation3 + $0xc] sm:$0xf]
        %v5715 = vld [vmem:[#allocation3 + $0x10] sm:$0xf]
        %v5716 = vld [vmem:[#allocation3 + $0x14] sm:$0xf]
        %v5717 = vld [vmem:[#allocation3 + $0x18] sm:$0xf]
        %v5718 = vld [vmem:[#allocation3 + $0x1c] sm:$0xf]
        %v5719 = vld [vmem:[#allocation3 + $0x20] sm:$0xf]
        %v5720 = vld [vmem:[#allocation3 + $0x24] sm:$0xf]
        %v5721 = vld [vmem:[#allocation3 + $0x28] sm:$0xf]
        %v5722 = vld [vmem:[#allocation3 + $0x2c] sm:$0xf]
        %v5723 = vld [vmem:[#allocation3 + $0x30] sm:$0xf]
        %v5724 = vld [vmem:[#allocation3 + $0x34] sm:$0xf]
        %v5725 = vld [vmem:[#allocation3 + $0x38] sm:$0xf]
        %v5726 = vld [vmem:[#allocation3 + $0x3c] sm:$0xf]
        %v5727 = vld [vmem:[#allocation3 + $0x40] sm:$0xf]
        %v5728 = vld [vmem:[#allocation3 + $0x44] sm:$0xf]
        %v5729 = vld [vmem:[#allocation3 + $0x48] sm:$0xf]
        %v5730 = vld [vmem:[#allocation3 + $0x4c] sm:$0xf]
        %v5731 = vld [vmem:[#allocation3 + $0x50] sm:$0xf]
        %v5732 = vld [vmem:[#allocation3 + $0x54] sm:$0xf]
        %v5733 = vld [vmem:[#allocation3 + $0x58] sm:$0xf]
        %v5734 = vld [vmem:[#allocation3 + $0x5c] sm:$0xf]
        %v5735 = vld [vmem:[#allocation3 + $0x60] sm:$0xf]
        %v5736 = vld [vmem:[#allocation3 + $0x64] sm:$0xf]
        %v5737 = vld [vmem:[#allocation3 + $0x68] sm:$0xf]
        %v5738 = vld [vmem:[#allocation3 + $0x6c] sm:$0xf]
        %v5739 = vld [vmem:[#allocation3 + $0x70] sm:$0xf]
        %v5740 = vld [vmem:[#allocation3 + $0x74] sm:$0xf]
        %v5741 = vld [vmem:[#allocation3 + $0x78] sm:$0xf]
        %v5742 = vld [vmem:[#allocation3 + $0x7c] sm:$0xf]
        %v5743 = vld [vmem:[#allocation3 + $0x80] sm:$0x1]
        %s5744 = scalar_lea.vmem [#allocation4], 64
        %v5745 = vld [vmem:[%s5744] sm:$0xf]
        %v5746 = vld [vmem:[%s5744 + $0x4] sm:$0xf]
        %v5747 = vld [vmem:[%s5744 + $0x8] sm:$0xf]
        %v5748 = vld [vmem:[%s5744 + $0xc] sm:$0xf]
        %v5749 = vld [vmem:[%s5744 + $0x10] sm:$0xf]
        %v5750 = vld [vmem:[%s5744 + $0x14] sm:$0xf]
        %v5751 = vld [vmem:[%s5744 + $0x18] sm:$0xf]
        %v5752 = vld [vmem:[%s5744 + $0x1c] sm:$0xf]
        %v5753 = vld [vmem:[%s5744 + $0x20] sm:$0xf]
        %v5754 = vld [vmem:[%s5744 + $0x24] sm:$0xf]
        %v5755 = vld [vmem:[%s5744 + $0x28] sm:$0xf]
        %v5756 = vld [vmem:[%s5744 + $0x2c] sm:$0xf]
        %v5757 = vld [vmem:[%s5744 + $0x30] sm:$0xf]
        %v5758 = vld [vmem:[%s5744 + $0x34] sm:$0xf]
        %v5759 = vld [vmem:[%s5744 + $0x38] sm:$0xf]
        %v5760 = vld [vmem:[%s5744 + $0x3c] sm:$0xf]
        %v5794 = vunpack.c.l.b16 %v5711
        %v5795 = vunpack.c.l.b16 %v5712
        %v5796 = vunpack.c.l.b16 %v5713
        %v5797 = vunpack.c.l.b16 %v5714
        %v5798 = vunpack.c.l.b16 %v5715
        %v5799 = vunpack.c.l.b16 %v5716
        %v5800 = vunpack.c.l.b16 %v5717
        %v5801 = vunpack.c.l.b16 %v5718
        %v5802 = vunpack.c.l.b16 %v5719
        %v5803 = vunpack.c.l.b16 %v5720
        %v5804 = vunpack.c.l.b16 %v5721
        %v5805 = vunpack.c.l.b16 %v5722
        %v5806 = vunpack.c.l.b16 %v5723
        %v5807 = vunpack.c.l.b16 %v5724
        %v5808 = vunpack.c.l.b16 %v5725
        %v5809 = vunpack.c.l.b16 %v5726
        %v5810 = vunpack.c.l.b16 %v5727
        %v5811 = vunpack.c.l.b16 %v5728
        %v5812 = vunpack.c.l.b16 %v5729
        %v5813 = vunpack.c.l.b16 %v5730
        %v5814 = vunpack.c.l.b16 %v5731
        %v5815 = vunpack.c.l.b16 %v5732
        %v5816 = vunpack.c.l.b16 %v5733
        %v5817 = vunpack.c.l.b16 %v5734
        %v5818 = vunpack.c.l.b16 %v5735
        %v5819 = vunpack.c.l.b16 %v5736
        %v5820 = vunpack.c.l.b16 %v5737
        %v5821 = vunpack.c.l.b16 %v5738
        %v5822 = vunpack.c.l.b16 %v5739
        %v5823 = vunpack.c.l.b16 %v5740
        %v5824 = vunpack.c.l.b16 %v5741
        %v5825 = vunpack.c.l.b16 %v5742
        %v5826 = vunpack.c.l.b16 %v5743
        %v5827 = vpack.c.b16 %v5795, %v5794
        %v5828 = vpack.c.b16 %v5797, %v5796
        %v5829 = vpack.c.b16 %v5799, %v5798
        %v5830 = vpack.c.b16 %v5801, %v5800
        %v5831 = vpack.c.b16 %v5803, %v5802
        %v5832 = vpack.c.b16 %v5805, %v5804
        %v5833 = vpack.c.b16 %v5807, %v5806
        %v5834 = vpack.c.b16 %v5809, %v5808
        %v5835 = vpack.c.b16 %v5811, %v5810
        %v5836 = vpack.c.b16 %v5813, %v5812
        %v5837 = vpack.c.b16 %v5815, %v5814
        %v5838 = vpack.c.b16 %v5817, %v5816
        %v5839 = vpack.c.b16 %v5819, %v5818
        %v5840 = vpack.c.b16 %v5821, %v5820
        %v5841 = vpack.c.b16 %v5823, %v5822
        %v5842 = vpack.c.b16 %v5825, %v5824
        %v5843 = vpack.c.b16 %v5826, %v5826
        %v5845 = vshrl.u32 %v5827, 16
        %v5847 = vshll.u32 %v5827, 16
        %v5849 = vrot.slane %v5847, 1
        %v5850 = vor.u32 %v5845, %v5849
        %v5852 = vshll.u32 %v5828, 16
        %v5854 = vrot.slane %v5852, 1
        %v5855 = vsel %vm1384, %v5850, %v5854
        %v5856 = vshrl.u32 %v5828, 16
        %v5858 = vor.u32 %v5856, %v5854
        %v5860 = vshll.u32 %v5829, 16
        %v5862 = vrot.slane %v5860, 1
        %v5863 = vsel %vm1384, %v5858, %v5862
        %v5864 = vshrl.u32 %v5829, 16
        %v5866 = vor.u32 %v5864, %v5862
        %v5868 = vshll.u32 %v5830, 16
        %v5870 = vrot.slane %v5868, 1
        %v5871 = vsel %vm1384, %v5866, %v5870
        %v5872 = vshrl.u32 %v5830, 16
        %v5874 = vor.u32 %v5872, %v5870
        %v5876 = vshll.u32 %v5831, 16
        %v5878 = vrot.slane %v5876, 1
        %v5879 = vsel %vm1384, %v5874, %v5878
        %v5880 = vshrl.u32 %v5831, 16
        %v5882 = vor.u32 %v5880, %v5878
        %v5884 = vshll.u32 %v5832, 16
        %v5886 = vrot.slane %v5884, 1
        %v5887 = vsel %vm1384, %v5882, %v5886
        %v5888 = vshrl.u32 %v5832, 16
        %v5890 = vor.u32 %v5888, %v5886
        %v5892 = vshll.u32 %v5833, 16
        %v5894 = vrot.slane %v5892, 1
        %v5895 = vsel %vm1384, %v5890, %v5894
        %v5896 = vshrl.u32 %v5833, 16
        %v5898 = vor.u32 %v5896, %v5894
        %v5900 = vshll.u32 %v5834, 16
        %v5902 = vrot.slane %v5900, 1
        %v5903 = vsel %vm1384, %v5898, %v5902
        %v5904 = vshrl.u32 %v5834, 16
        %v5906 = vor.u32 %v5904, %v5902
        %v5908 = vshll.u32 %v5835, 16
        %v5910 = vrot.slane %v5908, 1
        %v5911 = vsel %vm1384, %v5906, %v5910
        %v5912 = vshrl.u32 %v5835, 16
        %v5914 = vor.u32 %v5912, %v5910
        %v5916 = vshll.u32 %v5836, 16
        %v5918 = vrot.slane %v5916, 1
        %v5919 = vsel %vm1384, %v5914, %v5918
        %v5920 = vshrl.u32 %v5836, 16
        %v5922 = vor.u32 %v5920, %v5918
        %v5924 = vshll.u32 %v5837, 16
        %v5926 = vrot.slane %v5924, 1
        %v5927 = vsel %vm1384, %v5922, %v5926
        %v5928 = vshrl.u32 %v5837, 16
        %v5930 = vor.u32 %v5928, %v5926
        %v5932 = vshll.u32 %v5838, 16
        %v5934 = vrot.slane %v5932, 1
        %v5935 = vsel %vm1384, %v5930, %v5934
        %v5936 = vshrl.u32 %v5838, 16
        %v5938 = vor.u32 %v5936, %v5934
        %v5940 = vshll.u32 %v5839, 16
        %v5942 = vrot.slane %v5940, 1
        %v5943 = vsel %vm1384, %v5938, %v5942
        %v5944 = vshrl.u32 %v5839, 16
        %v5946 = vor.u32 %v5944, %v5942
        %v5948 = vshll.u32 %v5840, 16
        %v5950 = vrot.slane %v5948, 1
        %v5951 = vsel %vm1384, %v5946, %v5950
        %v5952 = vshrl.u32 %v5840, 16
        %v5954 = vor.u32 %v5952, %v5950
        %v5956 = vshll.u32 %v5841, 16
        %v5958 = vrot.slane %v5956, 1
        %v5959 = vsel %vm1384, %v5954, %v5958
        %v5960 = vshrl.u32 %v5841, 16
        %v5962 = vor.u32 %v5960, %v5958
        %v5964 = vshll.u32 %v5842, 16
        %v5966 = vrot.slane %v5964, 1
        %v5967 = vsel %vm1384, %v5962, %v5966
        %v5968 = vshrl.u32 %v5842, 16
        %v5970 = vor.u32 %v5968, %v5966
        %v5972 = vshll.u32 %v5843, 16
        %v5974 = vrot.slane %v5972, 1
        %v5975 = vsel %vm1384, %v5970, %v5974
        %v6008 = vunpack.c.l.b16 %v5745
        %v6009 = vunpack.c.l.b16 %v5746
        %v6010 = vunpack.c.l.b16 %v5747
        %v6011 = vunpack.c.l.b16 %v5748
        %v6012 = vunpack.c.l.b16 %v5749
        %v6013 = vunpack.c.l.b16 %v5750
        %v6014 = vunpack.c.l.b16 %v5751
        %v6015 = vunpack.c.l.b16 %v5752
        %v6016 = vunpack.c.l.b16 %v5753
        %v6017 = vunpack.c.l.b16 %v5754
        %v6018 = vunpack.c.l.b16 %v5755
        %v6019 = vunpack.c.l.b16 %v5756
        %v6020 = vunpack.c.l.b16 %v5757
        %v6021 = vunpack.c.l.b16 %v5758
        %v6022 = vunpack.c.l.b16 %v5759
        %v6023 = vunpack.c.l.b16 %v5760
        %v6024 = vpack.c.b16 %v6009, %v6008
        %v6025 = vpack.c.b16 %v6011, %v6010
        %v6026 = vpack.c.b16 %v6013, %v6012
        %v6027 = vpack.c.b16 %v6015, %v6014
        %v6028 = vpack.c.b16 %v6017, %v6016
        %v6029 = vpack.c.b16 %v6019, %v6018
        %v6030 = vpack.c.b16 %v6021, %v6020
        %v6031 = vpack.c.b16 %v6023, %v6022
        %6040 = vmatprep.subr.bf16.mxu0 0
        %6041 = vmatpush1.bf16.msra.mxu0 %v6031
        %6042 = vmatprep.subr.bf16.mxu0 0
        %6043 = vmatpush1.bf16.msra.mxu0 %v6030
        %6044 = vmatprep.subr.bf16.mxu0 0
        %6045 = vmatpush1.bf16.msra.mxu0 %v6029
        %6046 = vmatprep.subr.bf16.mxu0 0
        %6047 = vmatpush1.bf16.msra.mxu0 %v6028
        %6048 = vmatprep.subr.bf16.mxu0 0
        %6049 = vmatpush1.bf16.msra.mxu0 %v6027
        %6050 = vmatprep.subr.bf16.mxu0 0
        %6051 = vmatpush1.bf16.msra.mxu0 %v6026
        %6052 = vmatprep.subr.bf16.mxu0 0
        %6053 = vmatpush1.bf16.msra.mxu0 %v6025
        %6054 = vmatprep.subr.bf16.mxu0 0
        %6055 = vmatpush1.bf16.msra.mxu0 %v6024
        %6056 = vmatprep.subr.bf16.mxu0 0
        %6057 = vmatpush2.bf16.msra.mxu0 0
        %6058 = vmatprep.subr.bf16.mxu0 0
        %6059 = vmatpush2.bf16.msra.mxu0 0
        %6060 = vmatprep.subr.bf16.mxu0 0
        %6061 = vmatpush2.bf16.msra.mxu0 0
        %6062 = vmatprep.subr.bf16.mxu0 0
        %6063 = vmatpush2.bf16.msra.mxu0 0
        %6064 = vmatprep.subr.bf16.mxu0 0
        %6065 = vmatpush2.bf16.msra.mxu0 0
        %6066 = vmatprep.subr.bf16.mxu0 0
        %6067 = vmatpush2.bf16.msra.mxu0 0
        %6068 = vmatprep.subr.bf16.mxu0 0
        %6069 = vmatpush2.bf16.msra.mxu0 0
        %6070 = vmatprep.subr.bf16.mxu0 0
        %6071 = vmatpush2.bf16.msra.mxu0 0
        %6072 = vmatprep.mubr.bf16.mxu0 0
        %6073 = vmatmul.mubr.bf16.gmra.mxu0 %v5855
        %v6074 = vpop.f32.mrf.mxu0
        %v6075 = vadd.f32 0.0, %v6074
        %v6076 = vpop.f32.mrf.mxu0
        %v6077 = vpop.f32.mrf.mxu0
        %v6078 = vadd.f32 0.0, %v6077
        %v6079 = vpop.f32.mrf.mxu0
        %6080 = vmatprep.mubr.bf16.mxu0 0
        %6081 = vmatmul.mubr.bf16.gmra.mxu0 %v5863
        %v6082 = vpop.f32.mrf.mxu0
        %v6083 = vadd.f32 0.0, %v6082
        %v6084 = vpop.f32.mrf.mxu0
        %v6085 = vpop.f32.mrf.mxu0
        %v6086 = vadd.f32 0.0, %v6085
        %v6087 = vpop.f32.mrf.mxu0
        %6088 = vmatprep.mubr.bf16.mxu0 0
        %6089 = vmatmul.mubr.bf16.gmra.mxu0 %v5871
        %v6090 = vpop.f32.mrf.mxu0
        %v6091 = vadd.f32 0.0, %v6090
        %v6092 = vpop.f32.mrf.mxu0
        %v6093 = vpop.f32.mrf.mxu0
        %v6094 = vadd.f32 0.0, %v6093
        %v6095 = vpop.f32.mrf.mxu0
        %6096 = vmatprep.mubr.bf16.mxu0 0
        %6097 = vmatmul.mubr.bf16.gmra.mxu0 %v5879
        %v6098 = vpop.f32.mrf.mxu0
        %v6099 = vadd.f32 0.0, %v6098
        %v6100 = vpop.f32.mrf.mxu0
        %v6101 = vpop.f32.mrf.mxu0
        %v6102 = vadd.f32 0.0, %v6101
        %v6103 = vpop.f32.mrf.mxu0
        %6104 = vmatprep.mubr.bf16.mxu0 0
        %6105 = vmatmul.mubr.bf16.gmra.mxu0 %v5887
        %v6106 = vpop.f32.mrf.mxu0
        %v6107 = vadd.f32 0.0, %v6106
        %v6108 = vpop.f32.mrf.mxu0
        %v6109 = vpop.f32.mrf.mxu0
        %v6110 = vadd.f32 0.0, %v6109
        %v6111 = vpop.f32.mrf.mxu0
        %6112 = vmatprep.mubr.bf16.mxu0 0
        %6113 = vmatmul.mubr.bf16.gmra.mxu0 %v5895
        %v6114 = vpop.f32.mrf.mxu0
        %v6115 = vadd.f32 0.0, %v6114
        %v6116 = vpop.f32.mrf.mxu0
        %v6117 = vpop.f32.mrf.mxu0
        %v6118 = vadd.f32 0.0, %v6117
        %v6119 = vpop.f32.mrf.mxu0
        %6120 = vmatprep.mubr.bf16.mxu0 0
        %6121 = vmatmul.mubr.bf16.gmra.mxu0 %v5903
        %v6122 = vpop.f32.mrf.mxu0
        %v6123 = vadd.f32 0.0, %v6122
        %v6124 = vpop.f32.mrf.mxu0
        %v6125 = vpop.f32.mrf.mxu0
        %v6126 = vadd.f32 0.0, %v6125
        %v6127 = vpop.f32.mrf.mxu0
        %6128 = vmatprep.mubr.bf16.mxu0 0
        %6129 = vmatmul.mubr.bf16.gmra.mxu0 %v5911
        %v6130 = vpop.f32.mrf.mxu0
        %v6131 = vadd.f32 0.0, %v6130
        %v6132 = vpop.f32.mrf.mxu0
        %v6133 = vpop.f32.mrf.mxu0
        %v6134 = vadd.f32 0.0, %v6133
        %v6135 = vpop.f32.mrf.mxu0
        %6136 = vmatprep.mubr.bf16.mxu0 0
        %6137 = vmatmul.mubr.bf16.gmra.mxu0 %v5919
        %v6138 = vpop.f32.mrf.mxu0
        %v6139 = vadd.f32 0.0, %v6138
        %v6140 = vpop.f32.mrf.mxu0
        %v6141 = vpop.f32.mrf.mxu0
        %v6142 = vadd.f32 0.0, %v6141
        %v6143 = vpop.f32.mrf.mxu0
        %6144 = vmatprep.mubr.bf16.mxu0 0
        %6145 = vmatmul.mubr.bf16.gmra.mxu0 %v5927
        %v6146 = vpop.f32.mrf.mxu0
        %v6147 = vadd.f32 0.0, %v6146
        %v6148 = vpop.f32.mrf.mxu0
        %v6149 = vpop.f32.mrf.mxu0
        %v6150 = vadd.f32 0.0, %v6149
        %v6151 = vpop.f32.mrf.mxu0
        %6152 = vmatprep.mubr.bf16.mxu0 0
        %6153 = vmatmul.mubr.bf16.gmra.mxu0 %v5935
        %v6154 = vpop.f32.mrf.mxu0
        %v6155 = vadd.f32 0.0, %v6154
        %v6156 = vpop.f32.mrf.mxu0
        %v6157 = vpop.f32.mrf.mxu0
        %v6158 = vadd.f32 0.0, %v6157
        %v6159 = vpop.f32.mrf.mxu0
        %6160 = vmatprep.mubr.bf16.mxu0 0
        %6161 = vmatmul.mubr.bf16.gmra.mxu0 %v5943
        %v6162 = vpop.f32.mrf.mxu0
        %v6163 = vadd.f32 0.0, %v6162
        %v6164 = vpop.f32.mrf.mxu0
        %v6165 = vpop.f32.mrf.mxu0
        %v6166 = vadd.f32 0.0, %v6165
        %v6167 = vpop.f32.mrf.mxu0
        %6168 = vmatprep.mubr.bf16.mxu0 0
        %6169 = vmatmul.mubr.bf16.gmra.mxu0 %v5951
        %v6170 = vpop.f32.mrf.mxu0
        %v6171 = vadd.f32 0.0, %v6170
        %v6172 = vpop.f32.mrf.mxu0
        %v6173 = vpop.f32.mrf.mxu0
        %v6174 = vadd.f32 0.0, %v6173
        %v6175 = vpop.f32.mrf.mxu0
        %6176 = vmatprep.mubr.bf16.mxu0 0
        %6177 = vmatmul.mubr.bf16.gmra.mxu0 %v5959
        %v6178 = vpop.f32.mrf.mxu0
        %v6179 = vadd.f32 0.0, %v6178
        %v6180 = vpop.f32.mrf.mxu0
        %v6181 = vpop.f32.mrf.mxu0
        %v6182 = vadd.f32 0.0, %v6181
        %v6183 = vpop.f32.mrf.mxu0
        %6184 = vmatprep.mubr.bf16.mxu0 0
        %6185 = vmatmul.mubr.bf16.gmra.mxu0 %v5967
        %v6186 = vpop.f32.mrf.mxu0
        %v6187 = vadd.f32 0.0, %v6186
        %v6188 = vpop.f32.mrf.mxu0
        %v6189 = vpop.f32.mrf.mxu0
        %v6190 = vadd.f32 0.0, %v6189
        %v6191 = vpop.f32.mrf.mxu0
        %6192 = vmatprep.mubr.bf16.mxu0 0
        %6193 = vmatmul.mubr.bf16.gmra.mxu0 %v5975
        %v6194 = vpop.f32.mrf.mxu0
        %v6195 = vadd.f32 0.0, %v6194
        %v6196 = vpop.f32.mrf.mxu0
        %v6197 = vpop.f32.mrf.mxu0
        %v6198 = vadd.f32 0.0, %v6197
        %v6199 = vpop.f32.mrf.mxu0
        %6200 = vdwg.mxu0
        %v6201 = vadd.f32 %v5679, %v6075
        %v6202 = vadd.f32 %v5680, %v6078
        %v6203 = vadd.f32 %v5681, %v6083
        %v6204 = vadd.f32 %v5682, %v6086
        %v6205 = vadd.f32 %v5683, %v6091
        %v6206 = vadd.f32 %v5684, %v6094
        %v6207 = vadd.f32 %v5685, %v6099
        %v6208 = vadd.f32 %v5686, %v6102
        %v6209 = vadd.f32 %v5687, %v6107
        %v6210 = vadd.f32 %v5688, %v6110
        %v6211 = vadd.f32 %v5689, %v6115
        %v6212 = vadd.f32 %v5690, %v6118
        %v6213 = vadd.f32 %v5691, %v6123
        %v6214 = vadd.f32 %v5692, %v6126
        %v6215 = vadd.f32 %v5693, %v6131
        %v6216 = vadd.f32 %v5694, %v6134
        %v6217 = vadd.f32 %v5695, %v6139
        %v6218 = vadd.f32 %v5696, %v6142
        %v6219 = vadd.f32 %v5697, %v6147
        %v6220 = vadd.f32 %v5698, %v6150
        %v6221 = vadd.f32 %v5699, %v6155
        %v6222 = vadd.f32 %v5700, %v6158
        %v6223 = vadd.f32 %v5701, %v6163
        %v6224 = vadd.f32 %v5702, %v6166
        %v6225 = vadd.f32 %v5703, %v6171
        %v6226 = vadd.f32 %v5704, %v6174
        %v6227 = vadd.f32 %v5705, %v6179
        %v6228 = vadd.f32 %v5706, %v6182
        %v6229 = vadd.f32 %v5707, %v6187
        %v6230 = vadd.f32 %v5708, %v6190
        %v6231 = vadd.f32 %v5709, %v6195
        %v6232 = vadd.f32 %v5710, %v6198
        %v6233 = vld [vmem:[#allocation3] sm:$0xe]
        %s6234 = scalar_lea.vmem [#allocation4], 128
        %v6235 = vld [vmem:[%s6234] sm:$0xf]
        %v6236 = vld [vmem:[%s6234 + $0x4] sm:$0xf]
        %v6237 = vld [vmem:[%s6234 + $0x8] sm:$0xf]
        %v6238 = vld [vmem:[%s6234 + $0xc] sm:$0xf]
        %v6239 = vld [vmem:[%s6234 + $0x10] sm:$0xf]
        %v6240 = vld [vmem:[%s6234 + $0x14] sm:$0xf]
        %v6241 = vld [vmem:[%s6234 + $0x18] sm:$0xf]
        %v6242 = vld [vmem:[%s6234 + $0x1c] sm:$0xf]
        %v6243 = vld [vmem:[%s6234 + $0x20] sm:$0xf]
        %v6244 = vld [vmem:[%s6234 + $0x24] sm:$0xf]
        %v6245 = vld [vmem:[%s6234 + $0x28] sm:$0xf]
        %v6246 = vld [vmem:[%s6234 + $0x2c] sm:$0xf]
        %v6247 = vld [vmem:[%s6234 + $0x30] sm:$0xf]
        %v6248 = vld [vmem:[%s6234 + $0x34] sm:$0xf]
        %v6249 = vld [vmem:[%s6234 + $0x38] sm:$0xf]
        %v6250 = vld [vmem:[%s6234 + $0x3c] sm:$0xf]
        %v6252 = vunpack.c.l.b16 %v6233
        %v6253 = vpack.c.b16 %v5795, %v6252
        %v6254 = vrot.slane %v6253, 1
        %v6255 = vrot.slane %v5828, 1
        %v6256 = vsel %vm1795, %v6254, %v6255
        %v6257 = vrot.slane %v5829, 1
        %v6258 = vsel %vm1795, %v6255, %v6257
        %v6259 = vrot.slane %v5830, 1
        %v6260 = vsel %vm1795, %v6257, %v6259
        %v6261 = vrot.slane %v5831, 1
        %v6262 = vsel %vm1795, %v6259, %v6261
        %v6263 = vrot.slane %v5832, 1
        %v6264 = vsel %vm1795, %v6261, %v6263
        %v6265 = vrot.slane %v5833, 1
        %v6266 = vsel %vm1795, %v6263, %v6265
        %v6267 = vrot.slane %v5834, 1
        %v6268 = vsel %vm1795, %v6265, %v6267
        %v6269 = vrot.slane %v5835, 1
        %v6270 = vsel %vm1795, %v6267, %v6269
        %v6271 = vrot.slane %v5836, 1
        %v6272 = vsel %vm1795, %v6269, %v6271
        %v6273 = vrot.slane %v5837, 1
        %v6274 = vsel %vm1795, %v6271, %v6273
        %v6275 = vrot.slane %v5838, 1
        %v6276 = vsel %vm1795, %v6273, %v6275
        %v6277 = vrot.slane %v5839, 1
        %v6278 = vsel %vm1795, %v6275, %v6277
        %v6279 = vrot.slane %v5840, 1
        %v6280 = vsel %vm1795, %v6277, %v6279
        %v6281 = vrot.slane %v5841, 1
        %v6282 = vsel %vm1795, %v6279, %v6281
        %v6283 = vrot.slane %v5842, 1
        %v6284 = vsel %vm1795, %v6281, %v6283
        %v6285 = vrot.slane %v5843, 1
        %v6286 = vsel %vm1795, %v6283, %v6285
        %v6319 = vunpack.c.l.b16 %v6235
        %v6320 = vunpack.c.l.b16 %v6236
        %v6321 = vunpack.c.l.b16 %v6237
        %v6322 = vunpack.c.l.b16 %v6238
        %v6323 = vunpack.c.l.b16 %v6239
        %v6324 = vunpack.c.l.b16 %v6240
        %v6325 = vunpack.c.l.b16 %v6241
        %v6326 = vunpack.c.l.b16 %v6242
        %v6327 = vunpack.c.l.b16 %v6243
        %v6328 = vunpack.c.l.b16 %v6244
        %v6329 = vunpack.c.l.b16 %v6245
        %v6330 = vunpack.c.l.b16 %v6246
        %v6331 = vunpack.c.l.b16 %v6247
        %v6332 = vunpack.c.l.b16 %v6248
        %v6333 = vunpack.c.l.b16 %v6249
        %v6334 = vunpack.c.l.b16 %v6250
        %v6335 = vpack.c.b16 %v6320, %v6319
        %v6336 = vpack.c.b16 %v6322, %v6321
        %v6337 = vpack.c.b16 %v6324, %v6323
        %v6338 = vpack.c.b16 %v6326, %v6325
        %v6339 = vpack.c.b16 %v6328, %v6327
        %v6340 = vpack.c.b16 %v6330, %v6329
        %v6341 = vpack.c.b16 %v6332, %v6331
        %v6342 = vpack.c.b16 %v6334, %v6333
        %6351 = vmatprep.subr.bf16.mxu0 0
        %6352 = vmatpush1.bf16.msra.mxu0 %v6342
        %6353 = vmatprep.subr.bf16.mxu0 0
        %6354 = vmatpush1.bf16.msra.mxu0 %v6341
        %6355 = vmatprep.subr.bf16.mxu0 0
        %6356 = vmatpush1.bf16.msra.mxu0 %v6340
        %6357 = vmatprep.subr.bf16.mxu0 0
        %6358 = vmatpush1.bf16.msra.mxu0 %v6339
        %6359 = vmatprep.subr.bf16.mxu0 0
        %6360 = vmatpush1.bf16.msra.mxu0 %v6338
        %6361 = vmatprep.subr.bf16.mxu0 0
        %6362 = vmatpush1.bf16.msra.mxu0 %v6337
        %6363 = vmatprep.subr.bf16.mxu0 0
        %6364 = vmatpush1.bf16.msra.mxu0 %v6336
        %6365 = vmatprep.subr.bf16.mxu0 0
        %6366 = vmatpush1.bf16.msra.mxu0 %v6335
        %6367 = vmatprep.subr.bf16.mxu0 0
        %6368 = vmatpush2.bf16.msra.mxu0 0
        %6369 = vmatprep.subr.bf16.mxu0 0
        %6370 = vmatpush2.bf16.msra.mxu0 0
        %6371 = vmatprep.subr.bf16.mxu0 0
        %6372 = vmatpush2.bf16.msra.mxu0 0
        %6373 = vmatprep.subr.bf16.mxu0 0
        %6374 = vmatpush2.bf16.msra.mxu0 0
        %6375 = vmatprep.subr.bf16.mxu0 0
        %6376 = vmatpush2.bf16.msra.mxu0 0
        %6377 = vmatprep.subr.bf16.mxu0 0
        %6378 = vmatpush2.bf16.msra.mxu0 0
        %6379 = vmatprep.subr.bf16.mxu0 0
        %6380 = vmatpush2.bf16.msra.mxu0 0
        %6381 = vmatprep.subr.bf16.mxu0 0
        %6382 = vmatpush2.bf16.msra.mxu0 0
        %6383 = vmatprep.mubr.bf16.mxu0 0
        %6384 = vmatmul.mubr.bf16.gmra.mxu0 %v6256
        %v6385 = vpop.f32.mrf.mxu0
        %v6386 = vadd.f32 0.0, %v6385
        %v6387 = vpop.f32.mrf.mxu0
        %v6388 = vpop.f32.mrf.mxu0
        %v6389 = vadd.f32 0.0, %v6388
        %v6390 = vpop.f32.mrf.mxu0
        %6391 = vmatprep.mubr.bf16.mxu0 0
        %6392 = vmatmul.mubr.bf16.gmra.mxu0 %v6258
        %v6393 = vpop.f32.mrf.mxu0
        %v6394 = vadd.f32 0.0, %v6393
        %v6395 = vpop.f32.mrf.mxu0
        %v6396 = vpop.f32.mrf.mxu0
        %v6397 = vadd.f32 0.0, %v6396
        %v6398 = vpop.f32.mrf.mxu0
        %6399 = vmatprep.mubr.bf16.mxu0 0
        %6400 = vmatmul.mubr.bf16.gmra.mxu0 %v6260
        %v6401 = vpop.f32.mrf.mxu0
        %v6402 = vadd.f32 0.0, %v6401
        %v6403 = vpop.f32.mrf.mxu0
        %v6404 = vpop.f32.mrf.mxu0
        %v6405 = vadd.f32 0.0, %v6404
        %v6406 = vpop.f32.mrf.mxu0
        %6407 = vmatprep.mubr.bf16.mxu0 0
        %6408 = vmatmul.mubr.bf16.gmra.mxu0 %v6262
        %v6409 = vpop.f32.mrf.mxu0
        %v6410 = vadd.f32 0.0, %v6409
        %v6411 = vpop.f32.mrf.mxu0
        %v6412 = vpop.f32.mrf.mxu0
        %v6413 = vadd.f32 0.0, %v6412
        %v6414 = vpop.f32.mrf.mxu0
        %6415 = vmatprep.mubr.bf16.mxu0 0
        %6416 = vmatmul.mubr.bf16.gmra.mxu0 %v6264
        %v6417 = vpop.f32.mrf.mxu0
        %v6418 = vadd.f32 0.0, %v6417
        %v6419 = vpop.f32.mrf.mxu0
        %v6420 = vpop.f32.mrf.mxu0
        %v6421 = vadd.f32 0.0, %v6420
        %v6422 = vpop.f32.mrf.mxu0
        %6423 = vmatprep.mubr.bf16.mxu0 0
        %6424 = vmatmul.mubr.bf16.gmra.mxu0 %v6266
        %v6425 = vpop.f32.mrf.mxu0
        %v6426 = vadd.f32 0.0, %v6425
        %v6427 = vpop.f32.mrf.mxu0
        %v6428 = vpop.f32.mrf.mxu0
        %v6429 = vadd.f32 0.0, %v6428
        %v6430 = vpop.f32.mrf.mxu0
        %6431 = vmatprep.mubr.bf16.mxu0 0
        %6432 = vmatmul.mubr.bf16.gmra.mxu0 %v6268
        %v6433 = vpop.f32.mrf.mxu0
        %v6434 = vadd.f32 0.0, %v6433
        %v6435 = vpop.f32.mrf.mxu0
        %v6436 = vpop.f32.mrf.mxu0
        %v6437 = vadd.f32 0.0, %v6436
        %v6438 = vpop.f32.mrf.mxu0
        %6439 = vmatprep.mubr.bf16.mxu0 0
        %6440 = vmatmul.mubr.bf16.gmra.mxu0 %v6270
        %v6441 = vpop.f32.mrf.mxu0
        %v6442 = vadd.f32 0.0, %v6441
        %v6443 = vpop.f32.mrf.mxu0
        %v6444 = vpop.f32.mrf.mxu0
        %v6445 = vadd.f32 0.0, %v6444
        %v6446 = vpop.f32.mrf.mxu0
        %6447 = vmatprep.mubr.bf16.mxu0 0
        %6448 = vmatmul.mubr.bf16.gmra.mxu0 %v6272
        %v6449 = vpop.f32.mrf.mxu0
        %v6450 = vadd.f32 0.0, %v6449
        %v6451 = vpop.f32.mrf.mxu0
        %v6452 = vpop.f32.mrf.mxu0
        %v6453 = vadd.f32 0.0, %v6452
        %v6454 = vpop.f32.mrf.mxu0
        %6455 = vmatprep.mubr.bf16.mxu0 0
        %6456 = vmatmul.mubr.bf16.gmra.mxu0 %v6274
        %v6457 = vpop.f32.mrf.mxu0
        %v6458 = vadd.f32 0.0, %v6457
        %v6459 = vpop.f32.mrf.mxu0
        %v6460 = vpop.f32.mrf.mxu0
        %v6461 = vadd.f32 0.0, %v6460
        %v6462 = vpop.f32.mrf.mxu0
        %6463 = vmatprep.mubr.bf16.mxu0 0
        %6464 = vmatmul.mubr.bf16.gmra.mxu0 %v6276
        %v6465 = vpop.f32.mrf.mxu0
        %v6466 = vadd.f32 0.0, %v6465
        %v6467 = vpop.f32.mrf.mxu0
        %v6468 = vpop.f32.mrf.mxu0
        %v6469 = vadd.f32 0.0, %v6468
        %v6470 = vpop.f32.mrf.mxu0
        %6471 = vmatprep.mubr.bf16.mxu0 0
        %6472 = vmatmul.mubr.bf16.gmra.mxu0 %v6278
        %v6473 = vpop.f32.mrf.mxu0
        %v6474 = vadd.f32 0.0, %v6473
        %v6475 = vpop.f32.mrf.mxu0
        %v6476 = vpop.f32.mrf.mxu0
        %v6477 = vadd.f32 0.0, %v6476
        %v6478 = vpop.f32.mrf.mxu0
        %6479 = vmatprep.mubr.bf16.mxu0 0
        %6480 = vmatmul.mubr.bf16.gmra.mxu0 %v6280
        %v6481 = vpop.f32.mrf.mxu0
        %v6482 = vadd.f32 0.0, %v6481
        %v6483 = vpop.f32.mrf.mxu0
        %v6484 = vpop.f32.mrf.mxu0
        %v6485 = vadd.f32 0.0, %v6484
        %v6486 = vpop.f32.mrf.mxu0
        %6487 = vmatprep.mubr.bf16.mxu0 0
        %6488 = vmatmul.mubr.bf16.gmra.mxu0 %v6282
        %v6489 = vpop.f32.mrf.mxu0
        %v6490 = vadd.f32 0.0, %v6489
        %v6491 = vpop.f32.mrf.mxu0
        %v6492 = vpop.f32.mrf.mxu0
        %v6493 = vadd.f32 0.0, %v6492
        %v6494 = vpop.f32.mrf.mxu0
        %6495 = vmatprep.mubr.bf16.mxu0 0
        %6496 = vmatmul.mubr.bf16.gmra.mxu0 %v6284
        %v6497 = vpop.f32.mrf.mxu0
        %v6498 = vadd.f32 0.0, %v6497
        %v6499 = vpop.f32.mrf.mxu0
        %v6500 = vpop.f32.mrf.mxu0
        %v6501 = vadd.f32 0.0, %v6500
        %v6502 = vpop.f32.mrf.mxu0
        %6503 = vmatprep.mubr.bf16.mxu0 0
        %6504 = vmatmul.mubr.bf16.gmra.mxu0 %v6286
        %v6505 = vpop.f32.mrf.mxu0
        %v6506 = vadd.f32 0.0, %v6505
        %v6507 = vpop.f32.mrf.mxu0
        %v6508 = vpop.f32.mrf.mxu0
        %v6509 = vadd.f32 0.0, %v6508
        %v6510 = vpop.f32.mrf.mxu0
        %6511 = vdwg.mxu0
        %v6512 = vsel %vm2094, %v6386, 0.0
        %v6513 = vsel %vm2095, %v6389, 0.0
        %v6514 = vsel %vm2096, %v6394, 0.0
        %v6515 = vsel %vm2097, %v6397, 0.0
        %v6516 = vsel %vm2098, %v6402, 0.0
        %v6517 = vsel %vm2099, %v6405, 0.0
        %v6518 = vsel %vm2100, %v6410, 0.0
        %v6519 = vsel %vm2101, %v6413, 0.0
        %v6520 = vsel %vm2102, %v6418, 0.0
        %v6521 = vsel %vm2103, %v6421, 0.0
        %v6522 = vsel %vm2104, %v6426, 0.0
        %v6523 = vsel %vm2105, %v6429, 0.0
        %v6524 = vsel %vm2106, %v6434, 0.0
        %v6525 = vsel %vm2107, %v6437, 0.0
        %v6526 = vsel %vm2108, %v6442, 0.0
        %v6527 = vsel %vm2109, %v6445, 0.0
        %v6528 = vsel %vm2110, %v6450, 0.0
        %v6529 = vsel %vm2111, %v6453, 0.0
        %v6530 = vsel %vm2112, %v6458, 0.0
        %v6531 = vsel %vm2113, %v6461, 0.0
        %v6532 = vsel %vm2114, %v6466, 0.0
        %v6533 = vsel %vm2115, %v6469, 0.0
        %v6534 = vsel %vm2116, %v6474, 0.0
        %v6535 = vsel %vm2117, %v6477, 0.0
        %v6536 = vsel %vm2118, %v6482, 0.0
        %v6537 = vsel %vm2119, %v6485, 0.0
        %v6538 = vsel %vm2120, %v6490, 0.0
        %v6539 = vsel %vm2121, %v6493, 0.0
        %v6540 = vsel %vm2122, %v6498, 0.0
        %v6541 = vsel %vm2123, %v6501, 0.0
        %v6542 = vsel %vm2124, %v6506, 0.0
        %v6543 = vsel %vm2125, %v6509, 0.0
        %v6544 = vadd.f32 %v6201, %v6512
        %v6545 = vadd.f32 %v6202, %v6513
        %v6546 = vadd.f32 %v6203, %v6514
        %v6547 = vadd.f32 %v6204, %v6515
        %v6548 = vadd.f32 %v6205, %v6516
        %v6549 = vadd.f32 %v6206, %v6517
        %v6550 = vadd.f32 %v6207, %v6518
        %v6551 = vadd.f32 %v6208, %v6519
        %v6552 = vadd.f32 %v6209, %v6520
        %v6553 = vadd.f32 %v6210, %v6521
        %v6554 = vadd.f32 %v6211, %v6522
        %v6555 = vadd.f32 %v6212, %v6523
        %v6556 = vadd.f32 %v6213, %v6524
        %v6557 = vadd.f32 %v6214, %v6525
        %v6558 = vadd.f32 %v6215, %v6526
        %v6559 = vadd.f32 %v6216, %v6527
        %v6560 = vadd.f32 %v6217, %v6528
        %v6561 = vadd.f32 %v6218, %v6529
        %v6562 = vadd.f32 %v6219, %v6530
        %v6563 = vadd.f32 %v6220, %v6531
        %v6564 = vadd.f32 %v6221, %v6532
        %v6565 = vadd.f32 %v6222, %v6533
        %v6566 = vadd.f32 %v6223, %v6534
        %v6567 = vadd.f32 %v6224, %v6535
        %v6568 = vadd.f32 %v6225, %v6536
        %v6569 = vadd.f32 %v6226, %v6537
        %v6570 = vadd.f32 %v6227, %v6538
        %v6571 = vadd.f32 %v6228, %v6539
        %v6572 = vadd.f32 %v6229, %v6540
        %v6573 = vadd.f32 %v6230, %v6541
        %v6574 = vadd.f32 %v6231, %v6542
        %v6575 = vadd.f32 %v6232, %v6543
        %v6576 = vld [vmem:[#allocation3 + $0x8] sm:$0xf]
        %v6577 = vld [vmem:[#allocation3 + $0xc] sm:$0xf]
        %v6578 = vld [vmem:[#allocation3 + $0x10] sm:$0xf]
        %v6579 = vld [vmem:[#allocation3 + $0x14] sm:$0xf]
        %v6580 = vld [vmem:[#allocation3 + $0x18] sm:$0xf]
        %v6581 = vld [vmem:[#allocation3 + $0x1c] sm:$0xf]
        %v6582 = vld [vmem:[#allocation3 + $0x20] sm:$0xf]
        %v6583 = vld [vmem:[#allocation3 + $0x24] sm:$0xf]
        %v6584 = vld [vmem:[#allocation3 + $0x28] sm:$0xf]
        %v6585 = vld [vmem:[#allocation3 + $0x2c] sm:$0xf]
        %v6586 = vld [vmem:[#allocation3 + $0x30] sm:$0xf]
        %v6587 = vld [vmem:[#allocation3 + $0x34] sm:$0xf]
        %v6588 = vld [vmem:[#allocation3 + $0x38] sm:$0xf]
        %v6589 = vld [vmem:[#allocation3 + $0x3c] sm:$0xf]
        %v6590 = vld [vmem:[#allocation3 + $0x40] sm:$0xf]
        %v6591 = vld [vmem:[#allocation3 + $0x44] sm:$0xf]
        %v6592 = vld [vmem:[#allocation3 + $0x48] sm:$0xf]
        %v6593 = vld [vmem:[#allocation3 + $0x4c] sm:$0xf]
        %v6594 = vld [vmem:[#allocation3 + $0x50] sm:$0xf]
        %v6595 = vld [vmem:[#allocation3 + $0x54] sm:$0xf]
        %v6596 = vld [vmem:[#allocation3 + $0x58] sm:$0xf]
        %v6597 = vld [vmem:[#allocation3 + $0x5c] sm:$0xf]
        %v6598 = vld [vmem:[#allocation3 + $0x60] sm:$0xf]
        %v6599 = vld [vmem:[#allocation3 + $0x64] sm:$0xf]
        %v6600 = vld [vmem:[#allocation3 + $0x68] sm:$0xf]
        %v6601 = vld [vmem:[#allocation3 + $0x6c] sm:$0xf]
        %v6602 = vld [vmem:[#allocation3 + $0x70] sm:$0xf]
        %v6603 = vld [vmem:[#allocation3 + $0x74] sm:$0xf]
        %v6604 = vld [vmem:[#allocation3 + $0x78] sm:$0xf]
        %v6605 = vld [vmem:[#allocation3 + $0x7c] sm:$0xf]
        %v6606 = vld [vmem:[#allocation3 + $0x80] sm:$0xf]
        %v6607 = vld [vmem:[#allocation3 + $0x84] sm:$0xf]
        %s6608 = scalar_lea.vmem [#allocation4], 192
        %v6609 = vld [vmem:[%s6608] sm:$0xf]
        %v6610 = vld [vmem:[%s6608 + $0x4] sm:$0xf]
        %v6611 = vld [vmem:[%s6608 + $0x8] sm:$0xf]
        %v6612 = vld [vmem:[%s6608 + $0xc] sm:$0xf]
        %v6613 = vld [vmem:[%s6608 + $0x10] sm:$0xf]
        %v6614 = vld [vmem:[%s6608 + $0x14] sm:$0xf]
        %v6615 = vld [vmem:[%s6608 + $0x18] sm:$0xf]
        %v6616 = vld [vmem:[%s6608 + $0x1c] sm:$0xf]
        %v6617 = vld [vmem:[%s6608 + $0x20] sm:$0xf]
        %v6618 = vld [vmem:[%s6608 + $0x24] sm:$0xf]
        %v6619 = vld [vmem:[%s6608 + $0x28] sm:$0xf]
        %v6620 = vld [vmem:[%s6608 + $0x2c] sm:$0xf]
        %v6621 = vld [vmem:[%s6608 + $0x30] sm:$0xf]
        %v6622 = vld [vmem:[%s6608 + $0x34] sm:$0xf]
        %v6623 = vld [vmem:[%s6608 + $0x38] sm:$0xf]
        %v6624 = vld [vmem:[%s6608 + $0x3c] sm:$0xf]
        %v6657 = vunpack.c.l.b16 %v6576
        %v6658 = vunpack.c.l.b16 %v6577
        %v6659 = vunpack.c.l.b16 %v6578
        %v6660 = vunpack.c.l.b16 %v6579
        %v6661 = vunpack.c.l.b16 %v6580
        %v6662 = vunpack.c.l.b16 %v6581
        %v6663 = vunpack.c.l.b16 %v6582
        %v6664 = vunpack.c.l.b16 %v6583
        %v6665 = vunpack.c.l.b16 %v6584
        %v6666 = vunpack.c.l.b16 %v6585
        %v6667 = vunpack.c.l.b16 %v6586
        %v6668 = vunpack.c.l.b16 %v6587
        %v6669 = vunpack.c.l.b16 %v6588
        %v6670 = vunpack.c.l.b16 %v6589
        %v6671 = vunpack.c.l.b16 %v6590
        %v6672 = vunpack.c.l.b16 %v6591
        %v6673 = vunpack.c.l.b16 %v6592
        %v6674 = vunpack.c.l.b16 %v6593
        %v6675 = vunpack.c.l.b16 %v6594
        %v6676 = vunpack.c.l.b16 %v6595
        %v6677 = vunpack.c.l.b16 %v6596
        %v6678 = vunpack.c.l.b16 %v6597
        %v6679 = vunpack.c.l.b16 %v6598
        %v6680 = vunpack.c.l.b16 %v6599
        %v6681 = vunpack.c.l.b16 %v6600
        %v6682 = vunpack.c.l.b16 %v6601
        %v6683 = vunpack.c.l.b16 %v6602
        %v6684 = vunpack.c.l.b16 %v6603
        %v6685 = vunpack.c.l.b16 %v6604
        %v6686 = vunpack.c.l.b16 %v6605
        %v6687 = vunpack.c.l.b16 %v6606
        %v6688 = vunpack.c.l.b16 %v6607
        %v6689 = vpack.c.b16 %v6658, %v6657
        %v6690 = vpack.c.b16 %v6660, %v6659
        %v6691 = vpack.c.b16 %v6662, %v6661
        %v6692 = vpack.c.b16 %v6664, %v6663
        %v6693 = vpack.c.b16 %v6666, %v6665
        %v6694 = vpack.c.b16 %v6668, %v6667
        %v6695 = vpack.c.b16 %v6670, %v6669
        %v6696 = vpack.c.b16 %v6672, %v6671
        %v6697 = vpack.c.b16 %v6674, %v6673
        %v6698 = vpack.c.b16 %v6676, %v6675
        %v6699 = vpack.c.b16 %v6678, %v6677
        %v6700 = vpack.c.b16 %v6680, %v6679
        %v6701 = vpack.c.b16 %v6682, %v6681
        %v6702 = vpack.c.b16 %v6684, %v6683
        %v6703 = vpack.c.b16 %v6686, %v6685
        %v6704 = vpack.c.b16 %v6688, %v6687
        %v6737 = vunpack.c.l.b16 %v6609
        %v6738 = vunpack.c.l.b16 %v6610
        %v6739 = vunpack.c.l.b16 %v6611
        %v6740 = vunpack.c.l.b16 %v6612
        %v6741 = vunpack.c.l.b16 %v6613
        %v6742 = vunpack.c.l.b16 %v6614
        %v6743 = vunpack.c.l.b16 %v6615
        %v6744 = vunpack.c.l.b16 %v6616
        %v6745 = vunpack.c.l.b16 %v6617
        %v6746 = vunpack.c.l.b16 %v6618
        %v6747 = vunpack.c.l.b16 %v6619
        %v6748 = vunpack.c.l.b16 %v6620
        %v6749 = vunpack.c.l.b16 %v6621
        %v6750 = vunpack.c.l.b16 %v6622
        %v6751 = vunpack.c.l.b16 %v6623
        %v6752 = vunpack.c.l.b16 %v6624
        %v6753 = vpack.c.b16 %v6738, %v6737
        %v6754 = vpack.c.b16 %v6740, %v6739
        %v6755 = vpack.c.b16 %v6742, %v6741
        %v6756 = vpack.c.b16 %v6744, %v6743
        %v6757 = vpack.c.b16 %v6746, %v6745
        %v6758 = vpack.c.b16 %v6748, %v6747
        %v6759 = vpack.c.b16 %v6750, %v6749
        %v6760 = vpack.c.b16 %v6752, %v6751
        %6769 = vmatprep.subr.bf16.mxu0 0
        %6770 = vmatpush1.bf16.msra.mxu0 %v6760
        %6771 = vmatprep.subr.bf16.mxu0 0
        %6772 = vmatpush1.bf16.msra.mxu0 %v6759
        %6773 = vmatprep.subr.bf16.mxu0 0
        %6774 = vmatpush1.bf16.msra.mxu0 %v6758
        %6775 = vmatprep.subr.bf16.mxu0 0
        %6776 = vmatpush1.bf16.msra.mxu0 %v6757
        %6777 = vmatprep.subr.bf16.mxu0 0
        %6778 = vmatpush1.bf16.msra.mxu0 %v6756
        %6779 = vmatprep.subr.bf16.mxu0 0
        %6780 = vmatpush1.bf16.msra.mxu0 %v6755
        %6781 = vmatprep.subr.bf16.mxu0 0
        %6782 = vmatpush1.bf16.msra.mxu0 %v6754
        %6783 = vmatprep.subr.bf16.mxu0 0
        %6784 = vmatpush1.bf16.msra.mxu0 %v6753
        %6785 = vmatprep.subr.bf16.mxu0 0
        %6786 = vmatpush2.bf16.msra.mxu0 0
        %6787 = vmatprep.subr.bf16.mxu0 0
        %6788 = vmatpush2.bf16.msra.mxu0 0
        %6789 = vmatprep.subr.bf16.mxu0 0
        %6790 = vmatpush2.bf16.msra.mxu0 0
        %6791 = vmatprep.subr.bf16.mxu0 0
        %6792 = vmatpush2.bf16.msra.mxu0 0
        %6793 = vmatprep.subr.bf16.mxu0 0
        %6794 = vmatpush2.bf16.msra.mxu0 0
        %6795 = vmatprep.subr.bf16.mxu0 0
        %6796 = vmatpush2.bf16.msra.mxu0 0
        %6797 = vmatprep.subr.bf16.mxu0 0
        %6798 = vmatpush2.bf16.msra.mxu0 0
        %6799 = vmatprep.subr.bf16.mxu0 0
        %6800 = vmatpush2.bf16.msra.mxu0 0
        %6801 = vmatprep.mubr.bf16.mxu0 0
        %6802 = vmatmul.mubr.bf16.gmra.mxu0 %v6689
        %v6803 = vpop.f32.mrf.mxu0
        %v6804 = vadd.f32 0.0, %v6803
        %v6805 = vpop.f32.mrf.mxu0
        %v6806 = vpop.f32.mrf.mxu0
        %v6807 = vadd.f32 0.0, %v6806
        %v6808 = vpop.f32.mrf.mxu0
        %6809 = vmatprep.mubr.bf16.mxu0 0
        %6810 = vmatmul.mubr.bf16.gmra.mxu0 %v6690
        %v6811 = vpop.f32.mrf.mxu0
        %v6812 = vadd.f32 0.0, %v6811
        %v6813 = vpop.f32.mrf.mxu0
        %v6814 = vpop.f32.mrf.mxu0
        %v6815 = vadd.f32 0.0, %v6814
        %v6816 = vpop.f32.mrf.mxu0
        %6817 = vmatprep.mubr.bf16.mxu0 0
        %6818 = vmatmul.mubr.bf16.gmra.mxu0 %v6691
        %v6819 = vpop.f32.mrf.mxu0
        %v6820 = vadd.f32 0.0, %v6819
        %v6821 = vpop.f32.mrf.mxu0
        %v6822 = vpop.f32.mrf.mxu0
        %v6823 = vadd.f32 0.0, %v6822
        %v6824 = vpop.f32.mrf.mxu0
        %6825 = vmatprep.mubr.bf16.mxu0 0
        %6826 = vmatmul.mubr.bf16.gmra.mxu0 %v6692
        %v6827 = vpop.f32.mrf.mxu0
        %v6828 = vadd.f32 0.0, %v6827
        %v6829 = vpop.f32.mrf.mxu0
        %v6830 = vpop.f32.mrf.mxu0
        %v6831 = vadd.f32 0.0, %v6830
        %v6832 = vpop.f32.mrf.mxu0
        %6833 = vmatprep.mubr.bf16.mxu0 0
        %6834 = vmatmul.mubr.bf16.gmra.mxu0 %v6693
        %v6835 = vpop.f32.mrf.mxu0
        %v6836 = vadd.f32 0.0, %v6835
        %v6837 = vpop.f32.mrf.mxu0
        %v6838 = vpop.f32.mrf.mxu0
        %v6839 = vadd.f32 0.0, %v6838
        %v6840 = vpop.f32.mrf.mxu0
        %6841 = vmatprep.mubr.bf16.mxu0 0
        %6842 = vmatmul.mubr.bf16.gmra.mxu0 %v6694
        %v6843 = vpop.f32.mrf.mxu0
        %v6844 = vadd.f32 0.0, %v6843
        %v6845 = vpop.f32.mrf.mxu0
        %v6846 = vpop.f32.mrf.mxu0
        %v6847 = vadd.f32 0.0, %v6846
        %v6848 = vpop.f32.mrf.mxu0
        %6849 = vmatprep.mubr.bf16.mxu0 0
        %6850 = vmatmul.mubr.bf16.gmra.mxu0 %v6695
        %v6851 = vpop.f32.mrf.mxu0
        %v6852 = vadd.f32 0.0, %v6851
        %v6853 = vpop.f32.mrf.mxu0
        %v6854 = vpop.f32.mrf.mxu0
        %v6855 = vadd.f32 0.0, %v6854
        %v6856 = vpop.f32.mrf.mxu0
        %6857 = vmatprep.mubr.bf16.mxu0 0
        %6858 = vmatmul.mubr.bf16.gmra.mxu0 %v6696
        %v6859 = vpop.f32.mrf.mxu0
        %v6860 = vadd.f32 0.0, %v6859
        %v6861 = vpop.f32.mrf.mxu0
        %v6862 = vpop.f32.mrf.mxu0
        %v6863 = vadd.f32 0.0, %v6862
        %v6864 = vpop.f32.mrf.mxu0
        %6865 = vmatprep.mubr.bf16.mxu0 0
        %6866 = vmatmul.mubr.bf16.gmra.mxu0 %v6697
        %v6867 = vpop.f32.mrf.mxu0
        %v6868 = vadd.f32 0.0, %v6867
        %v6869 = vpop.f32.mrf.mxu0
        %v6870 = vpop.f32.mrf.mxu0
        %v6871 = vadd.f32 0.0, %v6870
        %v6872 = vpop.f32.mrf.mxu0
        %6873 = vmatprep.mubr.bf16.mxu0 0
        %6874 = vmatmul.mubr.bf16.gmra.mxu0 %v6698
        %v6875 = vpop.f32.mrf.mxu0
        %v6876 = vadd.f32 0.0, %v6875
        %v6877 = vpop.f32.mrf.mxu0
        %v6878 = vpop.f32.mrf.mxu0
        %v6879 = vadd.f32 0.0, %v6878
        %v6880 = vpop.f32.mrf.mxu0
        %6881 = vmatprep.mubr.bf16.mxu0 0
        %6882 = vmatmul.mubr.bf16.gmra.mxu0 %v6699
        %v6883 = vpop.f32.mrf.mxu0
        %v6884 = vadd.f32 0.0, %v6883
        %v6885 = vpop.f32.mrf.mxu0
        %v6886 = vpop.f32.mrf.mxu0
        %v6887 = vadd.f32 0.0, %v6886
        %v6888 = vpop.f32.mrf.mxu0
        %6889 = vmatprep.mubr.bf16.mxu0 0
        %6890 = vmatmul.mubr.bf16.gmra.mxu0 %v6700
        %v6891 = vpop.f32.mrf.mxu0
        %v6892 = vadd.f32 0.0, %v6891
        %v6893 = vpop.f32.mrf.mxu0
        %v6894 = vpop.f32.mrf.mxu0
        %v6895 = vadd.f32 0.0, %v6894
        %v6896 = vpop.f32.mrf.mxu0
        %6897 = vmatprep.mubr.bf16.mxu0 0
        %6898 = vmatmul.mubr.bf16.gmra.mxu0 %v6701
        %v6899 = vpop.f32.mrf.mxu0
        %v6900 = vadd.f32 0.0, %v6899
        %v6901 = vpop.f32.mrf.mxu0
        %v6902 = vpop.f32.mrf.mxu0
        %v6903 = vadd.f32 0.0, %v6902
        %v6904 = vpop.f32.mrf.mxu0
        %6905 = vmatprep.mubr.bf16.mxu0 0
        %6906 = vmatmul.mubr.bf16.gmra.mxu0 %v6702
        %v6907 = vpop.f32.mrf.mxu0
        %v6908 = vadd.f32 0.0, %v6907
        %v6909 = vpop.f32.mrf.mxu0
        %v6910 = vpop.f32.mrf.mxu0
        %v6911 = vadd.f32 0.0, %v6910
        %v6912 = vpop.f32.mrf.mxu0
        %6913 = vmatprep.mubr.bf16.mxu0 0
        %6914 = vmatmul.mubr.bf16.gmra.mxu0 %v6703
        %v6915 = vpop.f32.mrf.mxu0
        %v6916 = vadd.f32 0.0, %v6915
        %v6917 = vpop.f32.mrf.mxu0
        %v6918 = vpop.f32.mrf.mxu0
        %v6919 = vadd.f32 0.0, %v6918
        %v6920 = vpop.f32.mrf.mxu0
        %6921 = vmatprep.mubr.bf16.mxu0 0
        %6922 = vmatmul.mubr.bf16.gmra.mxu0 %v6704
        %v6923 = vpop.f32.mrf.mxu0
        %v6924 = vadd.f32 0.0, %v6923
        %v6925 = vpop.f32.mrf.mxu0
        %v6926 = vpop.f32.mrf.mxu0
        %v6927 = vadd.f32 0.0, %v6926
        %v6928 = vpop.f32.mrf.mxu0
        %6929 = vdwg.mxu0
        %v6930 = vsel %vm1163, %v6804, 0.0
        %v6931 = vsel %vm1164, %v6807, 0.0
        %v6932 = vsel %vm1165, %v6812, 0.0
        %v6933 = vsel %vm1166, %v6815, 0.0
        %v6934 = vsel %vm1167, %v6820, 0.0
        %v6935 = vsel %vm1168, %v6823, 0.0
        %v6936 = vsel %vm1169, %v6828, 0.0
        %v6937 = vsel %vm1170, %v6831, 0.0
        %v6938 = vsel %vm1171, %v6836, 0.0
        %v6939 = vsel %vm1172, %v6839, 0.0
        %v6940 = vsel %vm1173, %v6844, 0.0
        %v6941 = vsel %vm1174, %v6847, 0.0
        %v6942 = vsel %vm1175, %v6852, 0.0
        %v6943 = vsel %vm1176, %v6855, 0.0
        %v6944 = vsel %vm1177, %v6860, 0.0
        %v6945 = vsel %vm1178, %v6863, 0.0
        %v6946 = vsel %vm1179, %v6868, 0.0
        %v6947 = vsel %vm1180, %v6871, 0.0
        %v6948 = vsel %vm1181, %v6876, 0.0
        %v6949 = vsel %vm1182, %v6879, 0.0
        %v6950 = vsel %vm1183, %v6884, 0.0
        %v6951 = vsel %vm1184, %v6887, 0.0
        %v6952 = vsel %vm1185, %v6892, 0.0
        %v6953 = vsel %vm1186, %v6895, 0.0
        %v6954 = vsel %vm1187, %v6900, 0.0
        %v6955 = vsel %vm1188, %v6903, 0.0
        %v6956 = vsel %vm1189, %v6908, 0.0
        %v6957 = vsel %vm1190, %v6911, 0.0
        %v6958 = vsel %vm1191, %v6916, 0.0
        %v6959 = vsel %vm1192, %v6919, 0.0
        %v6960 = vsel %vm1193, %v6924, 0.0
        %v6961 = vsel %vm1194, %v6927, 0.0
        %v6962 = vadd.f32 %v6544, %v6930
        %v6963 = vadd.f32 %v6545, %v6931
        %v6964 = vadd.f32 %v6546, %v6932
        %v6965 = vadd.f32 %v6547, %v6933
        %v6966 = vadd.f32 %v6548, %v6934
        %v6967 = vadd.f32 %v6549, %v6935
        %v6968 = vadd.f32 %v6550, %v6936
        %v6969 = vadd.f32 %v6551, %v6937
        %v6970 = vadd.f32 %v6552, %v6938
        %v6971 = vadd.f32 %v6553, %v6939
        %v6972 = vadd.f32 %v6554, %v6940
        %v6973 = vadd.f32 %v6555, %v6941
        %v6974 = vadd.f32 %v6556, %v6942
        %v6975 = vadd.f32 %v6557, %v6943
        %v6976 = vadd.f32 %v6558, %v6944
        %v6977 = vadd.f32 %v6559, %v6945
        %v6978 = vadd.f32 %v6560, %v6946
        %v6979 = vadd.f32 %v6561, %v6947
        %v6980 = vadd.f32 %v6562, %v6948
        %v6981 = vadd.f32 %v6563, %v6949
        %v6982 = vadd.f32 %v6564, %v6950
        %v6983 = vadd.f32 %v6565, %v6951
        %v6984 = vadd.f32 %v6566, %v6952
        %v6985 = vadd.f32 %v6567, %v6953
        %v6986 = vadd.f32 %v6568, %v6954
        %v6987 = vadd.f32 %v6569, %v6955
        %v6988 = vadd.f32 %v6570, %v6956
        %v6989 = vadd.f32 %v6571, %v6957
        %v6990 = vadd.f32 %v6572, %v6958
        %v6991 = vadd.f32 %v6573, %v6959
        %v6992 = vadd.f32 %v6574, %v6960
        %v6993 = vadd.f32 %v6575, %v6961
        %v6994 = vld [vmem:[#allocation3 + $0x8] sm:$0xf]
        %v6995 = vld [vmem:[#allocation3 + $0xc] sm:$0xf]
        %v6996 = vld [vmem:[#allocation3 + $0x10] sm:$0xf]
        %v6997 = vld [vmem:[#allocation3 + $0x14] sm:$0xf]
        %v6998 = vld [vmem:[#allocation3 + $0x18] sm:$0xf]
        %v6999 = vld [vmem:[#allocation3 + $0x1c] sm:$0xf]
        %v7000 = vld [vmem:[#allocation3 + $0x20] sm:$0xf]
        %v7001 = vld [vmem:[#allocation3 + $0x24] sm:$0xf]
        %v7002 = vld [vmem:[#allocation3 + $0x28] sm:$0xf]
        %v7003 = vld [vmem:[#allocation3 + $0x2c] sm:$0xf]
        %v7004 = vld [vmem:[#allocation3 + $0x30] sm:$0xf]
        %v7005 = vld [vmem:[#allocation3 + $0x34] sm:$0xf]
        %v7006 = vld [vmem:[#allocation3 + $0x38] sm:$0xf]
        %v7007 = vld [vmem:[#allocation3 + $0x3c] sm:$0xf]
        %v7008 = vld [vmem:[#allocation3 + $0x40] sm:$0xf]
        %v7009 = vld [vmem:[#allocation3 + $0x44] sm:$0xf]
        %v7010 = vld [vmem:[#allocation3 + $0x48] sm:$0xf]
        %v7011 = vld [vmem:[#allocation3 + $0x4c] sm:$0xf]
        %v7012 = vld [vmem:[#allocation3 + $0x50] sm:$0xf]
        %v7013 = vld [vmem:[#allocation3 + $0x54] sm:$0xf]
        %v7014 = vld [vmem:[#allocation3 + $0x58] sm:$0xf]
        %v7015 = vld [vmem:[#allocation3 + $0x5c] sm:$0xf]
        %v7016 = vld [vmem:[#allocation3 + $0x60] sm:$0xf]
        %v7017 = vld [vmem:[#allocation3 + $0x64] sm:$0xf]
        %v7018 = vld [vmem:[#allocation3 + $0x68] sm:$0xf]
        %v7019 = vld [vmem:[#allocation3 + $0x6c] sm:$0xf]
        %v7020 = vld [vmem:[#allocation3 + $0x70] sm:$0xf]
        %v7021 = vld [vmem:[#allocation3 + $0x74] sm:$0xf]
        %v7022 = vld [vmem:[#allocation3 + $0x78] sm:$0xf]
        %v7023 = vld [vmem:[#allocation3 + $0x7c] sm:$0xf]
        %v7024 = vld [vmem:[#allocation3 + $0x80] sm:$0xf]
        %v7025 = vld [vmem:[#allocation3 + $0x84] sm:$0xf]
        %v7026 = vld [vmem:[#allocation3 + $0x88] sm:$0x1]
        %s7027 = scalar_lea.vmem [#allocation4], 256
        %v7028 = vld [vmem:[%s7027] sm:$0xf]
        %v7029 = vld [vmem:[%s7027 + $0x4] sm:$0xf]
        %v7030 = vld [vmem:[%s7027 + $0x8] sm:$0xf]
        %v7031 = vld [vmem:[%s7027 + $0xc] sm:$0xf]
        %v7032 = vld [vmem:[%s7027 + $0x10] sm:$0xf]
        %v7033 = vld [vmem:[%s7027 + $0x14] sm:$0xf]
        %v7034 = vld [vmem:[%s7027 + $0x18] sm:$0xf]
        %v7035 = vld [vmem:[%s7027 + $0x1c] sm:$0xf]
        %v7036 = vld [vmem:[%s7027 + $0x20] sm:$0xf]
        %v7037 = vld [vmem:[%s7027 + $0x24] sm:$0xf]
        %v7038 = vld [vmem:[%s7027 + $0x28] sm:$0xf]
        %v7039 = vld [vmem:[%s7027 + $0x2c] sm:$0xf]
        %v7040 = vld [vmem:[%s7027 + $0x30] sm:$0xf]
        %v7041 = vld [vmem:[%s7027 + $0x34] sm:$0xf]
        %v7042 = vld [vmem:[%s7027 + $0x38] sm:$0xf]
        %v7043 = vld [vmem:[%s7027 + $0x3c] sm:$0xf]
        %v7077 = vunpack.c.l.b16 %v6994
        %v7078 = vunpack.c.l.b16 %v6995
        %v7079 = vunpack.c.l.b16 %v6996
        %v7080 = vunpack.c.l.b16 %v6997
        %v7081 = vunpack.c.l.b16 %v6998
        %v7082 = vunpack.c.l.b16 %v6999
        %v7083 = vunpack.c.l.b16 %v7000
        %v7084 = vunpack.c.l.b16 %v7001
        %v7085 = vunpack.c.l.b16 %v7002
        %v7086 = vunpack.c.l.b16 %v7003
        %v7087 = vunpack.c.l.b16 %v7004
        %v7088 = vunpack.c.l.b16 %v7005
        %v7089 = vunpack.c.l.b16 %v7006
        %v7090 = vunpack.c.l.b16 %v7007
        %v7091 = vunpack.c.l.b16 %v7008
        %v7092 = vunpack.c.l.b16 %v7009
        %v7093 = vunpack.c.l.b16 %v7010
        %v7094 = vunpack.c.l.b16 %v7011
        %v7095 = vunpack.c.l.b16 %v7012
        %v7096 = vunpack.c.l.b16 %v7013
        %v7097 = vunpack.c.l.b16 %v7014
        %v7098 = vunpack.c.l.b16 %v7015
        %v7099 = vunpack.c.l.b16 %v7016
        %v7100 = vunpack.c.l.b16 %v7017
        %v7101 = vunpack.c.l.b16 %v7018
        %v7102 = vunpack.c.l.b16 %v7019
        %v7103 = vunpack.c.l.b16 %v7020
        %v7104 = vunpack.c.l.b16 %v7021
        %v7105 = vunpack.c.l.b16 %v7022
        %v7106 = vunpack.c.l.b16 %v7023
        %v7107 = vunpack.c.l.b16 %v7024
        %v7108 = vunpack.c.l.b16 %v7025
        %v7109 = vunpack.c.l.b16 %v7026
        %v7110 = vpack.c.b16 %v7078, %v7077
        %v7111 = vpack.c.b16 %v7080, %v7079
        %v7112 = vpack.c.b16 %v7082, %v7081
        %v7113 = vpack.c.b16 %v7084, %v7083
        %v7114 = vpack.c.b16 %v7086, %v7085
        %v7115 = vpack.c.b16 %v7088, %v7087
        %v7116 = vpack.c.b16 %v7090, %v7089
        %v7117 = vpack.c.b16 %v7092, %v7091
        %v7118 = vpack.c.b16 %v7094, %v7093
        %v7119 = vpack.c.b16 %v7096, %v7095
        %v7120 = vpack.c.b16 %v7098, %v7097
        %v7121 = vpack.c.b16 %v7100, %v7099
        %v7122 = vpack.c.b16 %v7102, %v7101
        %v7123 = vpack.c.b16 %v7104, %v7103
        %v7124 = vpack.c.b16 %v7106, %v7105
        %v7125 = vpack.c.b16 %v7108, %v7107
        %v7126 = vpack.c.b16 %v7109, %v7109
        %v7128 = vshrl.u32 %v7110, 16
        %v7130 = vshll.u32 %v7110, 16
        %v7132 = vrot.slane %v7130, 1
        %v7133 = vor.u32 %v7128, %v7132
        %v7135 = vshll.u32 %v7111, 16
        %v7137 = vrot.slane %v7135, 1
        %v7138 = vsel %vm1384, %v7133, %v7137
        %v7139 = vshrl.u32 %v7111, 16
        %v7141 = vor.u32 %v7139, %v7137
        %v7143 = vshll.u32 %v7112, 16
        %v7145 = vrot.slane %v7143, 1
        %v7146 = vsel %vm1384, %v7141, %v7145
        %v7147 = vshrl.u32 %v7112, 16
        %v7149 = vor.u32 %v7147, %v7145
        %v7151 = vshll.u32 %v7113, 16
        %v7153 = vrot.slane %v7151, 1
        %v7154 = vsel %vm1384, %v7149, %v7153
        %v7155 = vshrl.u32 %v7113, 16
        %v7157 = vor.u32 %v7155, %v7153
        %v7159 = vshll.u32 %v7114, 16
        %v7161 = vrot.slane %v7159, 1
        %v7162 = vsel %vm1384, %v7157, %v7161
        %v7163 = vshrl.u32 %v7114, 16
        %v7165 = vor.u32 %v7163, %v7161
        %v7167 = vshll.u32 %v7115, 16
        %v7169 = vrot.slane %v7167, 1
        %v7170 = vsel %vm1384, %v7165, %v7169
        %v7171 = vshrl.u32 %v7115, 16
        %v7173 = vor.u32 %v7171, %v7169
        %v7175 = vshll.u32 %v7116, 16
        %v7177 = vrot.slane %v7175, 1
        %v7178 = vsel %vm1384, %v7173, %v7177
        %v7179 = vshrl.u32 %v7116, 16
        %v7181 = vor.u32 %v7179, %v7177
        %v7183 = vshll.u32 %v7117, 16
        %v7185 = vrot.slane %v7183, 1
        %v7186 = vsel %vm1384, %v7181, %v7185
        %v7187 = vshrl.u32 %v7117, 16
        %v7189 = vor.u32 %v7187, %v7185
        %v7191 = vshll.u32 %v7118, 16
        %v7193 = vrot.slane %v7191, 1
        %v7194 = vsel %vm1384, %v7189, %v7193
        %v7195 = vshrl.u32 %v7118, 16
        %v7197 = vor.u32 %v7195, %v7193
        %v7199 = vshll.u32 %v7119, 16
        %v7201 = vrot.slane %v7199, 1
        %v7202 = vsel %vm1384, %v7197, %v7201
        %v7203 = vshrl.u32 %v7119, 16
        %v7205 = vor.u32 %v7203, %v7201
        %v7207 = vshll.u32 %v7120, 16
        %v7209 = vrot.slane %v7207, 1
        %v7210 = vsel %vm1384, %v7205, %v7209
        %v7211 = vshrl.u32 %v7120, 16
        %v7213 = vor.u32 %v7211, %v7209
        %v7215 = vshll.u32 %v7121, 16
        %v7217 = vrot.slane %v7215, 1
        %v7218 = vsel %vm1384, %v7213, %v7217
        %v7219 = vshrl.u32 %v7121, 16
        %v7221 = vor.u32 %v7219, %v7217
        %v7223 = vshll.u32 %v7122, 16
        %v7225 = vrot.slane %v7223, 1
        %v7226 = vsel %vm1384, %v7221, %v7225
        %v7227 = vshrl.u32 %v7122, 16
        %v7229 = vor.u32 %v7227, %v7225
        %v7231 = vshll.u32 %v7123, 16
        %v7233 = vrot.slane %v7231, 1
        %v7234 = vsel %vm1384, %v7229, %v7233
        %v7235 = vshrl.u32 %v7123, 16
        %v7237 = vor.u32 %v7235, %v7233
        %v7239 = vshll.u32 %v7124, 16
        %v7241 = vrot.slane %v7239, 1
        %v7242 = vsel %vm1384, %v7237, %v7241
        %v7243 = vshrl.u32 %v7124, 16
        %v7245 = vor.u32 %v7243, %v7241
        %v7247 = vshll.u32 %v7125, 16
        %v7249 = vrot.slane %v7247, 1
        %v7250 = vsel %vm1384, %v7245, %v7249
        %v7251 = vshrl.u32 %v7125, 16
        %v7253 = vor.u32 %v7251, %v7249
        %v7255 = vshll.u32 %v7126, 16
        %v7257 = vrot.slane %v7255, 1
        %v7258 = vsel %vm1384, %v7253, %v7257
        %v7291 = vunpack.c.l.b16 %v7028
        %v7292 = vunpack.c.l.b16 %v7029
        %v7293 = vunpack.c.l.b16 %v7030
        %v7294 = vunpack.c.l.b16 %v7031
        %v7295 = vunpack.c.l.b16 %v7032
        %v7296 = vunpack.c.l.b16 %v7033
        %v7297 = vunpack.c.l.b16 %v7034
        %v7298 = vunpack.c.l.b16 %v7035
        %v7299 = vunpack.c.l.b16 %v7036
        %v7300 = vunpack.c.l.b16 %v7037
        %v7301 = vunpack.c.l.b16 %v7038
        %v7302 = vunpack.c.l.b16 %v7039
        %v7303 = vunpack.c.l.b16 %v7040
        %v7304 = vunpack.c.l.b16 %v7041
        %v7305 = vunpack.c.l.b16 %v7042
        %v7306 = vunpack.c.l.b16 %v7043
        %v7307 = vpack.c.b16 %v7292, %v7291
        %v7308 = vpack.c.b16 %v7294, %v7293
        %v7309 = vpack.c.b16 %v7296, %v7295
        %v7310 = vpack.c.b16 %v7298, %v7297
        %v7311 = vpack.c.b16 %v7300, %v7299
        %v7312 = vpack.c.b16 %v7302, %v7301
        %v7313 = vpack.c.b16 %v7304, %v7303
        %v7314 = vpack.c.b16 %v7306, %v7305
        %7323 = vmatprep.subr.bf16.mxu0 0
        %7324 = vmatpush1.bf16.msra.mxu0 %v7314
        %7325 = vmatprep.subr.bf16.mxu0 0
        %7326 = vmatpush1.bf16.msra.mxu0 %v7313
        %7327 = vmatprep.subr.bf16.mxu0 0
        %7328 = vmatpush1.bf16.msra.mxu0 %v7312
        %7329 = vmatprep.subr.bf16.mxu0 0
        %7330 = vmatpush1.bf16.msra.mxu0 %v7311
        %7331 = vmatprep.subr.bf16.mxu0 0
        %7332 = vmatpush1.bf16.msra.mxu0 %v7310
        %7333 = vmatprep.subr.bf16.mxu0 0
        %7334 = vmatpush1.bf16.msra.mxu0 %v7309
        %7335 = vmatprep.subr.bf16.mxu0 0
        %7336 = vmatpush1.bf16.msra.mxu0 %v7308
        %7337 = vmatprep.subr.bf16.mxu0 0
        %7338 = vmatpush1.bf16.msra.mxu0 %v7307
        %7339 = vmatprep.subr.bf16.mxu0 0
        %7340 = vmatpush2.bf16.msra.mxu0 0
        %7341 = vmatprep.subr.bf16.mxu0 0
        %7342 = vmatpush2.bf16.msra.mxu0 0
        %7343 = vmatprep.subr.bf16.mxu0 0
        %7344 = vmatpush2.bf16.msra.mxu0 0
        %7345 = vmatprep.subr.bf16.mxu0 0
        %7346 = vmatpush2.bf16.msra.mxu0 0
        %7347 = vmatprep.subr.bf16.mxu0 0
        %7348 = vmatpush2.bf16.msra.mxu0 0
        %7349 = vmatprep.subr.bf16.mxu0 0
        %7350 = vmatpush2.bf16.msra.mxu0 0
        %7351 = vmatprep.subr.bf16.mxu0 0
        %7352 = vmatpush2.bf16.msra.mxu0 0
        %7353 = vmatprep.subr.bf16.mxu0 0
        %7354 = vmatpush2.bf16.msra.mxu0 0
        %7355 = vmatprep.mubr.bf16.mxu0 0
        %7356 = vmatmul.mubr.bf16.gmra.mxu0 %v7138
        %v7357 = vpop.f32.mrf.mxu0
        %v7358 = vadd.f32 0.0, %v7357
        %v7359 = vpop.f32.mrf.mxu0
        %v7360 = vpop.f32.mrf.mxu0
        %v7361 = vadd.f32 0.0, %v7360
        %v7362 = vpop.f32.mrf.mxu0
        %7363 = vmatprep.mubr.bf16.mxu0 0
        %7364 = vmatmul.mubr.bf16.gmra.mxu0 %v7146
        %v7365 = vpop.f32.mrf.mxu0
        %v7366 = vadd.f32 0.0, %v7365
        %v7367 = vpop.f32.mrf.mxu0
        %v7368 = vpop.f32.mrf.mxu0
        %v7369 = vadd.f32 0.0, %v7368
        %v7370 = vpop.f32.mrf.mxu0
        %7371 = vmatprep.mubr.bf16.mxu0 0
        %7372 = vmatmul.mubr.bf16.gmra.mxu0 %v7154
        %v7373 = vpop.f32.mrf.mxu0
        %v7374 = vadd.f32 0.0, %v7373
        %v7375 = vpop.f32.mrf.mxu0
        %v7376 = vpop.f32.mrf.mxu0
        %v7377 = vadd.f32 0.0, %v7376
        %v7378 = vpop.f32.mrf.mxu0
        %7379 = vmatprep.mubr.bf16.mxu0 0
        %7380 = vmatmul.mubr.bf16.gmra.mxu0 %v7162
        %v7381 = vpop.f32.mrf.mxu0
        %v7382 = vadd.f32 0.0, %v7381
        %v7383 = vpop.f32.mrf.mxu0
        %v7384 = vpop.f32.mrf.mxu0
        %v7385 = vadd.f32 0.0, %v7384
        %v7386 = vpop.f32.mrf.mxu0
        %7387 = vmatprep.mubr.bf16.mxu0 0
        %7388 = vmatmul.mubr.bf16.gmra.mxu0 %v7170
        %v7389 = vpop.f32.mrf.mxu0
        %v7390 = vadd.f32 0.0, %v7389
        %v7391 = vpop.f32.mrf.mxu0
        %v7392 = vpop.f32.mrf.mxu0
        %v7393 = vadd.f32 0.0, %v7392
        %v7394 = vpop.f32.mrf.mxu0
        %7395 = vmatprep.mubr.bf16.mxu0 0
        %7396 = vmatmul.mubr.bf16.gmra.mxu0 %v7178
        %v7397 = vpop.f32.mrf.mxu0
        %v7398 = vadd.f32 0.0, %v7397
        %v7399 = vpop.f32.mrf.mxu0
        %v7400 = vpop.f32.mrf.mxu0
        %v7401 = vadd.f32 0.0, %v7400
        %v7402 = vpop.f32.mrf.mxu0
        %7403 = vmatprep.mubr.bf16.mxu0 0
        %7404 = vmatmul.mubr.bf16.gmra.mxu0 %v7186
        %v7405 = vpop.f32.mrf.mxu0
        %v7406 = vadd.f32 0.0, %v7405
        %v7407 = vpop.f32.mrf.mxu0
        %v7408 = vpop.f32.mrf.mxu0
        %v7409 = vadd.f32 0.0, %v7408
        %v7410 = vpop.f32.mrf.mxu0
        %7411 = vmatprep.mubr.bf16.mxu0 0
        %7412 = vmatmul.mubr.bf16.gmra.mxu0 %v7194
        %v7413 = vpop.f32.mrf.mxu0
        %v7414 = vadd.f32 0.0, %v7413
        %v7415 = vpop.f32.mrf.mxu0
        %v7416 = vpop.f32.mrf.mxu0
        %v7417 = vadd.f32 0.0, %v7416
        %v7418 = vpop.f32.mrf.mxu0
        %7419 = vmatprep.mubr.bf16.mxu0 0
        %7420 = vmatmul.mubr.bf16.gmra.mxu0 %v7202
        %v7421 = vpop.f32.mrf.mxu0
        %v7422 = vadd.f32 0.0, %v7421
        %v7423 = vpop.f32.mrf.mxu0
        %v7424 = vpop.f32.mrf.mxu0
        %v7425 = vadd.f32 0.0, %v7424
        %v7426 = vpop.f32.mrf.mxu0
        %7427 = vmatprep.mubr.bf16.mxu0 0
        %7428 = vmatmul.mubr.bf16.gmra.mxu0 %v7210
        %v7429 = vpop.f32.mrf.mxu0
        %v7430 = vadd.f32 0.0, %v7429
        %v7431 = vpop.f32.mrf.mxu0
        %v7432 = vpop.f32.mrf.mxu0
        %v7433 = vadd.f32 0.0, %v7432
        %v7434 = vpop.f32.mrf.mxu0
        %7435 = vmatprep.mubr.bf16.mxu0 0
        %7436 = vmatmul.mubr.bf16.gmra.mxu0 %v7218
        %v7437 = vpop.f32.mrf.mxu0
        %v7438 = vadd.f32 0.0, %v7437
        %v7439 = vpop.f32.mrf.mxu0
        %v7440 = vpop.f32.mrf.mxu0
        %v7441 = vadd.f32 0.0, %v7440
        %v7442 = vpop.f32.mrf.mxu0
        %7443 = vmatprep.mubr.bf16.mxu0 0
        %7444 = vmatmul.mubr.bf16.gmra.mxu0 %v7226
        %v7445 = vpop.f32.mrf.mxu0
        %v7446 = vadd.f32 0.0, %v7445
        %v7447 = vpop.f32.mrf.mxu0
        %v7448 = vpop.f32.mrf.mxu0
        %v7449 = vadd.f32 0.0, %v7448
        %v7450 = vpop.f32.mrf.mxu0
        %7451 = vmatprep.mubr.bf16.mxu0 0
        %7452 = vmatmul.mubr.bf16.gmra.mxu0 %v7234
        %v7453 = vpop.f32.mrf.mxu0
        %v7454 = vadd.f32 0.0, %v7453
        %v7455 = vpop.f32.mrf.mxu0
        %v7456 = vpop.f32.mrf.mxu0
        %v7457 = vadd.f32 0.0, %v7456
        %v7458 = vpop.f32.mrf.mxu0
        %7459 = vmatprep.mubr.bf16.mxu0 0
        %7460 = vmatmul.mubr.bf16.gmra.mxu0 %v7242
        %v7461 = vpop.f32.mrf.mxu0
        %v7462 = vadd.f32 0.0, %v7461
        %v7463 = vpop.f32.mrf.mxu0
        %v7464 = vpop.f32.mrf.mxu0
        %v7465 = vadd.f32 0.0, %v7464
        %v7466 = vpop.f32.mrf.mxu0
        %7467 = vmatprep.mubr.bf16.mxu0 0
        %7468 = vmatmul.mubr.bf16.gmra.mxu0 %v7250
        %v7469 = vpop.f32.mrf.mxu0
        %v7470 = vadd.f32 0.0, %v7469
        %v7471 = vpop.f32.mrf.mxu0
        %v7472 = vpop.f32.mrf.mxu0
        %v7473 = vadd.f32 0.0, %v7472
        %v7474 = vpop.f32.mrf.mxu0
        %7475 = vmatprep.mubr.bf16.mxu0 0
        %7476 = vmatmul.mubr.bf16.gmra.mxu0 %v7258
        %v7477 = vpop.f32.mrf.mxu0
        %v7478 = vadd.f32 0.0, %v7477
        %v7479 = vpop.f32.mrf.mxu0
        %v7480 = vpop.f32.mrf.mxu0
        %v7481 = vadd.f32 0.0, %v7480
        %v7482 = vpop.f32.mrf.mxu0
        %7483 = vdwg.mxu0
        %v7484 = vadd.f32 %v6962, %v7358
        %v7485 = vadd.f32 %v6963, %v7361
        %v7486 = vadd.f32 %v6964, %v7366
        %v7487 = vadd.f32 %v6965, %v7369
        %v7488 = vadd.f32 %v6966, %v7374
        %v7489 = vadd.f32 %v6967, %v7377
        %v7490 = vadd.f32 %v6968, %v7382
        %v7491 = vadd.f32 %v6969, %v7385
        %v7492 = vadd.f32 %v6970, %v7390
        %v7493 = vadd.f32 %v6971, %v7393
        %v7494 = vadd.f32 %v6972, %v7398
        %v7495 = vadd.f32 %v6973, %v7401
        %v7496 = vadd.f32 %v6974, %v7406
        %v7497 = vadd.f32 %v6975, %v7409
        %v7498 = vadd.f32 %v6976, %v7414
        %v7499 = vadd.f32 %v6977, %v7417
        %v7500 = vadd.f32 %v6978, %v7422
        %v7501 = vadd.f32 %v6979, %v7425
        %v7502 = vadd.f32 %v6980, %v7430
        %v7503 = vadd.f32 %v6981, %v7433
        %v7504 = vadd.f32 %v6982, %v7438
        %v7505 = vadd.f32 %v6983, %v7441
        %v7506 = vadd.f32 %v6984, %v7446
        %v7507 = vadd.f32 %v6985, %v7449
        %v7508 = vadd.f32 %v6986, %v7454
        %v7509 = vadd.f32 %v6987, %v7457
        %v7510 = vadd.f32 %v6988, %v7462
        %v7511 = vadd.f32 %v6989, %v7465
        %v7512 = vadd.f32 %v6990, %v7470
        %v7513 = vadd.f32 %v6991, %v7473
        %v7514 = vadd.f32 %v6992, %v7478
        %v7515 = vadd.f32 %v6993, %v7481
        %v7516 = vld [vmem:[#allocation3 + $0x8] sm:$0xe]
        %s7517 = scalar_lea.vmem [#allocation4], 320
        %v7518 = vld [vmem:[%s7517] sm:$0xf]
        %v7519 = vld [vmem:[%s7517 + $0x4] sm:$0xf]
        %v7520 = vld [vmem:[%s7517 + $0x8] sm:$0xf]
        %v7521 = vld [vmem:[%s7517 + $0xc] sm:$0xf]
        %v7522 = vld [vmem:[%s7517 + $0x10] sm:$0xf]
        %v7523 = vld [vmem:[%s7517 + $0x14] sm:$0xf]
        %v7524 = vld [vmem:[%s7517 + $0x18] sm:$0xf]
        %v7525 = vld [vmem:[%s7517 + $0x1c] sm:$0xf]
        %v7526 = vld [vmem:[%s7517 + $0x20] sm:$0xf]
        %v7527 = vld [vmem:[%s7517 + $0x24] sm:$0xf]
        %v7528 = vld [vmem:[%s7517 + $0x28] sm:$0xf]
        %v7529 = vld [vmem:[%s7517 + $0x2c] sm:$0xf]
        %v7530 = vld [vmem:[%s7517 + $0x30] sm:$0xf]
        %v7531 = vld [vmem:[%s7517 + $0x34] sm:$0xf]
        %v7532 = vld [vmem:[%s7517 + $0x38] sm:$0xf]
        %v7533 = vld [vmem:[%s7517 + $0x3c] sm:$0xf]
        %v7535 = vunpack.c.l.b16 %v7516
        %v7536 = vpack.c.b16 %v7078, %v7535
        %v7537 = vrot.slane %v7536, 1
        %v7538 = vrot.slane %v7111, 1
        %v7539 = vsel %vm1795, %v7537, %v7538
        %v7540 = vrot.slane %v7112, 1
        %v7541 = vsel %vm1795, %v7538, %v7540
        %v7542 = vrot.slane %v7113, 1
        %v7543 = vsel %vm1795, %v7540, %v7542
        %v7544 = vrot.slane %v7114, 1
        %v7545 = vsel %vm1795, %v7542, %v7544
        %v7546 = vrot.slane %v7115, 1
        %v7547 = vsel %vm1795, %v7544, %v7546
        %v7548 = vrot.slane %v7116, 1
        %v7549 = vsel %vm1795, %v7546, %v7548
        %v7550 = vrot.slane %v7117, 1
        %v7551 = vsel %vm1795, %v7548, %v7550
        %v7552 = vrot.slane %v7118, 1
        %v7553 = vsel %vm1795, %v7550, %v7552
        %v7554 = vrot.slane %v7119, 1
        %v7555 = vsel %vm1795, %v7552, %v7554
        %v7556 = vrot.slane %v7120, 1
        %v7557 = vsel %vm1795, %v7554, %v7556
        %v7558 = vrot.slane %v7121, 1
        %v7559 = vsel %vm1795, %v7556, %v7558
        %v7560 = vrot.slane %v7122, 1
        %v7561 = vsel %vm1795, %v7558, %v7560
        %v7562 = vrot.slane %v7123, 1
        %v7563 = vsel %vm1795, %v7560, %v7562
        %v7564 = vrot.slane %v7124, 1
        %v7565 = vsel %vm1795, %v7562, %v7564
        %v7566 = vrot.slane %v7125, 1
        %v7567 = vsel %vm1795, %v7564, %v7566
        %v7568 = vrot.slane %v7126, 1
        %v7569 = vsel %vm1795, %v7566, %v7568
        %v7602 = vunpack.c.l.b16 %v7518
        %v7603 = vunpack.c.l.b16 %v7519
        %v7604 = vunpack.c.l.b16 %v7520
        %v7605 = vunpack.c.l.b16 %v7521
        %v7606 = vunpack.c.l.b16 %v7522
        %v7607 = vunpack.c.l.b16 %v7523
        %v7608 = vunpack.c.l.b16 %v7524
        %v7609 = vunpack.c.l.b16 %v7525
        %v7610 = vunpack.c.l.b16 %v7526
        %v7611 = vunpack.c.l.b16 %v7527
        %v7612 = vunpack.c.l.b16 %v7528
        %v7613 = vunpack.c.l.b16 %v7529
        %v7614 = vunpack.c.l.b16 %v7530
        %v7615 = vunpack.c.l.b16 %v7531
        %v7616 = vunpack.c.l.b16 %v7532
        %v7617 = vunpack.c.l.b16 %v7533
        %v7618 = vpack.c.b16 %v7603, %v7602
        %v7619 = vpack.c.b16 %v7605, %v7604
        %v7620 = vpack.c.b16 %v7607, %v7606
        %v7621 = vpack.c.b16 %v7609, %v7608
        %v7622 = vpack.c.b16 %v7611, %v7610
        %v7623 = vpack.c.b16 %v7613, %v7612
        %v7624 = vpack.c.b16 %v7615, %v7614
        %v7625 = vpack.c.b16 %v7617, %v7616
        %7634 = vmatprep.subr.bf16.mxu0 0
        %7635 = vmatpush1.bf16.msra.mxu0 %v7625
        %7636 = vmatprep.subr.bf16.mxu0 0
        %7637 = vmatpush1.bf16.msra.mxu0 %v7624
        %7638 = vmatprep.subr.bf16.mxu0 0
        %7639 = vmatpush1.bf16.msra.mxu0 %v7623
        %7640 = vmatprep.subr.bf16.mxu0 0
        %7641 = vmatpush1.bf16.msra.mxu0 %v7622
        %7642 = vmatprep.subr.bf16.mxu0 0
        %7643 = vmatpush1.bf16.msra.mxu0 %v7621
        %7644 = vmatprep.subr.bf16.mxu0 0
        %7645 = vmatpush1.bf16.msra.mxu0 %v7620
        %7646 = vmatprep.subr.bf16.mxu0 0
        %7647 = vmatpush1.bf16.msra.mxu0 %v7619
        %7648 = vmatprep.subr.bf16.mxu0 0
        %7649 = vmatpush1.bf16.msra.mxu0 %v7618
        %7650 = vmatprep.subr.bf16.mxu0 0
        %7651 = vmatpush2.bf16.msra.mxu0 0
        %7652 = vmatprep.subr.bf16.mxu0 0
        %7653 = vmatpush2.bf16.msra.mxu0 0
        %7654 = vmatprep.subr.bf16.mxu0 0
        %7655 = vmatpush2.bf16.msra.mxu0 0
        %7656 = vmatprep.subr.bf16.mxu0 0
        %7657 = vmatpush2.bf16.msra.mxu0 0
        %7658 = vmatprep.subr.bf16.mxu0 0
        %7659 = vmatpush2.bf16.msra.mxu0 0
        %7660 = vmatprep.subr.bf16.mxu0 0
        %7661 = vmatpush2.bf16.msra.mxu0 0
        %7662 = vmatprep.subr.bf16.mxu0 0
        %7663 = vmatpush2.bf16.msra.mxu0 0
        %7664 = vmatprep.subr.bf16.mxu0 0
        %7665 = vmatpush2.bf16.msra.mxu0 0
        %7666 = vmatprep.mubr.bf16.mxu0 0
        %7667 = vmatmul.mubr.bf16.gmra.mxu0 %v7539
        %v7668 = vpop.f32.mrf.mxu0
        %v7669 = vadd.f32 0.0, %v7668
        %v7670 = vpop.f32.mrf.mxu0
        %v7671 = vpop.f32.mrf.mxu0
        %v7672 = vadd.f32 0.0, %v7671
        %v7673 = vpop.f32.mrf.mxu0
        %7674 = vmatprep.mubr.bf16.mxu0 0
        %7675 = vmatmul.mubr.bf16.gmra.mxu0 %v7541
        %v7676 = vpop.f32.mrf.mxu0
        %v7677 = vadd.f32 0.0, %v7676
        %v7678 = vpop.f32.mrf.mxu0
        %v7679 = vpop.f32.mrf.mxu0
        %v7680 = vadd.f32 0.0, %v7679
        %v7681 = vpop.f32.mrf.mxu0
        %7682 = vmatprep.mubr.bf16.mxu0 0
        %7683 = vmatmul.mubr.bf16.gmra.mxu0 %v7543
        %v7684 = vpop.f32.mrf.mxu0
        %v7685 = vadd.f32 0.0, %v7684
        %v7686 = vpop.f32.mrf.mxu0
        %v7687 = vpop.f32.mrf.mxu0
        %v7688 = vadd.f32 0.0, %v7687
        %v7689 = vpop.f32.mrf.mxu0
        %7690 = vmatprep.mubr.bf16.mxu0 0
        %7691 = vmatmul.mubr.bf16.gmra.mxu0 %v7545
        %v7692 = vpop.f32.mrf.mxu0
        %v7693 = vadd.f32 0.0, %v7692
        %v7694 = vpop.f32.mrf.mxu0
        %v7695 = vpop.f32.mrf.mxu0
        %v7696 = vadd.f32 0.0, %v7695
        %v7697 = vpop.f32.mrf.mxu0
        %7698 = vmatprep.mubr.bf16.mxu0 0
        %7699 = vmatmul.mubr.bf16.gmra.mxu0 %v7547
        %v7700 = vpop.f32.mrf.mxu0
        %v7701 = vadd.f32 0.0, %v7700
        %v7702 = vpop.f32.mrf.mxu0
        %v7703 = vpop.f32.mrf.mxu0
        %v7704 = vadd.f32 0.0, %v7703
        %v7705 = vpop.f32.mrf.mxu0
        %7706 = vmatprep.mubr.bf16.mxu0 0
        %7707 = vmatmul.mubr.bf16.gmra.mxu0 %v7549
        %v7708 = vpop.f32.mrf.mxu0
        %v7709 = vadd.f32 0.0, %v7708
        %v7710 = vpop.f32.mrf.mxu0
        %v7711 = vpop.f32.mrf.mxu0
        %v7712 = vadd.f32 0.0, %v7711
        %v7713 = vpop.f32.mrf.mxu0
        %7714 = vmatprep.mubr.bf16.mxu0 0
        %7715 = vmatmul.mubr.bf16.gmra.mxu0 %v7551
        %v7716 = vpop.f32.mrf.mxu0
        %v7717 = vadd.f32 0.0, %v7716
        %v7718 = vpop.f32.mrf.mxu0
        %v7719 = vpop.f32.mrf.mxu0
        %v7720 = vadd.f32 0.0, %v7719
        %v7721 = vpop.f32.mrf.mxu0
        %7722 = vmatprep.mubr.bf16.mxu0 0
        %7723 = vmatmul.mubr.bf16.gmra.mxu0 %v7553
        %v7724 = vpop.f32.mrf.mxu0
        %v7725 = vadd.f32 0.0, %v7724
        %v7726 = vpop.f32.mrf.mxu0
        %v7727 = vpop.f32.mrf.mxu0
        %v7728 = vadd.f32 0.0, %v7727
        %v7729 = vpop.f32.mrf.mxu0
        %7730 = vmatprep.mubr.bf16.mxu0 0
        %7731 = vmatmul.mubr.bf16.gmra.mxu0 %v7555
        %v7732 = vpop.f32.mrf.mxu0
        %v7733 = vadd.f32 0.0, %v7732
        %v7734 = vpop.f32.mrf.mxu0
        %v7735 = vpop.f32.mrf.mxu0
        %v7736 = vadd.f32 0.0, %v7735
        %v7737 = vpop.f32.mrf.mxu0
        %7738 = vmatprep.mubr.bf16.mxu0 0
        %7739 = vmatmul.mubr.bf16.gmra.mxu0 %v7557
        %v7740 = vpop.f32.mrf.mxu0
        %v7741 = vadd.f32 0.0, %v7740
        %v7742 = vpop.f32.mrf.mxu0
        %v7743 = vpop.f32.mrf.mxu0
        %v7744 = vadd.f32 0.0, %v7743
        %v7745 = vpop.f32.mrf.mxu0
        %7746 = vmatprep.mubr.bf16.mxu0 0
        %7747 = vmatmul.mubr.bf16.gmra.mxu0 %v7559
        %v7748 = vpop.f32.mrf.mxu0
        %v7749 = vadd.f32 0.0, %v7748
        %v7750 = vpop.f32.mrf.mxu0
        %v7751 = vpop.f32.mrf.mxu0
        %v7752 = vadd.f32 0.0, %v7751
        %v7753 = vpop.f32.mrf.mxu0
        %7754 = vmatprep.mubr.bf16.mxu0 0
        %7755 = vmatmul.mubr.bf16.gmra.mxu0 %v7561
        %v7756 = vpop.f32.mrf.mxu0
        %v7757 = vadd.f32 0.0, %v7756
        %v7758 = vpop.f32.mrf.mxu0
        %v7759 = vpop.f32.mrf.mxu0
        %v7760 = vadd.f32 0.0, %v7759
        %v7761 = vpop.f32.mrf.mxu0
        %7762 = vmatprep.mubr.bf16.mxu0 0
        %7763 = vmatmul.mubr.bf16.gmra.mxu0 %v7563
        %v7764 = vpop.f32.mrf.mxu0
        %v7765 = vadd.f32 0.0, %v7764
        %v7766 = vpop.f32.mrf.mxu0
        %v7767 = vpop.f32.mrf.mxu0
        %v7768 = vadd.f32 0.0, %v7767
        %v7769 = vpop.f32.mrf.mxu0
        %7770 = vmatprep.mubr.bf16.mxu0 0
        %7771 = vmatmul.mubr.bf16.gmra.mxu0 %v7565
        %v7772 = vpop.f32.mrf.mxu0
        %v7773 = vadd.f32 0.0, %v7772
        %v7774 = vpop.f32.mrf.mxu0
        %v7775 = vpop.f32.mrf.mxu0
        %v7776 = vadd.f32 0.0, %v7775
        %v7777 = vpop.f32.mrf.mxu0
        %7778 = vmatprep.mubr.bf16.mxu0 0
        %7779 = vmatmul.mubr.bf16.gmra.mxu0 %v7567
        %v7780 = vpop.f32.mrf.mxu0
        %v7781 = vadd.f32 0.0, %v7780
        %v7782 = vpop.f32.mrf.mxu0
        %v7783 = vpop.f32.mrf.mxu0
        %v7784 = vadd.f32 0.0, %v7783
        %v7785 = vpop.f32.mrf.mxu0
        %7786 = vmatprep.mubr.bf16.mxu0 0
        %7787 = vmatmul.mubr.bf16.gmra.mxu0 %v7569
        %v7788 = vpop.f32.mrf.mxu0
        %v7789 = vadd.f32 0.0, %v7788
        %v7790 = vpop.f32.mrf.mxu0
        %v7791 = vpop.f32.mrf.mxu0
        %v7792 = vadd.f32 0.0, %v7791
        %v7793 = vpop.f32.mrf.mxu0
        %7794 = vdwg.mxu0
        %v7795 = vsel %vm2094, %v7669, 0.0
        %v7796 = vsel %vm2095, %v7672, 0.0
        %v7797 = vsel %vm2096, %v7677, 0.0
        %v7798 = vsel %vm2097, %v7680, 0.0
        %v7799 = vsel %vm2098, %v7685, 0.0
        %v7800 = vsel %vm2099, %v7688, 0.0
        %v7801 = vsel %vm2100, %v7693, 0.0
        %v7802 = vsel %vm2101, %v7696, 0.0
        %v7803 = vsel %vm2102, %v7701, 0.0
        %v7804 = vsel %vm2103, %v7704, 0.0
        %v7805 = vsel %vm2104, %v7709, 0.0
        %v7806 = vsel %vm2105, %v7712, 0.0
        %v7807 = vsel %vm2106, %v7717, 0.0
        %v7808 = vsel %vm2107, %v7720, 0.0
        %v7809 = vsel %vm2108, %v7725, 0.0
        %v7810 = vsel %vm2109, %v7728, 0.0
        %v7811 = vsel %vm2110, %v7733, 0.0
        %v7812 = vsel %vm2111, %v7736, 0.0
        %v7813 = vsel %vm2112, %v7741, 0.0
        %v7814 = vsel %vm2113, %v7744, 0.0
        %v7815 = vsel %vm2114, %v7749, 0.0
        %v7816 = vsel %vm2115, %v7752, 0.0
        %v7817 = vsel %vm2116, %v7757, 0.0
        %v7818 = vsel %vm2117, %v7760, 0.0
        %v7819 = vsel %vm2118, %v7765, 0.0
        %v7820 = vsel %vm2119, %v7768, 0.0
        %v7821 = vsel %vm2120, %v7773, 0.0
        %v7822 = vsel %vm2121, %v7776, 0.0
        %v7823 = vsel %vm2122, %v7781, 0.0
        %v7824 = vsel %vm2123, %v7784, 0.0
        %v7825 = vsel %vm2124, %v7789, 0.0
        %v7826 = vsel %vm2125, %v7792, 0.0
        %v7827 = vadd.f32 %v7484, %v7795
        %v7828 = vadd.f32 %v7485, %v7796
        %v7829 = vadd.f32 %v7486, %v7797
        %v7830 = vadd.f32 %v7487, %v7798
        %v7831 = vadd.f32 %v7488, %v7799
        %v7832 = vadd.f32 %v7489, %v7800
        %v7833 = vadd.f32 %v7490, %v7801
        %v7834 = vadd.f32 %v7491, %v7802
        %v7835 = vadd.f32 %v7492, %v7803
        %v7836 = vadd.f32 %v7493, %v7804
        %v7837 = vadd.f32 %v7494, %v7805
        %v7838 = vadd.f32 %v7495, %v7806
        %v7839 = vadd.f32 %v7496, %v7807
        %v7840 = vadd.f32 %v7497, %v7808
        %v7841 = vadd.f32 %v7498, %v7809
        %v7842 = vadd.f32 %v7499, %v7810
        %v7843 = vadd.f32 %v7500, %v7811
        %v7844 = vadd.f32 %v7501, %v7812
        %v7845 = vadd.f32 %v7502, %v7813
        %v7846 = vadd.f32 %v7503, %v7814
        %v7847 = vadd.f32 %v7504, %v7815
        %v7848 = vadd.f32 %v7505, %v7816
        %v7849 = vadd.f32 %v7506, %v7817
        %v7850 = vadd.f32 %v7507, %v7818
        %v7851 = vadd.f32 %v7508, %v7819
        %v7852 = vadd.f32 %v7509, %v7820
        %v7853 = vadd.f32 %v7510, %v7821
        %v7854 = vadd.f32 %v7511, %v7822
        %v7855 = vadd.f32 %v7512, %v7823
        %v7856 = vadd.f32 %v7513, %v7824
        %v7857 = vadd.f32 %v7514, %v7825
        %v7858 = vadd.f32 %v7515, %v7826
        %v7859 = vld [vmem:[#allocation3 + $0x10] sm:$0xf]
        %v7860 = vld [vmem:[#allocation3 + $0x14] sm:$0xf]
        %v7861 = vld [vmem:[#allocation3 + $0x18] sm:$0xf]
        %v7862 = vld [vmem:[#allocation3 + $0x1c] sm:$0xf]
        %v7863 = vld [vmem:[#allocation3 + $0x20] sm:$0xf]
        %v7864 = vld [vmem:[#allocation3 + $0x24] sm:$0xf]
        %v7865 = vld [vmem:[#allocation3 + $0x28] sm:$0xf]
        %v7866 = vld [vmem:[#allocation3 + $0x2c] sm:$0xf]
        %v7867 = vld [vmem:[#allocation3 + $0x30] sm:$0xf]
        %v7868 = vld [vmem:[#allocation3 + $0x34] sm:$0xf]
        %v7869 = vld [vmem:[#allocation3 + $0x38] sm:$0xf]
        %v7870 = vld [vmem:[#allocation3 + $0x3c] sm:$0xf]
        %v7871 = vld [vmem:[#allocation3 + $0x40] sm:$0xf]
        %v7872 = vld [vmem:[#allocation3 + $0x44] sm:$0xf]
        %v7873 = vld [vmem:[#allocation3 + $0x48] sm:$0xf]
        %v7874 = vld [vmem:[#allocation3 + $0x4c] sm:$0xf]
        %v7875 = vld [vmem:[#allocation3 + $0x50] sm:$0xf]
        %v7876 = vld [vmem:[#allocation3 + $0x54] sm:$0xf]
        %v7877 = vld [vmem:[#allocation3 + $0x58] sm:$0xf]
        %v7878 = vld [vmem:[#allocation3 + $0x5c] sm:$0xf]
        %v7879 = vld [vmem:[#allocation3 + $0x60] sm:$0xf]
        %v7880 = vld [vmem:[#allocation3 + $0x64] sm:$0xf]
        %v7881 = vld [vmem:[#allocation3 + $0x68] sm:$0xf]
        %v7882 = vld [vmem:[#allocation3 + $0x6c] sm:$0xf]
        %v7883 = vld [vmem:[#allocation3 + $0x70] sm:$0xf]
        %v7884 = vld [vmem:[#allocation3 + $0x74] sm:$0xf]
        %v7885 = vld [vmem:[#allocation3 + $0x78] sm:$0xf]
        %v7886 = vld [vmem:[#allocation3 + $0x7c] sm:$0xf]
        %v7887 = vld [vmem:[#allocation3 + $0x80] sm:$0xf]
        %v7888 = vld [vmem:[#allocation3 + $0x84] sm:$0xf]
        %v7889 = vld [vmem:[#allocation3 + $0x88] sm:$0xf]
        %v7890 = vld [vmem:[#allocation3 + $0x8c] sm:$0xf]
        %s7891 = scalar_lea.vmem [#allocation4], 384
        %v7892 = vld [vmem:[%s7891] sm:$0xf]
        %v7893 = vld [vmem:[%s7891 + $0x4] sm:$0xf]
        %v7894 = vld [vmem:[%s7891 + $0x8] sm:$0xf]
        %v7895 = vld [vmem:[%s7891 + $0xc] sm:$0xf]
        %v7896 = vld [vmem:[%s7891 + $0x10] sm:$0xf]
        %v7897 = vld [vmem:[%s7891 + $0x14] sm:$0xf]
        %v7898 = vld [vmem:[%s7891 + $0x18] sm:$0xf]
        %v7899 = vld [vmem:[%s7891 + $0x1c] sm:$0xf]
        %v7900 = vld [vmem:[%s7891 + $0x20] sm:$0xf]
        %v7901 = vld [vmem:[%s7891 + $0x24] sm:$0xf]
        %v7902 = vld [vmem:[%s7891 + $0x28] sm:$0xf]
        %v7903 = vld [vmem:[%s7891 + $0x2c] sm:$0xf]
        %v7904 = vld [vmem:[%s7891 + $0x30] sm:$0xf]
        %v7905 = vld [vmem:[%s7891 + $0x34] sm:$0xf]
        %v7906 = vld [vmem:[%s7891 + $0x38] sm:$0xf]
        %v7907 = vld [vmem:[%s7891 + $0x3c] sm:$0xf]
        %v7940 = vunpack.c.l.b16 %v7859
        %v7941 = vunpack.c.l.b16 %v7860
        %v7942 = vunpack.c.l.b16 %v7861
        %v7943 = vunpack.c.l.b16 %v7862
        %v7944 = vunpack.c.l.b16 %v7863
        %v7945 = vunpack.c.l.b16 %v7864
        %v7946 = vunpack.c.l.b16 %v7865
        %v7947 = vunpack.c.l.b16 %v7866
        %v7948 = vunpack.c.l.b16 %v7867
        %v7949 = vunpack.c.l.b16 %v7868
        %v7950 = vunpack.c.l.b16 %v7869
        %v7951 = vunpack.c.l.b16 %v7870
        %v7952 = vunpack.c.l.b16 %v7871
        %v7953 = vunpack.c.l.b16 %v7872
        %v7954 = vunpack.c.l.b16 %v7873
        %v7955 = vunpack.c.l.b16 %v7874
        %v7956 = vunpack.c.l.b16 %v7875
        %v7957 = vunpack.c.l.b16 %v7876
        %v7958 = vunpack.c.l.b16 %v7877
        %v7959 = vunpack.c.l.b16 %v7878
        %v7960 = vunpack.c.l.b16 %v7879
        %v7961 = vunpack.c.l.b16 %v7880
        %v7962 = vunpack.c.l.b16 %v7881
        %v7963 = vunpack.c.l.b16 %v7882
        %v7964 = vunpack.c.l.b16 %v7883
        %v7965 = vunpack.c.l.b16 %v7884
        %v7966 = vunpack.c.l.b16 %v7885
        %v7967 = vunpack.c.l.b16 %v7886
        %v7968 = vunpack.c.l.b16 %v7887
        %v7969 = vunpack.c.l.b16 %v7888
        %v7970 = vunpack.c.l.b16 %v7889
        %v7971 = vunpack.c.l.b16 %v7890
        %v7972 = vpack.c.b16 %v7941, %v7940
        %v7973 = vpack.c.b16 %v7943, %v7942
        %v7974 = vpack.c.b16 %v7945, %v7944
        %v7975 = vpack.c.b16 %v7947, %v7946
        %v7976 = vpack.c.b16 %v7949, %v7948
        %v7977 = vpack.c.b16 %v7951, %v7950
        %v7978 = vpack.c.b16 %v7953, %v7952
        %v7979 = vpack.c.b16 %v7955, %v7954
        %v7980 = vpack.c.b16 %v7957, %v7956
        %v7981 = vpack.c.b16 %v7959, %v7958
        %v7982 = vpack.c.b16 %v7961, %v7960
        %v7983 = vpack.c.b16 %v7963, %v7962
        %v7984 = vpack.c.b16 %v7965, %v7964
        %v7985 = vpack.c.b16 %v7967, %v7966
        %v7986 = vpack.c.b16 %v7969, %v7968
        %v7987 = vpack.c.b16 %v7971, %v7970
        %v8020 = vunpack.c.l.b16 %v7892
        %v8021 = vunpack.c.l.b16 %v7893
        %v8022 = vunpack.c.l.b16 %v7894
        %v8023 = vunpack.c.l.b16 %v7895
        %v8024 = vunpack.c.l.b16 %v7896
        %v8025 = vunpack.c.l.b16 %v7897
        %v8026 = vunpack.c.l.b16 %v7898
        %v8027 = vunpack.c.l.b16 %v7899
        %v8028 = vunpack.c.l.b16 %v7900
        %v8029 = vunpack.c.l.b16 %v7901
        %v8030 = vunpack.c.l.b16 %v7902
        %v8031 = vunpack.c.l.b16 %v7903
        %v8032 = vunpack.c.l.b16 %v7904
        %v8033 = vunpack.c.l.b16 %v7905
        %v8034 = vunpack.c.l.b16 %v7906
        %v8035 = vunpack.c.l.b16 %v7907
        %v8036 = vpack.c.b16 %v8021, %v8020
        %v8037 = vpack.c.b16 %v8023, %v8022
        %v8038 = vpack.c.b16 %v8025, %v8024
        %v8039 = vpack.c.b16 %v8027, %v8026
        %v8040 = vpack.c.b16 %v8029, %v8028
        %v8041 = vpack.c.b16 %v8031, %v8030
        %v8042 = vpack.c.b16 %v8033, %v8032
        %v8043 = vpack.c.b16 %v8035, %v8034
        %8052 = vmatprep.subr.bf16.mxu0 0
        %8053 = vmatpush1.bf16.msra.mxu0 %v8043
        %8054 = vmatprep.subr.bf16.mxu0 0
        %8055 = vmatpush1.bf16.msra.mxu0 %v8042
        %8056 = vmatprep.subr.bf16.mxu0 0
        %8057 = vmatpush1.bf16.msra.mxu0 %v8041
        %8058 = vmatprep.subr.bf16.mxu0 0
        %8059 = vmatpush1.bf16.msra.mxu0 %v8040
        %8060 = vmatprep.subr.bf16.mxu0 0
        %8061 = vmatpush1.bf16.msra.mxu0 %v8039
        %8062 = vmatprep.subr.bf16.mxu0 0
        %8063 = vmatpush1.bf16.msra.mxu0 %v8038
        %8064 = vmatprep.subr.bf16.mxu0 0
        %8065 = vmatpush1.bf16.msra.mxu0 %v8037
        %8066 = vmatprep.subr.bf16.mxu0 0
        %8067 = vmatpush1.bf16.msra.mxu0 %v8036
        %8068 = vmatprep.subr.bf16.mxu0 0
        %8069 = vmatpush2.bf16.msra.mxu0 0
        %8070 = vmatprep.subr.bf16.mxu0 0
        %8071 = vmatpush2.bf16.msra.mxu0 0
        %8072 = vmatprep.subr.bf16.mxu0 0
        %8073 = vmatpush2.bf16.msra.mxu0 0
        %8074 = vmatprep.subr.bf16.mxu0 0
        %8075 = vmatpush2.bf16.msra.mxu0 0
        %8076 = vmatprep.subr.bf16.mxu0 0
        %8077 = vmatpush2.bf16.msra.mxu0 0
        %8078 = vmatprep.subr.bf16.mxu0 0
        %8079 = vmatpush2.bf16.msra.mxu0 0
        %8080 = vmatprep.subr.bf16.mxu0 0
        %8081 = vmatpush2.bf16.msra.mxu0 0
        %8082 = vmatprep.subr.bf16.mxu0 0
        %8083 = vmatpush2.bf16.msra.mxu0 0
        %8084 = vmatprep.mubr.bf16.mxu0 0
        %8085 = vmatmul.mubr.bf16.gmra.mxu0 %v7972
        %v8086 = vpop.f32.mrf.mxu0
        %v8087 = vadd.f32 0.0, %v8086
        %v8088 = vpop.f32.mrf.mxu0
        %v8089 = vpop.f32.mrf.mxu0
        %v8090 = vadd.f32 0.0, %v8089
        %v8091 = vpop.f32.mrf.mxu0
        %8092 = vmatprep.mubr.bf16.mxu0 0
        %8093 = vmatmul.mubr.bf16.gmra.mxu0 %v7973
        %v8094 = vpop.f32.mrf.mxu0
        %v8095 = vadd.f32 0.0, %v8094
        %v8096 = vpop.f32.mrf.mxu0
        %v8097 = vpop.f32.mrf.mxu0
        %v8098 = vadd.f32 0.0, %v8097
        %v8099 = vpop.f32.mrf.mxu0
        %8100 = vmatprep.mubr.bf16.mxu0 0
        %8101 = vmatmul.mubr.bf16.gmra.mxu0 %v7974
        %v8102 = vpop.f32.mrf.mxu0
        %v8103 = vadd.f32 0.0, %v8102
        %v8104 = vpop.f32.mrf.mxu0
        %v8105 = vpop.f32.mrf.mxu0
        %v8106 = vadd.f32 0.0, %v8105
        %v8107 = vpop.f32.mrf.mxu0
        %8108 = vmatprep.mubr.bf16.mxu0 0
        %8109 = vmatmul.mubr.bf16.gmra.mxu0 %v7975
        %v8110 = vpop.f32.mrf.mxu0
        %v8111 = vadd.f32 0.0, %v8110
        %v8112 = vpop.f32.mrf.mxu0
        %v8113 = vpop.f32.mrf.mxu0
        %v8114 = vadd.f32 0.0, %v8113
        %v8115 = vpop.f32.mrf.mxu0
        %8116 = vmatprep.mubr.bf16.mxu0 0
        %8117 = vmatmul.mubr.bf16.gmra.mxu0 %v7976
        %v8118 = vpop.f32.mrf.mxu0
        %v8119 = vadd.f32 0.0, %v8118
        %v8120 = vpop.f32.mrf.mxu0
        %v8121 = vpop.f32.mrf.mxu0
        %v8122 = vadd.f32 0.0, %v8121
        %v8123 = vpop.f32.mrf.mxu0
        %8124 = vmatprep.mubr.bf16.mxu0 0
        %8125 = vmatmul.mubr.bf16.gmra.mxu0 %v7977
        %v8126 = vpop.f32.mrf.mxu0
        %v8127 = vadd.f32 0.0, %v8126
        %v8128 = vpop.f32.mrf.mxu0
        %v8129 = vpop.f32.mrf.mxu0
        %v8130 = vadd.f32 0.0, %v8129
        %v8131 = vpop.f32.mrf.mxu0
        %8132 = vmatprep.mubr.bf16.mxu0 0
        %8133 = vmatmul.mubr.bf16.gmra.mxu0 %v7978
        %v8134 = vpop.f32.mrf.mxu0
        %v8135 = vadd.f32 0.0, %v8134
        %v8136 = vpop.f32.mrf.mxu0
        %v8137 = vpop.f32.mrf.mxu0
        %v8138 = vadd.f32 0.0, %v8137
        %v8139 = vpop.f32.mrf.mxu0
        %8140 = vmatprep.mubr.bf16.mxu0 0
        %8141 = vmatmul.mubr.bf16.gmra.mxu0 %v7979
        %v8142 = vpop.f32.mrf.mxu0
        %v8143 = vadd.f32 0.0, %v8142
        %v8144 = vpop.f32.mrf.mxu0
        %v8145 = vpop.f32.mrf.mxu0
        %v8146 = vadd.f32 0.0, %v8145
        %v8147 = vpop.f32.mrf.mxu0
        %8148 = vmatprep.mubr.bf16.mxu0 0
        %8149 = vmatmul.mubr.bf16.gmra.mxu0 %v7980
        %v8150 = vpop.f32.mrf.mxu0
        %v8151 = vadd.f32 0.0, %v8150
        %v8152 = vpop.f32.mrf.mxu0
        %v8153 = vpop.f32.mrf.mxu0
        %v8154 = vadd.f32 0.0, %v8153
        %v8155 = vpop.f32.mrf.mxu0
        %8156 = vmatprep.mubr.bf16.mxu0 0
        %8157 = vmatmul.mubr.bf16.gmra.mxu0 %v7981
        %v8158 = vpop.f32.mrf.mxu0
        %v8159 = vadd.f32 0.0, %v8158
        %v8160 = vpop.f32.mrf.mxu0
        %v8161 = vpop.f32.mrf.mxu0
        %v8162 = vadd.f32 0.0, %v8161
        %v8163 = vpop.f32.mrf.mxu0
        %8164 = vmatprep.mubr.bf16.mxu0 0
        %8165 = vmatmul.mubr.bf16.gmra.mxu0 %v7982
        %v8166 = vpop.f32.mrf.mxu0
        %v8167 = vadd.f32 0.0, %v8166
        %v8168 = vpop.f32.mrf.mxu0
        %v8169 = vpop.f32.mrf.mxu0
        %v8170 = vadd.f32 0.0, %v8169
        %v8171 = vpop.f32.mrf.mxu0
        %8172 = vmatprep.mubr.bf16.mxu0 0
        %8173 = vmatmul.mubr.bf16.gmra.mxu0 %v7983
        %v8174 = vpop.f32.mrf.mxu0
        %v8175 = vadd.f32 0.0, %v8174
        %v8176 = vpop.f32.mrf.mxu0
        %v8177 = vpop.f32.mrf.mxu0
        %v8178 = vadd.f32 0.0, %v8177
        %v8179 = vpop.f32.mrf.mxu0
        %8180 = vmatprep.mubr.bf16.mxu0 0
        %8181 = vmatmul.mubr.bf16.gmra.mxu0 %v7984
        %v8182 = vpop.f32.mrf.mxu0
        %v8183 = vadd.f32 0.0, %v8182
        %v8184 = vpop.f32.mrf.mxu0
        %v8185 = vpop.f32.mrf.mxu0
        %v8186 = vadd.f32 0.0, %v8185
        %v8187 = vpop.f32.mrf.mxu0
        %8188 = vmatprep.mubr.bf16.mxu0 0
        %8189 = vmatmul.mubr.bf16.gmra.mxu0 %v7985
        %v8190 = vpop.f32.mrf.mxu0
        %v8191 = vadd.f32 0.0, %v8190
        %v8192 = vpop.f32.mrf.mxu0
        %v8193 = vpop.f32.mrf.mxu0
        %v8194 = vadd.f32 0.0, %v8193
        %v8195 = vpop.f32.mrf.mxu0
        %8196 = vmatprep.mubr.bf16.mxu0 0
        %8197 = vmatmul.mubr.bf16.gmra.mxu0 %v7986
        %v8198 = vpop.f32.mrf.mxu0
        %v8199 = vadd.f32 0.0, %v8198
        %v8200 = vpop.f32.mrf.mxu0
        %v8201 = vpop.f32.mrf.mxu0
        %v8202 = vadd.f32 0.0, %v8201
        %v8203 = vpop.f32.mrf.mxu0
        %8204 = vmatprep.mubr.bf16.mxu0 0
        %8205 = vmatmul.mubr.bf16.gmra.mxu0 %v7987
        %v8206 = vpop.f32.mrf.mxu0
        %v8207 = vadd.f32 0.0, %v8206
        %v8208 = vpop.f32.mrf.mxu0
        %v8209 = vpop.f32.mrf.mxu0
        %v8210 = vadd.f32 0.0, %v8209
        %v8211 = vpop.f32.mrf.mxu0
        %8212 = vdwg.mxu0
        %v8213 = vsel %vm1163, %v8087, 0.0
        %v8214 = vsel %vm1164, %v8090, 0.0
        %v8215 = vsel %vm1165, %v8095, 0.0
        %v8216 = vsel %vm1166, %v8098, 0.0
        %v8217 = vsel %vm1167, %v8103, 0.0
        %v8218 = vsel %vm1168, %v8106, 0.0
        %v8219 = vsel %vm1169, %v8111, 0.0
        %v8220 = vsel %vm1170, %v8114, 0.0
        %v8221 = vsel %vm1171, %v8119, 0.0
        %v8222 = vsel %vm1172, %v8122, 0.0
        %v8223 = vsel %vm1173, %v8127, 0.0
        %v8224 = vsel %vm1174, %v8130, 0.0
        %v8225 = vsel %vm1175, %v8135, 0.0
        %v8226 = vsel %vm1176, %v8138, 0.0
        %v8227 = vsel %vm1177, %v8143, 0.0
        %v8228 = vsel %vm1178, %v8146, 0.0
        %v8229 = vsel %vm1179, %v8151, 0.0
        %v8230 = vsel %vm1180, %v8154, 0.0
        %v8231 = vsel %vm1181, %v8159, 0.0
        %v8232 = vsel %vm1182, %v8162, 0.0
        %v8233 = vsel %vm1183, %v8167, 0.0
        %v8234 = vsel %vm1184, %v8170, 0.0
        %v8235 = vsel %vm1185, %v8175, 0.0
        %v8236 = vsel %vm1186, %v8178, 0.0
        %v8237 = vsel %vm1187, %v8183, 0.0
        %v8238 = vsel %vm1188, %v8186, 0.0
        %v8239 = vsel %vm1189, %v8191, 0.0
        %v8240 = vsel %vm1190, %v8194, 0.0
        %v8241 = vsel %vm1191, %v8199, 0.0
        %v8242 = vsel %vm1192, %v8202, 0.0
        %v8243 = vsel %vm1193, %v8207, 0.0
        %v8244 = vsel %vm1194, %v8210, 0.0
        %v8245 = vadd.f32 %v7827, %v8213
        %v8246 = vadd.f32 %v7828, %v8214
        %v8247 = vadd.f32 %v7829, %v8215
        %v8248 = vadd.f32 %v7830, %v8216
        %v8249 = vadd.f32 %v7831, %v8217
        %v8250 = vadd.f32 %v7832, %v8218
        %v8251 = vadd.f32 %v7833, %v8219
        %v8252 = vadd.f32 %v7834, %v8220
        %v8253 = vadd.f32 %v7835, %v8221
        %v8254 = vadd.f32 %v7836, %v8222
        %v8255 = vadd.f32 %v7837, %v8223
        %v8256 = vadd.f32 %v7838, %v8224
        %v8257 = vadd.f32 %v7839, %v8225
        %v8258 = vadd.f32 %v7840, %v8226
        %v8259 = vadd.f32 %v7841, %v8227
        %v8260 = vadd.f32 %v7842, %v8228
        %v8261 = vadd.f32 %v7843, %v8229
        %v8262 = vadd.f32 %v7844, %v8230
        %v8263 = vadd.f32 %v7845, %v8231
        %v8264 = vadd.f32 %v7846, %v8232
        %v8265 = vadd.f32 %v7847, %v8233
        %v8266 = vadd.f32 %v7848, %v8234
        %v8267 = vadd.f32 %v7849, %v8235
        %v8268 = vadd.f32 %v7850, %v8236
        %v8269 = vadd.f32 %v7851, %v8237
        %v8270 = vadd.f32 %v7852, %v8238
        %v8271 = vadd.f32 %v7853, %v8239
        %v8272 = vadd.f32 %v7854, %v8240
        %v8273 = vadd.f32 %v7855, %v8241
        %v8274 = vadd.f32 %v7856, %v8242
        %v8275 = vadd.f32 %v7857, %v8243
        %v8276 = vadd.f32 %v7858, %v8244
        %v8277 = vld [vmem:[#allocation3 + $0x10] sm:$0xf]
        %v8278 = vld [vmem:[#allocation3 + $0x14] sm:$0xf]
        %v8279 = vld [vmem:[#allocation3 + $0x18] sm:$0xf]
        %v8280 = vld [vmem:[#allocation3 + $0x1c] sm:$0xf]
        %v8281 = vld [vmem:[#allocation3 + $0x20] sm:$0xf]
        %v8282 = vld [vmem:[#allocation3 + $0x24] sm:$0xf]
        %v8283 = vld [vmem:[#allocation3 + $0x28] sm:$0xf]
        %v8284 = vld [vmem:[#allocation3 + $0x2c] sm:$0xf]
        %v8285 = vld [vmem:[#allocation3 + $0x30] sm:$0xf]
        %v8286 = vld [vmem:[#allocation3 + $0x34] sm:$0xf]
        %v8287 = vld [vmem:[#allocation3 + $0x38] sm:$0xf]
        %v8288 = vld [vmem:[#allocation3 + $0x3c] sm:$0xf]
        %v8289 = vld [vmem:[#allocation3 + $0x40] sm:$0xf]
        %v8290 = vld [vmem:[#allocation3 + $0x44] sm:$0xf]
        %v8291 = vld [vmem:[#allocation3 + $0x48] sm:$0xf]
        %v8292 = vld [vmem:[#allocation3 + $0x4c] sm:$0xf]
        %v8293 = vld [vmem:[#allocation3 + $0x50] sm:$0xf]
        %v8294 = vld [vmem:[#allocation3 + $0x54] sm:$0xf]
        %v8295 = vld [vmem:[#allocation3 + $0x58] sm:$0xf]
        %v8296 = vld [vmem:[#allocation3 + $0x5c] sm:$0xf]
        %v8297 = vld [vmem:[#allocation3 + $0x60] sm:$0xf]
        %v8298 = vld [vmem:[#allocation3 + $0x64] sm:$0xf]
        %v8299 = vld [vmem:[#allocation3 + $0x68] sm:$0xf]
        %v8300 = vld [vmem:[#allocation3 + $0x6c] sm:$0xf]
        %v8301 = vld [vmem:[#allocation3 + $0x70] sm:$0xf]
        %v8302 = vld [vmem:[#allocation3 + $0x74] sm:$0xf]
        %v8303 = vld [vmem:[#allocation3 + $0x78] sm:$0xf]
        %v8304 = vld [vmem:[#allocation3 + $0x7c] sm:$0xf]
        %v8305 = vld [vmem:[#allocation3 + $0x80] sm:$0xf]
        %v8306 = vld [vmem:[#allocation3 + $0x84] sm:$0xf]
        %v8307 = vld [vmem:[#allocation3 + $0x88] sm:$0xf]
        %v8308 = vld [vmem:[#allocation3 + $0x8c] sm:$0xf]
        %v8309 = vld [vmem:[#allocation3 + $0x90] sm:$0x1]
        %s8310 = scalar_lea.vmem [#allocation4], 448
        %v8311 = vld [vmem:[%s8310] sm:$0xf]
        %v8312 = vld [vmem:[%s8310 + $0x4] sm:$0xf]
        %v8313 = vld [vmem:[%s8310 + $0x8] sm:$0xf]
        %v8314 = vld [vmem:[%s8310 + $0xc] sm:$0xf]
        %v8315 = vld [vmem:[%s8310 + $0x10] sm:$0xf]
        %v8316 = vld [vmem:[%s8310 + $0x14] sm:$0xf]
        %v8317 = vld [vmem:[%s8310 + $0x18] sm:$0xf]
        %v8318 = vld [vmem:[%s8310 + $0x1c] sm:$0xf]
        %v8319 = vld [vmem:[%s8310 + $0x20] sm:$0xf]
        %v8320 = vld [vmem:[%s8310 + $0x24] sm:$0xf]
        %v8321 = vld [vmem:[%s8310 + $0x28] sm:$0xf]
        %v8322 = vld [vmem:[%s8310 + $0x2c] sm:$0xf]
        %v8323 = vld [vmem:[%s8310 + $0x30] sm:$0xf]
        %v8324 = vld [vmem:[%s8310 + $0x34] sm:$0xf]
        %v8325 = vld [vmem:[%s8310 + $0x38] sm:$0xf]
        %v8326 = vld [vmem:[%s8310 + $0x3c] sm:$0xf]
        %v8360 = vunpack.c.l.b16 %v8277
        %v8361 = vunpack.c.l.b16 %v8278
        %v8362 = vunpack.c.l.b16 %v8279
        %v8363 = vunpack.c.l.b16 %v8280
        %v8364 = vunpack.c.l.b16 %v8281
        %v8365 = vunpack.c.l.b16 %v8282
        %v8366 = vunpack.c.l.b16 %v8283
        %v8367 = vunpack.c.l.b16 %v8284
        %v8368 = vunpack.c.l.b16 %v8285
        %v8369 = vunpack.c.l.b16 %v8286
        %v8370 = vunpack.c.l.b16 %v8287
        %v8371 = vunpack.c.l.b16 %v8288
        %v8372 = vunpack.c.l.b16 %v8289
        %v8373 = vunpack.c.l.b16 %v8290
        %v8374 = vunpack.c.l.b16 %v8291
        %v8375 = vunpack.c.l.b16 %v8292
        %v8376 = vunpack.c.l.b16 %v8293
        %v8377 = vunpack.c.l.b16 %v8294
        %v8378 = vunpack.c.l.b16 %v8295
        %v8379 = vunpack.c.l.b16 %v8296
        %v8380 = vunpack.c.l.b16 %v8297
        %v8381 = vunpack.c.l.b16 %v8298
        %v8382 = vunpack.c.l.b16 %v8299
        %v8383 = vunpack.c.l.b16 %v8300
        %v8384 = vunpack.c.l.b16 %v8301
        %v8385 = vunpack.c.l.b16 %v8302
        %v8386 = vunpack.c.l.b16 %v8303
        %v8387 = vunpack.c.l.b16 %v8304
        %v8388 = vunpack.c.l.b16 %v8305
        %v8389 = vunpack.c.l.b16 %v8306
        %v8390 = vunpack.c.l.b16 %v8307
        %v8391 = vunpack.c.l.b16 %v8308
        %v8392 = vunpack.c.l.b16 %v8309
        %v8393 = vpack.c.b16 %v8361, %v8360
        %v8394 = vpack.c.b16 %v8363, %v8362
        %v8395 = vpack.c.b16 %v8365, %v8364
        %v8396 = vpack.c.b16 %v8367, %v8366
        %v8397 = vpack.c.b16 %v8369, %v8368
        %v8398 = vpack.c.b16 %v8371, %v8370
        %v8399 = vpack.c.b16 %v8373, %v8372
        %v8400 = vpack.c.b16 %v8375, %v8374
        %v8401 = vpack.c.b16 %v8377, %v8376
        %v8402 = vpack.c.b16 %v8379, %v8378
        %v8403 = vpack.c.b16 %v8381, %v8380
        %v8404 = vpack.c.b16 %v8383, %v8382
        %v8405 = vpack.c.b16 %v8385, %v8384
        %v8406 = vpack.c.b16 %v8387, %v8386
        %v8407 = vpack.c.b16 %v8389, %v8388
        %v8408 = vpack.c.b16 %v8391, %v8390
        %v8409 = vpack.c.b16 %v8392, %v8392
        %v8411 = vshrl.u32 %v8393, 16
        %v8413 = vshll.u32 %v8393, 16
        %v8415 = vrot.slane %v8413, 1
        %v8416 = vor.u32 %v8411, %v8415
        %v8418 = vshll.u32 %v8394, 16
        %v8420 = vrot.slane %v8418, 1
        %v8421 = vsel %vm1384, %v8416, %v8420
        %v8422 = vshrl.u32 %v8394, 16
        %v8424 = vor.u32 %v8422, %v8420
        %v8426 = vshll.u32 %v8395, 16
        %v8428 = vrot.slane %v8426, 1
        %v8429 = vsel %vm1384, %v8424, %v8428
        %v8430 = vshrl.u32 %v8395, 16
        %v8432 = vor.u32 %v8430, %v8428
        %v8434 = vshll.u32 %v8396, 16
        %v8436 = vrot.slane %v8434, 1
        %v8437 = vsel %vm1384, %v8432, %v8436
        %v8438 = vshrl.u32 %v8396, 16
        %v8440 = vor.u32 %v8438, %v8436
        %v8442 = vshll.u32 %v8397, 16
        %v8444 = vrot.slane %v8442, 1
        %v8445 = vsel %vm1384, %v8440, %v8444
        %v8446 = vshrl.u32 %v8397, 16
        %v8448 = vor.u32 %v8446, %v8444
        %v8450 = vshll.u32 %v8398, 16
        %v8452 = vrot.slane %v8450, 1
        %v8453 = vsel %vm1384, %v8448, %v8452
        %v8454 = vshrl.u32 %v8398, 16
        %v8456 = vor.u32 %v8454, %v8452
        %v8458 = vshll.u32 %v8399, 16
        %v8460 = vrot.slane %v8458, 1
        %v8461 = vsel %vm1384, %v8456, %v8460
        %v8462 = vshrl.u32 %v8399, 16
        %v8464 = vor.u32 %v8462, %v8460
        %v8466 = vshll.u32 %v8400, 16
        %v8468 = vrot.slane %v8466, 1
        %v8469 = vsel %vm1384, %v8464, %v8468
        %v8470 = vshrl.u32 %v8400, 16
        %v8472 = vor.u32 %v8470, %v8468
        %v8474 = vshll.u32 %v8401, 16
        %v8476 = vrot.slane %v8474, 1
        %v8477 = vsel %vm1384, %v8472, %v8476
        %v8478 = vshrl.u32 %v8401, 16
        %v8480 = vor.u32 %v8478, %v8476
        %v8482 = vshll.u32 %v8402, 16
        %v8484 = vrot.slane %v8482, 1
        %v8485 = vsel %vm1384, %v8480, %v8484
        %v8486 = vshrl.u32 %v8402, 16
        %v8488 = vor.u32 %v8486, %v8484
        %v8490 = vshll.u32 %v8403, 16
        %v8492 = vrot.slane %v8490, 1
        %v8493 = vsel %vm1384, %v8488, %v8492
        %v8494 = vshrl.u32 %v8403, 16
        %v8496 = vor.u32 %v8494, %v8492
        %v8498 = vshll.u32 %v8404, 16
        %v8500 = vrot.slane %v8498, 1
        %v8501 = vsel %vm1384, %v8496, %v8500
        %v8502 = vshrl.u32 %v8404, 16
        %v8504 = vor.u32 %v8502, %v8500
        %v8506 = vshll.u32 %v8405, 16
        %v8508 = vrot.slane %v8506, 1
        %v8509 = vsel %vm1384, %v8504, %v8508
        %v8510 = vshrl.u32 %v8405, 16
        %v8512 = vor.u32 %v8510, %v8508
        %v8514 = vshll.u32 %v8406, 16
        %v8516 = vrot.slane %v8514, 1
        %v8517 = vsel %vm1384, %v8512, %v8516
        %v8518 = vshrl.u32 %v8406, 16
        %v8520 = vor.u32 %v8518, %v8516
        %v8522 = vshll.u32 %v8407, 16
        %v8524 = vrot.slane %v8522, 1
        %v8525 = vsel %vm1384, %v8520, %v8524
        %v8526 = vshrl.u32 %v8407, 16
        %v8528 = vor.u32 %v8526, %v8524
        %v8530 = vshll.u32 %v8408, 16
        %v8532 = vrot.slane %v8530, 1
        %v8533 = vsel %vm1384, %v8528, %v8532
        %v8534 = vshrl.u32 %v8408, 16
        %v8536 = vor.u32 %v8534, %v8532
        %v8538 = vshll.u32 %v8409, 16
        %v8540 = vrot.slane %v8538, 1
        %v8541 = vsel %vm1384, %v8536, %v8540
        %v8574 = vunpack.c.l.b16 %v8311
        %v8575 = vunpack.c.l.b16 %v8312
        %v8576 = vunpack.c.l.b16 %v8313
        %v8577 = vunpack.c.l.b16 %v8314
        %v8578 = vunpack.c.l.b16 %v8315
        %v8579 = vunpack.c.l.b16 %v8316
        %v8580 = vunpack.c.l.b16 %v8317
        %v8581 = vunpack.c.l.b16 %v8318
        %v8582 = vunpack.c.l.b16 %v8319
        %v8583 = vunpack.c.l.b16 %v8320
        %v8584 = vunpack.c.l.b16 %v8321
        %v8585 = vunpack.c.l.b16 %v8322
        %v8586 = vunpack.c.l.b16 %v8323
        %v8587 = vunpack.c.l.b16 %v8324
        %v8588 = vunpack.c.l.b16 %v8325
        %v8589 = vunpack.c.l.b16 %v8326
        %v8590 = vpack.c.b16 %v8575, %v8574
        %v8591 = vpack.c.b16 %v8577, %v8576
        %v8592 = vpack.c.b16 %v8579, %v8578
        %v8593 = vpack.c.b16 %v8581, %v8580
        %v8594 = vpack.c.b16 %v8583, %v8582
        %v8595 = vpack.c.b16 %v8585, %v8584
        %v8596 = vpack.c.b16 %v8587, %v8586
        %v8597 = vpack.c.b16 %v8589, %v8588
        %8606 = vmatprep.subr.bf16.mxu0 0
        %8607 = vmatpush1.bf16.msra.mxu0 %v8597
        %8608 = vmatprep.subr.bf16.mxu0 0
        %8609 = vmatpush1.bf16.msra.mxu0 %v8596
        %8610 = vmatprep.subr.bf16.mxu0 0
        %8611 = vmatpush1.bf16.msra.mxu0 %v8595
        %8612 = vmatprep.subr.bf16.mxu0 0
        %8613 = vmatpush1.bf16.msra.mxu0 %v8594
        %8614 = vmatprep.subr.bf16.mxu0 0
        %8615 = vmatpush1.bf16.msra.mxu0 %v8593
        %8616 = vmatprep.subr.bf16.mxu0 0
        %8617 = vmatpush1.bf16.msra.mxu0 %v8592
        %8618 = vmatprep.subr.bf16.mxu0 0
        %8619 = vmatpush1.bf16.msra.mxu0 %v8591
        %8620 = vmatprep.subr.bf16.mxu0 0
        %8621 = vmatpush1.bf16.msra.mxu0 %v8590
        %8622 = vmatprep.subr.bf16.mxu0 0
        %8623 = vmatpush2.bf16.msra.mxu0 0
        %8624 = vmatprep.subr.bf16.mxu0 0
        %8625 = vmatpush2.bf16.msra.mxu0 0
        %8626 = vmatprep.subr.bf16.mxu0 0
        %8627 = vmatpush2.bf16.msra.mxu0 0
        %8628 = vmatprep.subr.bf16.mxu0 0
        %8629 = vmatpush2.bf16.msra.mxu0 0
        %8630 = vmatprep.subr.bf16.mxu0 0
        %8631 = vmatpush2.bf16.msra.mxu0 0
        %8632 = vmatprep.subr.bf16.mxu0 0
        %8633 = vmatpush2.bf16.msra.mxu0 0
        %8634 = vmatprep.subr.bf16.mxu0 0
        %8635 = vmatpush2.bf16.msra.mxu0 0
        %8636 = vmatprep.subr.bf16.mxu0 0
        %8637 = vmatpush2.bf16.msra.mxu0 0
        %8638 = vmatprep.mubr.bf16.mxu0 0
        %8639 = vmatmul.mubr.bf16.gmra.mxu0 %v8421
        %v8640 = vpop.f32.mrf.mxu0
        %v8641 = vadd.f32 0.0, %v8640
        %v8642 = vpop.f32.mrf.mxu0
        %v8643 = vpop.f32.mrf.mxu0
        %v8644 = vadd.f32 0.0, %v8643
        %v8645 = vpop.f32.mrf.mxu0
        %8646 = vmatprep.mubr.bf16.mxu0 0
        %8647 = vmatmul.mubr.bf16.gmra.mxu0 %v8429
        %v8648 = vpop.f32.mrf.mxu0
        %v8649 = vadd.f32 0.0, %v8648
        %v8650 = vpop.f32.mrf.mxu0
        %v8651 = vpop.f32.mrf.mxu0
        %v8652 = vadd.f32 0.0, %v8651
        %v8653 = vpop.f32.mrf.mxu0
        %8654 = vmatprep.mubr.bf16.mxu0 0
        %8655 = vmatmul.mubr.bf16.gmra.mxu0 %v8437
        %v8656 = vpop.f32.mrf.mxu0
        %v8657 = vadd.f32 0.0, %v8656
        %v8658 = vpop.f32.mrf.mxu0
        %v8659 = vpop.f32.mrf.mxu0
        %v8660 = vadd.f32 0.0, %v8659
        %v8661 = vpop.f32.mrf.mxu0
        %8662 = vmatprep.mubr.bf16.mxu0 0
        %8663 = vmatmul.mubr.bf16.gmra.mxu0 %v8445
        %v8664 = vpop.f32.mrf.mxu0
        %v8665 = vadd.f32 0.0, %v8664
        %v8666 = vpop.f32.mrf.mxu0
        %v8667 = vpop.f32.mrf.mxu0
        %v8668 = vadd.f32 0.0, %v8667
        %v8669 = vpop.f32.mrf.mxu0
        %8670 = vmatprep.mubr.bf16.mxu0 0
        %8671 = vmatmul.mubr.bf16.gmra.mxu0 %v8453
        %v8672 = vpop.f32.mrf.mxu0
        %v8673 = vadd.f32 0.0, %v8672
        %v8674 = vpop.f32.mrf.mxu0
        %v8675 = vpop.f32.mrf.mxu0
        %v8676 = vadd.f32 0.0, %v8675
        %v8677 = vpop.f32.mrf.mxu0
        %8678 = vmatprep.mubr.bf16.mxu0 0
        %8679 = vmatmul.mubr.bf16.gmra.mxu0 %v8461
        %v8680 = vpop.f32.mrf.mxu0
        %v8681 = vadd.f32 0.0, %v8680
        %v8682 = vpop.f32.mrf.mxu0
        %v8683 = vpop.f32.mrf.mxu0
        %v8684 = vadd.f32 0.0, %v8683
        %v8685 = vpop.f32.mrf.mxu0
        %8686 = vmatprep.mubr.bf16.mxu0 0
        %8687 = vmatmul.mubr.bf16.gmra.mxu0 %v8469
        %v8688 = vpop.f32.mrf.mxu0
        %v8689 = vadd.f32 0.0, %v8688
        %v8690 = vpop.f32.mrf.mxu0
        %v8691 = vpop.f32.mrf.mxu0
        %v8692 = vadd.f32 0.0, %v8691
        %v8693 = vpop.f32.mrf.mxu0
        %8694 = vmatprep.mubr.bf16.mxu0 0
        %8695 = vmatmul.mubr.bf16.gmra.mxu0 %v8477
        %v8696 = vpop.f32.mrf.mxu0
        %v8697 = vadd.f32 0.0, %v8696
        %v8698 = vpop.f32.mrf.mxu0
        %v8699 = vpop.f32.mrf.mxu0
        %v8700 = vadd.f32 0.0, %v8699
        %v8701 = vpop.f32.mrf.mxu0
        %8702 = vmatprep.mubr.bf16.mxu0 0
        %8703 = vmatmul.mubr.bf16.gmra.mxu0 %v8485
        %v8704 = vpop.f32.mrf.mxu0
        %v8705 = vadd.f32 0.0, %v8704
        %v8706 = vpop.f32.mrf.mxu0
        %v8707 = vpop.f32.mrf.mxu0
        %v8708 = vadd.f32 0.0, %v8707
        %v8709 = vpop.f32.mrf.mxu0
        %8710 = vmatprep.mubr.bf16.mxu0 0
        %8711 = vmatmul.mubr.bf16.gmra.mxu0 %v8493
        %v8712 = vpop.f32.mrf.mxu0
        %v8713 = vadd.f32 0.0, %v8712
        %v8714 = vpop.f32.mrf.mxu0
        %v8715 = vpop.f32.mrf.mxu0
        %v8716 = vadd.f32 0.0, %v8715
        %v8717 = vpop.f32.mrf.mxu0
        %8718 = vmatprep.mubr.bf16.mxu0 0
        %8719 = vmatmul.mubr.bf16.gmra.mxu0 %v8501
        %v8720 = vpop.f32.mrf.mxu0
        %v8721 = vadd.f32 0.0, %v8720
        %v8722 = vpop.f32.mrf.mxu0
        %v8723 = vpop.f32.mrf.mxu0
        %v8724 = vadd.f32 0.0, %v8723
        %v8725 = vpop.f32.mrf.mxu0
        %8726 = vmatprep.mubr.bf16.mxu0 0
        %8727 = vmatmul.mubr.bf16.gmra.mxu0 %v8509
        %v8728 = vpop.f32.mrf.mxu0
        %v8729 = vadd.f32 0.0, %v8728
        %v8730 = vpop.f32.mrf.mxu0
        %v8731 = vpop.f32.mrf.mxu0
        %v8732 = vadd.f32 0.0, %v8731
        %v8733 = vpop.f32.mrf.mxu0
        %8734 = vmatprep.mubr.bf16.mxu0 0
        %8735 = vmatmul.mubr.bf16.gmra.mxu0 %v8517
        %v8736 = vpop.f32.mrf.mxu0
        %v8737 = vadd.f32 0.0, %v8736
        %v8738 = vpop.f32.mrf.mxu0
        %v8739 = vpop.f32.mrf.mxu0
        %v8740 = vadd.f32 0.0, %v8739
        %v8741 = vpop.f32.mrf.mxu0
        %8742 = vmatprep.mubr.bf16.mxu0 0
        %8743 = vmatmul.mubr.bf16.gmra.mxu0 %v8525
        %v8744 = vpop.f32.mrf.mxu0
        %v8745 = vadd.f32 0.0, %v8744
        %v8746 = vpop.f32.mrf.mxu0
        %v8747 = vpop.f32.mrf.mxu0
        %v8748 = vadd.f32 0.0, %v8747
        %v8749 = vpop.f32.mrf.mxu0
        %8750 = vmatprep.mubr.bf16.mxu0 0
        %8751 = vmatmul.mubr.bf16.gmra.mxu0 %v8533
        %v8752 = vpop.f32.mrf.mxu0
        %v8753 = vadd.f32 0.0, %v8752
        %v8754 = vpop.f32.mrf.mxu0
        %v8755 = vpop.f32.mrf.mxu0
        %v8756 = vadd.f32 0.0, %v8755
        %v8757 = vpop.f32.mrf.mxu0
        %8758 = vmatprep.mubr.bf16.mxu0 0
        %8759 = vmatmul.mubr.bf16.gmra.mxu0 %v8541
        %v8760 = vpop.f32.mrf.mxu0
        %v8761 = vadd.f32 0.0, %v8760
        %v8762 = vpop.f32.mrf.mxu0
        %v8763 = vpop.f32.mrf.mxu0
        %v8764 = vadd.f32 0.0, %v8763
        %v8765 = vpop.f32.mrf.mxu0
        %8766 = vdwg.mxu0
        %v8767 = vadd.f32 %v8245, %v8641
        %v8768 = vadd.f32 %v8246, %v8644
        %v8769 = vadd.f32 %v8247, %v8649
        %v8770 = vadd.f32 %v8248, %v8652
        %v8771 = vadd.f32 %v8249, %v8657
        %v8772 = vadd.f32 %v8250, %v8660
        %v8773 = vadd.f32 %v8251, %v8665
        %v8774 = vadd.f32 %v8252, %v8668
        %v8775 = vadd.f32 %v8253, %v8673
        %v8776 = vadd.f32 %v8254, %v8676
        %v8777 = vadd.f32 %v8255, %v8681
        %v8778 = vadd.f32 %v8256, %v8684
        %v8779 = vadd.f32 %v8257, %v8689
        %v8780 = vadd.f32 %v8258, %v8692
        %v8781 = vadd.f32 %v8259, %v8697
        %v8782 = vadd.f32 %v8260, %v8700
        %v8783 = vadd.f32 %v8261, %v8705
        %v8784 = vadd.f32 %v8262, %v8708
        %v8785 = vadd.f32 %v8263, %v8713
        %v8786 = vadd.f32 %v8264, %v8716
        %v8787 = vadd.f32 %v8265, %v8721
        %v8788 = vadd.f32 %v8266, %v8724
        %v8789 = vadd.f32 %v8267, %v8729
        %v8790 = vadd.f32 %v8268, %v8732
        %v8791 = vadd.f32 %v8269, %v8737
        %v8792 = vadd.f32 %v8270, %v8740
        %v8793 = vadd.f32 %v8271, %v8745
        %v8794 = vadd.f32 %v8272, %v8748
        %v8795 = vadd.f32 %v8273, %v8753
        %v8796 = vadd.f32 %v8274, %v8756
        %v8797 = vadd.f32 %v8275, %v8761
        %v8798 = vadd.f32 %v8276, %v8764
        %v8799 = vld [vmem:[#allocation3 + $0x10] sm:$0xe]
        %s8800 = scalar_lea.vmem [#allocation4], 512
        %v8801 = vld [vmem:[%s8800] sm:$0xf]
        %v8802 = vld [vmem:[%s8800 + $0x4] sm:$0xf]
        %v8803 = vld [vmem:[%s8800 + $0x8] sm:$0xf]
        %v8804 = vld [vmem:[%s8800 + $0xc] sm:$0xf]
        %v8805 = vld [vmem:[%s8800 + $0x10] sm:$0xf]
        %v8806 = vld [vmem:[%s8800 + $0x14] sm:$0xf]
        %v8807 = vld [vmem:[%s8800 + $0x18] sm:$0xf]
        %v8808 = vld [vmem:[%s8800 + $0x1c] sm:$0xf]
        %v8809 = vld [vmem:[%s8800 + $0x20] sm:$0xf]
        %v8810 = vld [vmem:[%s8800 + $0x24] sm:$0xf]
        %v8811 = vld [vmem:[%s8800 + $0x28] sm:$0xf]
        %v8812 = vld [vmem:[%s8800 + $0x2c] sm:$0xf]
        %v8813 = vld [vmem:[%s8800 + $0x30] sm:$0xf]
        %v8814 = vld [vmem:[%s8800 + $0x34] sm:$0xf]
        %v8815 = vld [vmem:[%s8800 + $0x38] sm:$0xf]
        %v8816 = vld [vmem:[%s8800 + $0x3c] sm:$0xf]
        %v8818 = vunpack.c.l.b16 %v8799
        %v8819 = vpack.c.b16 %v8361, %v8818
        %v8820 = vrot.slane %v8819, 1
        %v8821 = vrot.slane %v8394, 1
        %v8822 = vsel %vm1795, %v8820, %v8821
        %v8823 = vrot.slane %v8395, 1
        %v8824 = vsel %vm1795, %v8821, %v8823
        %v8825 = vrot.slane %v8396, 1
        %v8826 = vsel %vm1795, %v8823, %v8825
        %v8827 = vrot.slane %v8397, 1
        %v8828 = vsel %vm1795, %v8825, %v8827
        %v8829 = vrot.slane %v8398, 1
        %v8830 = vsel %vm1795, %v8827, %v8829
        %v8831 = vrot.slane %v8399, 1
        %v8832 = vsel %vm1795, %v8829, %v8831
        %v8833 = vrot.slane %v8400, 1
        %v8834 = vsel %vm1795, %v8831, %v8833
        %v8835 = vrot.slane %v8401, 1
        %v8836 = vsel %vm1795, %v8833, %v8835
        %v8837 = vrot.slane %v8402, 1
        %v8838 = vsel %vm1795, %v8835, %v8837
        %v8839 = vrot.slane %v8403, 1
        %v8840 = vsel %vm1795, %v8837, %v8839
        %v8841 = vrot.slane %v8404, 1
        %v8842 = vsel %vm1795, %v8839, %v8841
        %v8843 = vrot.slane %v8405, 1
        %v8844 = vsel %vm1795, %v8841, %v8843
        %v8845 = vrot.slane %v8406, 1
        %v8846 = vsel %vm1795, %v8843, %v8845
        %v8847 = vrot.slane %v8407, 1
        %v8848 = vsel %vm1795, %v8845, %v8847
        %v8849 = vrot.slane %v8408, 1
        %v8850 = vsel %vm1795, %v8847, %v8849
        %v8851 = vrot.slane %v8409, 1
        %v8852 = vsel %vm1795, %v8849, %v8851
        %v8885 = vunpack.c.l.b16 %v8801
        %v8886 = vunpack.c.l.b16 %v8802
        %v8887 = vunpack.c.l.b16 %v8803
        %v8888 = vunpack.c.l.b16 %v8804
        %v8889 = vunpack.c.l.b16 %v8805
        %v8890 = vunpack.c.l.b16 %v8806
        %v8891 = vunpack.c.l.b16 %v8807
        %v8892 = vunpack.c.l.b16 %v8808
        %v8893 = vunpack.c.l.b16 %v8809
        %v8894 = vunpack.c.l.b16 %v8810
        %v8895 = vunpack.c.l.b16 %v8811
        %v8896 = vunpack.c.l.b16 %v8812
        %v8897 = vunpack.c.l.b16 %v8813
        %v8898 = vunpack.c.l.b16 %v8814
        %v8899 = vunpack.c.l.b16 %v8815
        %v8900 = vunpack.c.l.b16 %v8816
        %v8901 = vpack.c.b16 %v8886, %v8885
        %v8902 = vpack.c.b16 %v8888, %v8887
        %v8903 = vpack.c.b16 %v8890, %v8889
        %v8904 = vpack.c.b16 %v8892, %v8891
        %v8905 = vpack.c.b16 %v8894, %v8893
        %v8906 = vpack.c.b16 %v8896, %v8895
        %v8907 = vpack.c.b16 %v8898, %v8897
        %v8908 = vpack.c.b16 %v8900, %v8899
        %8917 = vmatprep.subr.bf16.mxu0 0
        %8918 = vmatpush1.bf16.msra.mxu0 %v8908
        %8919 = vmatprep.subr.bf16.mxu0 0
        %8920 = vmatpush1.bf16.msra.mxu0 %v8907
        %8921 = vmatprep.subr.bf16.mxu0 0
        %8922 = vmatpush1.bf16.msra.mxu0 %v8906
        %8923 = vmatprep.subr.bf16.mxu0 0
        %8924 = vmatpush1.bf16.msra.mxu0 %v8905
        %8925 = vmatprep.subr.bf16.mxu0 0
        %8926 = vmatpush1.bf16.msra.mxu0 %v8904
        %8927 = vmatprep.subr.bf16.mxu0 0
        %8928 = vmatpush1.bf16.msra.mxu0 %v8903
        %8929 = vmatprep.subr.bf16.mxu0 0
        %8930 = vmatpush1.bf16.msra.mxu0 %v8902
        %8931 = vmatprep.subr.bf16.mxu0 0
        %8932 = vmatpush1.bf16.msra.mxu0 %v8901
        %8933 = vmatprep.subr.bf16.mxu0 0
        %8934 = vmatpush2.bf16.msra.mxu0 0
        %8935 = vmatprep.subr.bf16.mxu0 0
        %8936 = vmatpush2.bf16.msra.mxu0 0
        %8937 = vmatprep.subr.bf16.mxu0 0
        %8938 = vmatpush2.bf16.msra.mxu0 0
        %8939 = vmatprep.subr.bf16.mxu0 0
        %8940 = vmatpush2.bf16.msra.mxu0 0
        %8941 = vmatprep.subr.bf16.mxu0 0
        %8942 = vmatpush2.bf16.msra.mxu0 0
        %8943 = vmatprep.subr.bf16.mxu0 0
        %8944 = vmatpush2.bf16.msra.mxu0 0
        %8945 = vmatprep.subr.bf16.mxu0 0
        %8946 = vmatpush2.bf16.msra.mxu0 0
        %8947 = vmatprep.subr.bf16.mxu0 0
        %8948 = vmatpush2.bf16.msra.mxu0 0
        %8949 = vmatprep.mubr.bf16.mxu0 0
        %8950 = vmatmul.mubr.bf16.gmra.mxu0 %v8822
        %v8951 = vpop.f32.mrf.mxu0
        %v8952 = vadd.f32 0.0, %v8951
        %v8953 = vpop.f32.mrf.mxu0
        %v8954 = vpop.f32.mrf.mxu0
        %v8955 = vadd.f32 0.0, %v8954
        %v8956 = vpop.f32.mrf.mxu0
        %8957 = vmatprep.mubr.bf16.mxu0 0
        %8958 = vmatmul.mubr.bf16.gmra.mxu0 %v8824
        %v8959 = vpop.f32.mrf.mxu0
        %v8960 = vadd.f32 0.0, %v8959
        %v8961 = vpop.f32.mrf.mxu0
        %v8962 = vpop.f32.mrf.mxu0
        %v8963 = vadd.f32 0.0, %v8962
        %v8964 = vpop.f32.mrf.mxu0
        %8965 = vmatprep.mubr.bf16.mxu0 0
        %8966 = vmatmul.mubr.bf16.gmra.mxu0 %v8826
        %v8967 = vpop.f32.mrf.mxu0
        %v8968 = vadd.f32 0.0, %v8967
        %v8969 = vpop.f32.mrf.mxu0
        %v8970 = vpop.f32.mrf.mxu0
        %v8971 = vadd.f32 0.0, %v8970
        %v8972 = vpop.f32.mrf.mxu0
        %8973 = vmatprep.mubr.bf16.mxu0 0
        %8974 = vmatmul.mubr.bf16.gmra.mxu0 %v8828
        %v8975 = vpop.f32.mrf.mxu0
        %v8976 = vadd.f32 0.0, %v8975
        %v8977 = vpop.f32.mrf.mxu0
        %v8978 = vpop.f32.mrf.mxu0
        %v8979 = vadd.f32 0.0, %v8978
        %v8980 = vpop.f32.mrf.mxu0
        %8981 = vmatprep.mubr.bf16.mxu0 0
        %8982 = vmatmul.mubr.bf16.gmra.mxu0 %v8830
        %v8983 = vpop.f32.mrf.mxu0
        %v8984 = vadd.f32 0.0, %v8983
        %v8985 = vpop.f32.mrf.mxu0
        %v8986 = vpop.f32.mrf.mxu0
        %v8987 = vadd.f32 0.0, %v8986
        %v8988 = vpop.f32.mrf.mxu0
        %8989 = vmatprep.mubr.bf16.mxu0 0
        %8990 = vmatmul.mubr.bf16.gmra.mxu0 %v8832
        %v8991 = vpop.f32.mrf.mxu0
        %v8992 = vadd.f32 0.0, %v8991
        %v8993 = vpop.f32.mrf.mxu0
        %v8994 = vpop.f32.mrf.mxu0
        %v8995 = vadd.f32 0.0, %v8994
        %v8996 = vpop.f32.mrf.mxu0
        %8997 = vmatprep.mubr.bf16.mxu0 0
        %8998 = vmatmul.mubr.bf16.gmra.mxu0 %v8834
        %v8999 = vpop.f32.mrf.mxu0
        %v9000 = vadd.f32 0.0, %v8999
        %v9001 = vpop.f32.mrf.mxu0
        %v9002 = vpop.f32.mrf.mxu0
        %v9003 = vadd.f32 0.0, %v9002
        %v9004 = vpop.f32.mrf.mxu0
        %9005 = vmatprep.mubr.bf16.mxu0 0
        %9006 = vmatmul.mubr.bf16.gmra.mxu0 %v8836
        %v9007 = vpop.f32.mrf.mxu0
        %v9008 = vadd.f32 0.0, %v9007
        %v9009 = vpop.f32.mrf.mxu0
        %v9010 = vpop.f32.mrf.mxu0
        %v9011 = vadd.f32 0.0, %v9010
        %v9012 = vpop.f32.mrf.mxu0
        %9013 = vmatprep.mubr.bf16.mxu0 0
        %9014 = vmatmul.mubr.bf16.gmra.mxu0 %v8838
        %v9015 = vpop.f32.mrf.mxu0
        %v9016 = vadd.f32 0.0, %v9015
        %v9017 = vpop.f32.mrf.mxu0
        %v9018 = vpop.f32.mrf.mxu0
        %v9019 = vadd.f32 0.0, %v9018
        %v9020 = vpop.f32.mrf.mxu0
        %9021 = vmatprep.mubr.bf16.mxu0 0
        %9022 = vmatmul.mubr.bf16.gmra.mxu0 %v8840
        %v9023 = vpop.f32.mrf.mxu0
        %v9024 = vadd.f32 0.0, %v9023
        %v9025 = vpop.f32.mrf.mxu0
        %v9026 = vpop.f32.mrf.mxu0
        %v9027 = vadd.f32 0.0, %v9026
        %v9028 = vpop.f32.mrf.mxu0
        %9029 = vmatprep.mubr.bf16.mxu0 0
        %9030 = vmatmul.mubr.bf16.gmra.mxu0 %v8842
        %v9031 = vpop.f32.mrf.mxu0
        %v9032 = vadd.f32 0.0, %v9031
        %v9033 = vpop.f32.mrf.mxu0
        %v9034 = vpop.f32.mrf.mxu0
        %v9035 = vadd.f32 0.0, %v9034
        %v9036 = vpop.f32.mrf.mxu0
        %9037 = vmatprep.mubr.bf16.mxu0 0
        %9038 = vmatmul.mubr.bf16.gmra.mxu0 %v8844
        %v9039 = vpop.f32.mrf.mxu0
        %v9040 = vadd.f32 0.0, %v9039
        %v9041 = vpop.f32.mrf.mxu0
        %v9042 = vpop.f32.mrf.mxu0
        %v9043 = vadd.f32 0.0, %v9042
        %v9044 = vpop.f32.mrf.mxu0
        %9045 = vmatprep.mubr.bf16.mxu0 0
        %9046 = vmatmul.mubr.bf16.gmra.mxu0 %v8846
        %v9047 = vpop.f32.mrf.mxu0
        %v9048 = vadd.f32 0.0, %v9047
        %v9049 = vpop.f32.mrf.mxu0
        %v9050 = vpop.f32.mrf.mxu0
        %v9051 = vadd.f32 0.0, %v9050
        %v9052 = vpop.f32.mrf.mxu0
        %9053 = vmatprep.mubr.bf16.mxu0 0
        %9054 = vmatmul.mubr.bf16.gmra.mxu0 %v8848
        %v9055 = vpop.f32.mrf.mxu0
        %v9056 = vadd.f32 0.0, %v9055
        %v9057 = vpop.f32.mrf.mxu0
        %v9058 = vpop.f32.mrf.mxu0
        %v9059 = vadd.f32 0.0, %v9058
        %v9060 = vpop.f32.mrf.mxu0
        %9061 = vmatprep.mubr.bf16.mxu0 0
        %9062 = vmatmul.mubr.bf16.gmra.mxu0 %v8850
        %v9063 = vpop.f32.mrf.mxu0
        %v9064 = vadd.f32 0.0, %v9063
        %v9065 = vpop.f32.mrf.mxu0
        %v9066 = vpop.f32.mrf.mxu0
        %v9067 = vadd.f32 0.0, %v9066
        %v9068 = vpop.f32.mrf.mxu0
        %9069 = vmatprep.mubr.bf16.mxu0 0
        %9070 = vmatmul.mubr.bf16.gmra.mxu0 %v8852
        %v9071 = vpop.f32.mrf.mxu0
        %v9072 = vadd.f32 0.0, %v9071
        %v9073 = vpop.f32.mrf.mxu0
        %v9074 = vpop.f32.mrf.mxu0
        %v9075 = vadd.f32 0.0, %v9074
        %v9076 = vpop.f32.mrf.mxu0
        %9077 = vdwg.mxu0
        %v9078 = vsel %vm2094, %v8952, 0.0
        %v9079 = vsel %vm2095, %v8955, 0.0
        %v9080 = vsel %vm2096, %v8960, 0.0
        %v9081 = vsel %vm2097, %v8963, 0.0
        %v9082 = vsel %vm2098, %v8968, 0.0
        %v9083 = vsel %vm2099, %v8971, 0.0
        %v9084 = vsel %vm2100, %v8976, 0.0
        %v9085 = vsel %vm2101, %v8979, 0.0
        %v9086 = vsel %vm2102, %v8984, 0.0
        %v9087 = vsel %vm2103, %v8987, 0.0
        %v9088 = vsel %vm2104, %v8992, 0.0
        %v9089 = vsel %vm2105, %v8995, 0.0
        %v9090 = vsel %vm2106, %v9000, 0.0
        %v9091 = vsel %vm2107, %v9003, 0.0
        %v9092 = vsel %vm2108, %v9008, 0.0
        %v9093 = vsel %vm2109, %v9011, 0.0
        %v9094 = vsel %vm2110, %v9016, 0.0
        %v9095 = vsel %vm2111, %v9019, 0.0
        %v9096 = vsel %vm2112, %v9024, 0.0
        %v9097 = vsel %vm2113, %v9027, 0.0
        %v9098 = vsel %vm2114, %v9032, 0.0
        %v9099 = vsel %vm2115, %v9035, 0.0
        %v9100 = vsel %vm2116, %v9040, 0.0
        %v9101 = vsel %vm2117, %v9043, 0.0
        %v9102 = vsel %vm2118, %v9048, 0.0
        %v9103 = vsel %vm2119, %v9051, 0.0
        %v9104 = vsel %vm2120, %v9056, 0.0
        %v9105 = vsel %vm2121, %v9059, 0.0
        %v9106 = vsel %vm2122, %v9064, 0.0
        %v9107 = vsel %vm2123, %v9067, 0.0
        %v9108 = vsel %vm2124, %v9072, 0.0
        %v9109 = vsel %vm2125, %v9075, 0.0
        %v9110 = vadd.f32 %v8767, %v9078
        %v9111 = vadd.f32 %v8768, %v9079
        %v9112 = vadd.f32 %v8769, %v9080
        %v9113 = vadd.f32 %v8770, %v9081
        %v9114 = vadd.f32 %v8771, %v9082
        %v9115 = vadd.f32 %v8772, %v9083
        %v9116 = vadd.f32 %v8773, %v9084
        %v9117 = vadd.f32 %v8774, %v9085
        %v9118 = vadd.f32 %v8775, %v9086
        %v9119 = vadd.f32 %v8776, %v9087
        %v9120 = vadd.f32 %v8777, %v9088
        %v9121 = vadd.f32 %v8778, %v9089
        %v9122 = vadd.f32 %v8779, %v9090
        %v9123 = vadd.f32 %v8780, %v9091
        %v9124 = vadd.f32 %v8781, %v9092
        %v9125 = vadd.f32 %v8782, %v9093
        %v9126 = vadd.f32 %v8783, %v9094
        %v9127 = vadd.f32 %v8784, %v9095
        %v9128 = vadd.f32 %v8785, %v9096
        %v9129 = vadd.f32 %v8786, %v9097
        %v9130 = vadd.f32 %v8787, %v9098
        %v9131 = vadd.f32 %v8788, %v9099
        %v9132 = vadd.f32 %v8789, %v9100
        %v9133 = vadd.f32 %v8790, %v9101
        %v9134 = vadd.f32 %v8791, %v9102
        %v9135 = vadd.f32 %v8792, %v9103
        %v9136 = vadd.f32 %v8793, %v9104
        %v9137 = vadd.f32 %v8794, %v9105
        %v9138 = vadd.f32 %v8795, %v9106
        %v9139 = vadd.f32 %v8796, %v9107
        %v9140 = vadd.f32 %v8797, %v9108
        %v9141 = vadd.f32 %v8798, %v9109
        %v9142 = vld [vmem:[%s4] sm:$0x1]
        %v9144 = vlaneseq
        %v9145 = vshrl.u32 %v9144, 7
        %v9146 = vsub.s32 0, %v9145
        %v9147 = vrot.slane %v9142, %v9146
        %v9149 = vadd.f32 %v9110, %v9147
        %v9150 = vadd.f32 %v9111, %v9147
        %v9151 = vadd.f32 %v9112, %v9147
        %v9152 = vadd.f32 %v9113, %v9147
        %v9153 = vadd.f32 %v9114, %v9147
        %v9154 = vadd.f32 %v9115, %v9147
        %v9155 = vadd.f32 %v9116, %v9147
        %v9156 = vadd.f32 %v9117, %v9147
        %v9157 = vadd.f32 %v9118, %v9147
        %v9158 = vadd.f32 %v9119, %v9147
        %v9159 = vadd.f32 %v9120, %v9147
        %v9160 = vadd.f32 %v9121, %v9147
        %v9161 = vadd.f32 %v9122, %v9147
        %v9162 = vadd.f32 %v9123, %v9147
        %v9163 = vadd.f32 %v9124, %v9147
        %v9164 = vadd.f32 %v9125, %v9147
        %v9165 = vadd.f32 %v9126, %v9147
        %v9166 = vadd.f32 %v9127, %v9147
        %v9167 = vadd.f32 %v9128, %v9147
        %v9168 = vadd.f32 %v9129, %v9147
        %v9169 = vadd.f32 %v9130, %v9147
        %v9170 = vadd.f32 %v9131, %v9147
        %v9171 = vadd.f32 %v9132, %v9147
        %v9172 = vadd.f32 %v9133, %v9147
        %v9173 = vadd.f32 %v9134, %v9147
        %v9174 = vadd.f32 %v9135, %v9147
        %v9175 = vadd.f32 %v9136, %v9147
        %v9176 = vadd.f32 %v9137, %v9147
        %v9177 = vadd.f32 %v9138, %v9147
        %v9178 = vadd.f32 %v9139, %v9147
        %v9179 = vadd.f32 %v9140, %v9147
        %v9180 = vadd.f32 %v9141, %v9147
        %v9181 = vmax.f32 %v9149, 0.0
        %v9182 = vmax.f32 %v9150, 0.0
        %v9183 = vmax.f32 %v9151, 0.0
        %v9184 = vmax.f32 %v9152, 0.0
        %v9185 = vmax.f32 %v9153, 0.0
        %v9186 = vmax.f32 %v9154, 0.0
        %v9187 = vmax.f32 %v9155, 0.0
        %v9188 = vmax.f32 %v9156, 0.0
        %v9189 = vmax.f32 %v9157, 0.0
        %v9190 = vmax.f32 %v9158, 0.0
        %v9191 = vmax.f32 %v9159, 0.0
        %v9192 = vmax.f32 %v9160, 0.0
        %v9193 = vmax.f32 %v9161, 0.0
        %v9194 = vmax.f32 %v9162, 0.0
        %v9195 = vmax.f32 %v9163, 0.0
        %v9196 = vmax.f32 %v9164, 0.0
        %v9197 = vmax.f32 %v9165, 0.0
        %v9198 = vmax.f32 %v9166, 0.0
        %v9199 = vmax.f32 %v9167, 0.0
        %v9200 = vmax.f32 %v9168, 0.0
        %v9201 = vmax.f32 %v9169, 0.0
        %v9202 = vmax.f32 %v9170, 0.0
        %v9203 = vmax.f32 %v9171, 0.0
        %v9204 = vmax.f32 %v9172, 0.0
        %v9205 = vmax.f32 %v9173, 0.0
        %v9206 = vmax.f32 %v9174, 0.0
        %v9207 = vmax.f32 %v9175, 0.0
        %v9208 = vmax.f32 %v9176, 0.0
        %v9209 = vmax.f32 %v9177, 0.0
        %v9210 = vmax.f32 %v9178, 0.0
        %v9211 = vmax.f32 %v9179, 0.0
        %v9212 = vmax.f32 %v9180, 0.0
        %v9213 = vpack.c.bf16 %v9182, %v9181
        %v9214 = vpack.c.bf16 %v9184, %v9183
        %v9215 = vpack.c.bf16 %v9186, %v9185
        %v9216 = vpack.c.bf16 %v9188, %v9187
        %v9217 = vpack.c.bf16 %v9190, %v9189
        %v9218 = vpack.c.bf16 %v9192, %v9191
        %v9219 = vpack.c.bf16 %v9194, %v9193
        %v9220 = vpack.c.bf16 %v9196, %v9195
        %v9221 = vpack.c.bf16 %v9198, %v9197
        %v9222 = vpack.c.bf16 %v9200, %v9199
        %v9223 = vpack.c.bf16 %v9202, %v9201
        %v9224 = vpack.c.bf16 %v9204, %v9203
        %v9225 = vpack.c.bf16 %v9206, %v9205
        %v9226 = vpack.c.bf16 %v9208, %v9207
        %v9227 = vpack.c.bf16 %v9210, %v9209
        %v9228 = vpack.c.bf16 %v9212, %v9211
        %v9245 = vunpack.c.l.b16 %v9213
        %v9246 = vunpack.c.h.b16 %v9213
        %v9247 = vunpack.c.l.b16 %v9214
        %v9248 = vunpack.c.h.b16 %v9214
        %v9249 = vunpack.c.l.b16 %v9215
        %v9250 = vunpack.c.h.b16 %v9215
        %v9251 = vunpack.c.l.b16 %v9216
        %v9252 = vunpack.c.h.b16 %v9216
        %v9253 = vunpack.c.l.b16 %v9217
        %v9254 = vunpack.c.h.b16 %v9217
        %v9255 = vunpack.c.l.b16 %v9218
        %v9256 = vunpack.c.h.b16 %v9218
        %v9257 = vunpack.c.l.b16 %v9219
        %v9258 = vunpack.c.h.b16 %v9219
        %v9259 = vunpack.c.l.b16 %v9220
        %v9260 = vunpack.c.h.b16 %v9220
        %v9261 = vunpack.c.l.b16 %v9221
        %v9262 = vunpack.c.h.b16 %v9221
        %v9263 = vunpack.c.l.b16 %v9222
        %v9264 = vunpack.c.h.b16 %v9222
        %v9265 = vunpack.c.l.b16 %v9223
        %v9266 = vunpack.c.h.b16 %v9223
        %v9267 = vunpack.c.l.b16 %v9224
        %v9268 = vunpack.c.h.b16 %v9224
        %v9269 = vunpack.c.l.b16 %v9225
        %v9270 = vunpack.c.h.b16 %v9225
        %v9271 = vunpack.c.l.b16 %v9226
        %v9272 = vunpack.c.h.b16 %v9226
        %v9273 = vunpack.c.l.b16 %v9227
        %v9274 = vunpack.c.h.b16 %v9227
        %v9275 = vunpack.c.l.b16 %v9228
        %v9276 = vunpack.c.h.b16 %v9228
        %v9277 = vpack.c.b16 %v9245, %v9245
        %v9278 = vpack.c.b16 %v9246, %v9246
        %v9279 = vpack.c.b16 %v9247, %v9247
        %v9280 = vpack.c.b16 %v9248, %v9248
        %v9281 = vpack.c.b16 %v9249, %v9249
        %v9282 = vpack.c.b16 %v9250, %v9250
        %v9283 = vpack.c.b16 %v9251, %v9251
        %v9284 = vpack.c.b16 %v9252, %v9252
        %v9285 = vpack.c.b16 %v9253, %v9253
        %v9286 = vpack.c.b16 %v9254, %v9254
        %v9287 = vpack.c.b16 %v9255, %v9255
        %v9288 = vpack.c.b16 %v9256, %v9256
        %v9289 = vpack.c.b16 %v9257, %v9257
        %v9290 = vpack.c.b16 %v9258, %v9258
        %v9291 = vpack.c.b16 %v9259, %v9259
        %v9292 = vpack.c.b16 %v9260, %v9260
        %v9293 = vpack.c.b16 %v9261, %v9261
        %v9294 = vpack.c.b16 %v9262, %v9262
        %v9295 = vpack.c.b16 %v9263, %v9263
        %v9296 = vpack.c.b16 %v9264, %v9264
        %v9297 = vpack.c.b16 %v9265, %v9265
        %v9298 = vpack.c.b16 %v9266, %v9266
        %v9299 = vpack.c.b16 %v9267, %v9267
        %v9300 = vpack.c.b16 %v9268, %v9268
        %v9301 = vpack.c.b16 %v9269, %v9269
        %v9302 = vpack.c.b16 %v9270, %v9270
        %v9303 = vpack.c.b16 %v9271, %v9271
        %v9304 = vpack.c.b16 %v9272, %v9272
        %v9305 = vpack.c.b16 %v9273, %v9273
        %v9306 = vpack.c.b16 %v9274, %v9274
        %v9307 = vpack.c.b16 %v9275, %v9275
        %v9308 = vpack.c.b16 %v9276, %v9276
        %9341 = vst [vmem:[%s232] sm:$0xf] %v9277
        %9342 = vst [vmem:[%s232 + $0x4] sm:$0xf] %v9278
        %9343 = vst [vmem:[%s232 + $0x8] sm:$0xf] %v9279
        %9344 = vst [vmem:[%s232 + $0xc] sm:$0xf] %v9280
        %9345 = vst [vmem:[%s232 + $0x10] sm:$0xf] %v9281
        %9346 = vst [vmem:[%s232 + $0x14] sm:$0xf] %v9282
        %9347 = vst [vmem:[%s232 + $0x18] sm:$0xf] %v9283
        %9348 = vst [vmem:[%s232 + $0x1c] sm:$0xf] %v9284
        %9349 = vst [vmem:[%s232 + $0x20] sm:$0xf] %v9285
        %9350 = vst [vmem:[%s232 + $0x24] sm:$0xf] %v9286
        %9351 = vst [vmem:[%s232 + $0x28] sm:$0xf] %v9287
        %9352 = vst [vmem:[%s232 + $0x2c] sm:$0xf] %v9288
        %9353 = vst [vmem:[%s232 + $0x30] sm:$0xf] %v9289
        %9354 = vst [vmem:[%s232 + $0x34] sm:$0xf] %v9290
        %9355 = vst [vmem:[%s232 + $0x38] sm:$0xf] %v9291
        %9356 = vst [vmem:[%s232 + $0x3c] sm:$0xf] %v9292
        %9357 = vst [vmem:[%s232 + $0x40] sm:$0xf] %v9293
        %9358 = vst [vmem:[%s232 + $0x44] sm:$0xf] %v9294
        %9359 = vst [vmem:[%s232 + $0x48] sm:$0xf] %v9295
        %9360 = vst [vmem:[%s232 + $0x4c] sm:$0xf] %v9296
        %9361 = vst [vmem:[%s232 + $0x50] sm:$0xf] %v9297
        %9362 = vst [vmem:[%s232 + $0x54] sm:$0xf] %v9298
        %9363 = vst [vmem:[%s232 + $0x58] sm:$0xf] %v9299
        %9364 = vst [vmem:[%s232 + $0x5c] sm:$0xf] %v9300
        %9365 = vst [vmem:[%s232 + $0x60] sm:$0xf] %v9301
        %9366 = vst [vmem:[%s232 + $0x64] sm:$0xf] %v9302
        %9367 = vst [vmem:[%s232 + $0x68] sm:$0xf] %v9303
        %9368 = vst [vmem:[%s232 + $0x6c] sm:$0xf] %v9304
        %9369 = vst [vmem:[%s232 + $0x70] sm:$0xf] %v9305
        %9370 = vst [vmem:[%s232 + $0x74] sm:$0xf] %v9306
        %9371 = vst [vmem:[%s232 + $0x78] sm:$0xf] %v9307
        %9372 = vst [vmem:[%s232 + $0x7c] sm:$0xf] %v9308
        %s9373 = sand.u32 %s138, 1
        %s9374 = scalar_lea.sflag [#allocation6], %s9373
        %s9375 = sand.u32 %s138, 1
        %s9376 = smul.addr %s9375, 128
        %s9377 = scalar_lea.vmem [#allocation7], %s9376
        // Predicated region
        $region45: #{tpu_custom_call.1} parent=39 // pred_check
          %p9378 = pneg %p148
        $region46: #{tpu_custom_call.1} parent=39 // pred_check_branch
          %9380 = sbr.rel (%p9378) target = $region48
        $region47: #{tpu_custom_call.1} parent=39 // pred_region
          %s9382 = ssub.s32 2048, 2048
          %9383 = vsyncadd %s9374, %s9382
          %s9384 = smul.addr %s20, 32
          %s9385 = smul.addr %s9384, 64
          %s9386 = scalar_lea.hbm %s5, %s9385
          %s9387 = sshll.u32 %s9377, 4
          %s9388 = int_to_ptr.vmem [resolvable:$true] %s9387
          %9393 = dma.vmem_to_hbm [thread:$0]  %s9388, 2048, %s9386, %s9374, 64, 64, 4
        $region48: #{tpu_custom_call.1} parent=39 // pred_fallthru
          _
      $region40: #{tpu_custom_call.1} parent=5 // pred_fallthru
        _
      %p9394 = scmp.le.s32.totalorder 2, %s15
      // Predicated region
      $region49: #{tpu_custom_call.1} parent=5 // pred_check
        %p9395 = pneg %p9394
      $region50: #{tpu_custom_call.1} parent=5 // pred_check_branch
        %9397 = sbr.rel (%p9395) target = $region52
      $region51: #{tpu_custom_call.1} parent=5 // pred_region
        %s9398 = ssub.s32 %s15, 2
        // Predicated region
        $region53: #{tpu_custom_call.1} parent=51 // pred_check
          %p9399 = pneg %p154
        $region54: #{tpu_custom_call.1} parent=51 // pred_check_branch
          %9401 = sbr.rel (%p9399) target = $region56
        $region55: #{tpu_custom_call.1} parent=51 // pred_region
          %s9402 = sand.u32 %s139, 1
          %s9403 = scalar_lea.sflag [#allocation6], %s9402
          %s9404 = sand.u32 %s139, 1
          %s9405 = smul.addr %s9404, 128
          %s9406 = scalar_lea.vmem [#allocation7], %s9405
          %9407 = dma.done %s9403, 2048
        $region56: #{tpu_custom_call.1} parent=51 // pred_fallthru
          _
      $region52: #{tpu_custom_call.1} parent=5 // pred_fallthru
        _
    $region6: #{tpu_custom_call.1} parent=1 // loop_footer
      %s19 = sadd.s32 1, %s15
    $region7: #{tpu_custom_call.1} parent=1 // loop_footer_branch
      %14 = sbr.rel target = $region3
    $region8: #{tpu_custom_call.1} parent=1 // loop_exit
      _
    %9408 = vsyncpa [#allocation5], 1
    %s9409 = scalar_lea.sflag [#allocation5], 1
    %9410 = vsyncpa %s9409, 1
    %9411 = vsyncpa [#allocation6], 1
    %s9412 = scalar_lea.sflag [#allocation6], 1
    %9413 = vsyncpa %s9412, 1

</llo_original>
